<compile_context>
chip_gen: v6e
topology: v6e:2x2x1
jax: 0.10.0
libtpu: 0.0.40
codegen_flags: <defaults>
</compile_context>

<pallas_src>
import functools

import jax
import jax.numpy as jnp
import numpy as np
from jax.experimental import pallas as pl
from jax.experimental.pallas import tpu as pltpu


# ---------------------------------------------------------------------------
# Fused forward kernel (one batch tile per grid step)
# ---------------------------------------------------------------------------
def _cnn_mnist_kernel(xs_ref, m1_ref, bj1_ref, m2_ref, bj2_ref,
                      wfc1_ref, bfc1_ref, wfc2_ref, bfc2_ref,
                      x0_ref, logits_ref):
    tb = logits_ref.shape[0]
    wp1 = xs_ref.shape[-1]

    bj1 = bj1_ref[...]      # (1, 128): tile(b1, 12) padded to 128 lanes
    bj2 = bj2_ref[...]      # (1, 128): tile(b2, 4)  padded to 128 lanes

    # ---- conv1 (Cx28x28 -> 10x24x24) + maxpool(2) + relu, all in VMEM --------
    # l1[q][n*6 + t, :] = image row (q + 4t) of sample n, q in 0..7, t in 0..5.
    l1 = []
    for q in range(8):
        sl = xs_ref[:, q % 4, q // 4: q // 4 + 6, :]            # (tb, 6, wp1)
        l1.append(sl.reshape(tb * 6, wp1))

    def conv1_acc(row_off):
        # Both pool-column parities at once: lanes [0:128]=pj0, [128:256]=pj1.
        acc = jnp.dot(l1[row_off], m1_ref[0], preferred_element_type=jnp.float32)
        for kh in range(1, 5):
            acc = acc + jnp.dot(l1[row_off + kh], m1_ref[kh],
                                preferred_element_type=jnp.float32)
        return acc                                              # (tb*6, 256)

    # pooled1[s][n, t, jp*10 + c] = relu1[n, c, 2t + s, jp]  (t in 0..5, jp in 0..11)
    # lanes 120..127 are exact zeros.
    pooled1 = []
    for s in range(2):
        a0 = conv1_acc(2 * s)                                   # pool-row parity 0
        a1 = conv1_acc(2 * s + 1)                               # pool-row parity 1
        m = jnp.maximum(jnp.maximum(a0[:, :128], a0[:, 128:]),
                        jnp.maximum(a1[:, :128], a1[:, 128:]))
        p = jnp.maximum(m + bj1, 0.0)                           # (tb*6, 128)
        pooled1.append(p.reshape(tb, 6, 128))

    # ---- conv2 (10x12x12 -> 20x8x8) + maxpool(2) + relu -----------------------
    # l2[q][n*4 + i, :] = pooled1 row (q + 2i), q in 0..5, i in 0..3.
    l2 = []
    for q in range(6):
        sl = pooled1[q % 2][:, q // 2: q // 2 + 4, :]           # (tb, 4, 128)
        l2.append(sl.reshape(tb * 4, 128))

    acc_max = None
    for ri in range(2):
        acc = jnp.dot(l2[ri], m2_ref[0], preferred_element_type=jnp.float32)
        for kh in range(1, 5):
            acc = acc + jnp.dot(l2[ri + kh], m2_ref[kh],
                                preferred_element_type=jnp.float32)
        cand = jnp.maximum(acc[:, :128], acc[:, 128:])          # pool cols
        acc_max = cand if acc_max is None else jnp.maximum(acc_max, cand)
    # pooled2[n*4 + i, jp*20 + o] = relu2 pooled value at row i, col jp, chan o
    # lanes 80..127 are exact zeros.
    pooled2 = jnp.maximum(acc_max + bj2, 0.0)                   # (tb*4, 128)

    # ---- x0 output: lane-dense, relayout-free store ---------------------------
    x0_ref[...] = pooled2                                       # (tb*4, 128)

    # ---- classifier: fc1 (rows pre-permuted / zero-padded) + relu, fc2 --------
    p2 = pooled2.reshape(tb, 4, 128)
    hid = bfc1_ref[...]                                         # (1, 64)
    for i in range(4):
        hid = hid + jnp.dot(p2[:, i, :], wfc1_ref[128 * i:128 * (i + 1), :],
                            preferred_element_type=jnp.float32)
    hid = jnp.maximum(hid, 0.0)                                 # (tb, 64); cols>=50 zero
    logits_ref[...] = (
        jnp.dot(hid, wfc2_ref[...], preferred_element_type=jnp.float32)
        + bfc2_ref[...])                                        # (tb, 128) lane-dense


# ---------------------------------------------------------------------------
# Host wrapper
# ---------------------------------------------------------------------------
def cnn_mnist_forward(kp, x_nchw, *, num_channels=1, num_classes=10, tb=8):
    """Fused CNN_Mnist forward. Returns (logits, x0) like the PyTorch module."""
    assert tb % 8 == 0
    b, c, hh, ww = x_nchw.shape
    assert c == num_channels and hh == 28 and ww == 28
    wp1 = -(-28 * c // 8) * 8          # pad contraction dim (28*C) to sublane multiple

    # NCHW -> (B, 28, 28*C) with channel fastest; zero-pad contraction dim + batch.
    xk = jnp.transpose(x_nchw, (0, 2, 3, 1)).reshape(b, 28, 28 * c).astype(jnp.float32)
    if wp1 > 28 * c:
        xk = jnp.pad(xk, ((0, 0), (0, 0), (0, wp1 - 28 * c)))
    bp = -(-b // tb) * tb
    if bp > b:
        xk = jnp.pad(xk, ((0, bp - b), (0, 0), (0, 0)))
    # Split image rows by residue mod 4 so every conv/pool row window becomes a
    # contiguous slice inside the kernel (no strided access anywhere).
    xs = jnp.stack([xk[:, r::4, :] for r in range(4)], axis=1)   # (bp, 4, 7, wp1)

    x0p, logitsp = pl.pallas_call(
        _cnn_mnist_kernel,
        out_shape=(jax.ShapeDtypeStruct((bp * 4, 128), jnp.float32),
                   jax.ShapeDtypeStruct((bp, 128), jnp.float32)),
        grid_spec=pltpu.PrefetchScalarGridSpec(
            num_scalar_prefetch=0,
            grid=(bp // tb,),
            in_specs=[
                pl.BlockSpec((tb, 4, 7, wp1), lambda i: (i, 0, 0, 0)),
                pl.BlockSpec((5, wp1, 256), lambda i: (0, 0, 0)),
                pl.BlockSpec((1, 128), lambda i: (0, 0)),
                pl.BlockSpec((5, 128, 256), lambda i: (0, 0, 0)),
                pl.BlockSpec((1, 128), lambda i: (0, 0)),
                pl.BlockSpec((512, 64), lambda i: (0, 0)),
                pl.BlockSpec((1, 64), lambda i: (0, 0)),
                pl.BlockSpec((64, 128), lambda i: (0, 0)),
                pl.BlockSpec((1, 128), lambda i: (0, 0)),
            ],
            out_specs=(
                pl.BlockSpec((tb * 4, 128), lambda i: (i, 0)),
                pl.BlockSpec((tb, 128), lambda i: (i, 0)),
            ),
        ),
        compiler_params=pltpu.CompilerParams(dimension_semantics=("parallel",)),
    )(xs, kp["m1"], kp["bj1"], kp["m2"], kp["bj2"],
      kp["wfc1"], kp["bfc1"], kp["wfc2"], kp["bfc2"])

    logits = logitsp[:b, :num_classes]
    # x0 in PyTorch's NCHW flatten order (constant gather on the final output only).
    x0_nhwc = x0p.reshape(bp, 4 * 128)[:b]
    x0 = jnp.take(x0_nhwc, kp["r_of_q"], axis=1)
    return logits, x0


# ---------------------------------------------------------------------------
# Parameter init (PyTorch-style) and kernel-side weight preparation
# ---------------------------------------------------------------------------
def init_torch_like_params(key, num_channels=1, num_classes=10):
    ks = jax.random.split(key, 8)

    def u(k, shape, fan_in):
        bound = 1.0 / float(fan_in) ** 0.5
        return jax.random.uniform(k, shape, jnp.float32, -bound, bound)

    c = num_channels
    return {
        "w1": u(ks[0], (10, c, 5, 5), c * 25), "b1": u(ks[1], (10,), c * 25),
        "w2": u(ks[2], (20, 10, 5, 5), 250),   "b2": u(ks[3], (20,), 250),
        "fc1_w": u(ks[4], (50, 320), 320),     "fc1_b": u(ks[5], (50,), 320),
        "fc2_w": u(ks[6], (num_classes, 50), 50),
        "fc2_b": u(ks[7], (num_classes,), 50),
    }


def prepare_kernel_params(raw, num_channels=1, num_classes=10):
    """Build banded conv matrices (both pool-column parities fused into 2x128-lane
    blocks), tiled/padded biases and permuted/padded FC weights."""
    c = num_channels
    wp1 = -(-28 * c // 8) * 8
    w1 = np.asarray(raw["w1"], np.float32)           # (10, C, 5, 5)
    w2 = np.asarray(raw["w2"], np.float32)           # (20, 10, 5, 5)

    # m1[kh, w*C + ci, pj*128 + jp*10 + o] = w1[o, ci, kh, w - (2jp+pj)]  (0<=.<=4)
    m1 = np.zeros((5, wp1, 256), np.float32)
    for pj in range(2):
        for kh in range(5):
            for jp in range(12):
                for kw in range(5):
                    w = 2 * jp + pj + kw
                    m1[kh, w * c:(w + 1) * c,
                       pj * 128 + jp * 10: pj * 128 + (jp + 1) * 10] = w1[:, :, kh, kw].T
    # m2[kh, w*10 + ci, pj*128 + jp*20 + o] = w2[o, ci, kh, w - (2jp+pj)]
    m2 = np.zeros((5, 128, 256), np.float32)
    for pj in range(2):
        for kh in range(5):
            for jp in range(4):
                for kw in range(5):
                    w = 2 * jp + pj + kw
                    m2[kh, w * 10:(w + 1) * 10,
                       pj * 128 + jp * 20: pj * 128 + (jp + 1) * 20] = w2[:, :, kh, kw].T

    bj1 = np.zeros((1, 128), np.float32)
    bj1[0, :120] = np.tile(np.asarray(raw["b1"], np.float32), 12)
    bj2 = np.zeros((1, 128), np.float32)
    bj2[0, :80] = np.tile(np.asarray(raw["b2"], np.float32), 4)

    # fc1: rows permuted so it consumes the kernel's (row-block, col, chan) x0 layout
    # (kernel lane for PyTorch flat index q = o*16 + i*4 + jp is 128*i + 20*jp + o).
    fc1_wt = np.asarray(raw["fc1_w"], np.float32).T   # (320, 50), rows = NCHW index q
    wfc1 = np.zeros((512, 64), np.float32)
    for i in range(4):
        for jp in range(4):
            for o in range(20):
                q = o * 16 + i * 4 + jp
                wfc1[128 * i + 20 * jp + o, :50] = fc1_wt[q, :]
    bfc1 = np.zeros((1, 64), np.float32)
    bfc1[0, :50] = np.asarray(raw["fc1_b"], np.float32)

    wfc2 = np.zeros((64, 128), np.float32)            # logits padded to 128 lanes
    wfc2[:50, :num_classes] = np.asarray(raw["fc2_w"], np.float32).T
    bfc2 = np.zeros((1, 128), np.float32)
    bfc2[0, :num_classes] = np.asarray(raw["fc2_b"], np.float32)

    # Gather indices mapping PyTorch's NCHW flatten index -> kernel lane of x0.
    q_idx = np.arange(320)
    o_q = q_idx // 16
    i_q = (q_idx // 4) % 4
    j_q = q_idx % 4
    r_of_q = (128 * i_q + 20 * j_q + o_q).astype(np.int32)

    return {"m1": jnp.asarray(m1), "bj1": jnp.asarray(bj1),
            "m2": jnp.asarray(m2), "bj2": jnp.asarray(bj2),
            "wfc1": jnp.asarray(wfc1), "bfc1": jnp.asarray(bfc1),
            "wfc2": jnp.asarray(wfc2), "bfc2": jnp.asarray(bfc2),
            "r_of_q": jnp.asarray(r_of_q)}


# ---------------------------------------------------------------------------
# Pure-JAX reference (matches the PyTorch module in eval mode)
# ---------------------------------------------------------------------------
def reference_forward(raw, x_nchw):
    def conv_valid(x, w, b):
        bsz, _, h, wdt = x.shape
        cout, _, k, _ = w.shape
        ho, wo = h - k + 1, wdt - k + 1
        y = jnp.zeros((bsz, cout, ho, wo), jnp.float32) + b[None, :, None, None]
        for kh in range(k):
            for kw in range(k):
                y = y + jnp.einsum("bchw,oc->bohw",
                                   x[:, :, kh:kh + ho, kw:kw + wo], w[:, :, kh, kw])
        return y

    def pool2(x):
        bsz, cc, h, wdt = x.shape
        return jnp.max(x.reshape(bsz, cc, h // 2, 2, wdt // 2, 2), axis=(3, 5))

    y = jnp.maximum(pool2(conv_valid(x_nchw, raw["w1"], raw["b1"])), 0.0)
    y = jnp.maximum(pool2(conv_valid(y, raw["w2"], raw["b2"])), 0.0)
    x0 = y.reshape(x_nchw.shape[0], -1)                     # NCHW flatten -> (B, 320)
    h = jnp.maximum(x0 @ raw["fc1_w"].T + raw["fc1_b"], 0.0)
    logits = h @ raw["fc2_w"].T + raw["fc2_b"]
    return logits, x0


if __name__ == "__main__":
    num_channels, num_classes = 1, 10
    key = jax.random.PRNGKey(0)
    pkey, xkey = jax.random.split(key)
    raw = init_torch_like_params(pkey, num_channels, num_classes)
    kp = prepare_kernel_params(raw, num_channels, num_classes)

    # MNIST-shaped input (B, C, H, W) = (2, 1, 28, 28) so that the flatten is 320.
    x = jax.random.normal(xkey, (2, num_channels, 28, 28), jnp.float32)

    fwd = jax.jit(functools.partial(cnn_mnist_forward,
                                    num_channels=num_channels,
                                    num_classes=num_classes,
                                    tb=8))
    logits, x0 = fwd(kp, x)
    jax.block_until_ready((logits, x0))

    assert logits.shape == (2, num_classes), logits.shape
    assert x0.shape == (2, 320), x0.shape

    ref_logits, ref_x0 = reference_forward(raw, x)
    np.testing.assert_allclose(np.asarray(x0), np.asarray(ref_x0),
                               atol=2e-2, rtol=2e-2)
    np.testing.assert_allclose(np.asarray(logits), np.asarray(ref_logits),
                               atol=2e-2, rtol=2e-2)
    print("KERNEL_OK")
</pallas_src>

<mosaic_0001>
module attributes {stable_mosaic.version = 11 : i64} {
  func.func @_cnn_mnist_kernel(%arg0: i32, %arg1: memref<8x4x7x32xf32, #tpu.memory_space<vmem>>, %arg2: memref<5x32x256xf32, #tpu.memory_space<vmem>>, %arg3: memref<1x128xf32, #tpu.memory_space<vmem>>, %arg4: memref<5x128x256xf32, #tpu.memory_space<vmem>>, %arg5: memref<1x128xf32, #tpu.memory_space<vmem>>, %arg6: memref<512x64xf32, #tpu.memory_space<vmem>>, %arg7: memref<1x64xf32, #tpu.memory_space<vmem>>, %arg8: memref<64x128xf32, #tpu.memory_space<vmem>>, %arg9: memref<1x128xf32, #tpu.memory_space<vmem>>, %arg10: memref<32x128xf32, #tpu.memory_space<vmem>>, %arg11: memref<8x128xf32, #tpu.memory_space<vmem>>) attributes {dimension_semantics = [#tpu.dimension_semantics<parallel>], iteration_bounds = array<i64: 1>, scalar_prefetch = 0 : i64, scratch_operands = 0 : i64, tpu.core_type = #tpu.core_type<tc>, window_params = [{transform_indices = @transform_0, window_bounds = array<i64: 8, 4, 7, 32>}, {pipeline_mode = #tpu.pipeline_mode<synchronous>, transform_indices = @transform_1, window_bounds = array<i64: 5, 32, 256>}, {pipeline_mode = #tpu.pipeline_mode<synchronous>, transform_indices = @transform_2, window_bounds = array<i64: 1, 128>}, {pipeline_mode = #tpu.pipeline_mode<synchronous>, transform_indices = @transform_3, window_bounds = array<i64: 5, 128, 256>}, {pipeline_mode = #tpu.pipeline_mode<synchronous>, transform_indices = @transform_4, window_bounds = array<i64: 1, 128>}, {pipeline_mode = #tpu.pipeline_mode<synchronous>, transform_indices = @transform_5, window_bounds = array<i64: 512, 64>}, {pipeline_mode = #tpu.pipeline_mode<synchronous>, transform_indices = @transform_6, window_bounds = array<i64: 1, 64>}, {pipeline_mode = #tpu.pipeline_mode<synchronous>, transform_indices = @transform_7, window_bounds = array<i64: 64, 128>}, {pipeline_mode = #tpu.pipeline_mode<synchronous>, transform_indices = @transform_8, window_bounds = array<i64: 1, 128>}, {transform_indices = @transform_9, window_bounds = array<i64: 32, 128>}, {transform_indices = @transform_10, window_bounds = array<i64: 8, 128>}]} {
    %c0 = arith.constant 0 : index
    %c0_0 = arith.constant 0 : index
    %0 = vector.load %arg3[%c0, %c0_0] : memref<1x128xf32, #tpu.memory_space<vmem>>, vector<1x128xf32>
    %c0_1 = arith.constant 0 : index
    %c0_2 = arith.constant 0 : index
    %1 = vector.load %arg5[%c0_1, %c0_2] : memref<1x128xf32, #tpu.memory_space<vmem>>, vector<1x128xf32>
    %c0_3 = arith.constant 0 : index
    %c0_4 = arith.constant 0 : index
    %c0_5 = arith.constant 0 : index
    %c0_6 = arith.constant 0 : index
    %2 = vector.load %arg1[%c0_3, %c0_4, %c0_5, %c0_6] : memref<8x4x7x32xf32, #tpu.memory_space<vmem>>, vector<8x1x6x32xf32>
    %3 = vector.shape_cast %2 : vector<8x1x6x32xf32> to vector<8x6x32xf32>
    %4 = vector.shape_cast %3 : vector<8x6x32xf32> to vector<48x32xf32>
    %c0_7 = arith.constant 0 : index
    %c1 = arith.constant 1 : index
    %c0_8 = arith.constant 0 : index
    %c0_9 = arith.constant 0 : index
    %5 = vector.load %arg1[%c0_7, %c1, %c0_8, %c0_9] : memref<8x4x7x32xf32, #tpu.memory_space<vmem>>, vector<8x1x6x32xf32>
    %6 = vector.shape_cast %5 : vector<8x1x6x32xf32> to vector<8x6x32xf32>
    %7 = vector.shape_cast %6 : vector<8x6x32xf32> to vector<48x32xf32>
    %c0_10 = arith.constant 0 : index
    %c2 = arith.constant 2 : index
    %c0_11 = arith.constant 0 : index
    %c0_12 = arith.constant 0 : index
    %8 = vector.load %arg1[%c0_10, %c2, %c0_11, %c0_12] : memref<8x4x7x32xf32, #tpu.memory_space<vmem>>, vector<8x1x6x32xf32>
    %9 = vector.shape_cast %8 : vector<8x1x6x32xf32> to vector<8x6x32xf32>
    %10 = vector.shape_cast %9 : vector<8x6x32xf32> to vector<48x32xf32>
    %c0_13 = arith.constant 0 : index
    %c3 = arith.constant 3 : index
    %c0_14 = arith.constant 0 : index
    %c0_15 = arith.constant 0 : index
    %11 = vector.load %arg1[%c0_13, %c3, %c0_14, %c0_15] : memref<8x4x7x32xf32, #tpu.memory_space<vmem>>, vector<8x1x6x32xf32>
    %12 = vector.shape_cast %11 : vector<8x1x6x32xf32> to vector<8x6x32xf32>
    %13 = vector.shape_cast %12 : vector<8x6x32xf32> to vector<48x32xf32>
    %c0_16 = arith.constant 0 : index
    %c0_17 = arith.constant 0 : index
    %c1_18 = arith.constant 1 : index
    %c0_19 = arith.constant 0 : index
    %14 = vector.load %arg1[%c0_16, %c0_17, %c1_18, %c0_19] : memref<8x4x7x32xf32, #tpu.memory_space<vmem>>, vector<8x1x6x32xf32>
    %15 = vector.shape_cast %14 : vector<8x1x6x32xf32> to vector<8x6x32xf32>
    %16 = vector.shape_cast %15 : vector<8x6x32xf32> to vector<48x32xf32>
    %c0_20 = arith.constant 0 : index
    %c1_21 = arith.constant 1 : index
    %c1_22 = arith.constant 1 : index
    %c0_23 = arith.constant 0 : index
    %17 = vector.load %arg1[%c0_20, %c1_21, %c1_22, %c0_23] : memref<8x4x7x32xf32, #tpu.memory_space<vmem>>, vector<8x1x6x32xf32>
    %18 = vector.shape_cast %17 : vector<8x1x6x32xf32> to vector<8x6x32xf32>
    %19 = vector.shape_cast %18 : vector<8x6x32xf32> to vector<48x32xf32>
    %c0_24 = arith.constant 0 : index
    %c2_25 = arith.constant 2 : index
    %c1_26 = arith.constant 1 : index
    %c0_27 = arith.constant 0 : index
    %20 = vector.load %arg1[%c0_24, %c2_25, %c1_26, %c0_27] : memref<8x4x7x32xf32, #tpu.memory_space<vmem>>, vector<8x1x6x32xf32>
    %21 = vector.shape_cast %20 : vector<8x1x6x32xf32> to vector<8x6x32xf32>
    %22 = vector.shape_cast %21 : vector<8x6x32xf32> to vector<48x32xf32>
    %c0_28 = arith.constant 0 : index
    %c3_29 = arith.constant 3 : index
    %c1_30 = arith.constant 1 : index
    %c0_31 = arith.constant 0 : index
    %23 = vector.load %arg1[%c0_28, %c3_29, %c1_30, %c0_31] : memref<8x4x7x32xf32, #tpu.memory_space<vmem>>, vector<8x1x6x32xf32>
    %24 = vector.shape_cast %23 : vector<8x1x6x32xf32> to vector<8x6x32xf32>
    %25 = vector.shape_cast %24 : vector<8x6x32xf32> to vector<48x32xf32>
    %c0_32 = arith.constant 0 : index
    %c0_33 = arith.constant 0 : index
    %c0_34 = arith.constant 0 : index
    %26 = vector.load %arg2[%c0_32, %c0_33, %c0_34] : memref<5x32x256xf32, #tpu.memory_space<vmem>>, vector<1x32x256xf32>
    %27 = vector.shape_cast %26 : vector<1x32x256xf32> to vector<32x256xf32>
    %cst = arith.constant dense<0.000000e+00> : vector<48x256xf32>
    %28 = tpu.matmul %4, %27, %cst {dimension_numbers = #tpu.dot_dimension_numbers<[1], [0], [0], [1], [0, 0, 1, 1], [], []>} : vector<48x32xf32>, vector<32x256xf32>, vector<48x256xf32> -> vector<48x256xf32>
    %c1_35 = arith.constant 1 : index
    %c0_36 = arith.constant 0 : index
    %c0_37 = arith.constant 0 : index
    %29 = vector.load %arg2[%c1_35, %c0_36, %c0_37] : memref<5x32x256xf32, #tpu.memory_space<vmem>>, vector<1x32x256xf32>
    %30 = vector.shape_cast %29 : vector<1x32x256xf32> to vector<32x256xf32>
    %cst_38 = arith.constant dense<0.000000e+00> : vector<48x256xf32>
    %31 = tpu.matmul %7, %30, %cst_38 {dimension_numbers = #tpu.dot_dimension_numbers<[1], [0], [0], [1], [0, 0, 1, 1], [], []>} : vector<48x32xf32>, vector<32x256xf32>, vector<48x256xf32> -> vector<48x256xf32>
    %32 = arith.addf %28, %31 : vector<48x256xf32>
    %c2_39 = arith.constant 2 : index
    %c0_40 = arith.constant 0 : index
    %c0_41 = arith.constant 0 : index
    %33 = vector.load %arg2[%c2_39, %c0_40, %c0_41] : memref<5x32x256xf32, #tpu.memory_space<vmem>>, vector<1x32x256xf32>
    %34 = vector.shape_cast %33 : vector<1x32x256xf32> to vector<32x256xf32>
    %cst_42 = arith.constant dense<0.000000e+00> : vector<48x256xf32>
    %35 = tpu.matmul %10, %34, %cst_42 {dimension_numbers = #tpu.dot_dimension_numbers<[1], [0], [0], [1], [0, 0, 1, 1], [], []>} : vector<48x32xf32>, vector<32x256xf32>, vector<48x256xf32> -> vector<48x256xf32>
    %36 = arith.addf %32, %35 : vector<48x256xf32>
    %c3_43 = arith.constant 3 : index
    %c0_44 = arith.constant 0 : index
    %c0_45 = arith.constant 0 : index
    %37 = vector.load %arg2[%c3_43, %c0_44, %c0_45] : memref<5x32x256xf32, #tpu.memory_space<vmem>>, vector<1x32x256xf32>
    %38 = vector.shape_cast %37 : vector<1x32x256xf32> to vector<32x256xf32>
    %cst_46 = arith.constant dense<0.000000e+00> : vector<48x256xf32>
    %39 = tpu.matmul %13, %38, %cst_46 {dimension_numbers = #tpu.dot_dimension_numbers<[1], [0], [0], [1], [0, 0, 1, 1], [], []>} : vector<48x32xf32>, vector<32x256xf32>, vector<48x256xf32> -> vector<48x256xf32>
    %40 = arith.addf %36, %39 : vector<48x256xf32>
    %c4 = arith.constant 4 : index
    %c0_47 = arith.constant 0 : index
    %c0_48 = arith.constant 0 : index
    %41 = vector.load %arg2[%c4, %c0_47, %c0_48] : memref<5x32x256xf32, #tpu.memory_space<vmem>>, vector<1x32x256xf32>
    %42 = vector.shape_cast %41 : vector<1x32x256xf32> to vector<32x256xf32>
    %cst_49 = arith.constant dense<0.000000e+00> : vector<48x256xf32>
    %43 = tpu.matmul %16, %42, %cst_49 {dimension_numbers = #tpu.dot_dimension_numbers<[1], [0], [0], [1], [0, 0, 1, 1], [], []>} : vector<48x32xf32>, vector<32x256xf32>, vector<48x256xf32> -> vector<48x256xf32>
    %44 = arith.addf %40, %43 : vector<48x256xf32>
    %c0_50 = arith.constant 0 : index
    %c0_51 = arith.constant 0 : index
    %c0_52 = arith.constant 0 : index
    %45 = vector.load %arg2[%c0_50, %c0_51, %c0_52] : memref<5x32x256xf32, #tpu.memory_space<vmem>>, vector<1x32x256xf32>
    %46 = vector.shape_cast %45 : vector<1x32x256xf32> to vector<32x256xf32>
    %cst_53 = arith.constant dense<0.000000e+00> : vector<48x256xf32>
    %47 = tpu.matmul %7, %46, %cst_53 {dimension_numbers = #tpu.dot_dimension_numbers<[1], [0], [0], [1], [0, 0, 1, 1], [], []>} : vector<48x32xf32>, vector<32x256xf32>, vector<48x256xf32> -> vector<48x256xf32>
    %c1_54 = arith.constant 1 : index
    %c0_55 = arith.constant 0 : index
    %c0_56 = arith.constant 0 : index
    %48 = vector.load %arg2[%c1_54, %c0_55, %c0_56] : memref<5x32x256xf32, #tpu.memory_space<vmem>>, vector<1x32x256xf32>
    %49 = vector.shape_cast %48 : vector<1x32x256xf32> to vector<32x256xf32>
    %cst_57 = arith.constant dense<0.000000e+00> : vector<48x256xf32>
    %50 = tpu.matmul %10, %49, %cst_57 {dimension_numbers = #tpu.dot_dimension_numbers<[1], [0], [0], [1], [0, 0, 1, 1], [], []>} : vector<48x32xf32>, vector<32x256xf32>, vector<48x256xf32> -> vector<48x256xf32>
    %51 = arith.addf %47, %50 : vector<48x256xf32>
    %c2_58 = arith.constant 2 : index
    %c0_59 = arith.constant 0 : index
    %c0_60 = arith.constant 0 : index
    %52 = vector.load %arg2[%c2_58, %c0_59, %c0_60] : memref<5x32x256xf32, #tpu.memory_space<vmem>>, vector<1x32x256xf32>
    %53 = vector.shape_cast %52 : vector<1x32x256xf32> to vector<32x256xf32>
    %cst_61 = arith.constant dense<0.000000e+00> : vector<48x256xf32>
    %54 = tpu.matmul %13, %53, %cst_61 {dimension_numbers = #tpu.dot_dimension_numbers<[1], [0], [0], [1], [0, 0, 1, 1], [], []>} : vector<48x32xf32>, vector<32x256xf32>, vector<48x256xf32> -> vector<48x256xf32>
    %55 = arith.addf %51, %54 : vector<48x256xf32>
    %c3_62 = arith.constant 3 : index
    %c0_63 = arith.constant 0 : index
    %c0_64 = arith.constant 0 : index
    %56 = vector.load %arg2[%c3_62, %c0_63, %c0_64] : memref<5x32x256xf32, #tpu.memory_space<vmem>>, vector<1x32x256xf32>
    %57 = vector.shape_cast %56 : vector<1x32x256xf32> to vector<32x256xf32>
    %cst_65 = arith.constant dense<0.000000e+00> : vector<48x256xf32>
    %58 = tpu.matmul %16, %57, %cst_65 {dimension_numbers = #tpu.dot_dimension_numbers<[1], [0], [0], [1], [0, 0, 1, 1], [], []>} : vector<48x32xf32>, vector<32x256xf32>, vector<48x256xf32> -> vector<48x256xf32>
    %59 = arith.addf %55, %58 : vector<48x256xf32>
    %c4_66 = arith.constant 4 : index
    %c0_67 = arith.constant 0 : index
    %c0_68 = arith.constant 0 : index
    %60 = vector.load %arg2[%c4_66, %c0_67, %c0_68] : memref<5x32x256xf32, #tpu.memory_space<vmem>>, vector<1x32x256xf32>
    %61 = vector.shape_cast %60 : vector<1x32x256xf32> to vector<32x256xf32>
    %cst_69 = arith.constant dense<0.000000e+00> : vector<48x256xf32>
    %62 = tpu.matmul %19, %61, %cst_69 {dimension_numbers = #tpu.dot_dimension_numbers<[1], [0], [0], [1], [0, 0, 1, 1], [], []>} : vector<48x32xf32>, vector<32x256xf32>, vector<48x256xf32> -> vector<48x256xf32>
    %63 = arith.addf %59, %62 : vector<48x256xf32>
    %64 = vector.extract_strided_slice %44 {offsets = [0, 0], sizes = [48, 128], strides = [1, 1]} : vector<48x256xf32> to vector<48x128xf32>
    %65 = vector.extract_strided_slice %44 {offsets = [0, 128], sizes = [48, 128], strides = [1, 1]} : vector<48x256xf32> to vector<48x128xf32>
    %66 = arith.maximumf %64, %65 : vector<48x128xf32>
    %67 = vector.extract_strided_slice %63 {offsets = [0, 0], sizes = [48, 128], strides = [1, 1]} : vector<48x256xf32> to vector<48x128xf32>
    %68 = vector.extract_strided_slice %63 {offsets = [0, 128], sizes = [48, 128], strides = [1, 1]} : vector<48x256xf32> to vector<48x128xf32>
    %69 = arith.maximumf %67, %68 : vector<48x128xf32>
    %70 = arith.maximumf %66, %69 : vector<48x128xf32>
    %71 = vector.broadcast %0 : vector<1x128xf32> to vector<48x128xf32>
    %72 = arith.addf %70, %71 : vector<48x128xf32>
    %cst_70 = arith.constant 0.000000e+00 : f32
    %73 = vector.broadcast %cst_70 : f32 to vector<48x128xf32>
    %74 = arith.maximumf %72, %73 : vector<48x128xf32>
    %75 = vector.shape_cast %74 : vector<48x128xf32> to vector<8x6x128xf32>
    %c0_71 = arith.constant 0 : index
    %c0_72 = arith.constant 0 : index
    %c0_73 = arith.constant 0 : index
    %76 = vector.load %arg2[%c0_71, %c0_72, %c0_73] : memref<5x32x256xf32, #tpu.memory_space<vmem>>, vector<1x32x256xf32>
    %77 = vector.shape_cast %76 : vector<1x32x256xf32> to vector<32x256xf32>
    %cst_74 = arith.constant dense<0.000000e+00> : vector<48x256xf32>
    %78 = tpu.matmul %10, %77, %cst_74 {dimension_numbers = #tpu.dot_dimension_numbers<[1], [0], [0], [1], [0, 0, 1, 1], [], []>} : vector<48x32xf32>, vector<32x256xf32>, vector<48x256xf32> -> vector<48x256xf32>
    %c1_75 = arith.constant 1 : index
    %c0_76 = arith.constant 0 : index
    %c0_77 = arith.constant 0 : index
    %79 = vector.load %arg2[%c1_75, %c0_76, %c0_77] : memref<5x32x256xf32, #tpu.memory_space<vmem>>, vector<1x32x256xf32>
    %80 = vector.shape_cast %79 : vector<1x32x256xf32> to vector<32x256xf32>
    %cst_78 = arith.constant dense<0.000000e+00> : vector<48x256xf32>
    %81 = tpu.matmul %13, %80, %cst_78 {dimension_numbers = #tpu.dot_dimension_numbers<[1], [0], [0], [1], [0, 0, 1, 1], [], []>} : vector<48x32xf32>, vector<32x256xf32>, vector<48x256xf32> -> vector<48x256xf32>
    %82 = arith.addf %78, %81 : vector<48x256xf32>
    %c2_79 = arith.constant 2 : index
    %c0_80 = arith.constant 0 : index
    %c0_81 = arith.constant 0 : index
    %83 = vector.load %arg2[%c2_79, %c0_80, %c0_81] : memref<5x32x256xf32, #tpu.memory_space<vmem>>, vector<1x32x256xf32>
    %84 = vector.shape_cast %83 : vector<1x32x256xf32> to vector<32x256xf32>
    %cst_82 = arith.constant dense<0.000000e+00> : vector<48x256xf32>
    %85 = tpu.matmul %16, %84, %cst_82 {dimension_numbers = #tpu.dot_dimension_numbers<[1], [0], [0], [1], [0, 0, 1, 1], [], []>} : vector<48x32xf32>, vector<32x256xf32>, vector<48x256xf32> -> vector<48x256xf32>
    %86 = arith.addf %82, %85 : vector<48x256xf32>
    %c3_83 = arith.constant 3 : index
    %c0_84 = arith.constant 0 : index
    %c0_85 = arith.constant 0 : index
    %87 = vector.load %arg2[%c3_83, %c0_84, %c0_85] : memref<5x32x256xf32, #tpu.memory_space<vmem>>, vector<1x32x256xf32>
    %88 = vector.shape_cast %87 : vector<1x32x256xf32> to vector<32x256xf32>
    %cst_86 = arith.constant dense<0.000000e+00> : vector<48x256xf32>
    %89 = tpu.matmul %19, %88, %cst_86 {dimension_numbers = #tpu.dot_dimension_numbers<[1], [0], [0], [1], [0, 0, 1, 1], [], []>} : vector<48x32xf32>, vector<32x256xf32>, vector<48x256xf32> -> vector<48x256xf32>
    %90 = arith.addf %86, %89 : vector<48x256xf32>
    %c4_87 = arith.constant 4 : index
    %c0_88 = arith.constant 0 : index
    %c0_89 = arith.constant 0 : index
    %91 = vector.load %arg2[%c4_87, %c0_88, %c0_89] : memref<5x32x256xf32, #tpu.memory_space<vmem>>, vector<1x32x256xf32>
    %92 = vector.shape_cast %91 : vector<1x32x256xf32> to vector<32x256xf32>
    %cst_90 = arith.constant dense<0.000000e+00> : vector<48x256xf32>
    %93 = tpu.matmul %22, %92, %cst_90 {dimension_numbers = #tpu.dot_dimension_numbers<[1], [0], [0], [1], [0, 0, 1, 1], [], []>} : vector<48x32xf32>, vector<32x256xf32>, vector<48x256xf32> -> vector<48x256xf32>
    %94 = arith.addf %90, %93 : vector<48x256xf32>
    %c0_91 = arith.constant 0 : index
    %c0_92 = arith.constant 0 : index
    %c0_93 = arith.constant 0 : index
    %95 = vector.load %arg2[%c0_91, %c0_92, %c0_93] : memref<5x32x256xf32, #tpu.memory_space<vmem>>, vector<1x32x256xf32>
    %96 = vector.shape_cast %95 : vector<1x32x256xf32> to vector<32x256xf32>
    %cst_94 = arith.constant dense<0.000000e+00> : vector<48x256xf32>
    %97 = tpu.matmul %13, %96, %cst_94 {dimension_numbers = #tpu.dot_dimension_numbers<[1], [0], [0], [1], [0, 0, 1, 1], [], []>} : vector<48x32xf32>, vector<32x256xf32>, vector<48x256xf32> -> vector<48x256xf32>
    %c1_95 = arith.constant 1 : index
    %c0_96 = arith.constant 0 : index
    %c0_97 = arith.constant 0 : index
    %98 = vector.load %arg2[%c1_95, %c0_96, %c0_97] : memref<5x32x256xf32, #tpu.memory_space<vmem>>, vector<1x32x256xf32>
    %99 = vector.shape_cast %98 : vector<1x32x256xf32> to vector<32x256xf32>
    %cst_98 = arith.constant dense<0.000000e+00> : vector<48x256xf32>
    %100 = tpu.matmul %16, %99, %cst_98 {dimension_numbers = #tpu.dot_dimension_numbers<[1], [0], [0], [1], [0, 0, 1, 1], [], []>} : vector<48x32xf32>, vector<32x256xf32>, vector<48x256xf32> -> vector<48x256xf32>
    %101 = arith.addf %97, %100 : vector<48x256xf32>
    %c2_99 = arith.constant 2 : index
    %c0_100 = arith.constant 0 : index
    %c0_101 = arith.constant 0 : index
    %102 = vector.load %arg2[%c2_99, %c0_100, %c0_101] : memref<5x32x256xf32, #tpu.memory_space<vmem>>, vector<1x32x256xf32>
    %103 = vector.shape_cast %102 : vector<1x32x256xf32> to vector<32x256xf32>
    %cst_102 = arith.constant dense<0.000000e+00> : vector<48x256xf32>
    %104 = tpu.matmul %19, %103, %cst_102 {dimension_numbers = #tpu.dot_dimension_numbers<[1], [0], [0], [1], [0, 0, 1, 1], [], []>} : vector<48x32xf32>, vector<32x256xf32>, vector<48x256xf32> -> vector<48x256xf32>
    %105 = arith.addf %101, %104 : vector<48x256xf32>
    %c3_103 = arith.constant 3 : index
    %c0_104 = arith.constant 0 : index
    %c0_105 = arith.constant 0 : index
    %106 = vector.load %arg2[%c3_103, %c0_104, %c0_105] : memref<5x32x256xf32, #tpu.memory_space<vmem>>, vector<1x32x256xf32>
    %107 = vector.shape_cast %106 : vector<1x32x256xf32> to vector<32x256xf32>
    %cst_106 = arith.constant dense<0.000000e+00> : vector<48x256xf32>
    %108 = tpu.matmul %22, %107, %cst_106 {dimension_numbers = #tpu.dot_dimension_numbers<[1], [0], [0], [1], [0, 0, 1, 1], [], []>} : vector<48x32xf32>, vector<32x256xf32>, vector<48x256xf32> -> vector<48x256xf32>
    %109 = arith.addf %105, %108 : vector<48x256xf32>
    %c4_107 = arith.constant 4 : index
    %c0_108 = arith.constant 0 : index
    %c0_109 = arith.constant 0 : index
    %110 = vector.load %arg2[%c4_107, %c0_108, %c0_109] : memref<5x32x256xf32, #tpu.memory_space<vmem>>, vector<1x32x256xf32>
    %111 = vector.shape_cast %110 : vector<1x32x256xf32> to vector<32x256xf32>
    %cst_110 = arith.constant dense<0.000000e+00> : vector<48x256xf32>
    %112 = tpu.matmul %25, %111, %cst_110 {dimension_numbers = #tpu.dot_dimension_numbers<[1], [0], [0], [1], [0, 0, 1, 1], [], []>} : vector<48x32xf32>, vector<32x256xf32>, vector<48x256xf32> -> vector<48x256xf32>
    %113 = arith.addf %109, %112 : vector<48x256xf32>
    %114 = vector.extract_strided_slice %94 {offsets = [0, 0], sizes = [48, 128], strides = [1, 1]} : vector<48x256xf32> to vector<48x128xf32>
    %115 = vector.extract_strided_slice %94 {offsets = [0, 128], sizes = [48, 128], strides = [1, 1]} : vector<48x256xf32> to vector<48x128xf32>
    %116 = arith.maximumf %114, %115 : vector<48x128xf32>
    %117 = vector.extract_strided_slice %113 {offsets = [0, 0], sizes = [48, 128], strides = [1, 1]} : vector<48x256xf32> to vector<48x128xf32>
    %118 = vector.extract_strided_slice %113 {offsets = [0, 128], sizes = [48, 128], strides = [1, 1]} : vector<48x256xf32> to vector<48x128xf32>
    %119 = arith.maximumf %117, %118 : vector<48x128xf32>
    %120 = arith.maximumf %116, %119 : vector<48x128xf32>
    %121 = vector.broadcast %0 : vector<1x128xf32> to vector<48x128xf32>
    %122 = arith.addf %120, %121 : vector<48x128xf32>
    %cst_111 = arith.constant 0.000000e+00 : f32
    %123 = vector.broadcast %cst_111 : f32 to vector<48x128xf32>
    %124 = arith.maximumf %122, %123 : vector<48x128xf32>
    %125 = vector.shape_cast %124 : vector<48x128xf32> to vector<8x6x128xf32>
    %126 = vector.extract_strided_slice %75 {offsets = [0, 0, 0], sizes = [8, 4, 128], strides = [1, 1, 1]} : vector<8x6x128xf32> to vector<8x4x128xf32>
    %127 = vector.shape_cast %126 : vector<8x4x128xf32> to vector<32x128xf32>
    %128 = vector.extract_strided_slice %125 {offsets = [0, 0, 0], sizes = [8, 4, 128], strides = [1, 1, 1]} : vector<8x6x128xf32> to vector<8x4x128xf32>
    %129 = vector.shape_cast %128 : vector<8x4x128xf32> to vector<32x128xf32>
    %130 = vector.extract_strided_slice %75 {offsets = [0, 1, 0], sizes = [8, 4, 128], strides = [1, 1, 1]} : vector<8x6x128xf32> to vector<8x4x128xf32>
    %131 = vector.shape_cast %130 : vector<8x4x128xf32> to vector<32x128xf32>
    %132 = vector.extract_strided_slice %125 {offsets = [0, 1, 0], sizes = [8, 4, 128], strides = [1, 1, 1]} : vector<8x6x128xf32> to vector<8x4x128xf32>
    %133 = vector.shape_cast %132 : vector<8x4x128xf32> to vector<32x128xf32>
    %134 = vector.extract_strided_slice %75 {offsets = [0, 2, 0], sizes = [8, 4, 128], strides = [1, 1, 1]} : vector<8x6x128xf32> to vector<8x4x128xf32>
    %135 = vector.shape_cast %134 : vector<8x4x128xf32> to vector<32x128xf32>
    %136 = vector.extract_strided_slice %125 {offsets = [0, 2, 0], sizes = [8, 4, 128], strides = [1, 1, 1]} : vector<8x6x128xf32> to vector<8x4x128xf32>
    %137 = vector.shape_cast %136 : vector<8x4x128xf32> to vector<32x128xf32>
    %c0_112 = arith.constant 0 : index
    %c0_113 = arith.constant 0 : index
    %c0_114 = arith.constant 0 : index
    %138 = vector.load %arg4[%c0_112, %c0_113, %c0_114] : memref<5x128x256xf32, #tpu.memory_space<vmem>>, vector<1x128x256xf32>
    %139 = vector.shape_cast %138 : vector<1x128x256xf32> to vector<128x256xf32>
    %cst_115 = arith.constant dense<0.000000e+00> : vector<32x256xf32>
    %140 = tpu.matmul %127, %139, %cst_115 {dimension_numbers = #tpu.dot_dimension_numbers<[1], [0], [0], [1], [0, 0, 1, 1], [], []>} : vector<32x128xf32>, vector<128x256xf32>, vector<32x256xf32> -> vector<32x256xf32>
    %c1_116 = arith.constant 1 : index
    %c0_117 = arith.constant 0 : index
    %c0_118 = arith.constant 0 : index
    %141 = vector.load %arg4[%c1_116, %c0_117, %c0_118] : memref<5x128x256xf32, #tpu.memory_space<vmem>>, vector<1x128x256xf32>
    %142 = vector.shape_cast %141 : vector<1x128x256xf32> to vector<128x256xf32>
    %cst_119 = arith.constant dense<0.000000e+00> : vector<32x256xf32>
    %143 = tpu.matmul %129, %142, %cst_119 {dimension_numbers = #tpu.dot_dimension_numbers<[1], [0], [0], [1], [0, 0, 1, 1], [], []>} : vector<32x128xf32>, vector<128x256xf32>, vector<32x256xf32> -> vector<32x256xf32>
    %144 = arith.addf %140, %143 : vector<32x256xf32>
    %c2_120 = arith.constant 2 : index
    %c0_121 = arith.constant 0 : index
    %c0_122 = arith.constant 0 : index
    %145 = vector.load %arg4[%c2_120, %c0_121, %c0_122] : memref<5x128x256xf32, #tpu.memory_space<vmem>>, vector<1x128x256xf32>
    %146 = vector.shape_cast %145 : vector<1x128x256xf32> to vector<128x256xf32>
    %cst_123 = arith.constant dense<0.000000e+00> : vector<32x256xf32>
    %147 = tpu.matmul %131, %146, %cst_123 {dimension_numbers = #tpu.dot_dimension_numbers<[1], [0], [0], [1], [0, 0, 1, 1], [], []>} : vector<32x128xf32>, vector<128x256xf32>, vector<32x256xf32> -> vector<32x256xf32>
    %148 = arith.addf %144, %147 : vector<32x256xf32>
    %c3_124 = arith.constant 3 : index
    %c0_125 = arith.constant 0 : index
    %c0_126 = arith.constant 0 : index
    %149 = vector.load %arg4[%c3_124, %c0_125, %c0_126] : memref<5x128x256xf32, #tpu.memory_space<vmem>>, vector<1x128x256xf32>
    %150 = vector.shape_cast %149 : vector<1x128x256xf32> to vector<128x256xf32>
    %cst_127 = arith.constant dense<0.000000e+00> : vector<32x256xf32>
    %151 = tpu.matmul %133, %150, %cst_127 {dimension_numbers = #tpu.dot_dimension_numbers<[1], [0], [0], [1], [0, 0, 1, 1], [], []>} : vector<32x128xf32>, vector<128x256xf32>, vector<32x256xf32> -> vector<32x256xf32>
    %152 = arith.addf %148, %151 : vector<32x256xf32>
    %c4_128 = arith.constant 4 : index
    %c0_129 = arith.constant 0 : index
    %c0_130 = arith.constant 0 : index
    %153 = vector.load %arg4[%c4_128, %c0_129, %c0_130] : memref<5x128x256xf32, #tpu.memory_space<vmem>>, vector<1x128x256xf32>
    %154 = vector.shape_cast %153 : vector<1x128x256xf32> to vector<128x256xf32>
    %cst_131 = arith.constant dense<0.000000e+00> : vector<32x256xf32>
    %155 = tpu.matmul %135, %154, %cst_131 {dimension_numbers = #tpu.dot_dimension_numbers<[1], [0], [0], [1], [0, 0, 1, 1], [], []>} : vector<32x128xf32>, vector<128x256xf32>, vector<32x256xf32> -> vector<32x256xf32>
    %156 = arith.addf %152, %155 : vector<32x256xf32>
    %157 = vector.extract_strided_slice %156 {offsets = [0, 0], sizes = [32, 128], strides = [1, 1]} : vector<32x256xf32> to vector<32x128xf32>
    %158 = vector.extract_strided_slice %156 {offsets = [0, 128], sizes = [32, 128], strides = [1, 1]} : vector<32x256xf32> to vector<32x128xf32>
    %159 = arith.maximumf %157, %158 : vector<32x128xf32>
    %c0_132 = arith.constant 0 : index
    %c0_133 = arith.constant 0 : index
    %c0_134 = arith.constant 0 : index
    %160 = vector.load %arg4[%c0_132, %c0_133, %c0_134] : memref<5x128x256xf32, #tpu.memory_space<vmem>>, vector<1x128x256xf32>
    %161 = vector.shape_cast %160 : vector<1x128x256xf32> to vector<128x256xf32>
    %cst_135 = arith.constant dense<0.000000e+00> : vector<32x256xf32>
    %162 = tpu.matmul %129, %161, %cst_135 {dimension_numbers = #tpu.dot_dimension_numbers<[1], [0], [0], [1], [0, 0, 1, 1], [], []>} : vector<32x128xf32>, vector<128x256xf32>, vector<32x256xf32> -> vector<32x256xf32>
    %c1_136 = arith.constant 1 : index
    %c0_137 = arith.constant 0 : index
    %c0_138 = arith.constant 0 : index
    %163 = vector.load %arg4[%c1_136, %c0_137, %c0_138] : memref<5x128x256xf32, #tpu.memory_space<vmem>>, vector<1x128x256xf32>
    %164 = vector.shape_cast %163 : vector<1x128x256xf32> to vector<128x256xf32>
    %cst_139 = arith.constant dense<0.000000e+00> : vector<32x256xf32>
    %165 = tpu.matmul %131, %164, %cst_139 {dimension_numbers = #tpu.dot_dimension_numbers<[1], [0], [0], [1], [0, 0, 1, 1], [], []>} : vector<32x128xf32>, vector<128x256xf32>, vector<32x256xf32> -> vector<32x256xf32>
    %166 = arith.addf %162, %165 : vector<32x256xf32>
    %c2_140 = arith.constant 2 : index
    %c0_141 = arith.constant 0 : index
    %c0_142 = arith.constant 0 : index
    %167 = vector.load %arg4[%c2_140, %c0_141, %c0_142] : memref<5x128x256xf32, #tpu.memory_space<vmem>>, vector<1x128x256xf32>
    %168 = vector.shape_cast %167 : vector<1x128x256xf32> to vector<128x256xf32>
    %cst_143 = arith.constant dense<0.000000e+00> : vector<32x256xf32>
    %169 = tpu.matmul %133, %168, %cst_143 {dimension_numbers = #tpu.dot_dimension_numbers<[1], [0], [0], [1], [0, 0, 1, 1], [], []>} : vector<32x128xf32>, vector<128x256xf32>, vector<32x256xf32> -> vector<32x256xf32>
    %170 = arith.addf %166, %169 : vector<32x256xf32>
    %c3_144 = arith.constant 3 : index
    %c0_145 = arith.constant 0 : index
    %c0_146 = arith.constant 0 : index
    %171 = vector.load %arg4[%c3_144, %c0_145, %c0_146] : memref<5x128x256xf32, #tpu.memory_space<vmem>>, vector<1x128x256xf32>
    %172 = vector.shape_cast %171 : vector<1x128x256xf32> to vector<128x256xf32>
    %cst_147 = arith.constant dense<0.000000e+00> : vector<32x256xf32>
    %173 = tpu.matmul %135, %172, %cst_147 {dimension_numbers = #tpu.dot_dimension_numbers<[1], [0], [0], [1], [0, 0, 1, 1], [], []>} : vector<32x128xf32>, vector<128x256xf32>, vector<32x256xf32> -> vector<32x256xf32>
    %174 = arith.addf %170, %173 : vector<32x256xf32>
    %c4_148 = arith.constant 4 : index
    %c0_149 = arith.constant 0 : index
    %c0_150 = arith.constant 0 : index
    %175 = vector.load %arg4[%c4_148, %c0_149, %c0_150] : memref<5x128x256xf32, #tpu.memory_space<vmem>>, vector<1x128x256xf32>
    %176 = vector.shape_cast %175 : vector<1x128x256xf32> to vector<128x256xf32>
    %cst_151 = arith.constant dense<0.000000e+00> : vector<32x256xf32>
    %177 = tpu.matmul %137, %176, %cst_151 {dimension_numbers = #tpu.dot_dimension_numbers<[1], [0], [0], [1], [0, 0, 1, 1], [], []>} : vector<32x128xf32>, vector<128x256xf32>, vector<32x256xf32> -> vector<32x256xf32>
    %178 = arith.addf %174, %177 : vector<32x256xf32>
    %179 = vector.extract_strided_slice %178 {offsets = [0, 0], sizes = [32, 128], strides = [1, 1]} : vector<32x256xf32> to vector<32x128xf32>
    %180 = vector.extract_strided_slice %178 {offsets = [0, 128], sizes = [32, 128], strides = [1, 1]} : vector<32x256xf32> to vector<32x128xf32>
    %181 = arith.maximumf %179, %180 : vector<32x128xf32>
    %182 = arith.maximumf %159, %181 : vector<32x128xf32>
    %183 = vector.broadcast %1 : vector<1x128xf32> to vector<32x128xf32>
    %184 = arith.addf %182, %183 : vector<32x128xf32>
    %cst_152 = arith.constant 0.000000e+00 : f32
    %185 = vector.broadcast %cst_152 : f32 to vector<32x128xf32>
    %186 = arith.maximumf %184, %185 : vector<32x128xf32>
    %c0_153 = arith.constant 0 : index
    %c0_154 = arith.constant 0 : index
    %187 = vector.load %arg10[%c0_153, %c0_154] : memref<32x128xf32, #tpu.memory_space<vmem>>, vector<32x128xf32>
    tpu.vector_store %arg10[%c0_153, %c0_154], %186 {strides = array<i32>} : memref<32x128xf32, #tpu.memory_space<vmem>>, vector<32x128xf32>,
    %188 = vector.shape_cast %186 : vector<32x128xf32> to vector<8x4x128xf32>
    %c0_155 = arith.constant 0 : index
    %c0_156 = arith.constant 0 : index
    %189 = vector.load %arg7[%c0_155, %c0_156] : memref<1x64xf32, #tpu.memory_space<vmem>>, vector<1x64xf32>
    %190 = vector.extract_strided_slice %188 {offsets = [0, 0, 0], sizes = [8, 1, 128], strides = [1, 1, 1]} : vector<8x4x128xf32> to vector<8x1x128xf32>
    %191 = vector.shape_cast %190 : vector<8x1x128xf32> to vector<8x128xf32>
    %c0_157 = arith.constant 0 : index
    %c0_158 = arith.constant 0 : index
    %192 = vector.load %arg6[%c0_157, %c0_158] : memref<512x64xf32, #tpu.memory_space<vmem>>, vector<128x64xf32>
    %cst_159 = arith.constant dense<0.000000e+00> : vector<8x64xf32>
    %193 = tpu.matmul %191, %192, %cst_159 {dimension_numbers = #tpu.dot_dimension_numbers<[1], [0], [0], [1], [0, 0, 1, 1], [], []>} : vector<8x128xf32>, vector<128x64xf32>, vector<8x64xf32> -> vector<8x64xf32>
    %194 = vector.broadcast %189 : vector<1x64xf32> to vector<8x64xf32>
    %195 = arith.addf %194, %193 : vector<8x64xf32>
    %196 = vector.extract_strided_slice %188 {offsets = [0, 1, 0], sizes = [8, 1, 128], strides = [1, 1, 1]} : vector<8x4x128xf32> to vector<8x1x128xf32>
    %197 = vector.shape_cast %196 : vector<8x1x128xf32> to vector<8x128xf32>
    %c128 = arith.constant 128 : index
    %c0_160 = arith.constant 0 : index
    %198 = vector.load %arg6[%c128, %c0_160] : memref<512x64xf32, #tpu.memory_space<vmem>>, vector<128x64xf32>
    %cst_161 = arith.constant dense<0.000000e+00> : vector<8x64xf32>
    %199 = tpu.matmul %197, %198, %cst_161 {dimension_numbers = #tpu.dot_dimension_numbers<[1], [0], [0], [1], [0, 0, 1, 1], [], []>} : vector<8x128xf32>, vector<128x64xf32>, vector<8x64xf32> -> vector<8x64xf32>
    %200 = arith.addf %195, %199 : vector<8x64xf32>
    %201 = vector.extract_strided_slice %188 {offsets = [0, 2, 0], sizes = [8, 1, 128], strides = [1, 1, 1]} : vector<8x4x128xf32> to vector<8x1x128xf32>
    %202 = vector.shape_cast %201 : vector<8x1x128xf32> to vector<8x128xf32>
    %c256 = arith.constant 256 : index
    %c0_162 = arith.constant 0 : index
    %203 = vector.load %arg6[%c256, %c0_162] : memref<512x64xf32, #tpu.memory_space<vmem>>, vector<128x64xf32>
    %cst_163 = arith.constant dense<0.000000e+00> : vector<8x64xf32>
    %204 = tpu.matmul %202, %203, %cst_163 {dimension_numbers = #tpu.dot_dimension_numbers<[1], [0], [0], [1], [0, 0, 1, 1], [], []>} : vector<8x128xf32>, vector<128x64xf32>, vector<8x64xf32> -> vector<8x64xf32>
    %205 = arith.addf %200, %204 : vector<8x64xf32>
    %206 = vector.extract_strided_slice %188 {offsets = [0, 3, 0], sizes = [8, 1, 128], strides = [1, 1, 1]} : vector<8x4x128xf32> to vector<8x1x128xf32>
    %207 = vector.shape_cast %206 : vector<8x1x128xf32> to vector<8x128xf32>
    %c384 = arith.constant 384 : index
    %c0_164 = arith.constant 0 : index
    %208 = vector.load %arg6[%c384, %c0_164] : memref<512x64xf32, #tpu.memory_space<vmem>>, vector<128x64xf32>
    %cst_165 = arith.constant dense<0.000000e+00> : vector<8x64xf32>
    %209 = tpu.matmul %207, %208, %cst_165 {dimension_numbers = #tpu.dot_dimension_numbers<[1], [0], [0], [1], [0, 0, 1, 1], [], []>} : vector<8x128xf32>, vector<128x64xf32>, vector<8x64xf32> -> vector<8x64xf32>
    %210 = arith.addf %205, %209 : vector<8x64xf32>
    %cst_166 = arith.constant 0.000000e+00 : f32
    %211 = vector.broadcast %cst_166 : f32 to vector<8x64xf32>
    %212 = arith.maximumf %210, %211 : vector<8x64xf32>
    %c0_167 = arith.constant 0 : index
    %c0_168 = arith.constant 0 : index
    %213 = vector.load %arg8[%c0_167, %c0_168] : memref<64x128xf32, #tpu.memory_space<vmem>>, vector<64x128xf32>
    %cst_169 = arith.constant dense<0.000000e+00> : vector<8x128xf32>
    %214 = tpu.matmul %212, %213, %cst_169 {dimension_numbers = #tpu.dot_dimension_numbers<[1], [0], [0], [1], [0, 0, 1, 1], [], []>} : vector<8x64xf32>, vector<64x128xf32>, vector<8x128xf32> -> vector<8x128xf32>
    %c0_170 = arith.constant 0 : index
    %c0_171 = arith.constant 0 : index
    %215 = vector.load %arg9[%c0_170, %c0_171] : memref<1x128xf32, #tpu.memory_space<vmem>>, vector<1x128xf32>
    %216 = vector.broadcast %215 : vector<1x128xf32> to vector<8x128xf32>
    %217 = arith.addf %214, %216 : vector<8x128xf32>
    %c0_172 = arith.constant 0 : index
    %c0_173 = arith.constant 0 : index
    %218 = vector.load %arg11[%c0_172, %c0_173] : memref<8x128xf32, #tpu.memory_space<vmem>>, vector<8x128xf32>
    tpu.vector_store %arg11[%c0_172, %c0_173], %217 {strides = array<i32>} : memref<8x128xf32, #tpu.memory_space<vmem>>, vector<8x128xf32>,
    return
  }
  func.func @transform_0(%arg0: i32) -> (i32, i32, i32, i32) {
    %c0_i32 = arith.constant 0 : i32
    %c0_i32_0 = arith.constant 0 : i32
    %c0_i32_1 = arith.constant 0 : i32
    %c0_i32_2 = arith.constant 0 : i32
    return %arg0, %c0_i32, %c0_i32_0, %c0_i32_1 : i32, i32, i32, i32
  }
  func.func @transform_1(%arg0: i32) -> (i32, i32, i32) {
    %c0_i32 = arith.constant 0 : i32
    %c0_i32_0 = arith.constant 0 : i32
    %c0_i32_1 = arith.constant 0 : i32
    %c0_i32_2 = arith.constant 0 : i32
    return %c0_i32, %c0_i32_0, %c0_i32_1 : i32, i32, i32
  }
  func.func @transform_2(%arg0: i32) -> (i32, i32) {
    %c0_i32 = arith.constant 0 : i32
    %c0_i32_0 = arith.constant 0 : i32
    %c0_i32_1 = arith.constant 0 : i32
    return %c0_i32, %c0_i32_0 : i32, i32
  }
  func.func @transform_3(%arg0: i32) -> (i32, i32, i32) {
    %c0_i32 = arith.constant 0 : i32
    %c0_i32_0 = arith.constant 0 : i32
    %c0_i32_1 = arith.constant 0 : i32
    %c0_i32_2 = arith.constant 0 : i32
    return %c0_i32, %c0_i32_0, %c0_i32_1 : i32, i32, i32
  }
  func.func @transform_4(%arg0: i32) -> (i32, i32) {
    %c0_i32 = arith.constant 0 : i32
    %c0_i32_0 = arith.constant 0 : i32
    %c0_i32_1 = arith.constant 0 : i32
    return %c0_i32, %c0_i32_0 : i32, i32
  }
  func.func @transform_5(%arg0: i32) -> (i32, i32) {
    %c0_i32 = arith.constant 0 : i32
    %c0_i32_0 = arith.constant 0 : i32
    %c0_i32_1 = arith.constant 0 : i32
    return %c0_i32, %c0_i32_0 : i32, i32
  }
  func.func @transform_6(%arg0: i32) -> (i32, i32) {
    %c0_i32 = arith.constant 0 : i32
    %c0_i32_0 = arith.constant 0 : i32
    %c0_i32_1 = arith.constant 0 : i32
    return %c0_i32, %c0_i32_0 : i32, i32
  }
  func.func @transform_7(%arg0: i32) -> (i32, i32) {
    %c0_i32 = arith.constant 0 : i32
    %c0_i32_0 = arith.constant 0 : i32
    %c0_i32_1 = arith.constant 0 : i32
    return %c0_i32, %c0_i32_0 : i32, i32
  }
  func.func @transform_8(%arg0: i32) -> (i32, i32) {
    %c0_i32 = arith.constant 0 : i32
    %c0_i32_0 = arith.constant 0 : i32
    %c0_i32_1 = arith.constant 0 : i32
    return %c0_i32, %c0_i32_0 : i32, i32
  }
  func.func @transform_9(%arg0: i32) -> (i32, i32) {
    %c0_i32 = arith.constant 0 : i32
    %c0_i32_0 = arith.constant 0 : i32
    return %arg0, %c0_i32 : i32, i32
  }
  func.func @transform_10(%arg0: i32) -> (i32, i32) {
    %c0_i32 = arith.constant 0 : i32
    %c0_i32_0 = arith.constant 0 : i32
    return %arg0, %c0_i32 : i32, i32
  }
}

</mosaic_0001>

<llo_original>
// kernel: cnn_mnist_forward.1
$region0: #{cnn_mnist_forward.1}
  #allocation0 [shape = 'u32[]', space=smem, size = 0x4, offset = 0x4, fixed_abs, tag = 'smem constant byte address 0x4 - core index']
  #allocation1 [shape = 'u32[144,128]{1,0:T(1,128)}', space=vmem, size = 0x12000, scoped, tag = 'internal scratch']
  %s0 = inlined_call_operand.vmem [shape: f32[8,4,7,32], index: 0, kind: input, shape index: {}]
  %s1 = inlined_call_operand.vmem [shape: f32[5,32,256], index: 1, kind: input, shape index: {}]
  %s2 = inlined_call_operand.vmem [shape: f32[1,128], index: 2, kind: input, shape index: {}]
  %s3 = inlined_call_operand.vmem [shape: f32[5,128,256], index: 3, kind: input, shape index: {}]
  %s4 = inlined_call_operand.vmem [shape: f32[1,128], index: 4, kind: input, shape index: {}]
  %s5 = inlined_call_operand.vmem [shape: f32[512,64], index: 5, kind: input, shape index: {}]
  %s6 = inlined_call_operand.vmem [shape: f32[1,64], index: 6, kind: input, shape index: {}]
  %s7 = inlined_call_operand.vmem [shape: f32[64,128], index: 7, kind: input, shape index: {}]
  %s8 = inlined_call_operand.vmem [shape: f32[1,128], index: 8, kind: input, shape index: {}]
  %s9 = inlined_call_operand.vmem [shape: f32[32,128], index: 9, kind: output, shape index: {0}]
  %s10 = inlined_call_operand.vmem [shape: f32[8,128], index: 10, kind: output, shape index: {1}]
  %11 = xla_tuple %s9, %s10
  %s12 = sld [smem:[#allocation0]]
  $region54: #{cnn_mnist_forward.1} parent=0
    _
  %s14 = ssub.s32 1, %s12
  %s15 = scalar_select 0, %s14, %s12
  // Predicated region
  $region2: #{cnn_mnist_forward.1} parent=0 // pred_check
    _
  $region3: #{cnn_mnist_forward.1} parent=0 // pred_check_branch
    %17 = sbr.rel (0) target = $region5
  $region4: #{cnn_mnist_forward.1} parent=0 // pred_region
    _
  $region5: #{cnn_mnist_forward.1} parent=0 // pred_fallthru
    _
  // Predicated region
  $region6: #{cnn_mnist_forward.1} parent=0 // pred_check
    _
  $region7: #{cnn_mnist_forward.1} parent=0 // pred_check_branch
    %19 = sbr.rel (0) target = $region9
  $region8: #{cnn_mnist_forward.1} parent=0 // pred_region
    _
  $region9: #{cnn_mnist_forward.1} parent=0 // pred_fallthru
    _
  // Predicated region
  $region10: #{cnn_mnist_forward.1} parent=0 // pred_check
    _
  $region11: #{cnn_mnist_forward.1} parent=0 // pred_check_branch
    %21 = sbr.rel (0) target = $region13
  $region12: #{cnn_mnist_forward.1} parent=0 // pred_region
    _
  $region13: #{cnn_mnist_forward.1} parent=0 // pred_fallthru
    _
  // Predicated region
  $region14: #{cnn_mnist_forward.1} parent=0 // pred_check
    _
  $region15: #{cnn_mnist_forward.1} parent=0 // pred_check_branch
    %23 = sbr.rel (0) target = $region17
  $region16: #{cnn_mnist_forward.1} parent=0 // pred_region
    _
  $region17: #{cnn_mnist_forward.1} parent=0 // pred_fallthru
    _
  // Predicated region
  $region18: #{cnn_mnist_forward.1} parent=0 // pred_check
    _
  $region19: #{cnn_mnist_forward.1} parent=0 // pred_check_branch
    %25 = sbr.rel (0) target = $region21
  $region20: #{cnn_mnist_forward.1} parent=0 // pred_region
    _
  $region21: #{cnn_mnist_forward.1} parent=0 // pred_fallthru
    _
  // Predicated region
  $region22: #{cnn_mnist_forward.1} parent=0 // pred_check
    _
  $region23: #{cnn_mnist_forward.1} parent=0 // pred_check_branch
    %27 = sbr.rel (0) target = $region25
  $region24: #{cnn_mnist_forward.1} parent=0 // pred_region
    _
  $region25: #{cnn_mnist_forward.1} parent=0 // pred_fallthru
    _
  // Predicated region
  $region26: #{cnn_mnist_forward.1} parent=0 // pred_check
    _
  $region27: #{cnn_mnist_forward.1} parent=0 // pred_check_branch
    %29 = sbr.rel (0) target = $region29
  $region28: #{cnn_mnist_forward.1} parent=0 // pred_region
    _
  $region29: #{cnn_mnist_forward.1} parent=0 // pred_fallthru
    _
  // Predicated region
  $region30: #{cnn_mnist_forward.1} parent=0 // pred_check
    _
  $region31: #{cnn_mnist_forward.1} parent=0 // pred_check_branch
    %31 = sbr.rel (0) target = $region33
  $region32: #{cnn_mnist_forward.1} parent=0 // pred_region
    _
  $region33: #{cnn_mnist_forward.1} parent=0 // pred_fallthru
    _
  // Predicated region
  $region34: #{cnn_mnist_forward.1} parent=0 // pred_check
    _
  $region35: #{cnn_mnist_forward.1} parent=0 // pred_check_branch
    %33 = sbr.rel (0) target = $region37
  $region36: #{cnn_mnist_forward.1} parent=0 // pred_region
    _
  $region37: #{cnn_mnist_forward.1} parent=0 // pred_fallthru
    _
  %v34 = vld [vmem:[%s2] sm:$0x1]
  %v35 = vld [vmem:[%s4] sm:$0x1]
  %v36 = vld [vmem:[%s0] sm:$0x3f]
  %v37 = vld [vmem:[%s0 + $0x20] sm:$0x3f]
  %v38 = vld [vmem:[%s0 + $0x40] sm:$0x3f]
  %v39 = vld [vmem:[%s0 + $0x60] sm:$0x3f]
  %v40 = vld [vmem:[%s0 + $0x80] sm:$0x3f]
  %v41 = vld [vmem:[%s0 + $0xa0] sm:$0x3f]
  %v42 = vld [vmem:[%s0 + $0xc0] sm:$0x3f]
  %v43 = vld [vmem:[%s0 + $0xe0] sm:$0x3f]
  %v52 = vcombine.high %v36, %v36
  %v54 = vunpack.c.l.s4 1983009808
  %v55 = vunpack.c.0.s8 %v54
  %v56 = vlaneseq
  %v57 = vshrl.u32 %v56, 7
  %v58 = vsub.s32 %v55, %v57
  %v59 = vrot.slane %v36, %v58
  %v61 = vunpack.c.l.s4 1983009808
  %v62 = vunpack.c.0.s8 %v61
  %v63 = vlaneseq
  %v64 = vshrl.u32 %v63, 7
  %v65 = vsub.s32 %v62, %v64
  %v66 = vrot.slane %v52, %v65
  %v67 = vcombine.high %v59, %v59
  %v68 = vcombine.high %v37, %v37
  %v70 = vunpack.c.l.s4 1983009808
  %v71 = vunpack.c.0.s8 %v70
  %v72 = vlaneseq
  %v73 = vshrl.u32 %v72, 7
  %v74 = vsub.s32 %v71, %v73
  %v75 = vrot.slane %v37, %v74
  %v77 = vunpack.c.l.s4 1983009808
  %v78 = vunpack.c.0.s8 %v77
  %v79 = vlaneseq
  %v80 = vshrl.u32 %v79, 7
  %v81 = vsub.s32 %v78, %v80
  %v82 = vrot.slane %v68, %v81
  %v83 = vcombine.high %v75, %v75
  %v84 = vcombine.high %v38, %v38
  %v86 = vunpack.c.l.s4 1983009808
  %v87 = vunpack.c.0.s8 %v86
  %v88 = vlaneseq
  %v89 = vshrl.u32 %v88, 7
  %v90 = vsub.s32 %v87, %v89
  %v91 = vrot.slane %v38, %v90
  %v93 = vunpack.c.l.s4 1983009808
  %v94 = vunpack.c.0.s8 %v93
  %v95 = vlaneseq
  %v96 = vshrl.u32 %v95, 7
  %v97 = vsub.s32 %v94, %v96
  %v98 = vrot.slane %v84, %v97
  %v99 = vcombine.high %v91, %v91
  %v100 = vcombine.high %v39, %v39
  %v102 = vunpack.c.l.s4 1983009808
  %v103 = vunpack.c.0.s8 %v102
  %v104 = vlaneseq
  %v105 = vshrl.u32 %v104, 7
  %v106 = vsub.s32 %v103, %v105
  %v107 = vrot.slane %v39, %v106
  %v109 = vunpack.c.l.s4 1983009808
  %v110 = vunpack.c.0.s8 %v109
  %v111 = vlaneseq
  %v112 = vshrl.u32 %v111, 7
  %v113 = vsub.s32 %v110, %v112
  %v114 = vrot.slane %v100, %v113
  %v115 = vcombine.high %v107, %v107
  %v116 = vcombine.high %v40, %v40
  %v118 = vunpack.c.l.s4 1983009808
  %v119 = vunpack.c.0.s8 %v118
  %v120 = vlaneseq
  %v121 = vshrl.u32 %v120, 7
  %v122 = vsub.s32 %v119, %v121
  %v123 = vrot.slane %v40, %v122
  %v125 = vunpack.c.l.s4 1983009808
  %v126 = vunpack.c.0.s8 %v125
  %v127 = vlaneseq
  %v128 = vshrl.u32 %v127, 7
  %v129 = vsub.s32 %v126, %v128
  %v130 = vrot.slane %v116, %v129
  %v131 = vcombine.high %v123, %v123
  %v132 = vcombine.high %v41, %v41
  %v134 = vunpack.c.l.s4 1983009808
  %v135 = vunpack.c.0.s8 %v134
  %v136 = vlaneseq
  %v137 = vshrl.u32 %v136, 7
  %v138 = vsub.s32 %v135, %v137
  %v139 = vrot.slane %v41, %v138
  %v141 = vunpack.c.l.s4 1983009808
  %v142 = vunpack.c.0.s8 %v141
  %v143 = vlaneseq
  %v144 = vshrl.u32 %v143, 7
  %v145 = vsub.s32 %v142, %v144
  %v146 = vrot.slane %v132, %v145
  %v147 = vcombine.high %v139, %v139
  %v148 = vcombine.high %v42, %v42
  %v150 = vunpack.c.l.s4 1983009808
  %v151 = vunpack.c.0.s8 %v150
  %v152 = vlaneseq
  %v153 = vshrl.u32 %v152, 7
  %v154 = vsub.s32 %v151, %v153
  %v155 = vrot.slane %v42, %v154
  %v157 = vunpack.c.l.s4 1983009808
  %v158 = vunpack.c.0.s8 %v157
  %v159 = vlaneseq
  %v160 = vshrl.u32 %v159, 7
  %v161 = vsub.s32 %v158, %v160
  %v162 = vrot.slane %v148, %v161
  %v163 = vcombine.high %v155, %v155
  %v164 = vcombine.high %v43, %v43
  %v166 = vunpack.c.l.s4 1983009808
  %v167 = vunpack.c.0.s8 %v166
  %v168 = vlaneseq
  %v169 = vshrl.u32 %v168, 7
  %v170 = vsub.s32 %v167, %v169
  %v171 = vrot.slane %v43, %v170
  %v173 = vunpack.c.l.s4 1983009808
  %v174 = vunpack.c.0.s8 %v173
  %v175 = vlaneseq
  %v176 = vshrl.u32 %v175, 7
  %v177 = vsub.s32 %v174, %v176
  %v178 = vrot.slane %v164, %v177
  %v179 = vcombine.high %v171, %v171
  %s180 = scalar_lea.vmem %s0, 8
  %v181 = vld [vmem:[%s180] sm:$0x3f]
  %v182 = vld [vmem:[%s180 + $0x20] sm:$0x3f]
  %v183 = vld [vmem:[%s180 + $0x40] sm:$0x3f]
  %v184 = vld [vmem:[%s180 + $0x60] sm:$0x3f]
  %v185 = vld [vmem:[%s180 + $0x80] sm:$0x3f]
  %v186 = vld [vmem:[%s180 + $0xa0] sm:$0x3f]
  %v187 = vld [vmem:[%s180 + $0xc0] sm:$0x3f]
  %v188 = vld [vmem:[%s180 + $0xe0] sm:$0x3f]
  %v197 = vcombine.high %v181, %v181
  %v199 = vunpack.c.l.s4 1983009808
  %v200 = vunpack.c.0.s8 %v199
  %v201 = vlaneseq
  %v202 = vshrl.u32 %v201, 7
  %v203 = vsub.s32 %v200, %v202
  %v204 = vrot.slane %v181, %v203
  %v206 = vunpack.c.l.s4 1983009808
  %v207 = vunpack.c.0.s8 %v206
  %v208 = vlaneseq
  %v209 = vshrl.u32 %v208, 7
  %v210 = vsub.s32 %v207, %v209
  %v211 = vrot.slane %v197, %v210
  %v212 = vcombine.high %v204, %v204
  %v213 = vcombine.high %v182, %v182
  %v215 = vunpack.c.l.s4 1983009808
  %v216 = vunpack.c.0.s8 %v215
  %v217 = vlaneseq
  %v218 = vshrl.u32 %v217, 7
  %v219 = vsub.s32 %v216, %v218
  %v220 = vrot.slane %v182, %v219
  %v222 = vunpack.c.l.s4 1983009808
  %v223 = vunpack.c.0.s8 %v222
  %v224 = vlaneseq
  %v225 = vshrl.u32 %v224, 7
  %v226 = vsub.s32 %v223, %v225
  %v227 = vrot.slane %v213, %v226
  %v228 = vcombine.high %v220, %v220
  %v229 = vcombine.high %v183, %v183
  %v231 = vunpack.c.l.s4 1983009808
  %v232 = vunpack.c.0.s8 %v231
  %v233 = vlaneseq
  %v234 = vshrl.u32 %v233, 7
  %v235 = vsub.s32 %v232, %v234
  %v236 = vrot.slane %v183, %v235
  %v238 = vunpack.c.l.s4 1983009808
  %v239 = vunpack.c.0.s8 %v238
  %v240 = vlaneseq
  %v241 = vshrl.u32 %v240, 7
  %v242 = vsub.s32 %v239, %v241
  %v243 = vrot.slane %v229, %v242
  %v244 = vcombine.high %v236, %v236
  %v245 = vcombine.high %v184, %v184
  %v247 = vunpack.c.l.s4 1983009808
  %v248 = vunpack.c.0.s8 %v247
  %v249 = vlaneseq
  %v250 = vshrl.u32 %v249, 7
  %v251 = vsub.s32 %v248, %v250
  %v252 = vrot.slane %v184, %v251
  %v254 = vunpack.c.l.s4 1983009808
  %v255 = vunpack.c.0.s8 %v254
  %v256 = vlaneseq
  %v257 = vshrl.u32 %v256, 7
  %v258 = vsub.s32 %v255, %v257
  %v259 = vrot.slane %v245, %v258
  %v260 = vcombine.high %v252, %v252
  %v261 = vcombine.high %v185, %v185
  %v263 = vunpack.c.l.s4 1983009808
  %v264 = vunpack.c.0.s8 %v263
  %v265 = vlaneseq
  %v266 = vshrl.u32 %v265, 7
  %v267 = vsub.s32 %v264, %v266
  %v268 = vrot.slane %v185, %v267
  %v270 = vunpack.c.l.s4 1983009808
  %v271 = vunpack.c.0.s8 %v270
  %v272 = vlaneseq
  %v273 = vshrl.u32 %v272, 7
  %v274 = vsub.s32 %v271, %v273
  %v275 = vrot.slane %v261, %v274
  %v276 = vcombine.high %v268, %v268
  %v277 = vcombine.high %v186, %v186
  %v279 = vunpack.c.l.s4 1983009808
  %v280 = vunpack.c.0.s8 %v279
  %v281 = vlaneseq
  %v282 = vshrl.u32 %v281, 7
  %v283 = vsub.s32 %v280, %v282
  %v284 = vrot.slane %v186, %v283
  %v286 = vunpack.c.l.s4 1983009808
  %v287 = vunpack.c.0.s8 %v286
  %v288 = vlaneseq
  %v289 = vshrl.u32 %v288, 7
  %v290 = vsub.s32 %v287, %v289
  %v291 = vrot.slane %v277, %v290
  %v292 = vcombine.high %v284, %v284
  %v293 = vcombine.high %v187, %v187
  %v295 = vunpack.c.l.s4 1983009808
  %v296 = vunpack.c.0.s8 %v295
  %v297 = vlaneseq
  %v298 = vshrl.u32 %v297, 7
  %v299 = vsub.s32 %v296, %v298
  %v300 = vrot.slane %v187, %v299
  %v302 = vunpack.c.l.s4 1983009808
  %v303 = vunpack.c.0.s8 %v302
  %v304 = vlaneseq
  %v305 = vshrl.u32 %v304, 7
  %v306 = vsub.s32 %v303, %v305
  %v307 = vrot.slane %v293, %v306
  %v308 = vcombine.high %v300, %v300
  %v309 = vcombine.high %v188, %v188
  %v311 = vunpack.c.l.s4 1983009808
  %v312 = vunpack.c.0.s8 %v311
  %v313 = vlaneseq
  %v314 = vshrl.u32 %v313, 7
  %v315 = vsub.s32 %v312, %v314
  %v316 = vrot.slane %v188, %v315
  %v318 = vunpack.c.l.s4 1983009808
  %v319 = vunpack.c.0.s8 %v318
  %v320 = vlaneseq
  %v321 = vshrl.u32 %v320, 7
  %v322 = vsub.s32 %v319, %v321
  %v323 = vrot.slane %v309, %v322
  %v324 = vcombine.high %v316, %v316
  %s325 = scalar_lea.vmem %s0, 16
  %v326 = vld [vmem:[%s325] sm:$0x3f]
  %v327 = vld [vmem:[%s325 + $0x20] sm:$0x3f]
  %v328 = vld [vmem:[%s325 + $0x40] sm:$0x3f]
  %v329 = vld [vmem:[%s325 + $0x60] sm:$0x3f]
  %v330 = vld [vmem:[%s325 + $0x80] sm:$0x3f]
  %v331 = vld [vmem:[%s325 + $0xa0] sm:$0x3f]
  %v332 = vld [vmem:[%s325 + $0xc0] sm:$0x3f]
  %v333 = vld [vmem:[%s325 + $0xe0] sm:$0x3f]
  %v342 = vcombine.high %v326, %v326
  %v344 = vunpack.c.l.s4 1983009808
  %v345 = vunpack.c.0.s8 %v344
  %v346 = vlaneseq
  %v347 = vshrl.u32 %v346, 7
  %v348 = vsub.s32 %v345, %v347
  %v349 = vrot.slane %v326, %v348
  %v351 = vunpack.c.l.s4 1983009808
  %v352 = vunpack.c.0.s8 %v351
  %v353 = vlaneseq
  %v354 = vshrl.u32 %v353, 7
  %v355 = vsub.s32 %v352, %v354
  %v356 = vrot.slane %v342, %v355
  %v357 = vcombine.high %v349, %v349
  %v358 = vcombine.high %v327, %v327
  %v360 = vunpack.c.l.s4 1983009808
  %v361 = vunpack.c.0.s8 %v360
  %v362 = vlaneseq
  %v363 = vshrl.u32 %v362, 7
  %v364 = vsub.s32 %v361, %v363
  %v365 = vrot.slane %v327, %v364
  %v367 = vunpack.c.l.s4 1983009808
  %v368 = vunpack.c.0.s8 %v367
  %v369 = vlaneseq
  %v370 = vshrl.u32 %v369, 7
  %v371 = vsub.s32 %v368, %v370
  %v372 = vrot.slane %v358, %v371
  %v373 = vcombine.high %v365, %v365
  %v374 = vcombine.high %v328, %v328
  %v376 = vunpack.c.l.s4 1983009808
  %v377 = vunpack.c.0.s8 %v376
  %v378 = vlaneseq
  %v379 = vshrl.u32 %v378, 7
  %v380 = vsub.s32 %v377, %v379
  %v381 = vrot.slane %v328, %v380
  %v383 = vunpack.c.l.s4 1983009808
  %v384 = vunpack.c.0.s8 %v383
  %v385 = vlaneseq
  %v386 = vshrl.u32 %v385, 7
  %v387 = vsub.s32 %v384, %v386
  %v388 = vrot.slane %v374, %v387
  %v389 = vcombine.high %v381, %v381
  %v390 = vcombine.high %v329, %v329
  %v392 = vunpack.c.l.s4 1983009808
  %v393 = vunpack.c.0.s8 %v392
  %v394 = vlaneseq
  %v395 = vshrl.u32 %v394, 7
  %v396 = vsub.s32 %v393, %v395
  %v397 = vrot.slane %v329, %v396
  %v399 = vunpack.c.l.s4 1983009808
  %v400 = vunpack.c.0.s8 %v399
  %v401 = vlaneseq
  %v402 = vshrl.u32 %v401, 7
  %v403 = vsub.s32 %v400, %v402
  %v404 = vrot.slane %v390, %v403
  %v405 = vcombine.high %v397, %v397
  %v406 = vcombine.high %v330, %v330
  %v408 = vunpack.c.l.s4 1983009808
  %v409 = vunpack.c.0.s8 %v408
  %v410 = vlaneseq
  %v411 = vshrl.u32 %v410, 7
  %v412 = vsub.s32 %v409, %v411
  %v413 = vrot.slane %v330, %v412
  %v415 = vunpack.c.l.s4 1983009808
  %v416 = vunpack.c.0.s8 %v415
  %v417 = vlaneseq
  %v418 = vshrl.u32 %v417, 7
  %v419 = vsub.s32 %v416, %v418
  %v420 = vrot.slane %v406, %v419
  %v421 = vcombine.high %v413, %v413
  %v422 = vcombine.high %v331, %v331
  %v424 = vunpack.c.l.s4 1983009808
  %v425 = vunpack.c.0.s8 %v424
  %v426 = vlaneseq
  %v427 = vshrl.u32 %v426, 7
  %v428 = vsub.s32 %v425, %v427
  %v429 = vrot.slane %v331, %v428
  %v431 = vunpack.c.l.s4 1983009808
  %v432 = vunpack.c.0.s8 %v431
  %v433 = vlaneseq
  %v434 = vshrl.u32 %v433, 7
  %v435 = vsub.s32 %v432, %v434
  %v436 = vrot.slane %v422, %v435
  %v437 = vcombine.high %v429, %v429
  %v438 = vcombine.high %v332, %v332
  %v440 = vunpack.c.l.s4 1983009808
  %v441 = vunpack.c.0.s8 %v440
  %v442 = vlaneseq
  %v443 = vshrl.u32 %v442, 7
  %v444 = vsub.s32 %v441, %v443
  %v445 = vrot.slane %v332, %v444
  %v447 = vunpack.c.l.s4 1983009808
  %v448 = vunpack.c.0.s8 %v447
  %v449 = vlaneseq
  %v450 = vshrl.u32 %v449, 7
  %v451 = vsub.s32 %v448, %v450
  %v452 = vrot.slane %v438, %v451
  %v453 = vcombine.high %v445, %v445
  %v454 = vcombine.high %v333, %v333
  %v456 = vunpack.c.l.s4 1983009808
  %v457 = vunpack.c.0.s8 %v456
  %v458 = vlaneseq
  %v459 = vshrl.u32 %v458, 7
  %v460 = vsub.s32 %v457, %v459
  %v461 = vrot.slane %v333, %v460
  %v463 = vunpack.c.l.s4 1983009808
  %v464 = vunpack.c.0.s8 %v463
  %v465 = vlaneseq
  %v466 = vshrl.u32 %v465, 7
  %v467 = vsub.s32 %v464, %v466
  %v468 = vrot.slane %v454, %v467
  %v469 = vcombine.high %v461, %v461
  %s470 = scalar_lea.vmem %s0, 24
  %v471 = vld [vmem:[%s470] sm:$0x3f]
  %v472 = vld [vmem:[%s470 + $0x20] sm:$0x3f]
  %v473 = vld [vmem:[%s470 + $0x40] sm:$0x3f]
  %v474 = vld [vmem:[%s470 + $0x60] sm:$0x3f]
  %v475 = vld [vmem:[%s470 + $0x80] sm:$0x3f]
  %v476 = vld [vmem:[%s470 + $0xa0] sm:$0x3f]
  %v477 = vld [vmem:[%s470 + $0xc0] sm:$0x3f]
  %v478 = vld [vmem:[%s470 + $0xe0] sm:$0x3f]
  %v487 = vcombine.high %v471, %v471
  %v489 = vunpack.c.l.s4 1983009808
  %v490 = vunpack.c.0.s8 %v489
  %v491 = vlaneseq
  %v492 = vshrl.u32 %v491, 7
  %v493 = vsub.s32 %v490, %v492
  %v494 = vrot.slane %v471, %v493
  %v496 = vunpack.c.l.s4 1983009808
  %v497 = vunpack.c.0.s8 %v496
  %v498 = vlaneseq
  %v499 = vshrl.u32 %v498, 7
  %v500 = vsub.s32 %v497, %v499
  %v501 = vrot.slane %v487, %v500
  %v502 = vcombine.high %v494, %v494
  %v503 = vcombine.high %v472, %v472
  %v505 = vunpack.c.l.s4 1983009808
  %v506 = vunpack.c.0.s8 %v505
  %v507 = vlaneseq
  %v508 = vshrl.u32 %v507, 7
  %v509 = vsub.s32 %v506, %v508
  %v510 = vrot.slane %v472, %v509
  %v512 = vunpack.c.l.s4 1983009808
  %v513 = vunpack.c.0.s8 %v512
  %v514 = vlaneseq
  %v515 = vshrl.u32 %v514, 7
  %v516 = vsub.s32 %v513, %v515
  %v517 = vrot.slane %v503, %v516
  %v518 = vcombine.high %v510, %v510
  %v519 = vcombine.high %v473, %v473
  %v521 = vunpack.c.l.s4 1983009808
  %v522 = vunpack.c.0.s8 %v521
  %v523 = vlaneseq
  %v524 = vshrl.u32 %v523, 7
  %v525 = vsub.s32 %v522, %v524
  %v526 = vrot.slane %v473, %v525
  %v528 = vunpack.c.l.s4 1983009808
  %v529 = vunpack.c.0.s8 %v528
  %v530 = vlaneseq
  %v531 = vshrl.u32 %v530, 7
  %v532 = vsub.s32 %v529, %v531
  %v533 = vrot.slane %v519, %v532
  %v534 = vcombine.high %v526, %v526
  %v535 = vcombine.high %v474, %v474
  %v537 = vunpack.c.l.s4 1983009808
  %v538 = vunpack.c.0.s8 %v537
  %v539 = vlaneseq
  %v540 = vshrl.u32 %v539, 7
  %v541 = vsub.s32 %v538, %v540
  %v542 = vrot.slane %v474, %v541
  %v544 = vunpack.c.l.s4 1983009808
  %v545 = vunpack.c.0.s8 %v544
  %v546 = vlaneseq
  %v547 = vshrl.u32 %v546, 7
  %v548 = vsub.s32 %v545, %v547
  %v549 = vrot.slane %v535, %v548
  %v550 = vcombine.high %v542, %v542
  %v551 = vcombine.high %v475, %v475
  %v553 = vunpack.c.l.s4 1983009808
  %v554 = vunpack.c.0.s8 %v553
  %v555 = vlaneseq
  %v556 = vshrl.u32 %v555, 7
  %v557 = vsub.s32 %v554, %v556
  %v558 = vrot.slane %v475, %v557
  %v560 = vunpack.c.l.s4 1983009808
  %v561 = vunpack.c.0.s8 %v560
  %v562 = vlaneseq
  %v563 = vshrl.u32 %v562, 7
  %v564 = vsub.s32 %v561, %v563
  %v565 = vrot.slane %v551, %v564
  %v566 = vcombine.high %v558, %v558
  %v567 = vcombine.high %v476, %v476
  %v569 = vunpack.c.l.s4 1983009808
  %v570 = vunpack.c.0.s8 %v569
  %v571 = vlaneseq
  %v572 = vshrl.u32 %v571, 7
  %v573 = vsub.s32 %v570, %v572
  %v574 = vrot.slane %v476, %v573
  %v576 = vunpack.c.l.s4 1983009808
  %v577 = vunpack.c.0.s8 %v576
  %v578 = vlaneseq
  %v579 = vshrl.u32 %v578, 7
  %v580 = vsub.s32 %v577, %v579
  %v581 = vrot.slane %v567, %v580
  %v582 = vcombine.high %v574, %v574
  %v583 = vcombine.high %v477, %v477
  %v585 = vunpack.c.l.s4 1983009808
  %v586 = vunpack.c.0.s8 %v585
  %v587 = vlaneseq
  %v588 = vshrl.u32 %v587, 7
  %v589 = vsub.s32 %v586, %v588
  %v590 = vrot.slane %v477, %v589
  %v592 = vunpack.c.l.s4 1983009808
  %v593 = vunpack.c.0.s8 %v592
  %v594 = vlaneseq
  %v595 = vshrl.u32 %v594, 7
  %v596 = vsub.s32 %v593, %v595
  %v597 = vrot.slane %v583, %v596
  %v598 = vcombine.high %v590, %v590
  %v599 = vcombine.high %v478, %v478
  %v601 = vunpack.c.l.s4 1983009808
  %v602 = vunpack.c.0.s8 %v601
  %v603 = vlaneseq
  %v604 = vshrl.u32 %v603, 7
  %v605 = vsub.s32 %v602, %v604
  %v606 = vrot.slane %v478, %v605
  %v608 = vunpack.c.l.s4 1983009808
  %v609 = vunpack.c.0.s8 %v608
  %v610 = vlaneseq
  %v611 = vshrl.u32 %v610, 7
  %v612 = vsub.s32 %v609, %v611
  %v613 = vrot.slane %v599, %v612
  %v614 = vcombine.high %v606, %v606
  %v615 = vld [vmem:[%s0 + $0x1] sm:$0x3f]
  %v616 = vld [vmem:[%s0 + $0x21] sm:$0x3f]
  %v617 = vld [vmem:[%s0 + $0x41] sm:$0x3f]
  %v618 = vld [vmem:[%s0 + $0x61] sm:$0x3f]
  %v619 = vld [vmem:[%s0 + $0x81] sm:$0x3f]
  %v620 = vld [vmem:[%s0 + $0xa1] sm:$0x3f]
  %v621 = vld [vmem:[%s0 + $0xc1] sm:$0x3f]
  %v622 = vld [vmem:[%s0 + $0xe1] sm:$0x3f]
  %v631 = vcombine.high %v615, %v615
  %v633 = vunpack.c.l.s4 1983009808
  %v634 = vunpack.c.0.s8 %v633
  %v635 = vlaneseq
  %v636 = vshrl.u32 %v635, 7
  %v637 = vsub.s32 %v634, %v636
  %v638 = vrot.slane %v615, %v637
  %v640 = vunpack.c.l.s4 1983009808
  %v641 = vunpack.c.0.s8 %v640
  %v642 = vlaneseq
  %v643 = vshrl.u32 %v642, 7
  %v644 = vsub.s32 %v641, %v643
  %v645 = vrot.slane %v631, %v644
  %v646 = vcombine.high %v638, %v638
  %v647 = vcombine.high %v616, %v616
  %v649 = vunpack.c.l.s4 1983009808
  %v650 = vunpack.c.0.s8 %v649
  %v651 = vlaneseq
  %v652 = vshrl.u32 %v651, 7
  %v653 = vsub.s32 %v650, %v652
  %v654 = vrot.slane %v616, %v653
  %v656 = vunpack.c.l.s4 1983009808
  %v657 = vunpack.c.0.s8 %v656
  %v658 = vlaneseq
  %v659 = vshrl.u32 %v658, 7
  %v660 = vsub.s32 %v657, %v659
  %v661 = vrot.slane %v647, %v660
  %v662 = vcombine.high %v654, %v654
  %v663 = vcombine.high %v617, %v617
  %v665 = vunpack.c.l.s4 1983009808
  %v666 = vunpack.c.0.s8 %v665
  %v667 = vlaneseq
  %v668 = vshrl.u32 %v667, 7
  %v669 = vsub.s32 %v666, %v668
  %v670 = vrot.slane %v617, %v669
  %v672 = vunpack.c.l.s4 1983009808
  %v673 = vunpack.c.0.s8 %v672
  %v674 = vlaneseq
  %v675 = vshrl.u32 %v674, 7
  %v676 = vsub.s32 %v673, %v675
  %v677 = vrot.slane %v663, %v676
  %v678 = vcombine.high %v670, %v670
  %v679 = vcombine.high %v618, %v618
  %v681 = vunpack.c.l.s4 1983009808
  %v682 = vunpack.c.0.s8 %v681
  %v683 = vlaneseq
  %v684 = vshrl.u32 %v683, 7
  %v685 = vsub.s32 %v682, %v684
  %v686 = vrot.slane %v618, %v685
  %v688 = vunpack.c.l.s4 1983009808
  %v689 = vunpack.c.0.s8 %v688
  %v690 = vlaneseq
  %v691 = vshrl.u32 %v690, 7
  %v692 = vsub.s32 %v689, %v691
  %v693 = vrot.slane %v679, %v692
  %v694 = vcombine.high %v686, %v686
  %v695 = vcombine.high %v619, %v619
  %v697 = vunpack.c.l.s4 1983009808
  %v698 = vunpack.c.0.s8 %v697
  %v699 = vlaneseq
  %v700 = vshrl.u32 %v699, 7
  %v701 = vsub.s32 %v698, %v700
  %v702 = vrot.slane %v619, %v701
  %v704 = vunpack.c.l.s4 1983009808
  %v705 = vunpack.c.0.s8 %v704
  %v706 = vlaneseq
  %v707 = vshrl.u32 %v706, 7
  %v708 = vsub.s32 %v705, %v707
  %v709 = vrot.slane %v695, %v708
  %v710 = vcombine.high %v702, %v702
  %v711 = vcombine.high %v620, %v620
  %v713 = vunpack.c.l.s4 1983009808
  %v714 = vunpack.c.0.s8 %v713
  %v715 = vlaneseq
  %v716 = vshrl.u32 %v715, 7
  %v717 = vsub.s32 %v714, %v716
  %v718 = vrot.slane %v620, %v717
  %v720 = vunpack.c.l.s4 1983009808
  %v721 = vunpack.c.0.s8 %v720
  %v722 = vlaneseq
  %v723 = vshrl.u32 %v722, 7
  %v724 = vsub.s32 %v721, %v723
  %v725 = vrot.slane %v711, %v724
  %v726 = vcombine.high %v718, %v718
  %v727 = vcombine.high %v621, %v621
  %v729 = vunpack.c.l.s4 1983009808
  %v730 = vunpack.c.0.s8 %v729
  %v731 = vlaneseq
  %v732 = vshrl.u32 %v731, 7
  %v733 = vsub.s32 %v730, %v732
  %v734 = vrot.slane %v621, %v733
  %v736 = vunpack.c.l.s4 1983009808
  %v737 = vunpack.c.0.s8 %v736
  %v738 = vlaneseq
  %v739 = vshrl.u32 %v738, 7
  %v740 = vsub.s32 %v737, %v739
  %v741 = vrot.slane %v727, %v740
  %v742 = vcombine.high %v734, %v734
  %v743 = vcombine.high %v622, %v622
  %v745 = vunpack.c.l.s4 1983009808
  %v746 = vunpack.c.0.s8 %v745
  %v747 = vlaneseq
  %v748 = vshrl.u32 %v747, 7
  %v749 = vsub.s32 %v746, %v748
  %v750 = vrot.slane %v622, %v749
  %v752 = vunpack.c.l.s4 1983009808
  %v753 = vunpack.c.0.s8 %v752
  %v754 = vlaneseq
  %v755 = vshrl.u32 %v754, 7
  %v756 = vsub.s32 %v753, %v755
  %v757 = vrot.slane %v743, %v756
  %v758 = vcombine.high %v750, %v750
  %v759 = vld [vmem:[%s180 + $0x1] sm:$0x3f]
  %v760 = vld [vmem:[%s180 + $0x21] sm:$0x3f]
  %v761 = vld [vmem:[%s180 + $0x41] sm:$0x3f]
  %v762 = vld [vmem:[%s180 + $0x61] sm:$0x3f]
  %v763 = vld [vmem:[%s180 + $0x81] sm:$0x3f]
  %v764 = vld [vmem:[%s180 + $0xa1] sm:$0x3f]
  %v765 = vld [vmem:[%s180 + $0xc1] sm:$0x3f]
  %v766 = vld [vmem:[%s180 + $0xe1] sm:$0x3f]
  %v775 = vcombine.high %v759, %v759
  %v777 = vunpack.c.l.s4 1983009808
  %v778 = vunpack.c.0.s8 %v777
  %v779 = vlaneseq
  %v780 = vshrl.u32 %v779, 7
  %v781 = vsub.s32 %v778, %v780
  %v782 = vrot.slane %v759, %v781
  %v784 = vunpack.c.l.s4 1983009808
  %v785 = vunpack.c.0.s8 %v784
  %v786 = vlaneseq
  %v787 = vshrl.u32 %v786, 7
  %v788 = vsub.s32 %v785, %v787
  %v789 = vrot.slane %v775, %v788
  %v790 = vcombine.high %v782, %v782
  %v791 = vcombine.high %v760, %v760
  %v793 = vunpack.c.l.s4 1983009808
  %v794 = vunpack.c.0.s8 %v793
  %v795 = vlaneseq
  %v796 = vshrl.u32 %v795, 7
  %v797 = vsub.s32 %v794, %v796
  %v798 = vrot.slane %v760, %v797
  %v800 = vunpack.c.l.s4 1983009808
  %v801 = vunpack.c.0.s8 %v800
  %v802 = vlaneseq
  %v803 = vshrl.u32 %v802, 7
  %v804 = vsub.s32 %v801, %v803
  %v805 = vrot.slane %v791, %v804
  %v806 = vcombine.high %v798, %v798
  %v807 = vcombine.high %v761, %v761
  %v809 = vunpack.c.l.s4 1983009808
  %v810 = vunpack.c.0.s8 %v809
  %v811 = vlaneseq
  %v812 = vshrl.u32 %v811, 7
  %v813 = vsub.s32 %v810, %v812
  %v814 = vrot.slane %v761, %v813
  %v816 = vunpack.c.l.s4 1983009808
  %v817 = vunpack.c.0.s8 %v816
  %v818 = vlaneseq
  %v819 = vshrl.u32 %v818, 7
  %v820 = vsub.s32 %v817, %v819
  %v821 = vrot.slane %v807, %v820
  %v822 = vcombine.high %v814, %v814
  %v823 = vcombine.high %v762, %v762
  %v825 = vunpack.c.l.s4 1983009808
  %v826 = vunpack.c.0.s8 %v825
  %v827 = vlaneseq
  %v828 = vshrl.u32 %v827, 7
  %v829 = vsub.s32 %v826, %v828
  %v830 = vrot.slane %v762, %v829
  %v832 = vunpack.c.l.s4 1983009808
  %v833 = vunpack.c.0.s8 %v832
  %v834 = vlaneseq
  %v835 = vshrl.u32 %v834, 7
  %v836 = vsub.s32 %v833, %v835
  %v837 = vrot.slane %v823, %v836
  %v838 = vcombine.high %v830, %v830
  %v839 = vcombine.high %v763, %v763
  %v841 = vunpack.c.l.s4 1983009808
  %v842 = vunpack.c.0.s8 %v841
  %v843 = vlaneseq
  %v844 = vshrl.u32 %v843, 7
  %v845 = vsub.s32 %v842, %v844
  %v846 = vrot.slane %v763, %v845
  %v848 = vunpack.c.l.s4 1983009808
  %v849 = vunpack.c.0.s8 %v848
  %v850 = vlaneseq
  %v851 = vshrl.u32 %v850, 7
  %v852 = vsub.s32 %v849, %v851
  %v853 = vrot.slane %v839, %v852
  %v854 = vcombine.high %v846, %v846
  %v855 = vcombine.high %v764, %v764
  %v857 = vunpack.c.l.s4 1983009808
  %v858 = vunpack.c.0.s8 %v857
  %v859 = vlaneseq
  %v860 = vshrl.u32 %v859, 7
  %v861 = vsub.s32 %v858, %v860
  %v862 = vrot.slane %v764, %v861
  %v864 = vunpack.c.l.s4 1983009808
  %v865 = vunpack.c.0.s8 %v864
  %v866 = vlaneseq
  %v867 = vshrl.u32 %v866, 7
  %v868 = vsub.s32 %v865, %v867
  %v869 = vrot.slane %v855, %v868
  %v870 = vcombine.high %v862, %v862
  %v871 = vcombine.high %v765, %v765
  %v873 = vunpack.c.l.s4 1983009808
  %v874 = vunpack.c.0.s8 %v873
  %v875 = vlaneseq
  %v876 = vshrl.u32 %v875, 7
  %v877 = vsub.s32 %v874, %v876
  %v878 = vrot.slane %v765, %v877
  %v880 = vunpack.c.l.s4 1983009808
  %v881 = vunpack.c.0.s8 %v880
  %v882 = vlaneseq
  %v883 = vshrl.u32 %v882, 7
  %v884 = vsub.s32 %v881, %v883
  %v885 = vrot.slane %v871, %v884
  %v886 = vcombine.high %v878, %v878
  %v887 = vcombine.high %v766, %v766
  %v889 = vunpack.c.l.s4 1983009808
  %v890 = vunpack.c.0.s8 %v889
  %v891 = vlaneseq
  %v892 = vshrl.u32 %v891, 7
  %v893 = vsub.s32 %v890, %v892
  %v894 = vrot.slane %v766, %v893
  %v896 = vunpack.c.l.s4 1983009808
  %v897 = vunpack.c.0.s8 %v896
  %v898 = vlaneseq
  %v899 = vshrl.u32 %v898, 7
  %v900 = vsub.s32 %v897, %v899
  %v901 = vrot.slane %v887, %v900
  %v902 = vcombine.high %v894, %v894
  %v903 = vld [vmem:[%s325 + $0x1] sm:$0x3f]
  %v904 = vld [vmem:[%s325 + $0x21] sm:$0x3f]
  %v905 = vld [vmem:[%s325 + $0x41] sm:$0x3f]
  %v906 = vld [vmem:[%s325 + $0x61] sm:$0x3f]
  %v907 = vld [vmem:[%s325 + $0x81] sm:$0x3f]
  %v908 = vld [vmem:[%s325 + $0xa1] sm:$0x3f]
  %v909 = vld [vmem:[%s325 + $0xc1] sm:$0x3f]
  %v910 = vld [vmem:[%s325 + $0xe1] sm:$0x3f]
  %v919 = vcombine.high %v903, %v903
  %v921 = vunpack.c.l.s4 1983009808
  %v922 = vunpack.c.0.s8 %v921
  %v923 = vlaneseq
  %v924 = vshrl.u32 %v923, 7
  %v925 = vsub.s32 %v922, %v924
  %v926 = vrot.slane %v903, %v925
  %v928 = vunpack.c.l.s4 1983009808
  %v929 = vunpack.c.0.s8 %v928
  %v930 = vlaneseq
  %v931 = vshrl.u32 %v930, 7
  %v932 = vsub.s32 %v929, %v931
  %v933 = vrot.slane %v919, %v932
  %v934 = vcombine.high %v926, %v926
  %v935 = vcombine.high %v904, %v904
  %v937 = vunpack.c.l.s4 1983009808
  %v938 = vunpack.c.0.s8 %v937
  %v939 = vlaneseq
  %v940 = vshrl.u32 %v939, 7
  %v941 = vsub.s32 %v938, %v940
  %v942 = vrot.slane %v904, %v941
  %v944 = vunpack.c.l.s4 1983009808
  %v945 = vunpack.c.0.s8 %v944
  %v946 = vlaneseq
  %v947 = vshrl.u32 %v946, 7
  %v948 = vsub.s32 %v945, %v947
  %v949 = vrot.slane %v935, %v948
  %v950 = vcombine.high %v942, %v942
  %v951 = vcombine.high %v905, %v905
  %v953 = vunpack.c.l.s4 1983009808
  %v954 = vunpack.c.0.s8 %v953
  %v955 = vlaneseq
  %v956 = vshrl.u32 %v955, 7
  %v957 = vsub.s32 %v954, %v956
  %v958 = vrot.slane %v905, %v957
  %v960 = vunpack.c.l.s4 1983009808
  %v961 = vunpack.c.0.s8 %v960
  %v962 = vlaneseq
  %v963 = vshrl.u32 %v962, 7
  %v964 = vsub.s32 %v961, %v963
  %v965 = vrot.slane %v951, %v964
  %v966 = vcombine.high %v958, %v958
  %v967 = vcombine.high %v906, %v906
  %v969 = vunpack.c.l.s4 1983009808
  %v970 = vunpack.c.0.s8 %v969
  %v971 = vlaneseq
  %v972 = vshrl.u32 %v971, 7
  %v973 = vsub.s32 %v970, %v972
  %v974 = vrot.slane %v906, %v973
  %v976 = vunpack.c.l.s4 1983009808
  %v977 = vunpack.c.0.s8 %v976
  %v978 = vlaneseq
  %v979 = vshrl.u32 %v978, 7
  %v980 = vsub.s32 %v977, %v979
  %v981 = vrot.slane %v967, %v980
  %v982 = vcombine.high %v974, %v974
  %v983 = vcombine.high %v907, %v907
  %v985 = vunpack.c.l.s4 1983009808
  %v986 = vunpack.c.0.s8 %v985
  %v987 = vlaneseq
  %v988 = vshrl.u32 %v987, 7
  %v989 = vsub.s32 %v986, %v988
  %v990 = vrot.slane %v907, %v989
  %v992 = vunpack.c.l.s4 1983009808
  %v993 = vunpack.c.0.s8 %v992
  %v994 = vlaneseq
  %v995 = vshrl.u32 %v994, 7
  %v996 = vsub.s32 %v993, %v995
  %v997 = vrot.slane %v983, %v996
  %v998 = vcombine.high %v990, %v990
  %v999 = vcombine.high %v908, %v908
  %v1001 = vunpack.c.l.s4 1983009808
  %v1002 = vunpack.c.0.s8 %v1001
  %v1003 = vlaneseq
  %v1004 = vshrl.u32 %v1003, 7
  %v1005 = vsub.s32 %v1002, %v1004
  %v1006 = vrot.slane %v908, %v1005
  %v1008 = vunpack.c.l.s4 1983009808
  %v1009 = vunpack.c.0.s8 %v1008
  %v1010 = vlaneseq
  %v1011 = vshrl.u32 %v1010, 7
  %v1012 = vsub.s32 %v1009, %v1011
  %v1013 = vrot.slane %v999, %v1012
  %v1014 = vcombine.high %v1006, %v1006
  %v1015 = vcombine.high %v909, %v909
  %v1017 = vunpack.c.l.s4 1983009808
  %v1018 = vunpack.c.0.s8 %v1017
  %v1019 = vlaneseq
  %v1020 = vshrl.u32 %v1019, 7
  %v1021 = vsub.s32 %v1018, %v1020
  %v1022 = vrot.slane %v909, %v1021
  %v1024 = vunpack.c.l.s4 1983009808
  %v1025 = vunpack.c.0.s8 %v1024
  %v1026 = vlaneseq
  %v1027 = vshrl.u32 %v1026, 7
  %v1028 = vsub.s32 %v1025, %v1027
  %v1029 = vrot.slane %v1015, %v1028
  %v1030 = vcombine.high %v1022, %v1022
  %v1031 = vcombine.high %v910, %v910
  %v1033 = vunpack.c.l.s4 1983009808
  %v1034 = vunpack.c.0.s8 %v1033
  %v1035 = vlaneseq
  %v1036 = vshrl.u32 %v1035, 7
  %v1037 = vsub.s32 %v1034, %v1036
  %v1038 = vrot.slane %v910, %v1037
  %v1040 = vunpack.c.l.s4 1983009808
  %v1041 = vunpack.c.0.s8 %v1040
  %v1042 = vlaneseq
  %v1043 = vshrl.u32 %v1042, 7
  %v1044 = vsub.s32 %v1041, %v1043
  %v1045 = vrot.slane %v1031, %v1044
  %v1046 = vcombine.high %v1038, %v1038
  %v1047 = vld [vmem:[%s470 + $0x1] sm:$0x3f]
  %v1048 = vld [vmem:[%s470 + $0x21] sm:$0x3f]
  %v1049 = vld [vmem:[%s470 + $0x41] sm:$0x3f]
  %v1050 = vld [vmem:[%s470 + $0x61] sm:$0x3f]
  %v1051 = vld [vmem:[%s470 + $0x81] sm:$0x3f]
  %v1052 = vld [vmem:[%s470 + $0xa1] sm:$0x3f]
  %v1053 = vld [vmem:[%s470 + $0xc1] sm:$0x3f]
  %v1054 = vld [vmem:[%s470 + $0xe1] sm:$0x3f]
  %v1063 = vcombine.high %v1047, %v1047
  %v1065 = vunpack.c.l.s4 1983009808
  %v1066 = vunpack.c.0.s8 %v1065
  %v1067 = vlaneseq
  %v1068 = vshrl.u32 %v1067, 7
  %v1069 = vsub.s32 %v1066, %v1068
  %v1070 = vrot.slane %v1047, %v1069
  %v1072 = vunpack.c.l.s4 1983009808
  %v1073 = vunpack.c.0.s8 %v1072
  %v1074 = vlaneseq
  %v1075 = vshrl.u32 %v1074, 7
  %v1076 = vsub.s32 %v1073, %v1075
  %v1077 = vrot.slane %v1063, %v1076
  %v1078 = vcombine.high %v1070, %v1070
  %v1079 = vcombine.high %v1048, %v1048
  %v1081 = vunpack.c.l.s4 1983009808
  %v1082 = vunpack.c.0.s8 %v1081
  %v1083 = vlaneseq
  %v1084 = vshrl.u32 %v1083, 7
  %v1085 = vsub.s32 %v1082, %v1084
  %v1086 = vrot.slane %v1048, %v1085
  %v1088 = vunpack.c.l.s4 1983009808
  %v1089 = vunpack.c.0.s8 %v1088
  %v1090 = vlaneseq
  %v1091 = vshrl.u32 %v1090, 7
  %v1092 = vsub.s32 %v1089, %v1091
  %v1093 = vrot.slane %v1079, %v1092
  %v1094 = vcombine.high %v1086, %v1086
  %v1095 = vcombine.high %v1049, %v1049
  %v1097 = vunpack.c.l.s4 1983009808
  %v1098 = vunpack.c.0.s8 %v1097
  %v1099 = vlaneseq
  %v1100 = vshrl.u32 %v1099, 7
  %v1101 = vsub.s32 %v1098, %v1100
  %v1102 = vrot.slane %v1049, %v1101
  %v1104 = vunpack.c.l.s4 1983009808
  %v1105 = vunpack.c.0.s8 %v1104
  %v1106 = vlaneseq
  %v1107 = vshrl.u32 %v1106, 7
  %v1108 = vsub.s32 %v1105, %v1107
  %v1109 = vrot.slane %v1095, %v1108
  %v1110 = vcombine.high %v1102, %v1102
  %v1111 = vcombine.high %v1050, %v1050
  %v1113 = vunpack.c.l.s4 1983009808
  %v1114 = vunpack.c.0.s8 %v1113
  %v1115 = vlaneseq
  %v1116 = vshrl.u32 %v1115, 7
  %v1117 = vsub.s32 %v1114, %v1116
  %v1118 = vrot.slane %v1050, %v1117
  %v1120 = vunpack.c.l.s4 1983009808
  %v1121 = vunpack.c.0.s8 %v1120
  %v1122 = vlaneseq
  %v1123 = vshrl.u32 %v1122, 7
  %v1124 = vsub.s32 %v1121, %v1123
  %v1125 = vrot.slane %v1111, %v1124
  %v1126 = vcombine.high %v1118, %v1118
  %v1127 = vcombine.high %v1051, %v1051
  %v1129 = vunpack.c.l.s4 1983009808
  %v1130 = vunpack.c.0.s8 %v1129
  %v1131 = vlaneseq
  %v1132 = vshrl.u32 %v1131, 7
  %v1133 = vsub.s32 %v1130, %v1132
  %v1134 = vrot.slane %v1051, %v1133
  %v1136 = vunpack.c.l.s4 1983009808
  %v1137 = vunpack.c.0.s8 %v1136
  %v1138 = vlaneseq
  %v1139 = vshrl.u32 %v1138, 7
  %v1140 = vsub.s32 %v1137, %v1139
  %v1141 = vrot.slane %v1127, %v1140
  %v1142 = vcombine.high %v1134, %v1134
  %v1143 = vcombine.high %v1052, %v1052
  %v1145 = vunpack.c.l.s4 1983009808
  %v1146 = vunpack.c.0.s8 %v1145
  %v1147 = vlaneseq
  %v1148 = vshrl.u32 %v1147, 7
  %v1149 = vsub.s32 %v1146, %v1148
  %v1150 = vrot.slane %v1052, %v1149
  %v1152 = vunpack.c.l.s4 1983009808
  %v1153 = vunpack.c.0.s8 %v1152
  %v1154 = vlaneseq
  %v1155 = vshrl.u32 %v1154, 7
  %v1156 = vsub.s32 %v1153, %v1155
  %v1157 = vrot.slane %v1143, %v1156
  %v1158 = vcombine.high %v1150, %v1150
  %v1159 = vcombine.high %v1053, %v1053
  %v1161 = vunpack.c.l.s4 1983009808
  %v1162 = vunpack.c.0.s8 %v1161
  %v1163 = vlaneseq
  %v1164 = vshrl.u32 %v1163, 7
  %v1165 = vsub.s32 %v1162, %v1164
  %v1166 = vrot.slane %v1053, %v1165
  %v1168 = vunpack.c.l.s4 1983009808
  %v1169 = vunpack.c.0.s8 %v1168
  %v1170 = vlaneseq
  %v1171 = vshrl.u32 %v1170, 7
  %v1172 = vsub.s32 %v1169, %v1171
  %v1173 = vrot.slane %v1159, %v1172
  %v1174 = vcombine.high %v1166, %v1166
  %v1175 = vcombine.high %v1054, %v1054
  %v1177 = vunpack.c.l.s4 1983009808
  %v1178 = vunpack.c.0.s8 %v1177
  %v1179 = vlaneseq
  %v1180 = vshrl.u32 %v1179, 7
  %v1181 = vsub.s32 %v1178, %v1180
  %v1182 = vrot.slane %v1054, %v1181
  %v1184 = vunpack.c.l.s4 1983009808
  %v1185 = vunpack.c.0.s8 %v1184
  %v1186 = vlaneseq
  %v1187 = vshrl.u32 %v1186, 7
  %v1188 = vsub.s32 %v1185, %v1187
  %v1189 = vrot.slane %v1175, %v1188
  %v1190 = vcombine.high %v1182, %v1182
  %v1191 = vld [vmem:[%s1] sm:$0xff]
  %v1192 = vld [vmem:[%s1 + $0x8] sm:$0xff]
  %v1193 = vld [vmem:[%s1 + $0x10] sm:$0xff]
  %v1194 = vld [vmem:[%s1 + $0x18] sm:$0xff]
  %v1195 = vld [vmem:[%s1 + $0x20] sm:$0xff]
  %v1196 = vld [vmem:[%s1 + $0x28] sm:$0xff]
  %v1197 = vld [vmem:[%s1 + $0x30] sm:$0xff]
  %v1198 = vld [vmem:[%s1 + $0x38] sm:$0xff]
  %s1199 = scalar_lea.vmem %s1, 64
  %v1200 = vld [vmem:[%s1199] sm:$0xff]
  %v1201 = vld [vmem:[%s1199 + $0x8] sm:$0xff]
  %v1202 = vld [vmem:[%s1199 + $0x10] sm:$0xff]
  %v1203 = vld [vmem:[%s1199 + $0x18] sm:$0xff]
  %v1204 = vld [vmem:[%s1199 + $0x20] sm:$0xff]
  %v1205 = vld [vmem:[%s1199 + $0x28] sm:$0xff]
  %v1206 = vld [vmem:[%s1199 + $0x30] sm:$0xff]
  %v1207 = vld [vmem:[%s1199 + $0x38] sm:$0xff]
  %v1208 = vcombine.low %v204, %v212
  %v1209 = vcombine.low %v211, %v220
  %v1211 = vunpack.c.l.s4 1983009808
  %v1212 = vunpack.c.0.s8 %v1211
  %v1213 = vlaneseq
  %v1214 = vshrl.u32 %v1213, 7
  %v1215 = vsub.s32 %v1212, %v1214
  %v1216 = vrot.slane %v1208, %v1215
  %v1218 = vunpack.c.l.s4 1983009808
  %v1219 = vunpack.c.0.s8 %v1218
  %v1220 = vlaneseq
  %v1221 = vshrl.u32 %v1220, 7
  %v1222 = vsub.s32 %v1219, %v1221
  %v1223 = vrot.slane %v1209, %v1222
  %v1224 = vcombine.low %v1216, %v1223
  %v1225 = vcombine.low %v228, %v227
  %v1226 = vcombine.low %v236, %v244
  %v1228 = vunpack.c.l.s4 1983009808
  %v1229 = vunpack.c.0.s8 %v1228
  %v1230 = vlaneseq
  %v1231 = vshrl.u32 %v1230, 7
  %v1232 = vsub.s32 %v1229, %v1231
  %v1233 = vrot.slane %v1225, %v1232
  %v1235 = vunpack.c.l.s4 1983009808
  %v1236 = vunpack.c.0.s8 %v1235
  %v1237 = vlaneseq
  %v1238 = vshrl.u32 %v1237, 7
  %v1239 = vsub.s32 %v1236, %v1238
  %v1240 = vrot.slane %v1226, %v1239
  %v1241 = vcombine.low %v1233, %v1240
  %v1242 = vcombine.low %v243, %v252
  %v1243 = vcombine.low %v260, %v259
  %v1245 = vunpack.c.l.s4 1983009808
  %v1246 = vunpack.c.0.s8 %v1245
  %v1247 = vlaneseq
  %v1248 = vshrl.u32 %v1247, 7
  %v1249 = vsub.s32 %v1246, %v1248
  %v1250 = vrot.slane %v1242, %v1249
  %v1252 = vunpack.c.l.s4 1983009808
  %v1253 = vunpack.c.0.s8 %v1252
  %v1254 = vlaneseq
  %v1255 = vshrl.u32 %v1254, 7
  %v1256 = vsub.s32 %v1253, %v1255
  %v1257 = vrot.slane %v1243, %v1256
  %v1258 = vcombine.low %v1250, %v1257
  %v1259 = vcombine.low %v268, %v276
  %v1260 = vcombine.low %v275, %v284
  %v1262 = vunpack.c.l.s4 1983009808
  %v1263 = vunpack.c.0.s8 %v1262
  %v1264 = vlaneseq
  %v1265 = vshrl.u32 %v1264, 7
  %v1266 = vsub.s32 %v1263, %v1265
  %v1267 = vrot.slane %v1259, %v1266
  %v1269 = vunpack.c.l.s4 1983009808
  %v1270 = vunpack.c.0.s8 %v1269
  %v1271 = vlaneseq
  %v1272 = vshrl.u32 %v1271, 7
  %v1273 = vsub.s32 %v1270, %v1272
  %v1274 = vrot.slane %v1260, %v1273
  %v1275 = vcombine.low %v1267, %v1274
  %v1276 = vcombine.low %v292, %v291
  %v1277 = vcombine.low %v300, %v308
  %v1279 = vunpack.c.l.s4 1983009808
  %v1280 = vunpack.c.0.s8 %v1279
  %v1281 = vlaneseq
  %v1282 = vshrl.u32 %v1281, 7
  %v1283 = vsub.s32 %v1280, %v1282
  %v1284 = vrot.slane %v1276, %v1283
  %v1286 = vunpack.c.l.s4 1983009808
  %v1287 = vunpack.c.0.s8 %v1286
  %v1288 = vlaneseq
  %v1289 = vshrl.u32 %v1288, 7
  %v1290 = vsub.s32 %v1287, %v1289
  %v1291 = vrot.slane %v1277, %v1290
  %v1292 = vcombine.low %v1284, %v1291
  %v1293 = vcombine.low %v307, %v316
  %v1294 = vcombine.low %v324, %v323
  %v1296 = vunpack.c.l.s4 1983009808
  %v1297 = vunpack.c.0.s8 %v1296
  %v1298 = vlaneseq
  %v1299 = vshrl.u32 %v1298, 7
  %v1300 = vsub.s32 %v1297, %v1299
  %v1301 = vrot.slane %v1293, %v1300
  %v1303 = vunpack.c.l.s4 1983009808
  %v1304 = vunpack.c.0.s8 %v1303
  %v1305 = vlaneseq
  %v1306 = vshrl.u32 %v1305, 7
  %v1307 = vsub.s32 %v1304, %v1306
  %v1308 = vrot.slane %v1294, %v1307
  %v1309 = vcombine.low %v1301, %v1308
  %vm1310 = vcmask 261120
  %v1311 = vsel %vm1310, %v1224, 0
  %v1313 = vsel %vm1310, %v1241, 0
  %v1315 = vsel %vm1310, %v1258, 0
  %v1317 = vsel %vm1310, %v1275, 0
  %v1319 = vsel %vm1310, %v1292, 0
  %v1321 = vsel %vm1310, %v1309, 0
  %1323 = vmatprep.subr.mxu0 0.0
  %1324 = vmatpush1.msra.mxu0 0.0
  %1325 = vmatprep.subr.mxu0 0.0
  %1326 = vmatpush1.msra.mxu0 0.0
  %1327 = vmatprep.subr.mxu0 0.0
  %1328 = vmatpush1.msra.mxu0 0.0
  %1329 = vmatprep.subr.mxu0 0.0
  %1330 = vmatpush1.msra.mxu0 0.0
  %1331 = vmatprep.subr.mxu0 0.0
  %1332 = vmatpush1.msra.mxu0 0.0
  %1333 = vmatprep.subr.mxu0 0.0
  %1334 = vmatpush1.msra.mxu0 0.0
  %1335 = vmatprep.subr.mxu0 0.0
  %1336 = vmatpush1.msra.mxu0 0.0
  %1337 = vmatprep.subr.mxu0 0.0
  %1338 = vmatpush1.msra.mxu0 0.0
  %1339 = vmatprep.subr.mxu0 0.0
  %1340 = vmatpush1.msra.mxu0 0.0
  %1341 = vmatprep.subr.mxu0 0.0
  %1342 = vmatpush1.msra.mxu0 0.0
  %1343 = vmatprep.subr.mxu0 0.0
  %1344 = vmatpush1.msra.mxu0 0.0
  %1345 = vmatprep.subr.mxu0 0.0
  %1346 = vmatpush1.msra.mxu0 0.0
  %1347 = vmatprep.subr.mxu0 %v1207
  %1348 = vmatpush1.msra.mxu0 %v1206
  %1349 = vmatprep.subr.mxu0 %v1205
  %1350 = vmatpush1.msra.mxu0 %v1204
  %1351 = vmatprep.subr.mxu0 %v1203
  %1352 = vmatpush1.msra.mxu0 %v1202
  %1353 = vmatprep.subr.mxu0 %v1201
  %1354 = vmatpush1.msra.mxu0 %v1200
  %1355 = vmatprep.subr.mxu0 0.0
  %1356 = vmatpush2.msra.mxu0 0.0
  %1357 = vmatprep.subr.mxu0 0.0
  %1358 = vmatpush2.msra.mxu0 0.0
  %1359 = vmatprep.subr.mxu0 0.0
  %1360 = vmatpush2.msra.mxu0 0.0
  %1361 = vmatprep.subr.mxu0 0.0
  %1362 = vmatpush2.msra.mxu0 0.0
  %1363 = vmatprep.subr.mxu0 0.0
  %1364 = vmatpush2.msra.mxu0 0.0
  %1365 = vmatprep.subr.mxu0 0.0
  %1366 = vmatpush2.msra.mxu0 0.0
  %1367 = vmatprep.subr.mxu0 0.0
  %1368 = vmatpush2.msra.mxu0 0.0
  %1369 = vmatprep.subr.mxu0 0.0
  %1370 = vmatpush2.msra.mxu0 0.0
  %1371 = vmatprep.subr.mxu0 0.0
  %1372 = vmatpush2.msra.mxu0 0.0
  %1373 = vmatprep.subr.mxu0 0.0
  %1374 = vmatpush2.msra.mxu0 0.0
  %1375 = vmatprep.subr.mxu0 0.0
  %1376 = vmatpush2.msra.mxu0 0.0
  %1377 = vmatprep.subr.mxu0 0.0
  %1378 = vmatpush2.msra.mxu0 0.0
  %1379 = vmatprep.subr.mxu0 0.0
  %1380 = vmatpush2.msra.mxu0 0.0
  %1381 = vmatprep.subr.mxu0 0.0
  %1382 = vmatpush2.msra.mxu0 0.0
  %1383 = vmatprep.subr.mxu0 0.0
  %1384 = vmatpush2.msra.mxu0 0.0
  %1385 = vmatprep.subr.mxu0 0.0
  %1386 = vmatpush2.msra.mxu0 0.0
  %1387 = vmatprep.mubr.f32.mxu0 0.0
  %1388 = vmatmul.mubr.f32.gmra.mxu0 %v1311
  %v1389 = vpop.f32.mrf.mxu0
  %v1390 = vadd.f32 0.0, %v1389
  %v1391 = vpop.f32.mrf.mxu0
  %v1392 = vadd.f32 0.0, %v1391
  %1393 = vmatprep.mubr.f32.mxu0 0.0
  %1394 = vmatmul.mubr.f32.gmra.mxu0 %v1313
  %v1395 = vpop.f32.mrf.mxu0
  %v1396 = vadd.f32 0.0, %v1395
  %v1397 = vpop.f32.mrf.mxu0
  %v1398 = vadd.f32 0.0, %v1397
  %1399 = vmatprep.mubr.f32.mxu0 0.0
  %1400 = vmatmul.mubr.f32.gmra.mxu0 %v1315
  %v1401 = vpop.f32.mrf.mxu0
  %v1402 = vadd.f32 0.0, %v1401
  %v1403 = vpop.f32.mrf.mxu0
  %v1404 = vadd.f32 0.0, %v1403
  %1405 = vmatprep.mubr.f32.mxu0 0.0
  %1406 = vmatmul.mubr.f32.gmra.mxu0 %v1317
  %v1407 = vpop.f32.mrf.mxu0
  %v1408 = vadd.f32 0.0, %v1407
  %v1409 = vpop.f32.mrf.mxu0
  %v1410 = vadd.f32 0.0, %v1409
  %1411 = vmatprep.mubr.f32.mxu0 0.0
  %1412 = vmatmul.mubr.f32.gmra.mxu0 %v1319
  %v1413 = vpop.f32.mrf.mxu0
  %v1414 = vadd.f32 0.0, %v1413
  %v1415 = vpop.f32.mrf.mxu0
  %v1416 = vadd.f32 0.0, %v1415
  %1417 = vmatprep.mubr.f32.mxu0 0.0
  %1418 = vmatmul.mubr.f32.gmra.mxu0 %v1321
  %v1419 = vpop.f32.mrf.mxu0
  %v1420 = vadd.f32 0.0, %v1419
  %v1421 = vpop.f32.mrf.mxu0
  %v1422 = vadd.f32 0.0, %v1421
  %1423 = vdwg.mxu0
  %v1424 = vcombine.low %v59, %v67
  %v1425 = vcombine.low %v66, %v75
  %v1427 = vunpack.c.l.s4 1983009808
  %v1428 = vunpack.c.0.s8 %v1427
  %v1429 = vlaneseq
  %v1430 = vshrl.u32 %v1429, 7
  %v1431 = vsub.s32 %v1428, %v1430
  %v1432 = vrot.slane %v1424, %v1431
  %v1434 = vunpack.c.l.s4 1983009808
  %v1435 = vunpack.c.0.s8 %v1434
  %v1436 = vlaneseq
  %v1437 = vshrl.u32 %v1436, 7
  %v1438 = vsub.s32 %v1435, %v1437
  %v1439 = vrot.slane %v1425, %v1438
  %v1440 = vcombine.low %v1432, %v1439
  %v1441 = vcombine.low %v83, %v82
  %v1442 = vcombine.low %v91, %v99
  %v1444 = vunpack.c.l.s4 1983009808
  %v1445 = vunpack.c.0.s8 %v1444
  %v1446 = vlaneseq
  %v1447 = vshrl.u32 %v1446, 7
  %v1448 = vsub.s32 %v1445, %v1447
  %v1449 = vrot.slane %v1441, %v1448
  %v1451 = vunpack.c.l.s4 1983009808
  %v1452 = vunpack.c.0.s8 %v1451
  %v1453 = vlaneseq
  %v1454 = vshrl.u32 %v1453, 7
  %v1455 = vsub.s32 %v1452, %v1454
  %v1456 = vrot.slane %v1442, %v1455
  %v1457 = vcombine.low %v1449, %v1456
  %v1458 = vcombine.low %v98, %v107
  %v1459 = vcombine.low %v115, %v114
  %v1461 = vunpack.c.l.s4 1983009808
  %v1462 = vunpack.c.0.s8 %v1461
  %v1463 = vlaneseq
  %v1464 = vshrl.u32 %v1463, 7
  %v1465 = vsub.s32 %v1462, %v1464
  %v1466 = vrot.slane %v1458, %v1465
  %v1468 = vunpack.c.l.s4 1983009808
  %v1469 = vunpack.c.0.s8 %v1468
  %v1470 = vlaneseq
  %v1471 = vshrl.u32 %v1470, 7
  %v1472 = vsub.s32 %v1469, %v1471
  %v1473 = vrot.slane %v1459, %v1472
  %v1474 = vcombine.low %v1466, %v1473
  %v1475 = vcombine.low %v123, %v131
  %v1476 = vcombine.low %v130, %v139
  %v1478 = vunpack.c.l.s4 1983009808
  %v1479 = vunpack.c.0.s8 %v1478
  %v1480 = vlaneseq
  %v1481 = vshrl.u32 %v1480, 7
  %v1482 = vsub.s32 %v1479, %v1481
  %v1483 = vrot.slane %v1475, %v1482
  %v1485 = vunpack.c.l.s4 1983009808
  %v1486 = vunpack.c.0.s8 %v1485
  %v1487 = vlaneseq
  %v1488 = vshrl.u32 %v1487, 7
  %v1489 = vsub.s32 %v1486, %v1488
  %v1490 = vrot.slane %v1476, %v1489
  %v1491 = vcombine.low %v1483, %v1490
  %v1492 = vcombine.low %v147, %v146
  %v1493 = vcombine.low %v155, %v163
  %v1495 = vunpack.c.l.s4 1983009808
  %v1496 = vunpack.c.0.s8 %v1495
  %v1497 = vlaneseq
  %v1498 = vshrl.u32 %v1497, 7
  %v1499 = vsub.s32 %v1496, %v1498
  %v1500 = vrot.slane %v1492, %v1499
  %v1502 = vunpack.c.l.s4 1983009808
  %v1503 = vunpack.c.0.s8 %v1502
  %v1504 = vlaneseq
  %v1505 = vshrl.u32 %v1504, 7
  %v1506 = vsub.s32 %v1503, %v1505
  %v1507 = vrot.slane %v1493, %v1506
  %v1508 = vcombine.low %v1500, %v1507
  %v1509 = vcombine.low %v162, %v171
  %v1510 = vcombine.low %v179, %v178
  %v1512 = vunpack.c.l.s4 1983009808
  %v1513 = vunpack.c.0.s8 %v1512
  %v1514 = vlaneseq
  %v1515 = vshrl.u32 %v1514, 7
  %v1516 = vsub.s32 %v1513, %v1515
  %v1517 = vrot.slane %v1509, %v1516
  %v1519 = vunpack.c.l.s4 1983009808
  %v1520 = vunpack.c.0.s8 %v1519
  %v1521 = vlaneseq
  %v1522 = vshrl.u32 %v1521, 7
  %v1523 = vsub.s32 %v1520, %v1522
  %v1524 = vrot.slane %v1510, %v1523
  %v1525 = vcombine.low %v1517, %v1524
  %v1526 = vsel %vm1310, %v1440, 0
  %v1528 = vsel %vm1310, %v1457, 0
  %v1530 = vsel %vm1310, %v1474, 0
  %v1532 = vsel %vm1310, %v1491, 0
  %v1534 = vsel %vm1310, %v1508, 0
  %v1536 = vsel %vm1310, %v1525, 0
  %1538 = vmatprep.subr.mxu0 0.0
  %1539 = vmatpush1.msra.mxu0 0.0
  %1540 = vmatprep.subr.mxu0 0.0
  %1541 = vmatpush1.msra.mxu0 0.0
  %1542 = vmatprep.subr.mxu0 0.0
  %1543 = vmatpush1.msra.mxu0 0.0
  %1544 = vmatprep.subr.mxu0 0.0
  %1545 = vmatpush1.msra.mxu0 0.0
  %1546 = vmatprep.subr.mxu0 0.0
  %1547 = vmatpush1.msra.mxu0 0.0
  %1548 = vmatprep.subr.mxu0 0.0
  %1549 = vmatpush1.msra.mxu0 0.0
  %1550 = vmatprep.subr.mxu0 0.0
  %1551 = vmatpush1.msra.mxu0 0.0
  %1552 = vmatprep.subr.mxu0 0.0
  %1553 = vmatpush1.msra.mxu0 0.0
  %1554 = vmatprep.subr.mxu0 0.0
  %1555 = vmatpush1.msra.mxu0 0.0
  %1556 = vmatprep.subr.mxu0 0.0
  %1557 = vmatpush1.msra.mxu0 0.0
  %1558 = vmatprep.subr.mxu0 0.0
  %1559 = vmatpush1.msra.mxu0 0.0
  %1560 = vmatprep.subr.mxu0 0.0
  %1561 = vmatpush1.msra.mxu0 0.0
  %1562 = vmatprep.subr.mxu0 %v1198
  %1563 = vmatpush1.msra.mxu0 %v1197
  %1564 = vmatprep.subr.mxu0 %v1196
  %1565 = vmatpush1.msra.mxu0 %v1195
  %1566 = vmatprep.subr.mxu0 %v1194
  %1567 = vmatpush1.msra.mxu0 %v1193
  %1568 = vmatprep.subr.mxu0 %v1192
  %1569 = vmatpush1.msra.mxu0 %v1191
  %1570 = vmatprep.subr.mxu0 0.0
  %1571 = vmatpush2.msra.mxu0 0.0
  %1572 = vmatprep.subr.mxu0 0.0
  %1573 = vmatpush2.msra.mxu0 0.0
  %1574 = vmatprep.subr.mxu0 0.0
  %1575 = vmatpush2.msra.mxu0 0.0
  %1576 = vmatprep.subr.mxu0 0.0
  %1577 = vmatpush2.msra.mxu0 0.0
  %1578 = vmatprep.subr.mxu0 0.0
  %1579 = vmatpush2.msra.mxu0 0.0
  %1580 = vmatprep.subr.mxu0 0.0
  %1581 = vmatpush2.msra.mxu0 0.0
  %1582 = vmatprep.subr.mxu0 0.0
  %1583 = vmatpush2.msra.mxu0 0.0
  %1584 = vmatprep.subr.mxu0 0.0
  %1585 = vmatpush2.msra.mxu0 0.0
  %1586 = vmatprep.subr.mxu0 0.0
  %1587 = vmatpush2.msra.mxu0 0.0
  %1588 = vmatprep.subr.mxu0 0.0
  %1589 = vmatpush2.msra.mxu0 0.0
  %1590 = vmatprep.subr.mxu0 0.0
  %1591 = vmatpush2.msra.mxu0 0.0
  %1592 = vmatprep.subr.mxu0 0.0
  %1593 = vmatpush2.msra.mxu0 0.0
  %1594 = vmatprep.subr.mxu0 0.0
  %1595 = vmatpush2.msra.mxu0 0.0
  %1596 = vmatprep.subr.mxu0 0.0
  %1597 = vmatpush2.msra.mxu0 0.0
  %1598 = vmatprep.subr.mxu0 0.0
  %1599 = vmatpush2.msra.mxu0 0.0
  %1600 = vmatprep.subr.mxu0 0.0
  %1601 = vmatpush2.msra.mxu0 0.0
  %1602 = vmatprep.mubr.f32.mxu0 0.0
  %1603 = vmatmul.mubr.f32.gmra.mxu0 %v1526
  %v1604 = vpop.f32.mrf.mxu0
  %v1605 = vadd.f32 %v1390, %v1604
  %v1606 = vpop.f32.mrf.mxu0
  %v1607 = vadd.f32 %v1392, %v1606
  %1608 = vmatprep.mubr.f32.mxu0 0.0
  %1609 = vmatmul.mubr.f32.gmra.mxu0 %v1528
  %v1610 = vpop.f32.mrf.mxu0
  %v1611 = vadd.f32 %v1396, %v1610
  %v1612 = vpop.f32.mrf.mxu0
  %v1613 = vadd.f32 %v1398, %v1612
  %1614 = vmatprep.mubr.f32.mxu0 0.0
  %1615 = vmatmul.mubr.f32.gmra.mxu0 %v1530
  %v1616 = vpop.f32.mrf.mxu0
  %v1617 = vadd.f32 %v1402, %v1616
  %v1618 = vpop.f32.mrf.mxu0
  %v1619 = vadd.f32 %v1404, %v1618
  %1620 = vmatprep.mubr.f32.mxu0 0.0
  %1621 = vmatmul.mubr.f32.gmra.mxu0 %v1532
  %v1622 = vpop.f32.mrf.mxu0
  %v1623 = vadd.f32 %v1408, %v1622
  %v1624 = vpop.f32.mrf.mxu0
  %v1625 = vadd.f32 %v1410, %v1624
  %1626 = vmatprep.mubr.f32.mxu0 0.0
  %1627 = vmatmul.mubr.f32.gmra.mxu0 %v1534
  %v1628 = vpop.f32.mrf.mxu0
  %v1629 = vadd.f32 %v1414, %v1628
  %v1630 = vpop.f32.mrf.mxu0
  %v1631 = vadd.f32 %v1416, %v1630
  %1632 = vmatprep.mubr.f32.mxu0 0.0
  %1633 = vmatmul.mubr.f32.gmra.mxu0 %v1536
  %v1634 = vpop.f32.mrf.mxu0
  %v1635 = vadd.f32 %v1420, %v1634
  %v1636 = vpop.f32.mrf.mxu0
  %v1637 = vadd.f32 %v1422, %v1636
  %1638 = vdwg.mxu0
  %s1639 = scalar_lea.vmem %s1, 128
  %v1640 = vld [vmem:[%s1639] sm:$0xff]
  %v1641 = vld [vmem:[%s1639 + $0x8] sm:$0xff]
  %v1642 = vld [vmem:[%s1639 + $0x10] sm:$0xff]
  %v1643 = vld [vmem:[%s1639 + $0x18] sm:$0xff]
  %v1644 = vld [vmem:[%s1639 + $0x20] sm:$0xff]
  %v1645 = vld [vmem:[%s1639 + $0x28] sm:$0xff]
  %v1646 = vld [vmem:[%s1639 + $0x30] sm:$0xff]
  %v1647 = vld [vmem:[%s1639 + $0x38] sm:$0xff]
  %v1648 = vcombine.low %v349, %v357
  %v1649 = vcombine.low %v356, %v365
  %v1651 = vunpack.c.l.s4 1983009808
  %v1652 = vunpack.c.0.s8 %v1651
  %v1653 = vlaneseq
  %v1654 = vshrl.u32 %v1653, 7
  %v1655 = vsub.s32 %v1652, %v1654
  %v1656 = vrot.slane %v1648, %v1655
  %v1658 = vunpack.c.l.s4 1983009808
  %v1659 = vunpack.c.0.s8 %v1658
  %v1660 = vlaneseq
  %v1661 = vshrl.u32 %v1660, 7
  %v1662 = vsub.s32 %v1659, %v1661
  %v1663 = vrot.slane %v1649, %v1662
  %v1664 = vcombine.low %v1656, %v1663
  %v1665 = vcombine.low %v373, %v372
  %v1666 = vcombine.low %v381, %v389
  %v1668 = vunpack.c.l.s4 1983009808
  %v1669 = vunpack.c.0.s8 %v1668
  %v1670 = vlaneseq
  %v1671 = vshrl.u32 %v1670, 7
  %v1672 = vsub.s32 %v1669, %v1671
  %v1673 = vrot.slane %v1665, %v1672
  %v1675 = vunpack.c.l.s4 1983009808
  %v1676 = vunpack.c.0.s8 %v1675
  %v1677 = vlaneseq
  %v1678 = vshrl.u32 %v1677, 7
  %v1679 = vsub.s32 %v1676, %v1678
  %v1680 = vrot.slane %v1666, %v1679
  %v1681 = vcombine.low %v1673, %v1680
  %v1682 = vcombine.low %v388, %v397
  %v1683 = vcombine.low %v405, %v404
  %v1685 = vunpack.c.l.s4 1983009808
  %v1686 = vunpack.c.0.s8 %v1685
  %v1687 = vlaneseq
  %v1688 = vshrl.u32 %v1687, 7
  %v1689 = vsub.s32 %v1686, %v1688
  %v1690 = vrot.slane %v1682, %v1689
  %v1692 = vunpack.c.l.s4 1983009808
  %v1693 = vunpack.c.0.s8 %v1692
  %v1694 = vlaneseq
  %v1695 = vshrl.u32 %v1694, 7
  %v1696 = vsub.s32 %v1693, %v1695
  %v1697 = vrot.slane %v1683, %v1696
  %v1698 = vcombine.low %v1690, %v1697
  %v1699 = vcombine.low %v413, %v421
  %v1700 = vcombine.low %v420, %v429
  %v1702 = vunpack.c.l.s4 1983009808
  %v1703 = vunpack.c.0.s8 %v1702
  %v1704 = vlaneseq
  %v1705 = vshrl.u32 %v1704, 7
  %v1706 = vsub.s32 %v1703, %v1705
  %v1707 = vrot.slane %v1699, %v1706
  %v1709 = vunpack.c.l.s4 1983009808
  %v1710 = vunpack.c.0.s8 %v1709
  %v1711 = vlaneseq
  %v1712 = vshrl.u32 %v1711, 7
  %v1713 = vsub.s32 %v1710, %v1712
  %v1714 = vrot.slane %v1700, %v1713
  %v1715 = vcombine.low %v1707, %v1714
  %v1716 = vcombine.low %v437, %v436
  %v1717 = vcombine.low %v445, %v453
  %v1719 = vunpack.c.l.s4 1983009808
  %v1720 = vunpack.c.0.s8 %v1719
  %v1721 = vlaneseq
  %v1722 = vshrl.u32 %v1721, 7
  %v1723 = vsub.s32 %v1720, %v1722
  %v1724 = vrot.slane %v1716, %v1723
  %v1726 = vunpack.c.l.s4 1983009808
  %v1727 = vunpack.c.0.s8 %v1726
  %v1728 = vlaneseq
  %v1729 = vshrl.u32 %v1728, 7
  %v1730 = vsub.s32 %v1727, %v1729
  %v1731 = vrot.slane %v1717, %v1730
  %v1732 = vcombine.low %v1724, %v1731
  %v1733 = vcombine.low %v452, %v461
  %v1734 = vcombine.low %v469, %v468
  %v1736 = vunpack.c.l.s4 1983009808
  %v1737 = vunpack.c.0.s8 %v1736
  %v1738 = vlaneseq
  %v1739 = vshrl.u32 %v1738, 7
  %v1740 = vsub.s32 %v1737, %v1739
  %v1741 = vrot.slane %v1733, %v1740
  %v1743 = vunpack.c.l.s4 1983009808
  %v1744 = vunpack.c.0.s8 %v1743
  %v1745 = vlaneseq
  %v1746 = vshrl.u32 %v1745, 7
  %v1747 = vsub.s32 %v1744, %v1746
  %v1748 = vrot.slane %v1734, %v1747
  %v1749 = vcombine.low %v1741, %v1748
  %v1750 = vsel %vm1310, %v1664, 0
  %v1752 = vsel %vm1310, %v1681, 0
  %v1754 = vsel %vm1310, %v1698, 0
  %v1756 = vsel %vm1310, %v1715, 0
  %v1758 = vsel %vm1310, %v1732, 0
  %v1760 = vsel %vm1310, %v1749, 0
  %1762 = vmatprep.subr.mxu0 0.0
  %1763 = vmatpush1.msra.mxu0 0.0
  %1764 = vmatprep.subr.mxu0 0.0
  %1765 = vmatpush1.msra.mxu0 0.0
  %1766 = vmatprep.subr.mxu0 0.0
  %1767 = vmatpush1.msra.mxu0 0.0
  %1768 = vmatprep.subr.mxu0 0.0
  %1769 = vmatpush1.msra.mxu0 0.0
  %1770 = vmatprep.subr.mxu0 0.0
  %1771 = vmatpush1.msra.mxu0 0.0
  %1772 = vmatprep.subr.mxu0 0.0
  %1773 = vmatpush1.msra.mxu0 0.0
  %1774 = vmatprep.subr.mxu0 0.0
  %1775 = vmatpush1.msra.mxu0 0.0
  %1776 = vmatprep.subr.mxu0 0.0
  %1777 = vmatpush1.msra.mxu0 0.0
  %1778 = vmatprep.subr.mxu0 0.0
  %1779 = vmatpush1.msra.mxu0 0.0
  %1780 = vmatprep.subr.mxu0 0.0
  %1781 = vmatpush1.msra.mxu0 0.0
  %1782 = vmatprep.subr.mxu0 0.0
  %1783 = vmatpush1.msra.mxu0 0.0
  %1784 = vmatprep.subr.mxu0 0.0
  %1785 = vmatpush1.msra.mxu0 0.0
  %1786 = vmatprep.subr.mxu0 %v1647
  %1787 = vmatpush1.msra.mxu0 %v1646
  %1788 = vmatprep.subr.mxu0 %v1645
  %1789 = vmatpush1.msra.mxu0 %v1644
  %1790 = vmatprep.subr.mxu0 %v1643
  %1791 = vmatpush1.msra.mxu0 %v1642
  %1792 = vmatprep.subr.mxu0 %v1641
  %1793 = vmatpush1.msra.mxu0 %v1640
  %1794 = vmatprep.subr.mxu0 0.0
  %1795 = vmatpush2.msra.mxu0 0.0
  %1796 = vmatprep.subr.mxu0 0.0
  %1797 = vmatpush2.msra.mxu0 0.0
  %1798 = vmatprep.subr.mxu0 0.0
  %1799 = vmatpush2.msra.mxu0 0.0
  %1800 = vmatprep.subr.mxu0 0.0
  %1801 = vmatpush2.msra.mxu0 0.0
  %1802 = vmatprep.subr.mxu0 0.0
  %1803 = vmatpush2.msra.mxu0 0.0
  %1804 = vmatprep.subr.mxu0 0.0
  %1805 = vmatpush2.msra.mxu0 0.0
  %1806 = vmatprep.subr.mxu0 0.0
  %1807 = vmatpush2.msra.mxu0 0.0
  %1808 = vmatprep.subr.mxu0 0.0
  %1809 = vmatpush2.msra.mxu0 0.0
  %1810 = vmatprep.subr.mxu0 0.0
  %1811 = vmatpush2.msra.mxu0 0.0
  %1812 = vmatprep.subr.mxu0 0.0
  %1813 = vmatpush2.msra.mxu0 0.0
  %1814 = vmatprep.subr.mxu0 0.0
  %1815 = vmatpush2.msra.mxu0 0.0
  %1816 = vmatprep.subr.mxu0 0.0
  %1817 = vmatpush2.msra.mxu0 0.0
  %1818 = vmatprep.subr.mxu0 0.0
  %1819 = vmatpush2.msra.mxu0 0.0
  %1820 = vmatprep.subr.mxu0 0.0
  %1821 = vmatpush2.msra.mxu0 0.0
  %1822 = vmatprep.subr.mxu0 0.0
  %1823 = vmatpush2.msra.mxu0 0.0
  %1824 = vmatprep.subr.mxu0 0.0
  %1825 = vmatpush2.msra.mxu0 0.0
  %1826 = vmatprep.mubr.f32.mxu0 0.0
  %1827 = vmatmul.mubr.f32.gmra.mxu0 %v1750
  %v1828 = vpop.f32.mrf.mxu0
  %v1829 = vadd.f32 0.0, %v1828
  %v1830 = vpop.f32.mrf.mxu0
  %v1831 = vadd.f32 0.0, %v1830
  %1832 = vmatprep.mubr.f32.mxu0 0.0
  %1833 = vmatmul.mubr.f32.gmra.mxu0 %v1752
  %v1834 = vpop.f32.mrf.mxu0
  %v1835 = vadd.f32 0.0, %v1834
  %v1836 = vpop.f32.mrf.mxu0
  %v1837 = vadd.f32 0.0, %v1836
  %1838 = vmatprep.mubr.f32.mxu0 0.0
  %1839 = vmatmul.mubr.f32.gmra.mxu0 %v1754
  %v1840 = vpop.f32.mrf.mxu0
  %v1841 = vadd.f32 0.0, %v1840
  %v1842 = vpop.f32.mrf.mxu0
  %v1843 = vadd.f32 0.0, %v1842
  %1844 = vmatprep.mubr.f32.mxu0 0.0
  %1845 = vmatmul.mubr.f32.gmra.mxu0 %v1756
  %v1846 = vpop.f32.mrf.mxu0
  %v1847 = vadd.f32 0.0, %v1846
  %v1848 = vpop.f32.mrf.mxu0
  %v1849 = vadd.f32 0.0, %v1848
  %1850 = vmatprep.mubr.f32.mxu0 0.0
  %1851 = vmatmul.mubr.f32.gmra.mxu0 %v1758
  %v1852 = vpop.f32.mrf.mxu0
  %v1853 = vadd.f32 0.0, %v1852
  %v1854 = vpop.f32.mrf.mxu0
  %v1855 = vadd.f32 0.0, %v1854
  %1856 = vmatprep.mubr.f32.mxu0 0.0
  %1857 = vmatmul.mubr.f32.gmra.mxu0 %v1760
  %v1858 = vpop.f32.mrf.mxu0
  %v1859 = vadd.f32 0.0, %v1858
  %v1860 = vpop.f32.mrf.mxu0
  %v1861 = vadd.f32 0.0, %v1860
  %1862 = vdwg.mxu0
  %v1863 = vadd.f32 %v1605, %v1829
  %v1864 = vadd.f32 %v1607, %v1831
  %v1865 = vadd.f32 %v1611, %v1835
  %v1866 = vadd.f32 %v1613, %v1837
  %v1867 = vadd.f32 %v1617, %v1841
  %v1868 = vadd.f32 %v1619, %v1843
  %v1869 = vadd.f32 %v1623, %v1847
  %v1870 = vadd.f32 %v1625, %v1849
  %v1871 = vadd.f32 %v1629, %v1853
  %v1872 = vadd.f32 %v1631, %v1855
  %v1873 = vadd.f32 %v1635, %v1859
  %v1874 = vadd.f32 %v1637, %v1861
  %s1875 = scalar_lea.vmem %s1, 192
  %v1876 = vld [vmem:[%s1875] sm:$0xff]
  %v1877 = vld [vmem:[%s1875 + $0x8] sm:$0xff]
  %v1878 = vld [vmem:[%s1875 + $0x10] sm:$0xff]
  %v1879 = vld [vmem:[%s1875 + $0x18] sm:$0xff]
  %v1880 = vld [vmem:[%s1875 + $0x20] sm:$0xff]
  %v1881 = vld [vmem:[%s1875 + $0x28] sm:$0xff]
  %v1882 = vld [vmem:[%s1875 + $0x30] sm:$0xff]
  %v1883 = vld [vmem:[%s1875 + $0x38] sm:$0xff]
  %v1884 = vcombine.low %v494, %v502
  %v1885 = vcombine.low %v501, %v510
  %v1887 = vunpack.c.l.s4 1983009808
  %v1888 = vunpack.c.0.s8 %v1887
  %v1889 = vlaneseq
  %v1890 = vshrl.u32 %v1889, 7
  %v1891 = vsub.s32 %v1888, %v1890
  %v1892 = vrot.slane %v1884, %v1891
  %v1894 = vunpack.c.l.s4 1983009808
  %v1895 = vunpack.c.0.s8 %v1894
  %v1896 = vlaneseq
  %v1897 = vshrl.u32 %v1896, 7
  %v1898 = vsub.s32 %v1895, %v1897
  %v1899 = vrot.slane %v1885, %v1898
  %v1900 = vcombine.low %v1892, %v1899
  %v1901 = vcombine.low %v518, %v517
  %v1902 = vcombine.low %v526, %v534
  %v1904 = vunpack.c.l.s4 1983009808
  %v1905 = vunpack.c.0.s8 %v1904
  %v1906 = vlaneseq
  %v1907 = vshrl.u32 %v1906, 7
  %v1908 = vsub.s32 %v1905, %v1907
  %v1909 = vrot.slane %v1901, %v1908
  %v1911 = vunpack.c.l.s4 1983009808
  %v1912 = vunpack.c.0.s8 %v1911
  %v1913 = vlaneseq
  %v1914 = vshrl.u32 %v1913, 7
  %v1915 = vsub.s32 %v1912, %v1914
  %v1916 = vrot.slane %v1902, %v1915
  %v1917 = vcombine.low %v1909, %v1916
  %v1918 = vcombine.low %v533, %v542
  %v1919 = vcombine.low %v550, %v549
  %v1921 = vunpack.c.l.s4 1983009808
  %v1922 = vunpack.c.0.s8 %v1921
  %v1923 = vlaneseq
  %v1924 = vshrl.u32 %v1923, 7
  %v1925 = vsub.s32 %v1922, %v1924
  %v1926 = vrot.slane %v1918, %v1925
  %v1928 = vunpack.c.l.s4 1983009808
  %v1929 = vunpack.c.0.s8 %v1928
  %v1930 = vlaneseq
  %v1931 = vshrl.u32 %v1930, 7
  %v1932 = vsub.s32 %v1929, %v1931
  %v1933 = vrot.slane %v1919, %v1932
  %v1934 = vcombine.low %v1926, %v1933
  %v1935 = vcombine.low %v558, %v566
  %v1936 = vcombine.low %v565, %v574
  %v1938 = vunpack.c.l.s4 1983009808
  %v1939 = vunpack.c.0.s8 %v1938
  %v1940 = vlaneseq
  %v1941 = vshrl.u32 %v1940, 7
  %v1942 = vsub.s32 %v1939, %v1941
  %v1943 = vrot.slane %v1935, %v1942
  %v1945 = vunpack.c.l.s4 1983009808
  %v1946 = vunpack.c.0.s8 %v1945
  %v1947 = vlaneseq
  %v1948 = vshrl.u32 %v1947, 7
  %v1949 = vsub.s32 %v1946, %v1948
  %v1950 = vrot.slane %v1936, %v1949
  %v1951 = vcombine.low %v1943, %v1950
  %v1952 = vcombine.low %v582, %v581
  %v1953 = vcombine.low %v590, %v598
  %v1955 = vunpack.c.l.s4 1983009808
  %v1956 = vunpack.c.0.s8 %v1955
  %v1957 = vlaneseq
  %v1958 = vshrl.u32 %v1957, 7
  %v1959 = vsub.s32 %v1956, %v1958
  %v1960 = vrot.slane %v1952, %v1959
  %v1962 = vunpack.c.l.s4 1983009808
  %v1963 = vunpack.c.0.s8 %v1962
  %v1964 = vlaneseq
  %v1965 = vshrl.u32 %v1964, 7
  %v1966 = vsub.s32 %v1963, %v1965
  %v1967 = vrot.slane %v1953, %v1966
  %v1968 = vcombine.low %v1960, %v1967
  %v1969 = vcombine.low %v597, %v606
  %v1970 = vcombine.low %v614, %v613
  %v1972 = vunpack.c.l.s4 1983009808
  %v1973 = vunpack.c.0.s8 %v1972
  %v1974 = vlaneseq
  %v1975 = vshrl.u32 %v1974, 7
  %v1976 = vsub.s32 %v1973, %v1975
  %v1977 = vrot.slane %v1969, %v1976
  %v1979 = vunpack.c.l.s4 1983009808
  %v1980 = vunpack.c.0.s8 %v1979
  %v1981 = vlaneseq
  %v1982 = vshrl.u32 %v1981, 7
  %v1983 = vsub.s32 %v1980, %v1982
  %v1984 = vrot.slane %v1970, %v1983
  %v1985 = vcombine.low %v1977, %v1984
  %v1986 = vsel %vm1310, %v1900, 0
  %v1988 = vsel %vm1310, %v1917, 0
  %v1990 = vsel %vm1310, %v1934, 0
  %v1992 = vsel %vm1310, %v1951, 0
  %v1994 = vsel %vm1310, %v1968, 0
  %v1996 = vsel %vm1310, %v1985, 0
  %1998 = vmatprep.subr.mxu0 0.0
  %1999 = vmatpush1.msra.mxu0 0.0
  %2000 = vmatprep.subr.mxu0 0.0
  %2001 = vmatpush1.msra.mxu0 0.0
  %2002 = vmatprep.subr.mxu0 0.0
  %2003 = vmatpush1.msra.mxu0 0.0
  %2004 = vmatprep.subr.mxu0 0.0
  %2005 = vmatpush1.msra.mxu0 0.0
  %2006 = vmatprep.subr.mxu0 0.0
  %2007 = vmatpush1.msra.mxu0 0.0
  %2008 = vmatprep.subr.mxu0 0.0
  %2009 = vmatpush1.msra.mxu0 0.0
  %2010 = vmatprep.subr.mxu0 0.0
  %2011 = vmatpush1.msra.mxu0 0.0
  %2012 = vmatprep.subr.mxu0 0.0
  %2013 = vmatpush1.msra.mxu0 0.0
  %2014 = vmatprep.subr.mxu0 0.0
  %2015 = vmatpush1.msra.mxu0 0.0
  %2016 = vmatprep.subr.mxu0 0.0
  %2017 = vmatpush1.msra.mxu0 0.0
  %2018 = vmatprep.subr.mxu0 0.0
  %2019 = vmatpush1.msra.mxu0 0.0
  %2020 = vmatprep.subr.mxu0 0.0
  %2021 = vmatpush1.msra.mxu0 0.0
  %2022 = vmatprep.subr.mxu0 %v1883
  %2023 = vmatpush1.msra.mxu0 %v1882
  %2024 = vmatprep.subr.mxu0 %v1881
  %2025 = vmatpush1.msra.mxu0 %v1880
  %2026 = vmatprep.subr.mxu0 %v1879
  %2027 = vmatpush1.msra.mxu0 %v1878
  %2028 = vmatprep.subr.mxu0 %v1877
  %2029 = vmatpush1.msra.mxu0 %v1876
  %2030 = vmatprep.subr.mxu0 0.0
  %2031 = vmatpush2.msra.mxu0 0.0
  %2032 = vmatprep.subr.mxu0 0.0
  %2033 = vmatpush2.msra.mxu0 0.0
  %2034 = vmatprep.subr.mxu0 0.0
  %2035 = vmatpush2.msra.mxu0 0.0
  %2036 = vmatprep.subr.mxu0 0.0
  %2037 = vmatpush2.msra.mxu0 0.0
  %2038 = vmatprep.subr.mxu0 0.0
  %2039 = vmatpush2.msra.mxu0 0.0
  %2040 = vmatprep.subr.mxu0 0.0
  %2041 = vmatpush2.msra.mxu0 0.0
  %2042 = vmatprep.subr.mxu0 0.0
  %2043 = vmatpush2.msra.mxu0 0.0
  %2044 = vmatprep.subr.mxu0 0.0
  %2045 = vmatpush2.msra.mxu0 0.0
  %2046 = vmatprep.subr.mxu0 0.0
  %2047 = vmatpush2.msra.mxu0 0.0
  %2048 = vmatprep.subr.mxu0 0.0
  %2049 = vmatpush2.msra.mxu0 0.0
  %2050 = vmatprep.subr.mxu0 0.0
  %2051 = vmatpush2.msra.mxu0 0.0
  %2052 = vmatprep.subr.mxu0 0.0
  %2053 = vmatpush2.msra.mxu0 0.0
  %2054 = vmatprep.subr.mxu0 0.0
  %2055 = vmatpush2.msra.mxu0 0.0
  %2056 = vmatprep.subr.mxu0 0.0
  %2057 = vmatpush2.msra.mxu0 0.0
  %2058 = vmatprep.subr.mxu0 0.0
  %2059 = vmatpush2.msra.mxu0 0.0
  %2060 = vmatprep.subr.mxu0 0.0
  %2061 = vmatpush2.msra.mxu0 0.0
  %2062 = vmatprep.mubr.f32.mxu0 0.0
  %2063 = vmatmul.mubr.f32.gmra.mxu0 %v1986
  %v2064 = vpop.f32.mrf.mxu0
  %v2065 = vadd.f32 0.0, %v2064
  %v2066 = vpop.f32.mrf.mxu0
  %v2067 = vadd.f32 0.0, %v2066
  %2068 = vmatprep.mubr.f32.mxu0 0.0
  %2069 = vmatmul.mubr.f32.gmra.mxu0 %v1988
  %v2070 = vpop.f32.mrf.mxu0
  %v2071 = vadd.f32 0.0, %v2070
  %v2072 = vpop.f32.mrf.mxu0
  %v2073 = vadd.f32 0.0, %v2072
  %2074 = vmatprep.mubr.f32.mxu0 0.0
  %2075 = vmatmul.mubr.f32.gmra.mxu0 %v1990
  %v2076 = vpop.f32.mrf.mxu0
  %v2077 = vadd.f32 0.0, %v2076
  %v2078 = vpop.f32.mrf.mxu0
  %v2079 = vadd.f32 0.0, %v2078
  %2080 = vmatprep.mubr.f32.mxu0 0.0
  %2081 = vmatmul.mubr.f32.gmra.mxu0 %v1992
  %v2082 = vpop.f32.mrf.mxu0
  %v2083 = vadd.f32 0.0, %v2082
  %v2084 = vpop.f32.mrf.mxu0
  %v2085 = vadd.f32 0.0, %v2084
  %2086 = vmatprep.mubr.f32.mxu0 0.0
  %2087 = vmatmul.mubr.f32.gmra.mxu0 %v1994
  %v2088 = vpop.f32.mrf.mxu0
  %v2089 = vadd.f32 0.0, %v2088
  %v2090 = vpop.f32.mrf.mxu0
  %v2091 = vadd.f32 0.0, %v2090
  %2092 = vmatprep.mubr.f32.mxu0 0.0
  %2093 = vmatmul.mubr.f32.gmra.mxu0 %v1996
  %v2094 = vpop.f32.mrf.mxu0
  %v2095 = vadd.f32 0.0, %v2094
  %v2096 = vpop.f32.mrf.mxu0
  %v2097 = vadd.f32 0.0, %v2096
  %2098 = vdwg.mxu0
  %v2099 = vadd.f32 %v1863, %v2065
  %v2100 = vadd.f32 %v1864, %v2067
  %v2101 = vadd.f32 %v1865, %v2071
  %v2102 = vadd.f32 %v1866, %v2073
  %v2103 = vadd.f32 %v1867, %v2077
  %v2104 = vadd.f32 %v1868, %v2079
  %v2105 = vadd.f32 %v1869, %v2083
  %v2106 = vadd.f32 %v1870, %v2085
  %v2107 = vadd.f32 %v1871, %v2089
  %v2108 = vadd.f32 %v1872, %v2091
  %v2109 = vadd.f32 %v1873, %v2095
  %v2110 = vadd.f32 %v1874, %v2097
  %s2111 = scalar_lea.vmem %s1, 256
  %v2112 = vld [vmem:[%s2111] sm:$0xff]
  %v2113 = vld [vmem:[%s2111 + $0x8] sm:$0xff]
  %v2114 = vld [vmem:[%s2111 + $0x10] sm:$0xff]
  %v2115 = vld [vmem:[%s2111 + $0x18] sm:$0xff]
  %v2116 = vld [vmem:[%s2111 + $0x20] sm:$0xff]
  %v2117 = vld [vmem:[%s2111 + $0x28] sm:$0xff]
  %v2118 = vld [vmem:[%s2111 + $0x30] sm:$0xff]
  %v2119 = vld [vmem:[%s2111 + $0x38] sm:$0xff]
  %v2120 = vcombine.low %v638, %v646
  %v2121 = vcombine.low %v645, %v654
  %v2123 = vunpack.c.l.s4 1983009808
  %v2124 = vunpack.c.0.s8 %v2123
  %v2125 = vlaneseq
  %v2126 = vshrl.u32 %v2125, 7
  %v2127 = vsub.s32 %v2124, %v2126
  %v2128 = vrot.slane %v2120, %v2127
  %v2130 = vunpack.c.l.s4 1983009808
  %v2131 = vunpack.c.0.s8 %v2130
  %v2132 = vlaneseq
  %v2133 = vshrl.u32 %v2132, 7
  %v2134 = vsub.s32 %v2131, %v2133
  %v2135 = vrot.slane %v2121, %v2134
  %v2136 = vcombine.low %v2128, %v2135
  %v2137 = vcombine.low %v662, %v661
  %v2138 = vcombine.low %v670, %v678
  %v2140 = vunpack.c.l.s4 1983009808
  %v2141 = vunpack.c.0.s8 %v2140
  %v2142 = vlaneseq
  %v2143 = vshrl.u32 %v2142, 7
  %v2144 = vsub.s32 %v2141, %v2143
  %v2145 = vrot.slane %v2137, %v2144
  %v2147 = vunpack.c.l.s4 1983009808
  %v2148 = vunpack.c.0.s8 %v2147
  %v2149 = vlaneseq
  %v2150 = vshrl.u32 %v2149, 7
  %v2151 = vsub.s32 %v2148, %v2150
  %v2152 = vrot.slane %v2138, %v2151
  %v2153 = vcombine.low %v2145, %v2152
  %v2154 = vcombine.low %v677, %v686
  %v2155 = vcombine.low %v694, %v693
  %v2157 = vunpack.c.l.s4 1983009808
  %v2158 = vunpack.c.0.s8 %v2157
  %v2159 = vlaneseq
  %v2160 = vshrl.u32 %v2159, 7
  %v2161 = vsub.s32 %v2158, %v2160
  %v2162 = vrot.slane %v2154, %v2161
  %v2164 = vunpack.c.l.s4 1983009808
  %v2165 = vunpack.c.0.s8 %v2164
  %v2166 = vlaneseq
  %v2167 = vshrl.u32 %v2166, 7
  %v2168 = vsub.s32 %v2165, %v2167
  %v2169 = vrot.slane %v2155, %v2168
  %v2170 = vcombine.low %v2162, %v2169
  %v2171 = vcombine.low %v702, %v710
  %v2172 = vcombine.low %v709, %v718
  %v2174 = vunpack.c.l.s4 1983009808
  %v2175 = vunpack.c.0.s8 %v2174
  %v2176 = vlaneseq
  %v2177 = vshrl.u32 %v2176, 7
  %v2178 = vsub.s32 %v2175, %v2177
  %v2179 = vrot.slane %v2171, %v2178
  %v2181 = vunpack.c.l.s4 1983009808
  %v2182 = vunpack.c.0.s8 %v2181
  %v2183 = vlaneseq
  %v2184 = vshrl.u32 %v2183, 7
  %v2185 = vsub.s32 %v2182, %v2184
  %v2186 = vrot.slane %v2172, %v2185
  %v2187 = vcombine.low %v2179, %v2186
  %v2188 = vcombine.low %v726, %v725
  %v2189 = vcombine.low %v734, %v742
  %v2191 = vunpack.c.l.s4 1983009808
  %v2192 = vunpack.c.0.s8 %v2191
  %v2193 = vlaneseq
  %v2194 = vshrl.u32 %v2193, 7
  %v2195 = vsub.s32 %v2192, %v2194
  %v2196 = vrot.slane %v2188, %v2195
  %v2198 = vunpack.c.l.s4 1983009808
  %v2199 = vunpack.c.0.s8 %v2198
  %v2200 = vlaneseq
  %v2201 = vshrl.u32 %v2200, 7
  %v2202 = vsub.s32 %v2199, %v2201
  %v2203 = vrot.slane %v2189, %v2202
  %v2204 = vcombine.low %v2196, %v2203
  %v2205 = vcombine.low %v741, %v750
  %v2206 = vcombine.low %v758, %v757
  %v2208 = vunpack.c.l.s4 1983009808
  %v2209 = vunpack.c.0.s8 %v2208
  %v2210 = vlaneseq
  %v2211 = vshrl.u32 %v2210, 7
  %v2212 = vsub.s32 %v2209, %v2211
  %v2213 = vrot.slane %v2205, %v2212
  %v2215 = vunpack.c.l.s4 1983009808
  %v2216 = vunpack.c.0.s8 %v2215
  %v2217 = vlaneseq
  %v2218 = vshrl.u32 %v2217, 7
  %v2219 = vsub.s32 %v2216, %v2218
  %v2220 = vrot.slane %v2206, %v2219
  %v2221 = vcombine.low %v2213, %v2220
  %v2222 = vsel %vm1310, %v2136, 0
  %v2224 = vsel %vm1310, %v2153, 0
  %v2226 = vsel %vm1310, %v2170, 0
  %v2228 = vsel %vm1310, %v2187, 0
  %v2230 = vsel %vm1310, %v2204, 0
  %v2232 = vsel %vm1310, %v2221, 0
  %2234 = vmatprep.subr.mxu0 0.0
  %2235 = vmatpush1.msra.mxu0 0.0
  %2236 = vmatprep.subr.mxu0 0.0
  %2237 = vmatpush1.msra.mxu0 0.0
  %2238 = vmatprep.subr.mxu0 0.0
  %2239 = vmatpush1.msra.mxu0 0.0
  %2240 = vmatprep.subr.mxu0 0.0
  %2241 = vmatpush1.msra.mxu0 0.0
  %2242 = vmatprep.subr.mxu0 0.0
  %2243 = vmatpush1.msra.mxu0 0.0
  %2244 = vmatprep.subr.mxu0 0.0
  %2245 = vmatpush1.msra.mxu0 0.0
  %2246 = vmatprep.subr.mxu0 0.0
  %2247 = vmatpush1.msra.mxu0 0.0
  %2248 = vmatprep.subr.mxu0 0.0
  %2249 = vmatpush1.msra.mxu0 0.0
  %2250 = vmatprep.subr.mxu0 0.0
  %2251 = vmatpush1.msra.mxu0 0.0
  %2252 = vmatprep.subr.mxu0 0.0
  %2253 = vmatpush1.msra.mxu0 0.0
  %2254 = vmatprep.subr.mxu0 0.0
  %2255 = vmatpush1.msra.mxu0 0.0
  %2256 = vmatprep.subr.mxu0 0.0
  %2257 = vmatpush1.msra.mxu0 0.0
  %2258 = vmatprep.subr.mxu0 %v2119
  %2259 = vmatpush1.msra.mxu0 %v2118
  %2260 = vmatprep.subr.mxu0 %v2117
  %2261 = vmatpush1.msra.mxu0 %v2116
  %2262 = vmatprep.subr.mxu0 %v2115
  %2263 = vmatpush1.msra.mxu0 %v2114
  %2264 = vmatprep.subr.mxu0 %v2113
  %2265 = vmatpush1.msra.mxu0 %v2112
  %2266 = vmatprep.subr.mxu0 0.0
  %2267 = vmatpush2.msra.mxu0 0.0
  %2268 = vmatprep.subr.mxu0 0.0
  %2269 = vmatpush2.msra.mxu0 0.0
  %2270 = vmatprep.subr.mxu0 0.0
  %2271 = vmatpush2.msra.mxu0 0.0
  %2272 = vmatprep.subr.mxu0 0.0
  %2273 = vmatpush2.msra.mxu0 0.0
  %2274 = vmatprep.subr.mxu0 0.0
  %2275 = vmatpush2.msra.mxu0 0.0
  %2276 = vmatprep.subr.mxu0 0.0
  %2277 = vmatpush2.msra.mxu0 0.0
  %2278 = vmatprep.subr.mxu0 0.0
  %2279 = vmatpush2.msra.mxu0 0.0
  %2280 = vmatprep.subr.mxu0 0.0
  %2281 = vmatpush2.msra.mxu0 0.0
  %2282 = vmatprep.subr.mxu0 0.0
  %2283 = vmatpush2.msra.mxu0 0.0
  %2284 = vmatprep.subr.mxu0 0.0
  %2285 = vmatpush2.msra.mxu0 0.0
  %2286 = vmatprep.subr.mxu0 0.0
  %2287 = vmatpush2.msra.mxu0 0.0
  %2288 = vmatprep.subr.mxu0 0.0
  %2289 = vmatpush2.msra.mxu0 0.0
  %2290 = vmatprep.subr.mxu0 0.0
  %2291 = vmatpush2.msra.mxu0 0.0
  %2292 = vmatprep.subr.mxu0 0.0
  %2293 = vmatpush2.msra.mxu0 0.0
  %2294 = vmatprep.subr.mxu0 0.0
  %2295 = vmatpush2.msra.mxu0 0.0
  %2296 = vmatprep.subr.mxu0 0.0
  %2297 = vmatpush2.msra.mxu0 0.0
  %2298 = vmatprep.mubr.f32.mxu0 0.0
  %2299 = vmatmul.mubr.f32.gmra.mxu0 %v2222
  %v2300 = vpop.f32.mrf.mxu0
  %v2301 = vadd.f32 0.0, %v2300
  %v2302 = vpop.f32.mrf.mxu0
  %v2303 = vadd.f32 0.0, %v2302
  %2304 = vmatprep.mubr.f32.mxu0 0.0
  %2305 = vmatmul.mubr.f32.gmra.mxu0 %v2224
  %v2306 = vpop.f32.mrf.mxu0
  %v2307 = vadd.f32 0.0, %v2306
  %v2308 = vpop.f32.mrf.mxu0
  %v2309 = vadd.f32 0.0, %v2308
  %2310 = vmatprep.mubr.f32.mxu0 0.0
  %2311 = vmatmul.mubr.f32.gmra.mxu0 %v2226
  %v2312 = vpop.f32.mrf.mxu0
  %v2313 = vadd.f32 0.0, %v2312
  %v2314 = vpop.f32.mrf.mxu0
  %v2315 = vadd.f32 0.0, %v2314
  %2316 = vmatprep.mubr.f32.mxu0 0.0
  %2317 = vmatmul.mubr.f32.gmra.mxu0 %v2228
  %v2318 = vpop.f32.mrf.mxu0
  %v2319 = vadd.f32 0.0, %v2318
  %v2320 = vpop.f32.mrf.mxu0
  %v2321 = vadd.f32 0.0, %v2320
  %2322 = vmatprep.mubr.f32.mxu0 0.0
  %2323 = vmatmul.mubr.f32.gmra.mxu0 %v2230
  %v2324 = vpop.f32.mrf.mxu0
  %v2325 = vadd.f32 0.0, %v2324
  %v2326 = vpop.f32.mrf.mxu0
  %v2327 = vadd.f32 0.0, %v2326
  %2328 = vmatprep.mubr.f32.mxu0 0.0
  %2329 = vmatmul.mubr.f32.gmra.mxu0 %v2232
  %v2330 = vpop.f32.mrf.mxu0
  %v2331 = vadd.f32 0.0, %v2330
  %v2332 = vpop.f32.mrf.mxu0
  %v2333 = vadd.f32 0.0, %v2332
  %2334 = vdwg.mxu0
  %v2335 = vadd.f32 %v2099, %v2301
  %v2336 = vadd.f32 %v2100, %v2303
  %v2337 = vadd.f32 %v2101, %v2307
  %v2338 = vadd.f32 %v2102, %v2309
  %v2339 = vadd.f32 %v2103, %v2313
  %v2340 = vadd.f32 %v2104, %v2315
  %v2341 = vadd.f32 %v2105, %v2319
  %v2342 = vadd.f32 %v2106, %v2321
  %v2343 = vadd.f32 %v2107, %v2325
  %v2344 = vadd.f32 %v2108, %v2327
  %v2345 = vadd.f32 %v2109, %v2331
  %v2346 = vadd.f32 %v2110, %v2333
  %2347 = vmatprep.subr.mxu0 0.0
  %2348 = vmatpush1.msra.mxu0 0.0
  %2349 = vmatprep.subr.mxu0 0.0
  %2350 = vmatpush1.msra.mxu0 0.0
  %2351 = vmatprep.subr.mxu0 0.0
  %2352 = vmatpush1.msra.mxu0 0.0
  %2353 = vmatprep.subr.mxu0 0.0
  %2354 = vmatpush1.msra.mxu0 0.0
  %2355 = vmatprep.subr.mxu0 0.0
  %2356 = vmatpush1.msra.mxu0 0.0
  %2357 = vmatprep.subr.mxu0 0.0
  %2358 = vmatpush1.msra.mxu0 0.0
  %2359 = vmatprep.subr.mxu0 0.0
  %2360 = vmatpush1.msra.mxu0 0.0
  %2361 = vmatprep.subr.mxu0 0.0
  %2362 = vmatpush1.msra.mxu0 0.0
  %2363 = vmatprep.subr.mxu0 0.0
  %2364 = vmatpush1.msra.mxu0 0.0
  %2365 = vmatprep.subr.mxu0 0.0
  %2366 = vmatpush1.msra.mxu0 0.0
  %2367 = vmatprep.subr.mxu0 0.0
  %2368 = vmatpush1.msra.mxu0 0.0
  %2369 = vmatprep.subr.mxu0 0.0
  %2370 = vmatpush1.msra.mxu0 0.0
  %2371 = vmatprep.subr.mxu0 %v1207
  %2372 = vmatpush1.msra.mxu0 %v1206
  %2373 = vmatprep.subr.mxu0 %v1205
  %2374 = vmatpush1.msra.mxu0 %v1204
  %2375 = vmatprep.subr.mxu0 %v1203
  %2376 = vmatpush1.msra.mxu0 %v1202
  %2377 = vmatprep.subr.mxu0 %v1201
  %2378 = vmatpush1.msra.mxu0 %v1200
  %2379 = vmatprep.subr.mxu0 0.0
  %2380 = vmatpush2.msra.mxu0 0.0
  %2381 = vmatprep.subr.mxu0 0.0
  %2382 = vmatpush2.msra.mxu0 0.0
  %2383 = vmatprep.subr.mxu0 0.0
  %2384 = vmatpush2.msra.mxu0 0.0
  %2385 = vmatprep.subr.mxu0 0.0
  %2386 = vmatpush2.msra.mxu0 0.0
  %2387 = vmatprep.subr.mxu0 0.0
  %2388 = vmatpush2.msra.mxu0 0.0
  %2389 = vmatprep.subr.mxu0 0.0
  %2390 = vmatpush2.msra.mxu0 0.0
  %2391 = vmatprep.subr.mxu0 0.0
  %2392 = vmatpush2.msra.mxu0 0.0
  %2393 = vmatprep.subr.mxu0 0.0
  %2394 = vmatpush2.msra.mxu0 0.0
  %2395 = vmatprep.subr.mxu0 0.0
  %2396 = vmatpush2.msra.mxu0 0.0
  %2397 = vmatprep.subr.mxu0 0.0
  %2398 = vmatpush2.msra.mxu0 0.0
  %2399 = vmatprep.subr.mxu0 0.0
  %2400 = vmatpush2.msra.mxu0 0.0
  %2401 = vmatprep.subr.mxu0 0.0
  %2402 = vmatpush2.msra.mxu0 0.0
  %2403 = vmatprep.subr.mxu0 0.0
  %2404 = vmatpush2.msra.mxu0 0.0
  %2405 = vmatprep.subr.mxu0 0.0
  %2406 = vmatpush2.msra.mxu0 0.0
  %2407 = vmatprep.subr.mxu0 0.0
  %2408 = vmatpush2.msra.mxu0 0.0
  %2409 = vmatprep.subr.mxu0 0.0
  %2410 = vmatpush2.msra.mxu0 0.0
  %2411 = vmatprep.mubr.f32.mxu0 0.0
  %2412 = vmatmul.mubr.f32.gmra.mxu0 %v1750
  %v2413 = vpop.f32.mrf.mxu0
  %v2414 = vadd.f32 0.0, %v2413
  %v2415 = vpop.f32.mrf.mxu0
  %v2416 = vadd.f32 0.0, %v2415
  %2417 = vmatprep.mubr.f32.mxu0 0.0
  %2418 = vmatmul.mubr.f32.gmra.mxu0 %v1752
  %v2419 = vpop.f32.mrf.mxu0
  %v2420 = vadd.f32 0.0, %v2419
  %v2421 = vpop.f32.mrf.mxu0
  %v2422 = vadd.f32 0.0, %v2421
  %2423 = vmatprep.mubr.f32.mxu0 0.0
  %2424 = vmatmul.mubr.f32.gmra.mxu0 %v1754
  %v2425 = vpop.f32.mrf.mxu0
  %v2426 = vadd.f32 0.0, %v2425
  %v2427 = vpop.f32.mrf.mxu0
  %v2428 = vadd.f32 0.0, %v2427
  %2429 = vmatprep.mubr.f32.mxu0 0.0
  %2430 = vmatmul.mubr.f32.gmra.mxu0 %v1756
  %v2431 = vpop.f32.mrf.mxu0
  %v2432 = vadd.f32 0.0, %v2431
  %v2433 = vpop.f32.mrf.mxu0
  %v2434 = vadd.f32 0.0, %v2433
  %2435 = vmatprep.mubr.f32.mxu0 0.0
  %2436 = vmatmul.mubr.f32.gmra.mxu0 %v1758
  %v2437 = vpop.f32.mrf.mxu0
  %v2438 = vadd.f32 0.0, %v2437
  %v2439 = vpop.f32.mrf.mxu0
  %v2440 = vadd.f32 0.0, %v2439
  %2441 = vmatprep.mubr.f32.mxu0 0.0
  %2442 = vmatmul.mubr.f32.gmra.mxu0 %v1760
  %v2443 = vpop.f32.mrf.mxu0
  %v2444 = vadd.f32 0.0, %v2443
  %v2445 = vpop.f32.mrf.mxu0
  %v2446 = vadd.f32 0.0, %v2445
  %2447 = vdwg.mxu0
  %2448 = vmatprep.subr.mxu0 0.0
  %2449 = vmatpush1.msra.mxu0 0.0
  %2450 = vmatprep.subr.mxu0 0.0
  %2451 = vmatpush1.msra.mxu0 0.0
  %2452 = vmatprep.subr.mxu0 0.0
  %2453 = vmatpush1.msra.mxu0 0.0
  %2454 = vmatprep.subr.mxu0 0.0
  %2455 = vmatpush1.msra.mxu0 0.0
  %2456 = vmatprep.subr.mxu0 0.0
  %2457 = vmatpush1.msra.mxu0 0.0
  %2458 = vmatprep.subr.mxu0 0.0
  %2459 = vmatpush1.msra.mxu0 0.0
  %2460 = vmatprep.subr.mxu0 0.0
  %2461 = vmatpush1.msra.mxu0 0.0
  %2462 = vmatprep.subr.mxu0 0.0
  %2463 = vmatpush1.msra.mxu0 0.0
  %2464 = vmatprep.subr.mxu0 0.0
  %2465 = vmatpush1.msra.mxu0 0.0
  %2466 = vmatprep.subr.mxu0 0.0
  %2467 = vmatpush1.msra.mxu0 0.0
  %2468 = vmatprep.subr.mxu0 0.0
  %2469 = vmatpush1.msra.mxu0 0.0
  %2470 = vmatprep.subr.mxu0 0.0
  %2471 = vmatpush1.msra.mxu0 0.0
  %2472 = vmatprep.subr.mxu0 %v1198
  %2473 = vmatpush1.msra.mxu0 %v1197
  %2474 = vmatprep.subr.mxu0 %v1196
  %2475 = vmatpush1.msra.mxu0 %v1195
  %2476 = vmatprep.subr.mxu0 %v1194
  %2477 = vmatpush1.msra.mxu0 %v1193
  %2478 = vmatprep.subr.mxu0 %v1192
  %2479 = vmatpush1.msra.mxu0 %v1191
  %2480 = vmatprep.subr.mxu0 0.0
  %2481 = vmatpush2.msra.mxu0 0.0
  %2482 = vmatprep.subr.mxu0 0.0
  %2483 = vmatpush2.msra.mxu0 0.0
  %2484 = vmatprep.subr.mxu0 0.0
  %2485 = vmatpush2.msra.mxu0 0.0
  %2486 = vmatprep.subr.mxu0 0.0
  %2487 = vmatpush2.msra.mxu0 0.0
  %2488 = vmatprep.subr.mxu0 0.0
  %2489 = vmatpush2.msra.mxu0 0.0
  %2490 = vmatprep.subr.mxu0 0.0
  %2491 = vmatpush2.msra.mxu0 0.0
  %2492 = vmatprep.subr.mxu0 0.0
  %2493 = vmatpush2.msra.mxu0 0.0
  %2494 = vmatprep.subr.mxu0 0.0
  %2495 = vmatpush2.msra.mxu0 0.0
  %2496 = vmatprep.subr.mxu0 0.0
  %2497 = vmatpush2.msra.mxu0 0.0
  %2498 = vmatprep.subr.mxu0 0.0
  %2499 = vmatpush2.msra.mxu0 0.0
  %2500 = vmatprep.subr.mxu0 0.0
  %2501 = vmatpush2.msra.mxu0 0.0
  %2502 = vmatprep.subr.mxu0 0.0
  %2503 = vmatpush2.msra.mxu0 0.0
  %2504 = vmatprep.subr.mxu0 0.0
  %2505 = vmatpush2.msra.mxu0 0.0
  %2506 = vmatprep.subr.mxu0 0.0
  %2507 = vmatpush2.msra.mxu0 0.0
  %2508 = vmatprep.subr.mxu0 0.0
  %2509 = vmatpush2.msra.mxu0 0.0
  %2510 = vmatprep.subr.mxu0 0.0
  %2511 = vmatpush2.msra.mxu0 0.0
  %2512 = vmatprep.mubr.f32.mxu0 0.0
  %2513 = vmatmul.mubr.f32.gmra.mxu0 %v1311
  %v2514 = vpop.f32.mrf.mxu0
  %v2515 = vadd.f32 %v2414, %v2514
  %v2516 = vpop.f32.mrf.mxu0
  %v2517 = vadd.f32 %v2416, %v2516
  %2518 = vmatprep.mubr.f32.mxu0 0.0
  %2519 = vmatmul.mubr.f32.gmra.mxu0 %v1313
  %v2520 = vpop.f32.mrf.mxu0
  %v2521 = vadd.f32 %v2420, %v2520
  %v2522 = vpop.f32.mrf.mxu0
  %v2523 = vadd.f32 %v2422, %v2522
  %2524 = vmatprep.mubr.f32.mxu0 0.0
  %2525 = vmatmul.mubr.f32.gmra.mxu0 %v1315
  %v2526 = vpop.f32.mrf.mxu0
  %v2527 = vadd.f32 %v2426, %v2526
  %v2528 = vpop.f32.mrf.mxu0
  %v2529 = vadd.f32 %v2428, %v2528
  %2530 = vmatprep.mubr.f32.mxu0 0.0
  %2531 = vmatmul.mubr.f32.gmra.mxu0 %v1317
  %v2532 = vpop.f32.mrf.mxu0
  %v2533 = vadd.f32 %v2432, %v2532
  %v2534 = vpop.f32.mrf.mxu0
  %v2535 = vadd.f32 %v2434, %v2534
  %2536 = vmatprep.mubr.f32.mxu0 0.0
  %2537 = vmatmul.mubr.f32.gmra.mxu0 %v1319
  %v2538 = vpop.f32.mrf.mxu0
  %v2539 = vadd.f32 %v2438, %v2538
  %v2540 = vpop.f32.mrf.mxu0
  %v2541 = vadd.f32 %v2440, %v2540
  %2542 = vmatprep.mubr.f32.mxu0 0.0
  %2543 = vmatmul.mubr.f32.gmra.mxu0 %v1321
  %v2544 = vpop.f32.mrf.mxu0
  %v2545 = vadd.f32 %v2444, %v2544
  %v2546 = vpop.f32.mrf.mxu0
  %v2547 = vadd.f32 %v2446, %v2546
  %2548 = vdwg.mxu0
  %2549 = vmatprep.subr.mxu0 0.0
  %2550 = vmatpush1.msra.mxu0 0.0
  %2551 = vmatprep.subr.mxu0 0.0
  %2552 = vmatpush1.msra.mxu0 0.0
  %2553 = vmatprep.subr.mxu0 0.0
  %2554 = vmatpush1.msra.mxu0 0.0
  %2555 = vmatprep.subr.mxu0 0.0
  %2556 = vmatpush1.msra.mxu0 0.0
  %2557 = vmatprep.subr.mxu0 0.0
  %2558 = vmatpush1.msra.mxu0 0.0
  %2559 = vmatprep.subr.mxu0 0.0
  %2560 = vmatpush1.msra.mxu0 0.0
  %2561 = vmatprep.subr.mxu0 0.0
  %2562 = vmatpush1.msra.mxu0 0.0
  %2563 = vmatprep.subr.mxu0 0.0
  %2564 = vmatpush1.msra.mxu0 0.0
  %2565 = vmatprep.subr.mxu0 0.0
  %2566 = vmatpush1.msra.mxu0 0.0
  %2567 = vmatprep.subr.mxu0 0.0
  %2568 = vmatpush1.msra.mxu0 0.0
  %2569 = vmatprep.subr.mxu0 0.0
  %2570 = vmatpush1.msra.mxu0 0.0
  %2571 = vmatprep.subr.mxu0 0.0
  %2572 = vmatpush1.msra.mxu0 0.0
  %2573 = vmatprep.subr.mxu0 %v1647
  %2574 = vmatpush1.msra.mxu0 %v1646
  %2575 = vmatprep.subr.mxu0 %v1645
  %2576 = vmatpush1.msra.mxu0 %v1644
  %2577 = vmatprep.subr.mxu0 %v1643
  %2578 = vmatpush1.msra.mxu0 %v1642
  %2579 = vmatprep.subr.mxu0 %v1641
  %2580 = vmatpush1.msra.mxu0 %v1640
  %2581 = vmatprep.subr.mxu0 0.0
  %2582 = vmatpush2.msra.mxu0 0.0
  %2583 = vmatprep.subr.mxu0 0.0
  %2584 = vmatpush2.msra.mxu0 0.0
  %2585 = vmatprep.subr.mxu0 0.0
  %2586 = vmatpush2.msra.mxu0 0.0
  %2587 = vmatprep.subr.mxu0 0.0
  %2588 = vmatpush2.msra.mxu0 0.0
  %2589 = vmatprep.subr.mxu0 0.0
  %2590 = vmatpush2.msra.mxu0 0.0
  %2591 = vmatprep.subr.mxu0 0.0
  %2592 = vmatpush2.msra.mxu0 0.0
  %2593 = vmatprep.subr.mxu0 0.0
  %2594 = vmatpush2.msra.mxu0 0.0
  %2595 = vmatprep.subr.mxu0 0.0
  %2596 = vmatpush2.msra.mxu0 0.0
  %2597 = vmatprep.subr.mxu0 0.0
  %2598 = vmatpush2.msra.mxu0 0.0
  %2599 = vmatprep.subr.mxu0 0.0
  %2600 = vmatpush2.msra.mxu0 0.0
  %2601 = vmatprep.subr.mxu0 0.0
  %2602 = vmatpush2.msra.mxu0 0.0
  %2603 = vmatprep.subr.mxu0 0.0
  %2604 = vmatpush2.msra.mxu0 0.0
  %2605 = vmatprep.subr.mxu0 0.0
  %2606 = vmatpush2.msra.mxu0 0.0
  %2607 = vmatprep.subr.mxu0 0.0
  %2608 = vmatpush2.msra.mxu0 0.0
  %2609 = vmatprep.subr.mxu0 0.0
  %2610 = vmatpush2.msra.mxu0 0.0
  %2611 = vmatprep.subr.mxu0 0.0
  %2612 = vmatpush2.msra.mxu0 0.0
  %2613 = vmatprep.mubr.f32.mxu0 0.0
  %2614 = vmatmul.mubr.f32.gmra.mxu0 %v1986
  %v2615 = vpop.f32.mrf.mxu0
  %v2616 = vadd.f32 0.0, %v2615
  %v2617 = vpop.f32.mrf.mxu0
  %v2618 = vadd.f32 0.0, %v2617
  %2619 = vmatprep.mubr.f32.mxu0 0.0
  %2620 = vmatmul.mubr.f32.gmra.mxu0 %v1988
  %v2621 = vpop.f32.mrf.mxu0
  %v2622 = vadd.f32 0.0, %v2621
  %v2623 = vpop.f32.mrf.mxu0
  %v2624 = vadd.f32 0.0, %v2623
  %2625 = vmatprep.mubr.f32.mxu0 0.0
  %2626 = vmatmul.mubr.f32.gmra.mxu0 %v1990
  %v2627 = vpop.f32.mrf.mxu0
  %v2628 = vadd.f32 0.0, %v2627
  %v2629 = vpop.f32.mrf.mxu0
  %v2630 = vadd.f32 0.0, %v2629
  %2631 = vmatprep.mubr.f32.mxu0 0.0
  %2632 = vmatmul.mubr.f32.gmra.mxu0 %v1992
  %v2633 = vpop.f32.mrf.mxu0
  %v2634 = vadd.f32 0.0, %v2633
  %v2635 = vpop.f32.mrf.mxu0
  %v2636 = vadd.f32 0.0, %v2635
  %2637 = vmatprep.mubr.f32.mxu0 0.0
  %2638 = vmatmul.mubr.f32.gmra.mxu0 %v1994
  %v2639 = vpop.f32.mrf.mxu0
  %v2640 = vadd.f32 0.0, %v2639
  %v2641 = vpop.f32.mrf.mxu0
  %v2642 = vadd.f32 0.0, %v2641
  %2643 = vmatprep.mubr.f32.mxu0 0.0
  %2644 = vmatmul.mubr.f32.gmra.mxu0 %v1996
  %v2645 = vpop.f32.mrf.mxu0
  %v2646 = vadd.f32 0.0, %v2645
  %v2647 = vpop.f32.mrf.mxu0
  %v2648 = vadd.f32 0.0, %v2647
  %2649 = vdwg.mxu0
  %v2650 = vadd.f32 %v2515, %v2616
  %v2651 = vadd.f32 %v2517, %v2618
  %v2652 = vadd.f32 %v2521, %v2622
  %v2653 = vadd.f32 %v2523, %v2624
  %v2654 = vadd.f32 %v2527, %v2628
  %v2655 = vadd.f32 %v2529, %v2630
  %v2656 = vadd.f32 %v2533, %v2634
  %v2657 = vadd.f32 %v2535, %v2636
  %v2658 = vadd.f32 %v2539, %v2640
  %v2659 = vadd.f32 %v2541, %v2642
  %v2660 = vadd.f32 %v2545, %v2646
  %v2661 = vadd.f32 %v2547, %v2648
  %2662 = vmatprep.subr.mxu0 0.0
  %2663 = vmatpush1.msra.mxu0 0.0
  %2664 = vmatprep.subr.mxu0 0.0
  %2665 = vmatpush1.msra.mxu0 0.0
  %2666 = vmatprep.subr.mxu0 0.0
  %2667 = vmatpush1.msra.mxu0 0.0
  %2668 = vmatprep.subr.mxu0 0.0
  %2669 = vmatpush1.msra.mxu0 0.0
  %2670 = vmatprep.subr.mxu0 0.0
  %2671 = vmatpush1.msra.mxu0 0.0
  %2672 = vmatprep.subr.mxu0 0.0
  %2673 = vmatpush1.msra.mxu0 0.0
  %2674 = vmatprep.subr.mxu0 0.0
  %2675 = vmatpush1.msra.mxu0 0.0
  %2676 = vmatprep.subr.mxu0 0.0
  %2677 = vmatpush1.msra.mxu0 0.0
  %2678 = vmatprep.subr.mxu0 0.0
  %2679 = vmatpush1.msra.mxu0 0.0
  %2680 = vmatprep.subr.mxu0 0.0
  %2681 = vmatpush1.msra.mxu0 0.0
  %2682 = vmatprep.subr.mxu0 0.0
  %2683 = vmatpush1.msra.mxu0 0.0
  %2684 = vmatprep.subr.mxu0 0.0
  %2685 = vmatpush1.msra.mxu0 0.0
  %2686 = vmatprep.subr.mxu0 %v1883
  %2687 = vmatpush1.msra.mxu0 %v1882
  %2688 = vmatprep.subr.mxu0 %v1881
  %2689 = vmatpush1.msra.mxu0 %v1880
  %2690 = vmatprep.subr.mxu0 %v1879
  %2691 = vmatpush1.msra.mxu0 %v1878
  %2692 = vmatprep.subr.mxu0 %v1877
  %2693 = vmatpush1.msra.mxu0 %v1876
  %2694 = vmatprep.subr.mxu0 0.0
  %2695 = vmatpush2.msra.mxu0 0.0
  %2696 = vmatprep.subr.mxu0 0.0
  %2697 = vmatpush2.msra.mxu0 0.0
  %2698 = vmatprep.subr.mxu0 0.0
  %2699 = vmatpush2.msra.mxu0 0.0
  %2700 = vmatprep.subr.mxu0 0.0
  %2701 = vmatpush2.msra.mxu0 0.0
  %2702 = vmatprep.subr.mxu0 0.0
  %2703 = vmatpush2.msra.mxu0 0.0
  %2704 = vmatprep.subr.mxu0 0.0
  %2705 = vmatpush2.msra.mxu0 0.0
  %2706 = vmatprep.subr.mxu0 0.0
  %2707 = vmatpush2.msra.mxu0 0.0
  %2708 = vmatprep.subr.mxu0 0.0
  %2709 = vmatpush2.msra.mxu0 0.0
  %2710 = vmatprep.subr.mxu0 0.0
  %2711 = vmatpush2.msra.mxu0 0.0
  %2712 = vmatprep.subr.mxu0 0.0
  %2713 = vmatpush2.msra.mxu0 0.0
  %2714 = vmatprep.subr.mxu0 0.0
  %2715 = vmatpush2.msra.mxu0 0.0
  %2716 = vmatprep.subr.mxu0 0.0
  %2717 = vmatpush2.msra.mxu0 0.0
  %2718 = vmatprep.subr.mxu0 0.0
  %2719 = vmatpush2.msra.mxu0 0.0
  %2720 = vmatprep.subr.mxu0 0.0
  %2721 = vmatpush2.msra.mxu0 0.0
  %2722 = vmatprep.subr.mxu0 0.0
  %2723 = vmatpush2.msra.mxu0 0.0
  %2724 = vmatprep.subr.mxu0 0.0
  %2725 = vmatpush2.msra.mxu0 0.0
  %2726 = vmatprep.mubr.f32.mxu0 0.0
  %2727 = vmatmul.mubr.f32.gmra.mxu0 %v2222
  %v2728 = vpop.f32.mrf.mxu0
  %v2729 = vadd.f32 0.0, %v2728
  %v2730 = vpop.f32.mrf.mxu0
  %v2731 = vadd.f32 0.0, %v2730
  %2732 = vmatprep.mubr.f32.mxu0 0.0
  %2733 = vmatmul.mubr.f32.gmra.mxu0 %v2224
  %v2734 = vpop.f32.mrf.mxu0
  %v2735 = vadd.f32 0.0, %v2734
  %v2736 = vpop.f32.mrf.mxu0
  %v2737 = vadd.f32 0.0, %v2736
  %2738 = vmatprep.mubr.f32.mxu0 0.0
  %2739 = vmatmul.mubr.f32.gmra.mxu0 %v2226
  %v2740 = vpop.f32.mrf.mxu0
  %v2741 = vadd.f32 0.0, %v2740
  %v2742 = vpop.f32.mrf.mxu0
  %v2743 = vadd.f32 0.0, %v2742
  %2744 = vmatprep.mubr.f32.mxu0 0.0
  %2745 = vmatmul.mubr.f32.gmra.mxu0 %v2228
  %v2746 = vpop.f32.mrf.mxu0
  %v2747 = vadd.f32 0.0, %v2746
  %v2748 = vpop.f32.mrf.mxu0
  %v2749 = vadd.f32 0.0, %v2748
  %2750 = vmatprep.mubr.f32.mxu0 0.0
  %2751 = vmatmul.mubr.f32.gmra.mxu0 %v2230
  %v2752 = vpop.f32.mrf.mxu0
  %v2753 = vadd.f32 0.0, %v2752
  %v2754 = vpop.f32.mrf.mxu0
  %v2755 = vadd.f32 0.0, %v2754
  %2756 = vmatprep.mubr.f32.mxu0 0.0
  %2757 = vmatmul.mubr.f32.gmra.mxu0 %v2232
  %v2758 = vpop.f32.mrf.mxu0
  %v2759 = vadd.f32 0.0, %v2758
  %v2760 = vpop.f32.mrf.mxu0
  %v2761 = vadd.f32 0.0, %v2760
  %2762 = vdwg.mxu0
  %v2763 = vadd.f32 %v2650, %v2729
  %v2764 = vadd.f32 %v2651, %v2731
  %v2765 = vadd.f32 %v2652, %v2735
  %v2766 = vadd.f32 %v2653, %v2737
  %v2767 = vadd.f32 %v2654, %v2741
  %v2768 = vadd.f32 %v2655, %v2743
  %v2769 = vadd.f32 %v2656, %v2747
  %v2770 = vadd.f32 %v2657, %v2749
  %v2771 = vadd.f32 %v2658, %v2753
  %v2772 = vadd.f32 %v2659, %v2755
  %v2773 = vadd.f32 %v2660, %v2759
  %v2774 = vadd.f32 %v2661, %v2761
  %v2775 = vcombine.low %v782, %v790
  %v2776 = vcombine.low %v789, %v798
  %v2778 = vunpack.c.l.s4 1983009808
  %v2779 = vunpack.c.0.s8 %v2778
  %v2780 = vlaneseq
  %v2781 = vshrl.u32 %v2780, 7
  %v2782 = vsub.s32 %v2779, %v2781
  %v2783 = vrot.slane %v2775, %v2782
  %v2785 = vunpack.c.l.s4 1983009808
  %v2786 = vunpack.c.0.s8 %v2785
  %v2787 = vlaneseq
  %v2788 = vshrl.u32 %v2787, 7
  %v2789 = vsub.s32 %v2786, %v2788
  %v2790 = vrot.slane %v2776, %v2789
  %v2791 = vcombine.low %v2783, %v2790
  %v2792 = vcombine.low %v806, %v805
  %v2793 = vcombine.low %v814, %v822
  %v2795 = vunpack.c.l.s4 1983009808
  %v2796 = vunpack.c.0.s8 %v2795
  %v2797 = vlaneseq
  %v2798 = vshrl.u32 %v2797, 7
  %v2799 = vsub.s32 %v2796, %v2798
  %v2800 = vrot.slane %v2792, %v2799
  %v2802 = vunpack.c.l.s4 1983009808
  %v2803 = vunpack.c.0.s8 %v2802
  %v2804 = vlaneseq
  %v2805 = vshrl.u32 %v2804, 7
  %v2806 = vsub.s32 %v2803, %v2805
  %v2807 = vrot.slane %v2793, %v2806
  %v2808 = vcombine.low %v2800, %v2807
  %v2809 = vcombine.low %v821, %v830
  %v2810 = vcombine.low %v838, %v837
  %v2812 = vunpack.c.l.s4 1983009808
  %v2813 = vunpack.c.0.s8 %v2812
  %v2814 = vlaneseq
  %v2815 = vshrl.u32 %v2814, 7
  %v2816 = vsub.s32 %v2813, %v2815
  %v2817 = vrot.slane %v2809, %v2816
  %v2819 = vunpack.c.l.s4 1983009808
  %v2820 = vunpack.c.0.s8 %v2819
  %v2821 = vlaneseq
  %v2822 = vshrl.u32 %v2821, 7
  %v2823 = vsub.s32 %v2820, %v2822
  %v2824 = vrot.slane %v2810, %v2823
  %v2825 = vcombine.low %v2817, %v2824
  %v2826 = vcombine.low %v846, %v854
  %v2827 = vcombine.low %v853, %v862
  %v2829 = vunpack.c.l.s4 1983009808
  %v2830 = vunpack.c.0.s8 %v2829
  %v2831 = vlaneseq
  %v2832 = vshrl.u32 %v2831, 7
  %v2833 = vsub.s32 %v2830, %v2832
  %v2834 = vrot.slane %v2826, %v2833
  %v2836 = vunpack.c.l.s4 1983009808
  %v2837 = vunpack.c.0.s8 %v2836
  %v2838 = vlaneseq
  %v2839 = vshrl.u32 %v2838, 7
  %v2840 = vsub.s32 %v2837, %v2839
  %v2841 = vrot.slane %v2827, %v2840
  %v2842 = vcombine.low %v2834, %v2841
  %v2843 = vcombine.low %v870, %v869
  %v2844 = vcombine.low %v878, %v886
  %v2846 = vunpack.c.l.s4 1983009808
  %v2847 = vunpack.c.0.s8 %v2846
  %v2848 = vlaneseq
  %v2849 = vshrl.u32 %v2848, 7
  %v2850 = vsub.s32 %v2847, %v2849
  %v2851 = vrot.slane %v2843, %v2850
  %v2853 = vunpack.c.l.s4 1983009808
  %v2854 = vunpack.c.0.s8 %v2853
  %v2855 = vlaneseq
  %v2856 = vshrl.u32 %v2855, 7
  %v2857 = vsub.s32 %v2854, %v2856
  %v2858 = vrot.slane %v2844, %v2857
  %v2859 = vcombine.low %v2851, %v2858
  %v2860 = vcombine.low %v885, %v894
  %v2861 = vcombine.low %v902, %v901
  %v2863 = vunpack.c.l.s4 1983009808
  %v2864 = vunpack.c.0.s8 %v2863
  %v2865 = vlaneseq
  %v2866 = vshrl.u32 %v2865, 7
  %v2867 = vsub.s32 %v2864, %v2866
  %v2868 = vrot.slane %v2860, %v2867
  %v2870 = vunpack.c.l.s4 1983009808
  %v2871 = vunpack.c.0.s8 %v2870
  %v2872 = vlaneseq
  %v2873 = vshrl.u32 %v2872, 7
  %v2874 = vsub.s32 %v2871, %v2873
  %v2875 = vrot.slane %v2861, %v2874
  %v2876 = vcombine.low %v2868, %v2875
  %v2877 = vsel %vm1310, %v2791, 0
  %v2879 = vsel %vm1310, %v2808, 0
  %v2881 = vsel %vm1310, %v2825, 0
  %v2883 = vsel %vm1310, %v2842, 0
  %v2885 = vsel %vm1310, %v2859, 0
  %v2887 = vsel %vm1310, %v2876, 0
  %2889 = vmatprep.subr.mxu0 0.0
  %2890 = vmatpush1.msra.mxu0 0.0
  %2891 = vmatprep.subr.mxu0 0.0
  %2892 = vmatpush1.msra.mxu0 0.0
  %2893 = vmatprep.subr.mxu0 0.0
  %2894 = vmatpush1.msra.mxu0 0.0
  %2895 = vmatprep.subr.mxu0 0.0
  %2896 = vmatpush1.msra.mxu0 0.0
  %2897 = vmatprep.subr.mxu0 0.0
  %2898 = vmatpush1.msra.mxu0 0.0
  %2899 = vmatprep.subr.mxu0 0.0
  %2900 = vmatpush1.msra.mxu0 0.0
  %2901 = vmatprep.subr.mxu0 0.0
  %2902 = vmatpush1.msra.mxu0 0.0
  %2903 = vmatprep.subr.mxu0 0.0
  %2904 = vmatpush1.msra.mxu0 0.0
  %2905 = vmatprep.subr.mxu0 0.0
  %2906 = vmatpush1.msra.mxu0 0.0
  %2907 = vmatprep.subr.mxu0 0.0
  %2908 = vmatpush1.msra.mxu0 0.0
  %2909 = vmatprep.subr.mxu0 0.0
  %2910 = vmatpush1.msra.mxu0 0.0
  %2911 = vmatprep.subr.mxu0 0.0
  %2912 = vmatpush1.msra.mxu0 0.0
  %2913 = vmatprep.subr.mxu0 %v2119
  %2914 = vmatpush1.msra.mxu0 %v2118
  %2915 = vmatprep.subr.mxu0 %v2117
  %2916 = vmatpush1.msra.mxu0 %v2116
  %2917 = vmatprep.subr.mxu0 %v2115
  %2918 = vmatpush1.msra.mxu0 %v2114
  %2919 = vmatprep.subr.mxu0 %v2113
  %2920 = vmatpush1.msra.mxu0 %v2112
  %2921 = vmatprep.subr.mxu0 0.0
  %2922 = vmatpush2.msra.mxu0 0.0
  %2923 = vmatprep.subr.mxu0 0.0
  %2924 = vmatpush2.msra.mxu0 0.0
  %2925 = vmatprep.subr.mxu0 0.0
  %2926 = vmatpush2.msra.mxu0 0.0
  %2927 = vmatprep.subr.mxu0 0.0
  %2928 = vmatpush2.msra.mxu0 0.0
  %2929 = vmatprep.subr.mxu0 0.0
  %2930 = vmatpush2.msra.mxu0 0.0
  %2931 = vmatprep.subr.mxu0 0.0
  %2932 = vmatpush2.msra.mxu0 0.0
  %2933 = vmatprep.subr.mxu0 0.0
  %2934 = vmatpush2.msra.mxu0 0.0
  %2935 = vmatprep.subr.mxu0 0.0
  %2936 = vmatpush2.msra.mxu0 0.0
  %2937 = vmatprep.subr.mxu0 0.0
  %2938 = vmatpush2.msra.mxu0 0.0
  %2939 = vmatprep.subr.mxu0 0.0
  %2940 = vmatpush2.msra.mxu0 0.0
  %2941 = vmatprep.subr.mxu0 0.0
  %2942 = vmatpush2.msra.mxu0 0.0
  %2943 = vmatprep.subr.mxu0 0.0
  %2944 = vmatpush2.msra.mxu0 0.0
  %2945 = vmatprep.subr.mxu0 0.0
  %2946 = vmatpush2.msra.mxu0 0.0
  %2947 = vmatprep.subr.mxu0 0.0
  %2948 = vmatpush2.msra.mxu0 0.0
  %2949 = vmatprep.subr.mxu0 0.0
  %2950 = vmatpush2.msra.mxu0 0.0
  %2951 = vmatprep.subr.mxu0 0.0
  %2952 = vmatpush2.msra.mxu0 0.0
  %2953 = vmatprep.mubr.f32.mxu0 0.0
  %2954 = vmatmul.mubr.f32.gmra.mxu0 %v2877
  %v2955 = vpop.f32.mrf.mxu0
  %v2956 = vadd.f32 0.0, %v2955
  %v2957 = vpop.f32.mrf.mxu0
  %v2958 = vadd.f32 0.0, %v2957
  %2959 = vmatprep.mubr.f32.mxu0 0.0
  %2960 = vmatmul.mubr.f32.gmra.mxu0 %v2879
  %v2961 = vpop.f32.mrf.mxu0
  %v2962 = vadd.f32 0.0, %v2961
  %v2963 = vpop.f32.mrf.mxu0
  %v2964 = vadd.f32 0.0, %v2963
  %2965 = vmatprep.mubr.f32.mxu0 0.0
  %2966 = vmatmul.mubr.f32.gmra.mxu0 %v2881
  %v2967 = vpop.f32.mrf.mxu0
  %v2968 = vadd.f32 0.0, %v2967
  %v2969 = vpop.f32.mrf.mxu0
  %v2970 = vadd.f32 0.0, %v2969
  %2971 = vmatprep.mubr.f32.mxu0 0.0
  %2972 = vmatmul.mubr.f32.gmra.mxu0 %v2883
  %v2973 = vpop.f32.mrf.mxu0
  %v2974 = vadd.f32 0.0, %v2973
  %v2975 = vpop.f32.mrf.mxu0
  %v2976 = vadd.f32 0.0, %v2975
  %2977 = vmatprep.mubr.f32.mxu0 0.0
  %2978 = vmatmul.mubr.f32.gmra.mxu0 %v2885
  %v2979 = vpop.f32.mrf.mxu0
  %v2980 = vadd.f32 0.0, %v2979
  %v2981 = vpop.f32.mrf.mxu0
  %v2982 = vadd.f32 0.0, %v2981
  %2983 = vmatprep.mubr.f32.mxu0 0.0
  %2984 = vmatmul.mubr.f32.gmra.mxu0 %v2887
  %v2985 = vpop.f32.mrf.mxu0
  %v2986 = vadd.f32 0.0, %v2985
  %v2987 = vpop.f32.mrf.mxu0
  %v2988 = vadd.f32 0.0, %v2987
  %2989 = vdwg.mxu0
  %v2990 = vadd.f32 %v2763, %v2956
  %v2991 = vadd.f32 %v2764, %v2958
  %v2992 = vadd.f32 %v2765, %v2962
  %v2993 = vadd.f32 %v2766, %v2964
  %v2994 = vadd.f32 %v2767, %v2968
  %v2995 = vadd.f32 %v2768, %v2970
  %v2996 = vadd.f32 %v2769, %v2974
  %v2997 = vadd.f32 %v2770, %v2976
  %v2998 = vadd.f32 %v2771, %v2980
  %v2999 = vadd.f32 %v2772, %v2982
  %v3000 = vadd.f32 %v2773, %v2986
  %v3001 = vadd.f32 %v2774, %v2988
  %v3002 = vmax.f32 %v2335, %v2336
  %v3003 = vmax.f32 %v2337, %v2338
  %v3004 = vmax.f32 %v2339, %v2340
  %v3005 = vmax.f32 %v2341, %v2342
  %v3006 = vmax.f32 %v2343, %v2344
  %v3007 = vmax.f32 %v2345, %v2346
  %v3008 = vmax.f32 %v2990, %v2991
  %v3009 = vmax.f32 %v2992, %v2993
  %v3010 = vmax.f32 %v2994, %v2995
  %v3011 = vmax.f32 %v2996, %v2997
  %v3012 = vmax.f32 %v2998, %v2999
  %v3013 = vmax.f32 %v3000, %v3001
  %v3014 = vmax.f32 %v3002, %v3008
  %v3015 = vmax.f32 %v3003, %v3009
  %v3016 = vmax.f32 %v3004, %v3010
  %v3017 = vmax.f32 %v3005, %v3011
  %v3018 = vmax.f32 %v3006, %v3012
  %v3019 = vmax.f32 %v3007, %v3013
  %v3021 = vlaneseq
  %v3022 = vshrl.u32 %v3021, 7
  %v3023 = vsub.s32 0, %v3022
  %v3024 = vrot.slane %v34, %v3023
  %v3026 = vadd.f32 %v3014, %v3024
  %v3027 = vadd.f32 %v3015, %v3024
  %v3028 = vadd.f32 %v3016, %v3024
  %v3029 = vadd.f32 %v3017, %v3024
  %v3030 = vadd.f32 %v3018, %v3024
  %v3031 = vadd.f32 %v3019, %v3024
  %v3032 = vmax.f32 %v3026, 0.0
  %v3033 = vmax.f32 %v3027, 0.0
  %v3034 = vmax.f32 %v3028, 0.0
  %v3035 = vmax.f32 %v3029, 0.0
  %v3036 = vmax.f32 %v3030, 0.0
  %v3037 = vmax.f32 %v3031, 0.0
  %v3044 = vcombine.high %v3032, %v3032
  %v3046 = vunpack.c.l.s4 1983009808
  %v3047 = vunpack.c.0.s8 %v3046
  %v3048 = vlaneseq
  %v3049 = vshrl.u32 %v3048, 7
  %v3050 = vsub.s32 %v3047, %v3049
  %v3051 = vrot.slane %v3032, %v3050
  %v3053 = vunpack.c.l.s4 1983009808
  %v3054 = vunpack.c.0.s8 %v3053
  %v3055 = vlaneseq
  %v3056 = vshrl.u32 %v3055, 7
  %v3057 = vsub.s32 %v3054, %v3056
  %v3058 = vrot.slane %v3044, %v3057
  %v3059 = vcombine.high %v3051, %v3051
  %v3060 = vcombine.high %v3058, %v3058
  %v3061 = vcombine.high %v3033, %v3033
  %v3063 = vunpack.c.l.s4 1983009808
  %v3064 = vunpack.c.0.s8 %v3063
  %v3065 = vlaneseq
  %v3066 = vshrl.u32 %v3065, 7
  %v3067 = vsub.s32 %v3064, %v3066
  %v3068 = vrot.slane %v3033, %v3067
  %v3070 = vunpack.c.l.s4 1983009808
  %v3071 = vunpack.c.0.s8 %v3070
  %v3072 = vlaneseq
  %v3073 = vshrl.u32 %v3072, 7
  %v3074 = vsub.s32 %v3071, %v3073
  %v3075 = vrot.slane %v3061, %v3074
  %v3076 = vcombine.high %v3068, %v3068
  %v3077 = vcombine.high %v3075, %v3075
  %v3078 = vcombine.high %v3034, %v3034
  %v3080 = vunpack.c.l.s4 1983009808
  %v3081 = vunpack.c.0.s8 %v3080
  %v3082 = vlaneseq
  %v3083 = vshrl.u32 %v3082, 7
  %v3084 = vsub.s32 %v3081, %v3083
  %v3085 = vrot.slane %v3034, %v3084
  %v3087 = vunpack.c.l.s4 1983009808
  %v3088 = vunpack.c.0.s8 %v3087
  %v3089 = vlaneseq
  %v3090 = vshrl.u32 %v3089, 7
  %v3091 = vsub.s32 %v3088, %v3090
  %v3092 = vrot.slane %v3078, %v3091
  %v3093 = vcombine.high %v3085, %v3085
  %v3094 = vcombine.high %v3092, %v3092
  %v3095 = vcombine.high %v3035, %v3035
  %v3097 = vunpack.c.l.s4 1983009808
  %v3098 = vunpack.c.0.s8 %v3097
  %v3099 = vlaneseq
  %v3100 = vshrl.u32 %v3099, 7
  %v3101 = vsub.s32 %v3098, %v3100
  %v3102 = vrot.slane %v3035, %v3101
  %v3104 = vunpack.c.l.s4 1983009808
  %v3105 = vunpack.c.0.s8 %v3104
  %v3106 = vlaneseq
  %v3107 = vshrl.u32 %v3106, 7
  %v3108 = vsub.s32 %v3105, %v3107
  %v3109 = vrot.slane %v3095, %v3108
  %v3110 = vcombine.high %v3102, %v3102
  %v3111 = vcombine.high %v3109, %v3109
  %v3112 = vcombine.high %v3036, %v3036
  %v3114 = vunpack.c.l.s4 1983009808
  %v3115 = vunpack.c.0.s8 %v3114
  %v3116 = vlaneseq
  %v3117 = vshrl.u32 %v3116, 7
  %v3118 = vsub.s32 %v3115, %v3117
  %v3119 = vrot.slane %v3036, %v3118
  %v3121 = vunpack.c.l.s4 1983009808
  %v3122 = vunpack.c.0.s8 %v3121
  %v3123 = vlaneseq
  %v3124 = vshrl.u32 %v3123, 7
  %v3125 = vsub.s32 %v3122, %v3124
  %v3126 = vrot.slane %v3112, %v3125
  %v3127 = vcombine.high %v3119, %v3119
  %v3128 = vcombine.high %v3126, %v3126
  %v3129 = vcombine.high %v3037, %v3037
  %v3131 = vunpack.c.l.s4 1983009808
  %v3132 = vunpack.c.0.s8 %v3131
  %v3133 = vlaneseq
  %v3134 = vshrl.u32 %v3133, 7
  %v3135 = vsub.s32 %v3132, %v3134
  %v3136 = vrot.slane %v3037, %v3135
  %v3138 = vunpack.c.l.s4 1983009808
  %v3139 = vunpack.c.0.s8 %v3138
  %v3140 = vlaneseq
  %v3141 = vshrl.u32 %v3140, 7
  %v3142 = vsub.s32 %v3139, %v3141
  %v3143 = vrot.slane %v3129, %v3142
  %v3144 = vcombine.high %v3136, %v3136
  %v3145 = vcombine.high %v3143, %v3143
  %3146 = vmatprep.subr.mxu0 0.0
  %3147 = vmatpush1.msra.mxu0 0.0
  %3148 = vmatprep.subr.mxu0 0.0
  %3149 = vmatpush1.msra.mxu0 0.0
  %3150 = vmatprep.subr.mxu0 0.0
  %3151 = vmatpush1.msra.mxu0 0.0
  %3152 = vmatprep.subr.mxu0 0.0
  %3153 = vmatpush1.msra.mxu0 0.0
  %3154 = vmatprep.subr.mxu0 0.0
  %3155 = vmatpush1.msra.mxu0 0.0
  %3156 = vmatprep.subr.mxu0 0.0
  %3157 = vmatpush1.msra.mxu0 0.0
  %3158 = vmatprep.subr.mxu0 0.0
  %3159 = vmatpush1.msra.mxu0 0.0
  %3160 = vmatprep.subr.mxu0 0.0
  %3161 = vmatpush1.msra.mxu0 0.0
  %3162 = vmatprep.subr.mxu0 0.0
  %3163 = vmatpush1.msra.mxu0 0.0
  %3164 = vmatprep.subr.mxu0 0.0
  %3165 = vmatpush1.msra.mxu0 0.0
  %3166 = vmatprep.subr.mxu0 0.0
  %3167 = vmatpush1.msra.mxu0 0.0
  %3168 = vmatprep.subr.mxu0 0.0
  %3169 = vmatpush1.msra.mxu0 0.0
  %3170 = vmatprep.subr.mxu0 %v1207
  %3171 = vmatpush1.msra.mxu0 %v1206
  %3172 = vmatprep.subr.mxu0 %v1205
  %3173 = vmatpush1.msra.mxu0 %v1204
  %3174 = vmatprep.subr.mxu0 %v1203
  %3175 = vmatpush1.msra.mxu0 %v1202
  %3176 = vmatprep.subr.mxu0 %v1201
  %3177 = vmatpush1.msra.mxu0 %v1200
  %3178 = vmatprep.subr.mxu0 0.0
  %3179 = vmatpush2.msra.mxu0 0.0
  %3180 = vmatprep.subr.mxu0 0.0
  %3181 = vmatpush2.msra.mxu0 0.0
  %3182 = vmatprep.subr.mxu0 0.0
  %3183 = vmatpush2.msra.mxu0 0.0
  %3184 = vmatprep.subr.mxu0 0.0
  %3185 = vmatpush2.msra.mxu0 0.0
  %3186 = vmatprep.subr.mxu0 0.0
  %3187 = vmatpush2.msra.mxu0 0.0
  %3188 = vmatprep.subr.mxu0 0.0
  %3189 = vmatpush2.msra.mxu0 0.0
  %3190 = vmatprep.subr.mxu0 0.0
  %3191 = vmatpush2.msra.mxu0 0.0
  %3192 = vmatprep.subr.mxu0 0.0
  %3193 = vmatpush2.msra.mxu0 0.0
  %3194 = vmatprep.subr.mxu0 0.0
  %3195 = vmatpush2.msra.mxu0 0.0
  %3196 = vmatprep.subr.mxu0 0.0
  %3197 = vmatpush2.msra.mxu0 0.0
  %3198 = vmatprep.subr.mxu0 0.0
  %3199 = vmatpush2.msra.mxu0 0.0
  %3200 = vmatprep.subr.mxu0 0.0
  %3201 = vmatpush2.msra.mxu0 0.0
  %3202 = vmatprep.subr.mxu0 0.0
  %3203 = vmatpush2.msra.mxu0 0.0
  %3204 = vmatprep.subr.mxu0 0.0
  %3205 = vmatpush2.msra.mxu0 0.0
  %3206 = vmatprep.subr.mxu0 0.0
  %3207 = vmatpush2.msra.mxu0 0.0
  %3208 = vmatprep.subr.mxu0 0.0
  %3209 = vmatpush2.msra.mxu0 0.0
  %3210 = vmatprep.mubr.f32.mxu0 0.0
  %3211 = vmatmul.mubr.f32.gmra.mxu0 %v1986
  %v3212 = vpop.f32.mrf.mxu0
  %v3213 = vadd.f32 0.0, %v3212
  %v3214 = vpop.f32.mrf.mxu0
  %v3215 = vadd.f32 0.0, %v3214
  %3216 = vmatprep.mubr.f32.mxu0 0.0
  %3217 = vmatmul.mubr.f32.gmra.mxu0 %v1988
  %v3218 = vpop.f32.mrf.mxu0
  %v3219 = vadd.f32 0.0, %v3218
  %v3220 = vpop.f32.mrf.mxu0
  %v3221 = vadd.f32 0.0, %v3220
  %3222 = vmatprep.mubr.f32.mxu0 0.0
  %3223 = vmatmul.mubr.f32.gmra.mxu0 %v1990
  %v3224 = vpop.f32.mrf.mxu0
  %v3225 = vadd.f32 0.0, %v3224
  %v3226 = vpop.f32.mrf.mxu0
  %v3227 = vadd.f32 0.0, %v3226
  %3228 = vmatprep.mubr.f32.mxu0 0.0
  %3229 = vmatmul.mubr.f32.gmra.mxu0 %v1992
  %v3230 = vpop.f32.mrf.mxu0
  %v3231 = vadd.f32 0.0, %v3230
  %v3232 = vpop.f32.mrf.mxu0
  %v3233 = vadd.f32 0.0, %v3232
  %3234 = vmatprep.mubr.f32.mxu0 0.0
  %3235 = vmatmul.mubr.f32.gmra.mxu0 %v1994
  %v3236 = vpop.f32.mrf.mxu0
  %v3237 = vadd.f32 0.0, %v3236
  %v3238 = vpop.f32.mrf.mxu0
  %v3239 = vadd.f32 0.0, %v3238
  %3240 = vmatprep.mubr.f32.mxu0 0.0
  %3241 = vmatmul.mubr.f32.gmra.mxu0 %v1996
  %v3242 = vpop.f32.mrf.mxu0
  %v3243 = vadd.f32 0.0, %v3242
  %v3244 = vpop.f32.mrf.mxu0
  %v3245 = vadd.f32 0.0, %v3244
  %3246 = vdwg.mxu0
  %3247 = vmatprep.subr.mxu0 0.0
  %3248 = vmatpush1.msra.mxu0 0.0
  %3249 = vmatprep.subr.mxu0 0.0
  %3250 = vmatpush1.msra.mxu0 0.0
  %3251 = vmatprep.subr.mxu0 0.0
  %3252 = vmatpush1.msra.mxu0 0.0
  %3253 = vmatprep.subr.mxu0 0.0
  %3254 = vmatpush1.msra.mxu0 0.0
  %3255 = vmatprep.subr.mxu0 0.0
  %3256 = vmatpush1.msra.mxu0 0.0
  %3257 = vmatprep.subr.mxu0 0.0
  %3258 = vmatpush1.msra.mxu0 0.0
  %3259 = vmatprep.subr.mxu0 0.0
  %3260 = vmatpush1.msra.mxu0 0.0
  %3261 = vmatprep.subr.mxu0 0.0
  %3262 = vmatpush1.msra.mxu0 0.0
  %3263 = vmatprep.subr.mxu0 0.0
  %3264 = vmatpush1.msra.mxu0 0.0
  %3265 = vmatprep.subr.mxu0 0.0
  %3266 = vmatpush1.msra.mxu0 0.0
  %3267 = vmatprep.subr.mxu0 0.0
  %3268 = vmatpush1.msra.mxu0 0.0
  %3269 = vmatprep.subr.mxu0 0.0
  %3270 = vmatpush1.msra.mxu0 0.0
  %3271 = vmatprep.subr.mxu0 %v1198
  %3272 = vmatpush1.msra.mxu0 %v1197
  %3273 = vmatprep.subr.mxu0 %v1196
  %3274 = vmatpush1.msra.mxu0 %v1195
  %3275 = vmatprep.subr.mxu0 %v1194
  %3276 = vmatpush1.msra.mxu0 %v1193
  %3277 = vmatprep.subr.mxu0 %v1192
  %3278 = vmatpush1.msra.mxu0 %v1191
  %3279 = vmatprep.subr.mxu0 0.0
  %3280 = vmatpush2.msra.mxu0 0.0
  %3281 = vmatprep.subr.mxu0 0.0
  %3282 = vmatpush2.msra.mxu0 0.0
  %3283 = vmatprep.subr.mxu0 0.0
  %3284 = vmatpush2.msra.mxu0 0.0
  %3285 = vmatprep.subr.mxu0 0.0
  %3286 = vmatpush2.msra.mxu0 0.0
  %3287 = vmatprep.subr.mxu0 0.0
  %3288 = vmatpush2.msra.mxu0 0.0
  %3289 = vmatprep.subr.mxu0 0.0
  %3290 = vmatpush2.msra.mxu0 0.0
  %3291 = vmatprep.subr.mxu0 0.0
  %3292 = vmatpush2.msra.mxu0 0.0
  %3293 = vmatprep.subr.mxu0 0.0
  %3294 = vmatpush2.msra.mxu0 0.0
  %3295 = vmatprep.subr.mxu0 0.0
  %3296 = vmatpush2.msra.mxu0 0.0
  %3297 = vmatprep.subr.mxu0 0.0
  %3298 = vmatpush2.msra.mxu0 0.0
  %3299 = vmatprep.subr.mxu0 0.0
  %3300 = vmatpush2.msra.mxu0 0.0
  %3301 = vmatprep.subr.mxu0 0.0
  %3302 = vmatpush2.msra.mxu0 0.0
  %3303 = vmatprep.subr.mxu0 0.0
  %3304 = vmatpush2.msra.mxu0 0.0
  %3305 = vmatprep.subr.mxu0 0.0
  %3306 = vmatpush2.msra.mxu0 0.0
  %3307 = vmatprep.subr.mxu0 0.0
  %3308 = vmatpush2.msra.mxu0 0.0
  %3309 = vmatprep.subr.mxu0 0.0
  %3310 = vmatpush2.msra.mxu0 0.0
  %3311 = vmatprep.mubr.f32.mxu0 0.0
  %3312 = vmatmul.mubr.f32.gmra.mxu0 %v1750
  %v3313 = vpop.f32.mrf.mxu0
  %v3314 = vadd.f32 %v3213, %v3313
  %v3315 = vpop.f32.mrf.mxu0
  %v3316 = vadd.f32 %v3215, %v3315
  %3317 = vmatprep.mubr.f32.mxu0 0.0
  %3318 = vmatmul.mubr.f32.gmra.mxu0 %v1752
  %v3319 = vpop.f32.mrf.mxu0
  %v3320 = vadd.f32 %v3219, %v3319
  %v3321 = vpop.f32.mrf.mxu0
  %v3322 = vadd.f32 %v3221, %v3321
  %3323 = vmatprep.mubr.f32.mxu0 0.0
  %3324 = vmatmul.mubr.f32.gmra.mxu0 %v1754
  %v3325 = vpop.f32.mrf.mxu0
  %v3326 = vadd.f32 %v3225, %v3325
  %v3327 = vpop.f32.mrf.mxu0
  %v3328 = vadd.f32 %v3227, %v3327
  %3329 = vmatprep.mubr.f32.mxu0 0.0
  %3330 = vmatmul.mubr.f32.gmra.mxu0 %v1756
  %v3331 = vpop.f32.mrf.mxu0
  %v3332 = vadd.f32 %v3231, %v3331
  %v3333 = vpop.f32.mrf.mxu0
  %v3334 = vadd.f32 %v3233, %v3333
  %3335 = vmatprep.mubr.f32.mxu0 0.0
  %3336 = vmatmul.mubr.f32.gmra.mxu0 %v1758
  %v3337 = vpop.f32.mrf.mxu0
  %v3338 = vadd.f32 %v3237, %v3337
  %v3339 = vpop.f32.mrf.mxu0
  %v3340 = vadd.f32 %v3239, %v3339
  %3341 = vmatprep.mubr.f32.mxu0 0.0
  %3342 = vmatmul.mubr.f32.gmra.mxu0 %v1760
  %v3343 = vpop.f32.mrf.mxu0
  %v3344 = vadd.f32 %v3243, %v3343
  %v3345 = vpop.f32.mrf.mxu0
  %v3346 = vadd.f32 %v3245, %v3345
  %3347 = vdwg.mxu0
  %3348 = vmatprep.subr.mxu0 0.0
  %3349 = vmatpush1.msra.mxu0 0.0
  %3350 = vmatprep.subr.mxu0 0.0
  %3351 = vmatpush1.msra.mxu0 0.0
  %3352 = vmatprep.subr.mxu0 0.0
  %3353 = vmatpush1.msra.mxu0 0.0
  %3354 = vmatprep.subr.mxu0 0.0
  %3355 = vmatpush1.msra.mxu0 0.0
  %3356 = vmatprep.subr.mxu0 0.0
  %3357 = vmatpush1.msra.mxu0 0.0
  %3358 = vmatprep.subr.mxu0 0.0
  %3359 = vmatpush1.msra.mxu0 0.0
  %3360 = vmatprep.subr.mxu0 0.0
  %3361 = vmatpush1.msra.mxu0 0.0
  %3362 = vmatprep.subr.mxu0 0.0
  %3363 = vmatpush1.msra.mxu0 0.0
  %3364 = vmatprep.subr.mxu0 0.0
  %3365 = vmatpush1.msra.mxu0 0.0
  %3366 = vmatprep.subr.mxu0 0.0
  %3367 = vmatpush1.msra.mxu0 0.0
  %3368 = vmatprep.subr.mxu0 0.0
  %3369 = vmatpush1.msra.mxu0 0.0
  %3370 = vmatprep.subr.mxu0 0.0
  %3371 = vmatpush1.msra.mxu0 0.0
  %3372 = vmatprep.subr.mxu0 %v1647
  %3373 = vmatpush1.msra.mxu0 %v1646
  %3374 = vmatprep.subr.mxu0 %v1645
  %3375 = vmatpush1.msra.mxu0 %v1644
  %3376 = vmatprep.subr.mxu0 %v1643
  %3377 = vmatpush1.msra.mxu0 %v1642
  %3378 = vmatprep.subr.mxu0 %v1641
  %3379 = vmatpush1.msra.mxu0 %v1640
  %3380 = vmatprep.subr.mxu0 0.0
  %3381 = vmatpush2.msra.mxu0 0.0
  %3382 = vmatprep.subr.mxu0 0.0
  %3383 = vmatpush2.msra.mxu0 0.0
  %3384 = vmatprep.subr.mxu0 0.0
  %3385 = vmatpush2.msra.mxu0 0.0
  %3386 = vmatprep.subr.mxu0 0.0
  %3387 = vmatpush2.msra.mxu0 0.0
  %3388 = vmatprep.subr.mxu0 0.0
  %3389 = vmatpush2.msra.mxu0 0.0
  %3390 = vmatprep.subr.mxu0 0.0
  %3391 = vmatpush2.msra.mxu0 0.0
  %3392 = vmatprep.subr.mxu0 0.0
  %3393 = vmatpush2.msra.mxu0 0.0
  %3394 = vmatprep.subr.mxu0 0.0
  %3395 = vmatpush2.msra.mxu0 0.0
  %3396 = vmatprep.subr.mxu0 0.0
  %3397 = vmatpush2.msra.mxu0 0.0
  %3398 = vmatprep.subr.mxu0 0.0
  %3399 = vmatpush2.msra.mxu0 0.0
  %3400 = vmatprep.subr.mxu0 0.0
  %3401 = vmatpush2.msra.mxu0 0.0
  %3402 = vmatprep.subr.mxu0 0.0
  %3403 = vmatpush2.msra.mxu0 0.0
  %3404 = vmatprep.subr.mxu0 0.0
  %3405 = vmatpush2.msra.mxu0 0.0
  %3406 = vmatprep.subr.mxu0 0.0
  %3407 = vmatpush2.msra.mxu0 0.0
  %3408 = vmatprep.subr.mxu0 0.0
  %3409 = vmatpush2.msra.mxu0 0.0
  %3410 = vmatprep.subr.mxu0 0.0
  %3411 = vmatpush2.msra.mxu0 0.0
  %3412 = vmatprep.mubr.f32.mxu0 0.0
  %3413 = vmatmul.mubr.f32.gmra.mxu0 %v2222
  %v3414 = vpop.f32.mrf.mxu0
  %v3415 = vadd.f32 0.0, %v3414
  %v3416 = vpop.f32.mrf.mxu0
  %v3417 = vadd.f32 0.0, %v3416
  %3418 = vmatprep.mubr.f32.mxu0 0.0
  %3419 = vmatmul.mubr.f32.gmra.mxu0 %v2224
  %v3420 = vpop.f32.mrf.mxu0
  %v3421 = vadd.f32 0.0, %v3420
  %v3422 = vpop.f32.mrf.mxu0
  %v3423 = vadd.f32 0.0, %v3422
  %3424 = vmatprep.mubr.f32.mxu0 0.0
  %3425 = vmatmul.mubr.f32.gmra.mxu0 %v2226
  %v3426 = vpop.f32.mrf.mxu0
  %v3427 = vadd.f32 0.0, %v3426
  %v3428 = vpop.f32.mrf.mxu0
  %v3429 = vadd.f32 0.0, %v3428
  %3430 = vmatprep.mubr.f32.mxu0 0.0
  %3431 = vmatmul.mubr.f32.gmra.mxu0 %v2228
  %v3432 = vpop.f32.mrf.mxu0
  %v3433 = vadd.f32 0.0, %v3432
  %v3434 = vpop.f32.mrf.mxu0
  %v3435 = vadd.f32 0.0, %v3434
  %3436 = vmatprep.mubr.f32.mxu0 0.0
  %3437 = vmatmul.mubr.f32.gmra.mxu0 %v2230
  %v3438 = vpop.f32.mrf.mxu0
  %v3439 = vadd.f32 0.0, %v3438
  %v3440 = vpop.f32.mrf.mxu0
  %v3441 = vadd.f32 0.0, %v3440
  %3442 = vmatprep.mubr.f32.mxu0 0.0
  %3443 = vmatmul.mubr.f32.gmra.mxu0 %v2232
  %v3444 = vpop.f32.mrf.mxu0
  %v3445 = vadd.f32 0.0, %v3444
  %v3446 = vpop.f32.mrf.mxu0
  %v3447 = vadd.f32 0.0, %v3446
  %3448 = vdwg.mxu0
  %v3449 = vadd.f32 %v3314, %v3415
  %v3450 = vadd.f32 %v3316, %v3417
  %v3451 = vadd.f32 %v3320, %v3421
  %v3452 = vadd.f32 %v3322, %v3423
  %v3453 = vadd.f32 %v3326, %v3427
  %v3454 = vadd.f32 %v3328, %v3429
  %v3455 = vadd.f32 %v3332, %v3433
  %v3456 = vadd.f32 %v3334, %v3435
  %v3457 = vadd.f32 %v3338, %v3439
  %v3458 = vadd.f32 %v3340, %v3441
  %v3459 = vadd.f32 %v3344, %v3445
  %v3460 = vadd.f32 %v3346, %v3447
  %3461 = vmatprep.subr.mxu0 0.0
  %3462 = vmatpush1.msra.mxu0 0.0
  %3463 = vmatprep.subr.mxu0 0.0
  %3464 = vmatpush1.msra.mxu0 0.0
  %3465 = vmatprep.subr.mxu0 0.0
  %3466 = vmatpush1.msra.mxu0 0.0
  %3467 = vmatprep.subr.mxu0 0.0
  %3468 = vmatpush1.msra.mxu0 0.0
  %3469 = vmatprep.subr.mxu0 0.0
  %3470 = vmatpush1.msra.mxu0 0.0
  %3471 = vmatprep.subr.mxu0 0.0
  %3472 = vmatpush1.msra.mxu0 0.0
  %3473 = vmatprep.subr.mxu0 0.0
  %3474 = vmatpush1.msra.mxu0 0.0
  %3475 = vmatprep.subr.mxu0 0.0
  %3476 = vmatpush1.msra.mxu0 0.0
  %3477 = vmatprep.subr.mxu0 0.0
  %3478 = vmatpush1.msra.mxu0 0.0
  %3479 = vmatprep.subr.mxu0 0.0
  %3480 = vmatpush1.msra.mxu0 0.0
  %3481 = vmatprep.subr.mxu0 0.0
  %3482 = vmatpush1.msra.mxu0 0.0
  %3483 = vmatprep.subr.mxu0 0.0
  %3484 = vmatpush1.msra.mxu0 0.0
  %3485 = vmatprep.subr.mxu0 %v1883
  %3486 = vmatpush1.msra.mxu0 %v1882
  %3487 = vmatprep.subr.mxu0 %v1881
  %3488 = vmatpush1.msra.mxu0 %v1880
  %3489 = vmatprep.subr.mxu0 %v1879
  %3490 = vmatpush1.msra.mxu0 %v1878
  %3491 = vmatprep.subr.mxu0 %v1877
  %3492 = vmatpush1.msra.mxu0 %v1876
  %3493 = vmatprep.subr.mxu0 0.0
  %3494 = vmatpush2.msra.mxu0 0.0
  %3495 = vmatprep.subr.mxu0 0.0
  %3496 = vmatpush2.msra.mxu0 0.0
  %3497 = vmatprep.subr.mxu0 0.0
  %3498 = vmatpush2.msra.mxu0 0.0
  %3499 = vmatprep.subr.mxu0 0.0
  %3500 = vmatpush2.msra.mxu0 0.0
  %3501 = vmatprep.subr.mxu0 0.0
  %3502 = vmatpush2.msra.mxu0 0.0
  %3503 = vmatprep.subr.mxu0 0.0
  %3504 = vmatpush2.msra.mxu0 0.0
  %3505 = vmatprep.subr.mxu0 0.0
  %3506 = vmatpush2.msra.mxu0 0.0
  %3507 = vmatprep.subr.mxu0 0.0
  %3508 = vmatpush2.msra.mxu0 0.0
  %3509 = vmatprep.subr.mxu0 0.0
  %3510 = vmatpush2.msra.mxu0 0.0
  %3511 = vmatprep.subr.mxu0 0.0
  %3512 = vmatpush2.msra.mxu0 0.0
  %3513 = vmatprep.subr.mxu0 0.0
  %3514 = vmatpush2.msra.mxu0 0.0
  %3515 = vmatprep.subr.mxu0 0.0
  %3516 = vmatpush2.msra.mxu0 0.0
  %3517 = vmatprep.subr.mxu0 0.0
  %3518 = vmatpush2.msra.mxu0 0.0
  %3519 = vmatprep.subr.mxu0 0.0
  %3520 = vmatpush2.msra.mxu0 0.0
  %3521 = vmatprep.subr.mxu0 0.0
  %3522 = vmatpush2.msra.mxu0 0.0
  %3523 = vmatprep.subr.mxu0 0.0
  %3524 = vmatpush2.msra.mxu0 0.0
  %3525 = vmatprep.mubr.f32.mxu0 0.0
  %3526 = vmatmul.mubr.f32.gmra.mxu0 %v2877
  %v3527 = vpop.f32.mrf.mxu0
  %v3528 = vadd.f32 0.0, %v3527
  %v3529 = vpop.f32.mrf.mxu0
  %v3530 = vadd.f32 0.0, %v3529
  %3531 = vmatprep.mubr.f32.mxu0 0.0
  %3532 = vmatmul.mubr.f32.gmra.mxu0 %v2879
  %v3533 = vpop.f32.mrf.mxu0
  %v3534 = vadd.f32 0.0, %v3533
  %v3535 = vpop.f32.mrf.mxu0
  %v3536 = vadd.f32 0.0, %v3535
  %3537 = vmatprep.mubr.f32.mxu0 0.0
  %3538 = vmatmul.mubr.f32.gmra.mxu0 %v2881
  %v3539 = vpop.f32.mrf.mxu0
  %v3540 = vadd.f32 0.0, %v3539
  %v3541 = vpop.f32.mrf.mxu0
  %v3542 = vadd.f32 0.0, %v3541
  %3543 = vmatprep.mubr.f32.mxu0 0.0
  %3544 = vmatmul.mubr.f32.gmra.mxu0 %v2883
  %v3545 = vpop.f32.mrf.mxu0
  %v3546 = vadd.f32 0.0, %v3545
  %v3547 = vpop.f32.mrf.mxu0
  %v3548 = vadd.f32 0.0, %v3547
  %3549 = vmatprep.mubr.f32.mxu0 0.0
  %3550 = vmatmul.mubr.f32.gmra.mxu0 %v2885
  %v3551 = vpop.f32.mrf.mxu0
  %v3552 = vadd.f32 0.0, %v3551
  %v3553 = vpop.f32.mrf.mxu0
  %v3554 = vadd.f32 0.0, %v3553
  %3555 = vmatprep.mubr.f32.mxu0 0.0
  %3556 = vmatmul.mubr.f32.gmra.mxu0 %v2887
  %v3557 = vpop.f32.mrf.mxu0
  %v3558 = vadd.f32 0.0, %v3557
  %v3559 = vpop.f32.mrf.mxu0
  %v3560 = vadd.f32 0.0, %v3559
  %3561 = vdwg.mxu0
  %v3562 = vadd.f32 %v3449, %v3528
  %v3563 = vadd.f32 %v3450, %v3530
  %v3564 = vadd.f32 %v3451, %v3534
  %v3565 = vadd.f32 %v3452, %v3536
  %v3566 = vadd.f32 %v3453, %v3540
  %v3567 = vadd.f32 %v3454, %v3542
  %v3568 = vadd.f32 %v3455, %v3546
  %v3569 = vadd.f32 %v3456, %v3548
  %v3570 = vadd.f32 %v3457, %v3552
  %v3571 = vadd.f32 %v3458, %v3554
  %v3572 = vadd.f32 %v3459, %v3558
  %v3573 = vadd.f32 %v3460, %v3560
  %v3574 = vcombine.low %v926, %v934
  %v3575 = vcombine.low %v933, %v942
  %v3577 = vunpack.c.l.s4 1983009808
  %v3578 = vunpack.c.0.s8 %v3577
  %v3579 = vlaneseq
  %v3580 = vshrl.u32 %v3579, 7
  %v3581 = vsub.s32 %v3578, %v3580
  %v3582 = vrot.slane %v3574, %v3581
  %v3584 = vunpack.c.l.s4 1983009808
  %v3585 = vunpack.c.0.s8 %v3584
  %v3586 = vlaneseq
  %v3587 = vshrl.u32 %v3586, 7
  %v3588 = vsub.s32 %v3585, %v3587
  %v3589 = vrot.slane %v3575, %v3588
  %v3590 = vcombine.low %v3582, %v3589
  %v3591 = vcombine.low %v950, %v949
  %v3592 = vcombine.low %v958, %v966
  %v3594 = vunpack.c.l.s4 1983009808
  %v3595 = vunpack.c.0.s8 %v3594
  %v3596 = vlaneseq
  %v3597 = vshrl.u32 %v3596, 7
  %v3598 = vsub.s32 %v3595, %v3597
  %v3599 = vrot.slane %v3591, %v3598
  %v3601 = vunpack.c.l.s4 1983009808
  %v3602 = vunpack.c.0.s8 %v3601
  %v3603 = vlaneseq
  %v3604 = vshrl.u32 %v3603, 7
  %v3605 = vsub.s32 %v3602, %v3604
  %v3606 = vrot.slane %v3592, %v3605
  %v3607 = vcombine.low %v3599, %v3606
  %v3608 = vcombine.low %v965, %v974
  %v3609 = vcombine.low %v982, %v981
  %v3611 = vunpack.c.l.s4 1983009808
  %v3612 = vunpack.c.0.s8 %v3611
  %v3613 = vlaneseq
  %v3614 = vshrl.u32 %v3613, 7
  %v3615 = vsub.s32 %v3612, %v3614
  %v3616 = vrot.slane %v3608, %v3615
  %v3618 = vunpack.c.l.s4 1983009808
  %v3619 = vunpack.c.0.s8 %v3618
  %v3620 = vlaneseq
  %v3621 = vshrl.u32 %v3620, 7
  %v3622 = vsub.s32 %v3619, %v3621
  %v3623 = vrot.slane %v3609, %v3622
  %v3624 = vcombine.low %v3616, %v3623
  %v3625 = vcombine.low %v990, %v998
  %v3626 = vcombine.low %v997, %v1006
  %v3628 = vunpack.c.l.s4 1983009808
  %v3629 = vunpack.c.0.s8 %v3628
  %v3630 = vlaneseq
  %v3631 = vshrl.u32 %v3630, 7
  %v3632 = vsub.s32 %v3629, %v3631
  %v3633 = vrot.slane %v3625, %v3632
  %v3635 = vunpack.c.l.s4 1983009808
  %v3636 = vunpack.c.0.s8 %v3635
  %v3637 = vlaneseq
  %v3638 = vshrl.u32 %v3637, 7
  %v3639 = vsub.s32 %v3636, %v3638
  %v3640 = vrot.slane %v3626, %v3639
  %v3641 = vcombine.low %v3633, %v3640
  %v3642 = vcombine.low %v1014, %v1013
  %v3643 = vcombine.low %v1022, %v1030
  %v3645 = vunpack.c.l.s4 1983009808
  %v3646 = vunpack.c.0.s8 %v3645
  %v3647 = vlaneseq
  %v3648 = vshrl.u32 %v3647, 7
  %v3649 = vsub.s32 %v3646, %v3648
  %v3650 = vrot.slane %v3642, %v3649
  %v3652 = vunpack.c.l.s4 1983009808
  %v3653 = vunpack.c.0.s8 %v3652
  %v3654 = vlaneseq
  %v3655 = vshrl.u32 %v3654, 7
  %v3656 = vsub.s32 %v3653, %v3655
  %v3657 = vrot.slane %v3643, %v3656
  %v3658 = vcombine.low %v3650, %v3657
  %v3659 = vcombine.low %v1029, %v1038
  %v3660 = vcombine.low %v1046, %v1045
  %v3662 = vunpack.c.l.s4 1983009808
  %v3663 = vunpack.c.0.s8 %v3662
  %v3664 = vlaneseq
  %v3665 = vshrl.u32 %v3664, 7
  %v3666 = vsub.s32 %v3663, %v3665
  %v3667 = vrot.slane %v3659, %v3666
  %v3669 = vunpack.c.l.s4 1983009808
  %v3670 = vunpack.c.0.s8 %v3669
  %v3671 = vlaneseq
  %v3672 = vshrl.u32 %v3671, 7
  %v3673 = vsub.s32 %v3670, %v3672
  %v3674 = vrot.slane %v3660, %v3673
  %v3675 = vcombine.low %v3667, %v3674
  %v3676 = vsel %vm1310, %v3590, 0
  %v3678 = vsel %vm1310, %v3607, 0
  %v3680 = vsel %vm1310, %v3624, 0
  %v3682 = vsel %vm1310, %v3641, 0
  %v3684 = vsel %vm1310, %v3658, 0
  %v3686 = vsel %vm1310, %v3675, 0
  %3688 = vmatprep.subr.mxu0 0.0
  %3689 = vmatpush1.msra.mxu0 0.0
  %3690 = vmatprep.subr.mxu0 0.0
  %3691 = vmatpush1.msra.mxu0 0.0
  %3692 = vmatprep.subr.mxu0 0.0
  %3693 = vmatpush1.msra.mxu0 0.0
  %3694 = vmatprep.subr.mxu0 0.0
  %3695 = vmatpush1.msra.mxu0 0.0
  %3696 = vmatprep.subr.mxu0 0.0
  %3697 = vmatpush1.msra.mxu0 0.0
  %3698 = vmatprep.subr.mxu0 0.0
  %3699 = vmatpush1.msra.mxu0 0.0
  %3700 = vmatprep.subr.mxu0 0.0
  %3701 = vmatpush1.msra.mxu0 0.0
  %3702 = vmatprep.subr.mxu0 0.0
  %3703 = vmatpush1.msra.mxu0 0.0
  %3704 = vmatprep.subr.mxu0 0.0
  %3705 = vmatpush1.msra.mxu0 0.0
  %3706 = vmatprep.subr.mxu0 0.0
  %3707 = vmatpush1.msra.mxu0 0.0
  %3708 = vmatprep.subr.mxu0 0.0
  %3709 = vmatpush1.msra.mxu0 0.0
  %3710 = vmatprep.subr.mxu0 0.0
  %3711 = vmatpush1.msra.mxu0 0.0
  %3712 = vmatprep.subr.mxu0 %v2119
  %3713 = vmatpush1.msra.mxu0 %v2118
  %3714 = vmatprep.subr.mxu0 %v2117
  %3715 = vmatpush1.msra.mxu0 %v2116
  %3716 = vmatprep.subr.mxu0 %v2115
  %3717 = vmatpush1.msra.mxu0 %v2114
  %3718 = vmatprep.subr.mxu0 %v2113
  %3719 = vmatpush1.msra.mxu0 %v2112
  %3720 = vmatprep.subr.mxu0 0.0
  %3721 = vmatpush2.msra.mxu0 0.0
  %3722 = vmatprep.subr.mxu0 0.0
  %3723 = vmatpush2.msra.mxu0 0.0
  %3724 = vmatprep.subr.mxu0 0.0
  %3725 = vmatpush2.msra.mxu0 0.0
  %3726 = vmatprep.subr.mxu0 0.0
  %3727 = vmatpush2.msra.mxu0 0.0
  %3728 = vmatprep.subr.mxu0 0.0
  %3729 = vmatpush2.msra.mxu0 0.0
  %3730 = vmatprep.subr.mxu0 0.0
  %3731 = vmatpush2.msra.mxu0 0.0
  %3732 = vmatprep.subr.mxu0 0.0
  %3733 = vmatpush2.msra.mxu0 0.0
  %3734 = vmatprep.subr.mxu0 0.0
  %3735 = vmatpush2.msra.mxu0 0.0
  %3736 = vmatprep.subr.mxu0 0.0
  %3737 = vmatpush2.msra.mxu0 0.0
  %3738 = vmatprep.subr.mxu0 0.0
  %3739 = vmatpush2.msra.mxu0 0.0
  %3740 = vmatprep.subr.mxu0 0.0
  %3741 = vmatpush2.msra.mxu0 0.0
  %3742 = vmatprep.subr.mxu0 0.0
  %3743 = vmatpush2.msra.mxu0 0.0
  %3744 = vmatprep.subr.mxu0 0.0
  %3745 = vmatpush2.msra.mxu0 0.0
  %3746 = vmatprep.subr.mxu0 0.0
  %3747 = vmatpush2.msra.mxu0 0.0
  %3748 = vmatprep.subr.mxu0 0.0
  %3749 = vmatpush2.msra.mxu0 0.0
  %3750 = vmatprep.subr.mxu0 0.0
  %3751 = vmatpush2.msra.mxu0 0.0
  %3752 = vmatprep.mubr.f32.mxu0 0.0
  %3753 = vmatmul.mubr.f32.gmra.mxu0 %v3676
  %v3754 = vpop.f32.mrf.mxu0
  %v3755 = vadd.f32 0.0, %v3754
  %v3756 = vpop.f32.mrf.mxu0
  %v3757 = vadd.f32 0.0, %v3756
  %3758 = vmatprep.mubr.f32.mxu0 0.0
  %3759 = vmatmul.mubr.f32.gmra.mxu0 %v3678
  %v3760 = vpop.f32.mrf.mxu0
  %v3761 = vadd.f32 0.0, %v3760
  %v3762 = vpop.f32.mrf.mxu0
  %v3763 = vadd.f32 0.0, %v3762
  %3764 = vmatprep.mubr.f32.mxu0 0.0
  %3765 = vmatmul.mubr.f32.gmra.mxu0 %v3680
  %v3766 = vpop.f32.mrf.mxu0
  %v3767 = vadd.f32 0.0, %v3766
  %v3768 = vpop.f32.mrf.mxu0
  %v3769 = vadd.f32 0.0, %v3768
  %3770 = vmatprep.mubr.f32.mxu0 0.0
  %3771 = vmatmul.mubr.f32.gmra.mxu0 %v3682
  %v3772 = vpop.f32.mrf.mxu0
  %v3773 = vadd.f32 0.0, %v3772
  %v3774 = vpop.f32.mrf.mxu0
  %v3775 = vadd.f32 0.0, %v3774
  %3776 = vmatprep.mubr.f32.mxu0 0.0
  %3777 = vmatmul.mubr.f32.gmra.mxu0 %v3684
  %v3778 = vpop.f32.mrf.mxu0
  %v3779 = vadd.f32 0.0, %v3778
  %v3780 = vpop.f32.mrf.mxu0
  %v3781 = vadd.f32 0.0, %v3780
  %3782 = vmatprep.mubr.f32.mxu0 0.0
  %3783 = vmatmul.mubr.f32.gmra.mxu0 %v3686
  %v3784 = vpop.f32.mrf.mxu0
  %v3785 = vadd.f32 0.0, %v3784
  %v3786 = vpop.f32.mrf.mxu0
  %v3787 = vadd.f32 0.0, %v3786
  %3788 = vdwg.mxu0
  %v3789 = vadd.f32 %v3562, %v3755
  %v3790 = vadd.f32 %v3563, %v3757
  %v3791 = vadd.f32 %v3564, %v3761
  %v3792 = vadd.f32 %v3565, %v3763
  %v3793 = vadd.f32 %v3566, %v3767
  %v3794 = vadd.f32 %v3567, %v3769
  %v3795 = vadd.f32 %v3568, %v3773
  %v3796 = vadd.f32 %v3569, %v3775
  %v3797 = vadd.f32 %v3570, %v3779
  %v3798 = vadd.f32 %v3571, %v3781
  %v3799 = vadd.f32 %v3572, %v3785
  %v3800 = vadd.f32 %v3573, %v3787
  %3801 = vmatprep.subr.mxu0 0.0
  %3802 = vmatpush1.msra.mxu0 0.0
  %3803 = vmatprep.subr.mxu0 0.0
  %3804 = vmatpush1.msra.mxu0 0.0
  %3805 = vmatprep.subr.mxu0 0.0
  %3806 = vmatpush1.msra.mxu0 0.0
  %3807 = vmatprep.subr.mxu0 0.0
  %3808 = vmatpush1.msra.mxu0 0.0
  %3809 = vmatprep.subr.mxu0 0.0
  %3810 = vmatpush1.msra.mxu0 0.0
  %3811 = vmatprep.subr.mxu0 0.0
  %3812 = vmatpush1.msra.mxu0 0.0
  %3813 = vmatprep.subr.mxu0 0.0
  %3814 = vmatpush1.msra.mxu0 0.0
  %3815 = vmatprep.subr.mxu0 0.0
  %3816 = vmatpush1.msra.mxu0 0.0
  %3817 = vmatprep.subr.mxu0 0.0
  %3818 = vmatpush1.msra.mxu0 0.0
  %3819 = vmatprep.subr.mxu0 0.0
  %3820 = vmatpush1.msra.mxu0 0.0
  %3821 = vmatprep.subr.mxu0 0.0
  %3822 = vmatpush1.msra.mxu0 0.0
  %3823 = vmatprep.subr.mxu0 0.0
  %3824 = vmatpush1.msra.mxu0 0.0
  %3825 = vmatprep.subr.mxu0 %v1207
  %3826 = vmatpush1.msra.mxu0 %v1206
  %3827 = vmatprep.subr.mxu0 %v1205
  %3828 = vmatpush1.msra.mxu0 %v1204
  %3829 = vmatprep.subr.mxu0 %v1203
  %3830 = vmatpush1.msra.mxu0 %v1202
  %3831 = vmatprep.subr.mxu0 %v1201
  %3832 = vmatpush1.msra.mxu0 %v1200
  %3833 = vmatprep.subr.mxu0 0.0
  %3834 = vmatpush2.msra.mxu0 0.0
  %3835 = vmatprep.subr.mxu0 0.0
  %3836 = vmatpush2.msra.mxu0 0.0
  %3837 = vmatprep.subr.mxu0 0.0
  %3838 = vmatpush2.msra.mxu0 0.0
  %3839 = vmatprep.subr.mxu0 0.0
  %3840 = vmatpush2.msra.mxu0 0.0
  %3841 = vmatprep.subr.mxu0 0.0
  %3842 = vmatpush2.msra.mxu0 0.0
  %3843 = vmatprep.subr.mxu0 0.0
  %3844 = vmatpush2.msra.mxu0 0.0
  %3845 = vmatprep.subr.mxu0 0.0
  %3846 = vmatpush2.msra.mxu0 0.0
  %3847 = vmatprep.subr.mxu0 0.0
  %3848 = vmatpush2.msra.mxu0 0.0
  %3849 = vmatprep.subr.mxu0 0.0
  %3850 = vmatpush2.msra.mxu0 0.0
  %3851 = vmatprep.subr.mxu0 0.0
  %3852 = vmatpush2.msra.mxu0 0.0
  %3853 = vmatprep.subr.mxu0 0.0
  %3854 = vmatpush2.msra.mxu0 0.0
  %3855 = vmatprep.subr.mxu0 0.0
  %3856 = vmatpush2.msra.mxu0 0.0
  %3857 = vmatprep.subr.mxu0 0.0
  %3858 = vmatpush2.msra.mxu0 0.0
  %3859 = vmatprep.subr.mxu0 0.0
  %3860 = vmatpush2.msra.mxu0 0.0
  %3861 = vmatprep.subr.mxu0 0.0
  %3862 = vmatpush2.msra.mxu0 0.0
  %3863 = vmatprep.subr.mxu0 0.0
  %3864 = vmatpush2.msra.mxu0 0.0
  %3865 = vmatprep.mubr.f32.mxu0 0.0
  %3866 = vmatmul.mubr.f32.gmra.mxu0 %v2222
  %v3867 = vpop.f32.mrf.mxu0
  %v3868 = vadd.f32 0.0, %v3867
  %v3869 = vpop.f32.mrf.mxu0
  %v3870 = vadd.f32 0.0, %v3869
  %3871 = vmatprep.mubr.f32.mxu0 0.0
  %3872 = vmatmul.mubr.f32.gmra.mxu0 %v2224
  %v3873 = vpop.f32.mrf.mxu0
  %v3874 = vadd.f32 0.0, %v3873
  %v3875 = vpop.f32.mrf.mxu0
  %v3876 = vadd.f32 0.0, %v3875
  %3877 = vmatprep.mubr.f32.mxu0 0.0
  %3878 = vmatmul.mubr.f32.gmra.mxu0 %v2226
  %v3879 = vpop.f32.mrf.mxu0
  %v3880 = vadd.f32 0.0, %v3879
  %v3881 = vpop.f32.mrf.mxu0
  %v3882 = vadd.f32 0.0, %v3881
  %3883 = vmatprep.mubr.f32.mxu0 0.0
  %3884 = vmatmul.mubr.f32.gmra.mxu0 %v2228
  %v3885 = vpop.f32.mrf.mxu0
  %v3886 = vadd.f32 0.0, %v3885
  %v3887 = vpop.f32.mrf.mxu0
  %v3888 = vadd.f32 0.0, %v3887
  %3889 = vmatprep.mubr.f32.mxu0 0.0
  %3890 = vmatmul.mubr.f32.gmra.mxu0 %v2230
  %v3891 = vpop.f32.mrf.mxu0
  %v3892 = vadd.f32 0.0, %v3891
  %v3893 = vpop.f32.mrf.mxu0
  %v3894 = vadd.f32 0.0, %v3893
  %3895 = vmatprep.mubr.f32.mxu0 0.0
  %3896 = vmatmul.mubr.f32.gmra.mxu0 %v2232
  %v3897 = vpop.f32.mrf.mxu0
  %v3898 = vadd.f32 0.0, %v3897
  %v3899 = vpop.f32.mrf.mxu0
  %v3900 = vadd.f32 0.0, %v3899
  %3901 = vdwg.mxu0
  %3902 = vmatprep.subr.mxu0 0.0
  %3903 = vmatpush1.msra.mxu0 0.0
  %3904 = vmatprep.subr.mxu0 0.0
  %3905 = vmatpush1.msra.mxu0 0.0
  %3906 = vmatprep.subr.mxu0 0.0
  %3907 = vmatpush1.msra.mxu0 0.0
  %3908 = vmatprep.subr.mxu0 0.0
  %3909 = vmatpush1.msra.mxu0 0.0
  %3910 = vmatprep.subr.mxu0 0.0
  %3911 = vmatpush1.msra.mxu0 0.0
  %3912 = vmatprep.subr.mxu0 0.0
  %3913 = vmatpush1.msra.mxu0 0.0
  %3914 = vmatprep.subr.mxu0 0.0
  %3915 = vmatpush1.msra.mxu0 0.0
  %3916 = vmatprep.subr.mxu0 0.0
  %3917 = vmatpush1.msra.mxu0 0.0
  %3918 = vmatprep.subr.mxu0 0.0
  %3919 = vmatpush1.msra.mxu0 0.0
  %3920 = vmatprep.subr.mxu0 0.0
  %3921 = vmatpush1.msra.mxu0 0.0
  %3922 = vmatprep.subr.mxu0 0.0
  %3923 = vmatpush1.msra.mxu0 0.0
  %3924 = vmatprep.subr.mxu0 0.0
  %3925 = vmatpush1.msra.mxu0 0.0
  %3926 = vmatprep.subr.mxu0 %v1198
  %3927 = vmatpush1.msra.mxu0 %v1197
  %3928 = vmatprep.subr.mxu0 %v1196
  %3929 = vmatpush1.msra.mxu0 %v1195
  %3930 = vmatprep.subr.mxu0 %v1194
  %3931 = vmatpush1.msra.mxu0 %v1193
  %3932 = vmatprep.subr.mxu0 %v1192
  %3933 = vmatpush1.msra.mxu0 %v1191
  %3934 = vmatprep.subr.mxu0 0.0
  %3935 = vmatpush2.msra.mxu0 0.0
  %3936 = vmatprep.subr.mxu0 0.0
  %3937 = vmatpush2.msra.mxu0 0.0
  %3938 = vmatprep.subr.mxu0 0.0
  %3939 = vmatpush2.msra.mxu0 0.0
  %3940 = vmatprep.subr.mxu0 0.0
  %3941 = vmatpush2.msra.mxu0 0.0
  %3942 = vmatprep.subr.mxu0 0.0
  %3943 = vmatpush2.msra.mxu0 0.0
  %3944 = vmatprep.subr.mxu0 0.0
  %3945 = vmatpush2.msra.mxu0 0.0
  %3946 = vmatprep.subr.mxu0 0.0
  %3947 = vmatpush2.msra.mxu0 0.0
  %3948 = vmatprep.subr.mxu0 0.0
  %3949 = vmatpush2.msra.mxu0 0.0
  %3950 = vmatprep.subr.mxu0 0.0
  %3951 = vmatpush2.msra.mxu0 0.0
  %3952 = vmatprep.subr.mxu0 0.0
  %3953 = vmatpush2.msra.mxu0 0.0
  %3954 = vmatprep.subr.mxu0 0.0
  %3955 = vmatpush2.msra.mxu0 0.0
  %3956 = vmatprep.subr.mxu0 0.0
  %3957 = vmatpush2.msra.mxu0 0.0
  %3958 = vmatprep.subr.mxu0 0.0
  %3959 = vmatpush2.msra.mxu0 0.0
  %3960 = vmatprep.subr.mxu0 0.0
  %3961 = vmatpush2.msra.mxu0 0.0
  %3962 = vmatprep.subr.mxu0 0.0
  %3963 = vmatpush2.msra.mxu0 0.0
  %3964 = vmatprep.subr.mxu0 0.0
  %3965 = vmatpush2.msra.mxu0 0.0
  %3966 = vmatprep.mubr.f32.mxu0 0.0
  %3967 = vmatmul.mubr.f32.gmra.mxu0 %v1986
  %v3968 = vpop.f32.mrf.mxu0
  %v3969 = vadd.f32 %v3868, %v3968
  %v3970 = vpop.f32.mrf.mxu0
  %v3971 = vadd.f32 %v3870, %v3970
  %3972 = vmatprep.mubr.f32.mxu0 0.0
  %3973 = vmatmul.mubr.f32.gmra.mxu0 %v1988
  %v3974 = vpop.f32.mrf.mxu0
  %v3975 = vadd.f32 %v3874, %v3974
  %v3976 = vpop.f32.mrf.mxu0
  %v3977 = vadd.f32 %v3876, %v3976
  %3978 = vmatprep.mubr.f32.mxu0 0.0
  %3979 = vmatmul.mubr.f32.gmra.mxu0 %v1990
  %v3980 = vpop.f32.mrf.mxu0
  %v3981 = vadd.f32 %v3880, %v3980
  %v3982 = vpop.f32.mrf.mxu0
  %v3983 = vadd.f32 %v3882, %v3982
  %3984 = vmatprep.mubr.f32.mxu0 0.0
  %3985 = vmatmul.mubr.f32.gmra.mxu0 %v1992
  %v3986 = vpop.f32.mrf.mxu0
  %v3987 = vadd.f32 %v3886, %v3986
  %v3988 = vpop.f32.mrf.mxu0
  %v3989 = vadd.f32 %v3888, %v3988
  %3990 = vmatprep.mubr.f32.mxu0 0.0
  %3991 = vmatmul.mubr.f32.gmra.mxu0 %v1994
  %v3992 = vpop.f32.mrf.mxu0
  %v3993 = vadd.f32 %v3892, %v3992
  %v3994 = vpop.f32.mrf.mxu0
  %v3995 = vadd.f32 %v3894, %v3994
  %3996 = vmatprep.mubr.f32.mxu0 0.0
  %3997 = vmatmul.mubr.f32.gmra.mxu0 %v1996
  %v3998 = vpop.f32.mrf.mxu0
  %v3999 = vadd.f32 %v3898, %v3998
  %v4000 = vpop.f32.mrf.mxu0
  %v4001 = vadd.f32 %v3900, %v4000
  %4002 = vdwg.mxu0
  %4003 = vmatprep.subr.mxu0 0.0
  %4004 = vmatpush1.msra.mxu0 0.0
  %4005 = vmatprep.subr.mxu0 0.0
  %4006 = vmatpush1.msra.mxu0 0.0
  %4007 = vmatprep.subr.mxu0 0.0
  %4008 = vmatpush1.msra.mxu0 0.0
  %4009 = vmatprep.subr.mxu0 0.0
  %4010 = vmatpush1.msra.mxu0 0.0
  %4011 = vmatprep.subr.mxu0 0.0
  %4012 = vmatpush1.msra.mxu0 0.0
  %4013 = vmatprep.subr.mxu0 0.0
  %4014 = vmatpush1.msra.mxu0 0.0
  %4015 = vmatprep.subr.mxu0 0.0
  %4016 = vmatpush1.msra.mxu0 0.0
  %4017 = vmatprep.subr.mxu0 0.0
  %4018 = vmatpush1.msra.mxu0 0.0
  %4019 = vmatprep.subr.mxu0 0.0
  %4020 = vmatpush1.msra.mxu0 0.0
  %4021 = vmatprep.subr.mxu0 0.0
  %4022 = vmatpush1.msra.mxu0 0.0
  %4023 = vmatprep.subr.mxu0 0.0
  %4024 = vmatpush1.msra.mxu0 0.0
  %4025 = vmatprep.subr.mxu0 0.0
  %4026 = vmatpush1.msra.mxu0 0.0
  %4027 = vmatprep.subr.mxu0 %v1647
  %4028 = vmatpush1.msra.mxu0 %v1646
  %4029 = vmatprep.subr.mxu0 %v1645
  %4030 = vmatpush1.msra.mxu0 %v1644
  %4031 = vmatprep.subr.mxu0 %v1643
  %4032 = vmatpush1.msra.mxu0 %v1642
  %4033 = vmatprep.subr.mxu0 %v1641
  %4034 = vmatpush1.msra.mxu0 %v1640
  %4035 = vmatprep.subr.mxu0 0.0
  %4036 = vmatpush2.msra.mxu0 0.0
  %4037 = vmatprep.subr.mxu0 0.0
  %4038 = vmatpush2.msra.mxu0 0.0
  %4039 = vmatprep.subr.mxu0 0.0
  %4040 = vmatpush2.msra.mxu0 0.0
  %4041 = vmatprep.subr.mxu0 0.0
  %4042 = vmatpush2.msra.mxu0 0.0
  %4043 = vmatprep.subr.mxu0 0.0
  %4044 = vmatpush2.msra.mxu0 0.0
  %4045 = vmatprep.subr.mxu0 0.0
  %4046 = vmatpush2.msra.mxu0 0.0
  %4047 = vmatprep.subr.mxu0 0.0
  %4048 = vmatpush2.msra.mxu0 0.0
  %4049 = vmatprep.subr.mxu0 0.0
  %4050 = vmatpush2.msra.mxu0 0.0
  %4051 = vmatprep.subr.mxu0 0.0
  %4052 = vmatpush2.msra.mxu0 0.0
  %4053 = vmatprep.subr.mxu0 0.0
  %4054 = vmatpush2.msra.mxu0 0.0
  %4055 = vmatprep.subr.mxu0 0.0
  %4056 = vmatpush2.msra.mxu0 0.0
  %4057 = vmatprep.subr.mxu0 0.0
  %4058 = vmatpush2.msra.mxu0 0.0
  %4059 = vmatprep.subr.mxu0 0.0
  %4060 = vmatpush2.msra.mxu0 0.0
  %4061 = vmatprep.subr.mxu0 0.0
  %4062 = vmatpush2.msra.mxu0 0.0
  %4063 = vmatprep.subr.mxu0 0.0
  %4064 = vmatpush2.msra.mxu0 0.0
  %4065 = vmatprep.subr.mxu0 0.0
  %4066 = vmatpush2.msra.mxu0 0.0
  %4067 = vmatprep.mubr.f32.mxu0 0.0
  %4068 = vmatmul.mubr.f32.gmra.mxu0 %v2877
  %v4069 = vpop.f32.mrf.mxu0
  %v4070 = vadd.f32 0.0, %v4069
  %v4071 = vpop.f32.mrf.mxu0
  %v4072 = vadd.f32 0.0, %v4071
  %4073 = vmatprep.mubr.f32.mxu0 0.0
  %4074 = vmatmul.mubr.f32.gmra.mxu0 %v2879
  %v4075 = vpop.f32.mrf.mxu0
  %v4076 = vadd.f32 0.0, %v4075
  %v4077 = vpop.f32.mrf.mxu0
  %v4078 = vadd.f32 0.0, %v4077
  %4079 = vmatprep.mubr.f32.mxu0 0.0
  %4080 = vmatmul.mubr.f32.gmra.mxu0 %v2881
  %v4081 = vpop.f32.mrf.mxu0
  %v4082 = vadd.f32 0.0, %v4081
  %v4083 = vpop.f32.mrf.mxu0
  %v4084 = vadd.f32 0.0, %v4083
  %4085 = vmatprep.mubr.f32.mxu0 0.0
  %4086 = vmatmul.mubr.f32.gmra.mxu0 %v2883
  %v4087 = vpop.f32.mrf.mxu0
  %v4088 = vadd.f32 0.0, %v4087
  %v4089 = vpop.f32.mrf.mxu0
  %v4090 = vadd.f32 0.0, %v4089
  %4091 = vmatprep.mubr.f32.mxu0 0.0
  %4092 = vmatmul.mubr.f32.gmra.mxu0 %v2885
  %v4093 = vpop.f32.mrf.mxu0
  %v4094 = vadd.f32 0.0, %v4093
  %v4095 = vpop.f32.mrf.mxu0
  %v4096 = vadd.f32 0.0, %v4095
  %4097 = vmatprep.mubr.f32.mxu0 0.0
  %4098 = vmatmul.mubr.f32.gmra.mxu0 %v2887
  %v4099 = vpop.f32.mrf.mxu0
  %v4100 = vadd.f32 0.0, %v4099
  %v4101 = vpop.f32.mrf.mxu0
  %v4102 = vadd.f32 0.0, %v4101
  %4103 = vdwg.mxu0
  %v4104 = vadd.f32 %v3969, %v4070
  %v4105 = vadd.f32 %v3971, %v4072
  %v4106 = vadd.f32 %v3975, %v4076
  %v4107 = vadd.f32 %v3977, %v4078
  %v4108 = vadd.f32 %v3981, %v4082
  %v4109 = vadd.f32 %v3983, %v4084
  %v4110 = vadd.f32 %v3987, %v4088
  %v4111 = vadd.f32 %v3989, %v4090
  %v4112 = vadd.f32 %v3993, %v4094
  %v4113 = vadd.f32 %v3995, %v4096
  %v4114 = vadd.f32 %v3999, %v4100
  %v4115 = vadd.f32 %v4001, %v4102
  %4116 = vmatprep.subr.mxu0 0.0
  %4117 = vmatpush1.msra.mxu0 0.0
  %4118 = vmatprep.subr.mxu0 0.0
  %4119 = vmatpush1.msra.mxu0 0.0
  %4120 = vmatprep.subr.mxu0 0.0
  %4121 = vmatpush1.msra.mxu0 0.0
  %4122 = vmatprep.subr.mxu0 0.0
  %4123 = vmatpush1.msra.mxu0 0.0
  %4124 = vmatprep.subr.mxu0 0.0
  %4125 = vmatpush1.msra.mxu0 0.0
  %4126 = vmatprep.subr.mxu0 0.0
  %4127 = vmatpush1.msra.mxu0 0.0
  %4128 = vmatprep.subr.mxu0 0.0
  %4129 = vmatpush1.msra.mxu0 0.0
  %4130 = vmatprep.subr.mxu0 0.0
  %4131 = vmatpush1.msra.mxu0 0.0
  %4132 = vmatprep.subr.mxu0 0.0
  %4133 = vmatpush1.msra.mxu0 0.0
  %4134 = vmatprep.subr.mxu0 0.0
  %4135 = vmatpush1.msra.mxu0 0.0
  %4136 = vmatprep.subr.mxu0 0.0
  %4137 = vmatpush1.msra.mxu0 0.0
  %4138 = vmatprep.subr.mxu0 0.0
  %4139 = vmatpush1.msra.mxu0 0.0
  %4140 = vmatprep.subr.mxu0 %v1883
  %4141 = vmatpush1.msra.mxu0 %v1882
  %4142 = vmatprep.subr.mxu0 %v1881
  %4143 = vmatpush1.msra.mxu0 %v1880
  %4144 = vmatprep.subr.mxu0 %v1879
  %4145 = vmatpush1.msra.mxu0 %v1878
  %4146 = vmatprep.subr.mxu0 %v1877
  %4147 = vmatpush1.msra.mxu0 %v1876
  %4148 = vmatprep.subr.mxu0 0.0
  %4149 = vmatpush2.msra.mxu0 0.0
  %4150 = vmatprep.subr.mxu0 0.0
  %4151 = vmatpush2.msra.mxu0 0.0
  %4152 = vmatprep.subr.mxu0 0.0
  %4153 = vmatpush2.msra.mxu0 0.0
  %4154 = vmatprep.subr.mxu0 0.0
  %4155 = vmatpush2.msra.mxu0 0.0
  %4156 = vmatprep.subr.mxu0 0.0
  %4157 = vmatpush2.msra.mxu0 0.0
  %4158 = vmatprep.subr.mxu0 0.0
  %4159 = vmatpush2.msra.mxu0 0.0
  %4160 = vmatprep.subr.mxu0 0.0
  %4161 = vmatpush2.msra.mxu0 0.0
  %4162 = vmatprep.subr.mxu0 0.0
  %4163 = vmatpush2.msra.mxu0 0.0
  %4164 = vmatprep.subr.mxu0 0.0
  %4165 = vmatpush2.msra.mxu0 0.0
  %4166 = vmatprep.subr.mxu0 0.0
  %4167 = vmatpush2.msra.mxu0 0.0
  %4168 = vmatprep.subr.mxu0 0.0
  %4169 = vmatpush2.msra.mxu0 0.0
  %4170 = vmatprep.subr.mxu0 0.0
  %4171 = vmatpush2.msra.mxu0 0.0
  %4172 = vmatprep.subr.mxu0 0.0
  %4173 = vmatpush2.msra.mxu0 0.0
  %4174 = vmatprep.subr.mxu0 0.0
  %4175 = vmatpush2.msra.mxu0 0.0
  %4176 = vmatprep.subr.mxu0 0.0
  %4177 = vmatpush2.msra.mxu0 0.0
  %4178 = vmatprep.subr.mxu0 0.0
  %4179 = vmatpush2.msra.mxu0 0.0
  %4180 = vmatprep.mubr.f32.mxu0 0.0
  %4181 = vmatmul.mubr.f32.gmra.mxu0 %v3676
  %v4182 = vpop.f32.mrf.mxu0
  %v4183 = vadd.f32 0.0, %v4182
  %v4184 = vpop.f32.mrf.mxu0
  %v4185 = vadd.f32 0.0, %v4184
  %4186 = vmatprep.mubr.f32.mxu0 0.0
  %4187 = vmatmul.mubr.f32.gmra.mxu0 %v3678
  %v4188 = vpop.f32.mrf.mxu0
  %v4189 = vadd.f32 0.0, %v4188
  %v4190 = vpop.f32.mrf.mxu0
  %v4191 = vadd.f32 0.0, %v4190
  %4192 = vmatprep.mubr.f32.mxu0 0.0
  %4193 = vmatmul.mubr.f32.gmra.mxu0 %v3680
  %v4194 = vpop.f32.mrf.mxu0
  %v4195 = vadd.f32 0.0, %v4194
  %v4196 = vpop.f32.mrf.mxu0
  %v4197 = vadd.f32 0.0, %v4196
  %4198 = vmatprep.mubr.f32.mxu0 0.0
  %4199 = vmatmul.mubr.f32.gmra.mxu0 %v3682
  %v4200 = vpop.f32.mrf.mxu0
  %v4201 = vadd.f32 0.0, %v4200
  %v4202 = vpop.f32.mrf.mxu0
  %v4203 = vadd.f32 0.0, %v4202
  %4204 = vmatprep.mubr.f32.mxu0 0.0
  %4205 = vmatmul.mubr.f32.gmra.mxu0 %v3684
  %v4206 = vpop.f32.mrf.mxu0
  %v4207 = vadd.f32 0.0, %v4206
  %v4208 = vpop.f32.mrf.mxu0
  %v4209 = vadd.f32 0.0, %v4208
  %4210 = vmatprep.mubr.f32.mxu0 0.0
  %4211 = vmatmul.mubr.f32.gmra.mxu0 %v3686
  %v4212 = vpop.f32.mrf.mxu0
  %v4213 = vadd.f32 0.0, %v4212
  %v4214 = vpop.f32.mrf.mxu0
  %v4215 = vadd.f32 0.0, %v4214
  %4216 = vdwg.mxu0
  %v4217 = vadd.f32 %v4104, %v4183
  %v4218 = vadd.f32 %v4105, %v4185
  %v4219 = vadd.f32 %v4106, %v4189
  %v4220 = vadd.f32 %v4107, %v4191
  %v4221 = vadd.f32 %v4108, %v4195
  %v4222 = vadd.f32 %v4109, %v4197
  %v4223 = vadd.f32 %v4110, %v4201
  %v4224 = vadd.f32 %v4111, %v4203
  %v4225 = vadd.f32 %v4112, %v4207
  %v4226 = vadd.f32 %v4113, %v4209
  %v4227 = vadd.f32 %v4114, %v4213
  %v4228 = vadd.f32 %v4115, %v4215
  %v4229 = vcombine.low %v1070, %v1078
  %v4230 = vcombine.low %v1077, %v1086
  %v4232 = vunpack.c.l.s4 1983009808
  %v4233 = vunpack.c.0.s8 %v4232
  %v4234 = vlaneseq
  %v4235 = vshrl.u32 %v4234, 7
  %v4236 = vsub.s32 %v4233, %v4235
  %v4237 = vrot.slane %v4229, %v4236
  %v4239 = vunpack.c.l.s4 1983009808
  %v4240 = vunpack.c.0.s8 %v4239
  %v4241 = vlaneseq
  %v4242 = vshrl.u32 %v4241, 7
  %v4243 = vsub.s32 %v4240, %v4242
  %v4244 = vrot.slane %v4230, %v4243
  %v4245 = vcombine.low %v4237, %v4244
  %v4246 = vcombine.low %v1094, %v1093
  %v4247 = vcombine.low %v1102, %v1110
  %v4249 = vunpack.c.l.s4 1983009808
  %v4250 = vunpack.c.0.s8 %v4249
  %v4251 = vlaneseq
  %v4252 = vshrl.u32 %v4251, 7
  %v4253 = vsub.s32 %v4250, %v4252
  %v4254 = vrot.slane %v4246, %v4253
  %v4256 = vunpack.c.l.s4 1983009808
  %v4257 = vunpack.c.0.s8 %v4256
  %v4258 = vlaneseq
  %v4259 = vshrl.u32 %v4258, 7
  %v4260 = vsub.s32 %v4257, %v4259
  %v4261 = vrot.slane %v4247, %v4260
  %v4262 = vcombine.low %v4254, %v4261
  %v4263 = vcombine.low %v1109, %v1118
  %v4264 = vcombine.low %v1126, %v1125
  %v4266 = vunpack.c.l.s4 1983009808
  %v4267 = vunpack.c.0.s8 %v4266
  %v4268 = vlaneseq
  %v4269 = vshrl.u32 %v4268, 7
  %v4270 = vsub.s32 %v4267, %v4269
  %v4271 = vrot.slane %v4263, %v4270
  %v4273 = vunpack.c.l.s4 1983009808
  %v4274 = vunpack.c.0.s8 %v4273
  %v4275 = vlaneseq
  %v4276 = vshrl.u32 %v4275, 7
  %v4277 = vsub.s32 %v4274, %v4276
  %v4278 = vrot.slane %v4264, %v4277
  %v4279 = vcombine.low %v4271, %v4278
  %v4280 = vcombine.low %v1134, %v1142
  %v4281 = vcombine.low %v1141, %v1150
  %v4283 = vunpack.c.l.s4 1983009808
  %v4284 = vunpack.c.0.s8 %v4283
  %v4285 = vlaneseq
  %v4286 = vshrl.u32 %v4285, 7
  %v4287 = vsub.s32 %v4284, %v4286
  %v4288 = vrot.slane %v4280, %v4287
  %v4290 = vunpack.c.l.s4 1983009808
  %v4291 = vunpack.c.0.s8 %v4290
  %v4292 = vlaneseq
  %v4293 = vshrl.u32 %v4292, 7
  %v4294 = vsub.s32 %v4291, %v4293
  %v4295 = vrot.slane %v4281, %v4294
  %v4296 = vcombine.low %v4288, %v4295
  %v4297 = vcombine.low %v1158, %v1157
  %v4298 = vcombine.low %v1166, %v1174
  %v4300 = vunpack.c.l.s4 1983009808
  %v4301 = vunpack.c.0.s8 %v4300
  %v4302 = vlaneseq
  %v4303 = vshrl.u32 %v4302, 7
  %v4304 = vsub.s32 %v4301, %v4303
  %v4305 = vrot.slane %v4297, %v4304
  %v4307 = vunpack.c.l.s4 1983009808
  %v4308 = vunpack.c.0.s8 %v4307
  %v4309 = vlaneseq
  %v4310 = vshrl.u32 %v4309, 7
  %v4311 = vsub.s32 %v4308, %v4310
  %v4312 = vrot.slane %v4298, %v4311
  %v4313 = vcombine.low %v4305, %v4312
  %v4314 = vcombine.low %v1173, %v1182
  %v4315 = vcombine.low %v1190, %v1189
  %v4317 = vunpack.c.l.s4 1983009808
  %v4318 = vunpack.c.0.s8 %v4317
  %v4319 = vlaneseq
  %v4320 = vshrl.u32 %v4319, 7
  %v4321 = vsub.s32 %v4318, %v4320
  %v4322 = vrot.slane %v4314, %v4321
  %v4324 = vunpack.c.l.s4 1983009808
  %v4325 = vunpack.c.0.s8 %v4324
  %v4326 = vlaneseq
  %v4327 = vshrl.u32 %v4326, 7
  %v4328 = vsub.s32 %v4325, %v4327
  %v4329 = vrot.slane %v4315, %v4328
  %v4330 = vcombine.low %v4322, %v4329
  %v4331 = vsel %vm1310, %v4245, 0
  %v4333 = vsel %vm1310, %v4262, 0
  %v4335 = vsel %vm1310, %v4279, 0
  %v4337 = vsel %vm1310, %v4296, 0
  %v4339 = vsel %vm1310, %v4313, 0
  %v4341 = vsel %vm1310, %v4330, 0
  %4343 = vmatprep.subr.mxu0 0.0
  %4344 = vmatpush1.msra.mxu0 0.0
  %4345 = vmatprep.subr.mxu0 0.0
  %4346 = vmatpush1.msra.mxu0 0.0
  %4347 = vmatprep.subr.mxu0 0.0
  %4348 = vmatpush1.msra.mxu0 0.0
  %4349 = vmatprep.subr.mxu0 0.0
  %4350 = vmatpush1.msra.mxu0 0.0
  %4351 = vmatprep.subr.mxu0 0.0
  %4352 = vmatpush1.msra.mxu0 0.0
  %4353 = vmatprep.subr.mxu0 0.0
  %4354 = vmatpush1.msra.mxu0 0.0
  %4355 = vmatprep.subr.mxu0 0.0
  %4356 = vmatpush1.msra.mxu0 0.0
  %4357 = vmatprep.subr.mxu0 0.0
  %4358 = vmatpush1.msra.mxu0 0.0
  %4359 = vmatprep.subr.mxu0 0.0
  %4360 = vmatpush1.msra.mxu0 0.0
  %4361 = vmatprep.subr.mxu0 0.0
  %4362 = vmatpush1.msra.mxu0 0.0
  %4363 = vmatprep.subr.mxu0 0.0
  %4364 = vmatpush1.msra.mxu0 0.0
  %4365 = vmatprep.subr.mxu0 0.0
  %4366 = vmatpush1.msra.mxu0 0.0
  %4367 = vmatprep.subr.mxu0 %v2119
  %4368 = vmatpush1.msra.mxu0 %v2118
  %4369 = vmatprep.subr.mxu0 %v2117
  %4370 = vmatpush1.msra.mxu0 %v2116
  %4371 = vmatprep.subr.mxu0 %v2115
  %4372 = vmatpush1.msra.mxu0 %v2114
  %4373 = vmatprep.subr.mxu0 %v2113
  %4374 = vmatpush1.msra.mxu0 %v2112
  %4375 = vmatprep.subr.mxu0 0.0
  %4376 = vmatpush2.msra.mxu0 0.0
  %4377 = vmatprep.subr.mxu0 0.0
  %4378 = vmatpush2.msra.mxu0 0.0
  %4379 = vmatprep.subr.mxu0 0.0
  %4380 = vmatpush2.msra.mxu0 0.0
  %4381 = vmatprep.subr.mxu0 0.0
  %4382 = vmatpush2.msra.mxu0 0.0
  %4383 = vmatprep.subr.mxu0 0.0
  %4384 = vmatpush2.msra.mxu0 0.0
  %4385 = vmatprep.subr.mxu0 0.0
  %4386 = vmatpush2.msra.mxu0 0.0
  %4387 = vmatprep.subr.mxu0 0.0
  %4388 = vmatpush2.msra.mxu0 0.0
  %4389 = vmatprep.subr.mxu0 0.0
  %4390 = vmatpush2.msra.mxu0 0.0
  %4391 = vmatprep.subr.mxu0 0.0
  %4392 = vmatpush2.msra.mxu0 0.0
  %4393 = vmatprep.subr.mxu0 0.0
  %4394 = vmatpush2.msra.mxu0 0.0
  %4395 = vmatprep.subr.mxu0 0.0
  %4396 = vmatpush2.msra.mxu0 0.0
  %4397 = vmatprep.subr.mxu0 0.0
  %4398 = vmatpush2.msra.mxu0 0.0
  %4399 = vmatprep.subr.mxu0 0.0
  %4400 = vmatpush2.msra.mxu0 0.0
  %4401 = vmatprep.subr.mxu0 0.0
  %4402 = vmatpush2.msra.mxu0 0.0
  %4403 = vmatprep.subr.mxu0 0.0
  %4404 = vmatpush2.msra.mxu0 0.0
  %4405 = vmatprep.subr.mxu0 0.0
  %4406 = vmatpush2.msra.mxu0 0.0
  %4407 = vmatprep.mubr.f32.mxu0 0.0
  %4408 = vmatmul.mubr.f32.gmra.mxu0 %v4331
  %v4409 = vpop.f32.mrf.mxu0
  %v4410 = vadd.f32 0.0, %v4409
  %v4411 = vpop.f32.mrf.mxu0
  %v4412 = vadd.f32 0.0, %v4411
  %4413 = vmatprep.mubr.f32.mxu0 0.0
  %4414 = vmatmul.mubr.f32.gmra.mxu0 %v4333
  %v4415 = vpop.f32.mrf.mxu0
  %v4416 = vadd.f32 0.0, %v4415
  %v4417 = vpop.f32.mrf.mxu0
  %v4418 = vadd.f32 0.0, %v4417
  %4419 = vmatprep.mubr.f32.mxu0 0.0
  %4420 = vmatmul.mubr.f32.gmra.mxu0 %v4335
  %v4421 = vpop.f32.mrf.mxu0
  %v4422 = vadd.f32 0.0, %v4421
  %v4423 = vpop.f32.mrf.mxu0
  %v4424 = vadd.f32 0.0, %v4423
  %4425 = vmatprep.mubr.f32.mxu0 0.0
  %4426 = vmatmul.mubr.f32.gmra.mxu0 %v4337
  %v4427 = vpop.f32.mrf.mxu0
  %v4428 = vadd.f32 0.0, %v4427
  %v4429 = vpop.f32.mrf.mxu0
  %v4430 = vadd.f32 0.0, %v4429
  %4431 = vmatprep.mubr.f32.mxu0 0.0
  %4432 = vmatmul.mubr.f32.gmra.mxu0 %v4339
  %v4433 = vpop.f32.mrf.mxu0
  %v4434 = vadd.f32 0.0, %v4433
  %v4435 = vpop.f32.mrf.mxu0
  %v4436 = vadd.f32 0.0, %v4435
  %4437 = vmatprep.mubr.f32.mxu0 0.0
  %4438 = vmatmul.mubr.f32.gmra.mxu0 %v4341
  %v4439 = vpop.f32.mrf.mxu0
  %v4440 = vadd.f32 0.0, %v4439
  %v4441 = vpop.f32.mrf.mxu0
  %v4442 = vadd.f32 0.0, %v4441
  %4443 = vdwg.mxu0
  %v4444 = vadd.f32 %v4217, %v4410
  %v4445 = vadd.f32 %v4218, %v4412
  %v4446 = vadd.f32 %v4219, %v4416
  %v4447 = vadd.f32 %v4220, %v4418
  %v4448 = vadd.f32 %v4221, %v4422
  %v4449 = vadd.f32 %v4222, %v4424
  %v4450 = vadd.f32 %v4223, %v4428
  %v4451 = vadd.f32 %v4224, %v4430
  %v4452 = vadd.f32 %v4225, %v4434
  %v4453 = vadd.f32 %v4226, %v4436
  %v4454 = vadd.f32 %v4227, %v4440
  %v4455 = vadd.f32 %v4228, %v4442
  %v4456 = vmax.f32 %v3789, %v3790
  %v4457 = vmax.f32 %v3791, %v3792
  %v4458 = vmax.f32 %v3793, %v3794
  %v4459 = vmax.f32 %v3795, %v3796
  %v4460 = vmax.f32 %v3797, %v3798
  %v4461 = vmax.f32 %v3799, %v3800
  %v4462 = vmax.f32 %v4444, %v4445
  %v4463 = vmax.f32 %v4446, %v4447
  %v4464 = vmax.f32 %v4448, %v4449
  %v4465 = vmax.f32 %v4450, %v4451
  %v4466 = vmax.f32 %v4452, %v4453
  %v4467 = vmax.f32 %v4454, %v4455
  %v4468 = vmax.f32 %v4456, %v4462
  %v4469 = vmax.f32 %v4457, %v4463
  %v4470 = vmax.f32 %v4458, %v4464
  %v4471 = vmax.f32 %v4459, %v4465
  %v4472 = vmax.f32 %v4460, %v4466
  %v4473 = vmax.f32 %v4461, %v4467
  %v4474 = vadd.f32 %v4468, %v3024
  %v4475 = vadd.f32 %v4469, %v3024
  %v4476 = vadd.f32 %v4470, %v3024
  %v4477 = vadd.f32 %v4471, %v3024
  %v4478 = vadd.f32 %v4472, %v3024
  %v4479 = vadd.f32 %v4473, %v3024
  %v4480 = vmax.f32 %v4474, 0.0
  %v4481 = vmax.f32 %v4475, 0.0
  %v4482 = vmax.f32 %v4476, 0.0
  %v4483 = vmax.f32 %v4477, 0.0
  %v4484 = vmax.f32 %v4478, 0.0
  %v4485 = vmax.f32 %v4479, 0.0
  %v4492 = vcombine.high %v4480, %v4480
  %v4494 = vunpack.c.l.s4 1983009808
  %v4495 = vunpack.c.0.s8 %v4494
  %v4496 = vlaneseq
  %v4497 = vshrl.u32 %v4496, 7
  %v4498 = vsub.s32 %v4495, %v4497
  %v4499 = vrot.slane %v4480, %v4498
  %v4501 = vunpack.c.l.s4 1983009808
  %v4502 = vunpack.c.0.s8 %v4501
  %v4503 = vlaneseq
  %v4504 = vshrl.u32 %v4503, 7
  %v4505 = vsub.s32 %v4502, %v4504
  %v4506 = vrot.slane %v4492, %v4505
  %v4507 = vcombine.high %v4499, %v4499
  %v4508 = vcombine.high %v4506, %v4506
  %v4509 = vcombine.high %v4481, %v4481
  %v4511 = vunpack.c.l.s4 1983009808
  %v4512 = vunpack.c.0.s8 %v4511
  %v4513 = vlaneseq
  %v4514 = vshrl.u32 %v4513, 7
  %v4515 = vsub.s32 %v4512, %v4514
  %v4516 = vrot.slane %v4481, %v4515
  %v4518 = vunpack.c.l.s4 1983009808
  %v4519 = vunpack.c.0.s8 %v4518
  %v4520 = vlaneseq
  %v4521 = vshrl.u32 %v4520, 7
  %v4522 = vsub.s32 %v4519, %v4521
  %v4523 = vrot.slane %v4509, %v4522
  %v4524 = vcombine.high %v4516, %v4516
  %v4525 = vcombine.high %v4523, %v4523
  %v4526 = vcombine.high %v4482, %v4482
  %v4528 = vunpack.c.l.s4 1983009808
  %v4529 = vunpack.c.0.s8 %v4528
  %v4530 = vlaneseq
  %v4531 = vshrl.u32 %v4530, 7
  %v4532 = vsub.s32 %v4529, %v4531
  %v4533 = vrot.slane %v4482, %v4532
  %v4535 = vunpack.c.l.s4 1983009808
  %v4536 = vunpack.c.0.s8 %v4535
  %v4537 = vlaneseq
  %v4538 = vshrl.u32 %v4537, 7
  %v4539 = vsub.s32 %v4536, %v4538
  %v4540 = vrot.slane %v4526, %v4539
  %v4541 = vcombine.high %v4533, %v4533
  %v4542 = vcombine.high %v4540, %v4540
  %v4543 = vcombine.high %v4483, %v4483
  %v4545 = vunpack.c.l.s4 1983009808
  %v4546 = vunpack.c.0.s8 %v4545
  %v4547 = vlaneseq
  %v4548 = vshrl.u32 %v4547, 7
  %v4549 = vsub.s32 %v4546, %v4548
  %v4550 = vrot.slane %v4483, %v4549
  %v4552 = vunpack.c.l.s4 1983009808
  %v4553 = vunpack.c.0.s8 %v4552
  %v4554 = vlaneseq
  %v4555 = vshrl.u32 %v4554, 7
  %v4556 = vsub.s32 %v4553, %v4555
  %v4557 = vrot.slane %v4543, %v4556
  %v4558 = vcombine.high %v4550, %v4550
  %v4559 = vcombine.high %v4557, %v4557
  %v4560 = vcombine.high %v4484, %v4484
  %v4562 = vunpack.c.l.s4 1983009808
  %v4563 = vunpack.c.0.s8 %v4562
  %v4564 = vlaneseq
  %v4565 = vshrl.u32 %v4564, 7
  %v4566 = vsub.s32 %v4563, %v4565
  %v4567 = vrot.slane %v4484, %v4566
  %v4569 = vunpack.c.l.s4 1983009808
  %v4570 = vunpack.c.0.s8 %v4569
  %v4571 = vlaneseq
  %v4572 = vshrl.u32 %v4571, 7
  %v4573 = vsub.s32 %v4570, %v4572
  %v4574 = vrot.slane %v4560, %v4573
  %v4575 = vcombine.high %v4567, %v4567
  %v4576 = vcombine.high %v4574, %v4574
  %v4577 = vcombine.high %v4485, %v4485
  %v4579 = vunpack.c.l.s4 1983009808
  %v4580 = vunpack.c.0.s8 %v4579
  %v4581 = vlaneseq
  %v4582 = vshrl.u32 %v4581, 7
  %v4583 = vsub.s32 %v4580, %v4582
  %v4584 = vrot.slane %v4485, %v4583
  %v4586 = vunpack.c.l.s4 1983009808
  %v4587 = vunpack.c.0.s8 %v4586
  %v4588 = vlaneseq
  %v4589 = vshrl.u32 %v4588, 7
  %v4590 = vsub.s32 %v4587, %v4589
  %v4591 = vrot.slane %v4577, %v4590
  %v4592 = vcombine.high %v4584, %v4584
  %v4593 = vcombine.high %v4591, %v4591
  %vm4594 = vcmask 1040384
  %vm4595 = vcmask 1042434
  %vm4596 = vmor %vm4594, %vm4595
  %vm4597 = vcmask 1044484
  %vm4598 = vmor %vm4596, %vm4597
  %vm4599 = vcmask 1046534
  %vm4600 = vmor %vm4598, %vm4599
  %v4601 = vrot.slane %v3051, 7
  %v4602 = vrot.slane %v4601, 2
  %v4603 = vrot.slane %v3059, 7
  %v4604 = vsel %vm4600, %v4602, %v4603
  %v4605 = vrot.slane %v4603, 2
  %v4606 = vrot.slane %v3058, 7
  %v4607 = vsel %vm4600, %v4605, %v4606
  %v4608 = vrot.slane %v3060, 7
  %v4609 = vrot.slane %v4608, 2
  %v4610 = vrot.slane %v3068, 7
  %v4611 = vsel %vm4600, %v4609, %v4610
  %v4612 = vrot.slane %v4610, 2
  %v4613 = vrot.slane %v3076, 7
  %v4614 = vsel %vm4600, %v4612, %v4613
  %v4615 = vrot.slane %v3075, 7
  %v4616 = vrot.slane %v4615, 2
  %v4617 = vrot.slane %v3077, 7
  %v4618 = vsel %vm4600, %v4616, %v4617
  %v4619 = vrot.slane %v4617, 2
  %v4620 = vrot.slane %v3085, 7
  %v4621 = vsel %vm4600, %v4619, %v4620
  %v4622 = vrot.slane %v3093, 7
  %v4623 = vrot.slane %v4622, 2
  %v4624 = vrot.slane %v3092, 7
  %v4625 = vsel %vm4600, %v4623, %v4624
  %v4626 = vrot.slane %v4624, 2
  %v4627 = vrot.slane %v3094, 7
  %v4628 = vsel %vm4600, %v4626, %v4627
  %v4629 = vrot.slane %v3102, 7
  %v4630 = vrot.slane %v4629, 2
  %v4631 = vrot.slane %v3110, 7
  %v4632 = vsel %vm4600, %v4630, %v4631
  %v4633 = vrot.slane %v4631, 2
  %v4634 = vrot.slane %v3109, 7
  %v4635 = vsel %vm4600, %v4633, %v4634
  %v4636 = vrot.slane %v3111, 7
  %v4637 = vrot.slane %v4636, 2
  %v4638 = vrot.slane %v3119, 7
  %v4639 = vsel %vm4600, %v4637, %v4638
  %v4640 = vrot.slane %v4638, 2
  %v4641 = vrot.slane %v3127, 7
  %v4642 = vsel %vm4600, %v4640, %v4641
  %v4643 = vrot.slane %v3126, 7
  %v4644 = vrot.slane %v4643, 2
  %v4645 = vrot.slane %v3128, 7
  %v4646 = vsel %vm4600, %v4644, %v4645
  %v4647 = vrot.slane %v4645, 2
  %v4648 = vrot.slane %v3136, 7
  %v4649 = vsel %vm4600, %v4647, %v4648
  %v4650 = vrot.slane %v3144, 7
  %v4651 = vrot.slane %v4650, 2
  %v4652 = vrot.slane %v3143, 7
  %v4653 = vsel %vm4600, %v4651, %v4652
  %v4654 = vrot.slane %v4652, 2
  %v4655 = vrot.slane %v3145, 7
  %v4656 = vsel %vm4600, %v4654, %v4655
  %v4657 = vrot.slane %v4499, 7
  %v4658 = vrot.slane %v4657, 2
  %v4659 = vrot.slane %v4507, 7
  %v4660 = vsel %vm4600, %v4658, %v4659
  %v4661 = vrot.slane %v4659, 2
  %v4662 = vrot.slane %v4506, 7
  %v4663 = vsel %vm4600, %v4661, %v4662
  %v4664 = vrot.slane %v4508, 7
  %v4665 = vrot.slane %v4664, 2
  %v4666 = vrot.slane %v4516, 7
  %v4667 = vsel %vm4600, %v4665, %v4666
  %v4668 = vrot.slane %v4666, 2
  %v4669 = vrot.slane %v4524, 7
  %v4670 = vsel %vm4600, %v4668, %v4669
  %v4671 = vrot.slane %v4523, 7
  %v4672 = vrot.slane %v4671, 2
  %v4673 = vrot.slane %v4525, 7
  %v4674 = vsel %vm4600, %v4672, %v4673
  %v4675 = vrot.slane %v4673, 2
  %v4676 = vrot.slane %v4533, 7
  %v4677 = vsel %vm4600, %v4675, %v4676
  %v4678 = vrot.slane %v4541, 7
  %v4679 = vrot.slane %v4678, 2
  %v4680 = vrot.slane %v4540, 7
  %v4681 = vsel %vm4600, %v4679, %v4680
  %v4682 = vrot.slane %v4680, 2
  %v4683 = vrot.slane %v4542, 7
  %v4684 = vsel %vm4600, %v4682, %v4683
  %v4685 = vrot.slane %v4550, 7
  %v4686 = vrot.slane %v4685, 2
  %v4687 = vrot.slane %v4558, 7
  %v4688 = vsel %vm4600, %v4686, %v4687
  %v4689 = vrot.slane %v4687, 2
  %v4690 = vrot.slane %v4557, 7
  %v4691 = vsel %vm4600, %v4689, %v4690
  %v4692 = vrot.slane %v4559, 7
  %v4693 = vrot.slane %v4692, 2
  %v4694 = vrot.slane %v4567, 7
  %v4695 = vsel %vm4600, %v4693, %v4694
  %v4696 = vrot.slane %v4694, 2
  %v4697 = vrot.slane %v4575, 7
  %v4698 = vsel %vm4600, %v4696, %v4697
  %v4699 = vrot.slane %v4574, 7
  %v4700 = vrot.slane %v4699, 2
  %v4701 = vrot.slane %v4576, 7
  %v4702 = vsel %vm4600, %v4700, %v4701
  %v4703 = vrot.slane %v4701, 2
  %v4704 = vrot.slane %v4584, 7
  %v4705 = vsel %vm4600, %v4703, %v4704
  %v4706 = vrot.slane %v4592, 7
  %v4707 = vrot.slane %v4706, 2
  %v4708 = vrot.slane %v4591, 7
  %v4709 = vsel %vm4600, %v4707, %v4708
  %v4710 = vrot.slane %v4708, 2
  %v4711 = vrot.slane %v4593, 7
  %v4712 = vsel %vm4600, %v4710, %v4711
  %v4713 = vld [vmem:[%s3] sm:$0xff]
  %v4714 = vld [vmem:[%s3 + $0x8] sm:$0xff]
  %v4715 = vld [vmem:[%s3 + $0x10] sm:$0xff]
  %v4716 = vld [vmem:[%s3 + $0x18] sm:$0xff]
  %v4717 = vld [vmem:[%s3 + $0x20] sm:$0xff]
  %v4718 = vld [vmem:[%s3 + $0x28] sm:$0xff]
  %v4719 = vld [vmem:[%s3 + $0x30] sm:$0xff]
  %v4720 = vld [vmem:[%s3 + $0x38] sm:$0xff]
  %v4721 = vld [vmem:[%s3 + $0x40] sm:$0xff]
  %v4722 = vld [vmem:[%s3 + $0x48] sm:$0xff]
  %v4723 = vld [vmem:[%s3 + $0x50] sm:$0xff]
  %v4724 = vld [vmem:[%s3 + $0x58] sm:$0xff]
  %v4725 = vld [vmem:[%s3 + $0x60] sm:$0xff]
  %v4726 = vld [vmem:[%s3 + $0x68] sm:$0xff]
  %v4727 = vld [vmem:[%s3 + $0x70] sm:$0xff]
  %v4728 = vld [vmem:[%s3 + $0x78] sm:$0xff]
  %v4729 = vld [vmem:[%s3 + $0x80] sm:$0xff]
  %v4730 = vld [vmem:[%s3 + $0x88] sm:$0xff]
  %v4731 = vld [vmem:[%s3 + $0x90] sm:$0xff]
  %v4732 = vld [vmem:[%s3 + $0x98] sm:$0xff]
  %v4733 = vld [vmem:[%s3 + $0xa0] sm:$0xff]
  %v4734 = vld [vmem:[%s3 + $0xa8] sm:$0xff]
  %v4735 = vld [vmem:[%s3 + $0xb0] sm:$0xff]
  %v4736 = vld [vmem:[%s3 + $0xb8] sm:$0xff]
  %v4737 = vld [vmem:[%s3 + $0xc0] sm:$0xff]
  %v4738 = vld [vmem:[%s3 + $0xc8] sm:$0xff]
  %v4739 = vld [vmem:[%s3 + $0xd0] sm:$0xff]
  %v4740 = vld [vmem:[%s3 + $0xd8] sm:$0xff]
  %v4741 = vld [vmem:[%s3 + $0xe0] sm:$0xff]
  %v4742 = vld [vmem:[%s3 + $0xe8] sm:$0xff]
  %v4743 = vld [vmem:[%s3 + $0xf0] sm:$0xff]
  %v4744 = vld [vmem:[%s3 + $0xf8] sm:$0xff]
  %s4745 = scalar_lea.vmem %s3, 256
  %v4746 = vld [vmem:[%s4745] sm:$0xff]
  %v4747 = vld [vmem:[%s4745 + $0x8] sm:$0xff]
  %v4748 = vld [vmem:[%s4745 + $0x10] sm:$0xff]
  %v4749 = vld [vmem:[%s4745 + $0x18] sm:$0xff]
  %v4750 = vld [vmem:[%s4745 + $0x20] sm:$0xff]
  %v4751 = vld [vmem:[%s4745 + $0x28] sm:$0xff]
  %v4752 = vld [vmem:[%s4745 + $0x30] sm:$0xff]
  %v4753 = vld [vmem:[%s4745 + $0x38] sm:$0xff]
  %v4754 = vld [vmem:[%s4745 + $0x40] sm:$0xff]
  %v4755 = vld [vmem:[%s4745 + $0x48] sm:$0xff]
  %v4756 = vld [vmem:[%s4745 + $0x50] sm:$0xff]
  %v4757 = vld [vmem:[%s4745 + $0x58] sm:$0xff]
  %v4758 = vld [vmem:[%s4745 + $0x60] sm:$0xff]
  %v4759 = vld [vmem:[%s4745 + $0x68] sm:$0xff]
  %v4760 = vld [vmem:[%s4745 + $0x70] sm:$0xff]
  %v4761 = vld [vmem:[%s4745 + $0x78] sm:$0xff]
  %v4762 = vld [vmem:[%s4745 + $0x80] sm:$0xff]
  %v4763 = vld [vmem:[%s4745 + $0x88] sm:$0xff]
  %v4764 = vld [vmem:[%s4745 + $0x90] sm:$0xff]
  %v4765 = vld [vmem:[%s4745 + $0x98] sm:$0xff]
  %v4766 = vld [vmem:[%s4745 + $0xa0] sm:$0xff]
  %v4767 = vld [vmem:[%s4745 + $0xa8] sm:$0xff]
  %v4768 = vld [vmem:[%s4745 + $0xb0] sm:$0xff]
  %v4769 = vld [vmem:[%s4745 + $0xb8] sm:$0xff]
  %v4770 = vld [vmem:[%s4745 + $0xc0] sm:$0xff]
  %v4771 = vld [vmem:[%s4745 + $0xc8] sm:$0xff]
  %v4772 = vld [vmem:[%s4745 + $0xd0] sm:$0xff]
  %v4773 = vld [vmem:[%s4745 + $0xd8] sm:$0xff]
  %v4774 = vld [vmem:[%s4745 + $0xe0] sm:$0xff]
  %v4775 = vld [vmem:[%s4745 + $0xe8] sm:$0xff]
  %v4776 = vld [vmem:[%s4745 + $0xf0] sm:$0xff]
  %v4777 = vld [vmem:[%s4745 + $0xf8] sm:$0xff]
  %v4778 = vcombine.low %v4499, %v4507
  %v4779 = vcombine.low %v4508, %v4516
  %v4781 = vunpack.c.l.s4 1983009808
  %v4782 = vunpack.c.0.s8 %v4781
  %v4783 = vlaneseq
  %v4784 = vshrl.u32 %v4783, 7
  %v4785 = vsub.s32 %v4782, %v4784
  %v4786 = vrot.slane %v4778, %v4785
  %v4788 = vunpack.c.l.s4 1983009808
  %v4789 = vunpack.c.0.s8 %v4788
  %v4790 = vlaneseq
  %v4791 = vshrl.u32 %v4790, 7
  %v4792 = vsub.s32 %v4789, %v4791
  %v4793 = vrot.slane %v4779, %v4792
  %v4794 = vcombine.low %v4786, %v4793
  %v4795 = vcombine.low %v4523, %v4525
  %v4796 = vcombine.low %v4541, %v4540
  %v4798 = vunpack.c.l.s4 1983009808
  %v4799 = vunpack.c.0.s8 %v4798
  %v4800 = vlaneseq
  %v4801 = vshrl.u32 %v4800, 7
  %v4802 = vsub.s32 %v4799, %v4801
  %v4803 = vrot.slane %v4795, %v4802
  %v4805 = vunpack.c.l.s4 1983009808
  %v4806 = vunpack.c.0.s8 %v4805
  %v4807 = vlaneseq
  %v4808 = vshrl.u32 %v4807, 7
  %v4809 = vsub.s32 %v4806, %v4808
  %v4810 = vrot.slane %v4796, %v4809
  %v4811 = vcombine.low %v4803, %v4810
  %v4812 = vcombine.low %v4550, %v4558
  %v4813 = vcombine.low %v4559, %v4567
  %v4815 = vunpack.c.l.s4 1983009808
  %v4816 = vunpack.c.0.s8 %v4815
  %v4817 = vlaneseq
  %v4818 = vshrl.u32 %v4817, 7
  %v4819 = vsub.s32 %v4816, %v4818
  %v4820 = vrot.slane %v4812, %v4819
  %v4822 = vunpack.c.l.s4 1983009808
  %v4823 = vunpack.c.0.s8 %v4822
  %v4824 = vlaneseq
  %v4825 = vshrl.u32 %v4824, 7
  %v4826 = vsub.s32 %v4823, %v4825
  %v4827 = vrot.slane %v4813, %v4826
  %v4828 = vcombine.low %v4820, %v4827
  %v4829 = vcombine.low %v4574, %v4576
  %v4830 = vcombine.low %v4592, %v4591
  %v4832 = vunpack.c.l.s4 1983009808
  %v4833 = vunpack.c.0.s8 %v4832
  %v4834 = vlaneseq
  %v4835 = vshrl.u32 %v4834, 7
  %v4836 = vsub.s32 %v4833, %v4835
  %v4837 = vrot.slane %v4829, %v4836
  %v4839 = vunpack.c.l.s4 1983009808
  %v4840 = vunpack.c.0.s8 %v4839
  %v4841 = vlaneseq
  %v4842 = vshrl.u32 %v4841, 7
  %v4843 = vsub.s32 %v4840, %v4842
  %v4844 = vrot.slane %v4830, %v4843
  %v4845 = vcombine.low %v4837, %v4844
  %4850 = vmatprep.subr.mxu0 %v4777
  %4851 = vmatpush1.msra.mxu0 %v4776
  %4852 = vmatprep.subr.mxu0 %v4775
  %4853 = vmatpush1.msra.mxu0 %v4774
  %4854 = vmatprep.subr.mxu0 %v4773
  %4855 = vmatpush1.msra.mxu0 %v4772
  %4856 = vmatprep.subr.mxu0 %v4771
  %4857 = vmatpush1.msra.mxu0 %v4770
  %4858 = vmatprep.subr.mxu0 %v4769
  %4859 = vmatpush1.msra.mxu0 %v4768
  %4860 = vmatprep.subr.mxu0 %v4767
  %4861 = vmatpush1.msra.mxu0 %v4766
  %4862 = vmatprep.subr.mxu0 %v4765
  %4863 = vmatpush1.msra.mxu0 %v4764
  %4864 = vmatprep.subr.mxu0 %v4763
  %4865 = vmatpush1.msra.mxu0 %v4762
  %4866 = vmatprep.subr.mxu0 %v4761
  %4867 = vmatpush1.msra.mxu0 %v4760
  %4868 = vmatprep.subr.mxu0 %v4759
  %4869 = vmatpush1.msra.mxu0 %v4758
  %4870 = vmatprep.subr.mxu0 %v4757
  %4871 = vmatpush1.msra.mxu0 %v4756
  %4872 = vmatprep.subr.mxu0 %v4755
  %4873 = vmatpush1.msra.mxu0 %v4754
  %4874 = vmatprep.subr.mxu0 %v4753
  %4875 = vmatpush1.msra.mxu0 %v4752
  %4876 = vmatprep.subr.mxu0 %v4751
  %4877 = vmatpush1.msra.mxu0 %v4750
  %4878 = vmatprep.subr.mxu0 %v4749
  %4879 = vmatpush1.msra.mxu0 %v4748
  %4880 = vmatprep.subr.mxu0 %v4747
  %4881 = vmatpush1.msra.mxu0 %v4746
  %4882 = vmatprep.subr.mxu0 0.0
  %4883 = vmatpush2.msra.mxu0 0.0
  %4884 = vmatprep.subr.mxu0 0.0
  %4885 = vmatpush2.msra.mxu0 0.0
  %4886 = vmatprep.subr.mxu0 0.0
  %4887 = vmatpush2.msra.mxu0 0.0
  %4888 = vmatprep.subr.mxu0 0.0
  %4889 = vmatpush2.msra.mxu0 0.0
  %4890 = vmatprep.subr.mxu0 0.0
  %4891 = vmatpush2.msra.mxu0 0.0
  %4892 = vmatprep.subr.mxu0 0.0
  %4893 = vmatpush2.msra.mxu0 0.0
  %4894 = vmatprep.subr.mxu0 0.0
  %4895 = vmatpush2.msra.mxu0 0.0
  %4896 = vmatprep.subr.mxu0 0.0
  %4897 = vmatpush2.msra.mxu0 0.0
  %4898 = vmatprep.subr.mxu0 0.0
  %4899 = vmatpush2.msra.mxu0 0.0
  %4900 = vmatprep.subr.mxu0 0.0
  %4901 = vmatpush2.msra.mxu0 0.0
  %4902 = vmatprep.subr.mxu0 0.0
  %4903 = vmatpush2.msra.mxu0 0.0
  %4904 = vmatprep.subr.mxu0 0.0
  %4905 = vmatpush2.msra.mxu0 0.0
  %4906 = vmatprep.subr.mxu0 0.0
  %4907 = vmatpush2.msra.mxu0 0.0
  %4908 = vmatprep.subr.mxu0 0.0
  %4909 = vmatpush2.msra.mxu0 0.0
  %4910 = vmatprep.subr.mxu0 0.0
  %4911 = vmatpush2.msra.mxu0 0.0
  %4912 = vmatprep.subr.mxu0 0.0
  %4913 = vmatpush2.msra.mxu0 0.0
  %4914 = vmatprep.mubr.f32.mxu0 0.0
  %4915 = vmatmul.mubr.f32.gmra.mxu0 %v4794
  %v4916 = vpop.f32.mrf.mxu0
  %v4917 = vadd.f32 0.0, %v4916
  %v4918 = vpop.f32.mrf.mxu0
  %v4919 = vadd.f32 0.0, %v4918
  %4920 = vmatprep.mubr.f32.mxu0 0.0
  %4921 = vmatmul.mubr.f32.gmra.mxu0 %v4811
  %v4922 = vpop.f32.mrf.mxu0
  %v4923 = vadd.f32 0.0, %v4922
  %v4924 = vpop.f32.mrf.mxu0
  %v4925 = vadd.f32 0.0, %v4924
  %4926 = vmatprep.mubr.f32.mxu0 0.0
  %4927 = vmatmul.mubr.f32.gmra.mxu0 %v4828
  %v4928 = vpop.f32.mrf.mxu0
  %v4929 = vadd.f32 0.0, %v4928
  %v4930 = vpop.f32.mrf.mxu0
  %v4931 = vadd.f32 0.0, %v4930
  %4932 = vmatprep.mubr.f32.mxu0 0.0
  %4933 = vmatmul.mubr.f32.gmra.mxu0 %v4845
  %v4934 = vpop.f32.mrf.mxu0
  %v4935 = vadd.f32 0.0, %v4934
  %v4936 = vpop.f32.mrf.mxu0
  %v4937 = vadd.f32 0.0, %v4936
  %4938 = vdwg.mxu0
  %v4939 = vcombine.low %v3051, %v3059
  %v4940 = vcombine.low %v3060, %v3068
  %v4942 = vunpack.c.l.s4 1983009808
  %v4943 = vunpack.c.0.s8 %v4942
  %v4944 = vlaneseq
  %v4945 = vshrl.u32 %v4944, 7
  %v4946 = vsub.s32 %v4943, %v4945
  %v4947 = vrot.slane %v4939, %v4946
  %v4949 = vunpack.c.l.s4 1983009808
  %v4950 = vunpack.c.0.s8 %v4949
  %v4951 = vlaneseq
  %v4952 = vshrl.u32 %v4951, 7
  %v4953 = vsub.s32 %v4950, %v4952
  %v4954 = vrot.slane %v4940, %v4953
  %v4955 = vcombine.low %v4947, %v4954
  %v4956 = vcombine.low %v3075, %v3077
  %v4957 = vcombine.low %v3093, %v3092
  %v4959 = vunpack.c.l.s4 1983009808
  %v4960 = vunpack.c.0.s8 %v4959
  %v4961 = vlaneseq
  %v4962 = vshrl.u32 %v4961, 7
  %v4963 = vsub.s32 %v4960, %v4962
  %v4964 = vrot.slane %v4956, %v4963
  %v4966 = vunpack.c.l.s4 1983009808
  %v4967 = vunpack.c.0.s8 %v4966
  %v4968 = vlaneseq
  %v4969 = vshrl.u32 %v4968, 7
  %v4970 = vsub.s32 %v4967, %v4969
  %v4971 = vrot.slane %v4957, %v4970
  %v4972 = vcombine.low %v4964, %v4971
  %v4973 = vcombine.low %v3102, %v3110
  %v4974 = vcombine.low %v3111, %v3119
  %v4976 = vunpack.c.l.s4 1983009808
  %v4977 = vunpack.c.0.s8 %v4976
  %v4978 = vlaneseq
  %v4979 = vshrl.u32 %v4978, 7
  %v4980 = vsub.s32 %v4977, %v4979
  %v4981 = vrot.slane %v4973, %v4980
  %v4983 = vunpack.c.l.s4 1983009808
  %v4984 = vunpack.c.0.s8 %v4983
  %v4985 = vlaneseq
  %v4986 = vshrl.u32 %v4985, 7
  %v4987 = vsub.s32 %v4984, %v4986
  %v4988 = vrot.slane %v4974, %v4987
  %v4989 = vcombine.low %v4981, %v4988
  %v4990 = vcombine.low %v3126, %v3128
  %v4991 = vcombine.low %v3144, %v3143
  %v4993 = vunpack.c.l.s4 1983009808
  %v4994 = vunpack.c.0.s8 %v4993
  %v4995 = vlaneseq
  %v4996 = vshrl.u32 %v4995, 7
  %v4997 = vsub.s32 %v4994, %v4996
  %v4998 = vrot.slane %v4990, %v4997
  %v5000 = vunpack.c.l.s4 1983009808
  %v5001 = vunpack.c.0.s8 %v5000
  %v5002 = vlaneseq
  %v5003 = vshrl.u32 %v5002, 7
  %v5004 = vsub.s32 %v5001, %v5003
  %v5005 = vrot.slane %v4991, %v5004
  %v5006 = vcombine.low %v4998, %v5005
  %5011 = vmatprep.subr.mxu0 %v4744
  %5012 = vmatpush1.msra.mxu0 %v4743
  %5013 = vmatprep.subr.mxu0 %v4742
  %5014 = vmatpush1.msra.mxu0 %v4741
  %5015 = vmatprep.subr.mxu0 %v4740
  %5016 = vmatpush1.msra.mxu0 %v4739
  %5017 = vmatprep.subr.mxu0 %v4738
  %5018 = vmatpush1.msra.mxu0 %v4737
  %5019 = vmatprep.subr.mxu0 %v4736
  %5020 = vmatpush1.msra.mxu0 %v4735
  %5021 = vmatprep.subr.mxu0 %v4734
  %5022 = vmatpush1.msra.mxu0 %v4733
  %5023 = vmatprep.subr.mxu0 %v4732
  %5024 = vmatpush1.msra.mxu0 %v4731
  %5025 = vmatprep.subr.mxu0 %v4730
  %5026 = vmatpush1.msra.mxu0 %v4729
  %5027 = vmatprep.subr.mxu0 %v4728
  %5028 = vmatpush1.msra.mxu0 %v4727
  %5029 = vmatprep.subr.mxu0 %v4726
  %5030 = vmatpush1.msra.mxu0 %v4725
  %5031 = vmatprep.subr.mxu0 %v4724
  %5032 = vmatpush1.msra.mxu0 %v4723
  %5033 = vmatprep.subr.mxu0 %v4722
  %5034 = vmatpush1.msra.mxu0 %v4721
  %5035 = vmatprep.subr.mxu0 %v4720
  %5036 = vmatpush1.msra.mxu0 %v4719
  %5037 = vmatprep.subr.mxu0 %v4718
  %5038 = vmatpush1.msra.mxu0 %v4717
  %5039 = vmatprep.subr.mxu0 %v4716
  %5040 = vmatpush1.msra.mxu0 %v4715
  %5041 = vmatprep.subr.mxu0 %v4714
  %5042 = vmatpush1.msra.mxu0 %v4713
  %5043 = vmatprep.subr.mxu0 0.0
  %5044 = vmatpush2.msra.mxu0 0.0
  %5045 = vmatprep.subr.mxu0 0.0
  %5046 = vmatpush2.msra.mxu0 0.0
  %5047 = vmatprep.subr.mxu0 0.0
  %5048 = vmatpush2.msra.mxu0 0.0
  %5049 = vmatprep.subr.mxu0 0.0
  %5050 = vmatpush2.msra.mxu0 0.0
  %5051 = vmatprep.subr.mxu0 0.0
  %5052 = vmatpush2.msra.mxu0 0.0
  %5053 = vmatprep.subr.mxu0 0.0
  %5054 = vmatpush2.msra.mxu0 0.0
  %5055 = vmatprep.subr.mxu0 0.0
  %5056 = vmatpush2.msra.mxu0 0.0
  %5057 = vmatprep.subr.mxu0 0.0
  %5058 = vmatpush2.msra.mxu0 0.0
  %5059 = vmatprep.subr.mxu0 0.0
  %5060 = vmatpush2.msra.mxu0 0.0
  %5061 = vmatprep.subr.mxu0 0.0
  %5062 = vmatpush2.msra.mxu0 0.0
  %5063 = vmatprep.subr.mxu0 0.0
  %5064 = vmatpush2.msra.mxu0 0.0
  %5065 = vmatprep.subr.mxu0 0.0
  %5066 = vmatpush2.msra.mxu0 0.0
  %5067 = vmatprep.subr.mxu0 0.0
  %5068 = vmatpush2.msra.mxu0 0.0
  %5069 = vmatprep.subr.mxu0 0.0
  %5070 = vmatpush2.msra.mxu0 0.0
  %5071 = vmatprep.subr.mxu0 0.0
  %5072 = vmatpush2.msra.mxu0 0.0
  %5073 = vmatprep.subr.mxu0 0.0
  %5074 = vmatpush2.msra.mxu0 0.0
  %5075 = vmatprep.mubr.f32.mxu0 0.0
  %5076 = vmatmul.mubr.f32.gmra.mxu0 %v4955
  %v5077 = vpop.f32.mrf.mxu0
  %v5078 = vadd.f32 %v4917, %v5077
  %v5079 = vpop.f32.mrf.mxu0
  %v5080 = vadd.f32 %v4919, %v5079
  %5081 = vmatprep.mubr.f32.mxu0 0.0
  %5082 = vmatmul.mubr.f32.gmra.mxu0 %v4972
  %v5083 = vpop.f32.mrf.mxu0
  %v5084 = vadd.f32 %v4923, %v5083
  %v5085 = vpop.f32.mrf.mxu0
  %v5086 = vadd.f32 %v4925, %v5085
  %5087 = vmatprep.mubr.f32.mxu0 0.0
  %5088 = vmatmul.mubr.f32.gmra.mxu0 %v4989
  %v5089 = vpop.f32.mrf.mxu0
  %v5090 = vadd.f32 %v4929, %v5089
  %v5091 = vpop.f32.mrf.mxu0
  %v5092 = vadd.f32 %v4931, %v5091
  %5093 = vmatprep.mubr.f32.mxu0 0.0
  %5094 = vmatmul.mubr.f32.gmra.mxu0 %v5006
  %v5095 = vpop.f32.mrf.mxu0
  %v5096 = vadd.f32 %v4935, %v5095
  %v5097 = vpop.f32.mrf.mxu0
  %v5098 = vadd.f32 %v4937, %v5097
  %5099 = vdwg.mxu0
  %s5100 = scalar_lea.vmem %s3, 512
  %v5101 = vld [vmem:[%s5100] sm:$0xff]
  %v5102 = vld [vmem:[%s5100 + $0x8] sm:$0xff]
  %v5103 = vld [vmem:[%s5100 + $0x10] sm:$0xff]
  %v5104 = vld [vmem:[%s5100 + $0x18] sm:$0xff]
  %v5105 = vld [vmem:[%s5100 + $0x20] sm:$0xff]
  %v5106 = vld [vmem:[%s5100 + $0x28] sm:$0xff]
  %v5107 = vld [vmem:[%s5100 + $0x30] sm:$0xff]
  %v5108 = vld [vmem:[%s5100 + $0x38] sm:$0xff]
  %v5109 = vld [vmem:[%s5100 + $0x40] sm:$0xff]
  %v5110 = vld [vmem:[%s5100 + $0x48] sm:$0xff]
  %v5111 = vld [vmem:[%s5100 + $0x50] sm:$0xff]
  %v5112 = vld [vmem:[%s5100 + $0x58] sm:$0xff]
  %v5113 = vld [vmem:[%s5100 + $0x60] sm:$0xff]
  %v5114 = vld [vmem:[%s5100 + $0x68] sm:$0xff]
  %v5115 = vld [vmem:[%s5100 + $0x70] sm:$0xff]
  %v5116 = vld [vmem:[%s5100 + $0x78] sm:$0xff]
  %v5117 = vld [vmem:[%s5100 + $0x80] sm:$0xff]
  %v5118 = vld [vmem:[%s5100 + $0x88] sm:$0xff]
  %v5119 = vld [vmem:[%s5100 + $0x90] sm:$0xff]
  %v5120 = vld [vmem:[%s5100 + $0x98] sm:$0xff]
  %v5121 = vld [vmem:[%s5100 + $0xa0] sm:$0xff]
  %v5122 = vld [vmem:[%s5100 + $0xa8] sm:$0xff]
  %v5123 = vld [vmem:[%s5100 + $0xb0] sm:$0xff]
  %v5124 = vld [vmem:[%s5100 + $0xb8] sm:$0xff]
  %v5125 = vld [vmem:[%s5100 + $0xc0] sm:$0xff]
  %v5126 = vld [vmem:[%s5100 + $0xc8] sm:$0xff]
  %v5127 = vld [vmem:[%s5100 + $0xd0] sm:$0xff]
  %v5128 = vld [vmem:[%s5100 + $0xd8] sm:$0xff]
  %v5129 = vld [vmem:[%s5100 + $0xe0] sm:$0xff]
  %v5130 = vld [vmem:[%s5100 + $0xe8] sm:$0xff]
  %v5131 = vld [vmem:[%s5100 + $0xf0] sm:$0xff]
  %v5132 = vld [vmem:[%s5100 + $0xf8] sm:$0xff]
  %v5133 = vcombine.low %v4604, %v4607
  %v5134 = vcombine.low %v4611, %v4614
  %v5136 = vunpack.c.l.s4 1983009808
  %v5137 = vunpack.c.0.s8 %v5136
  %v5138 = vlaneseq
  %v5139 = vshrl.u32 %v5138, 7
  %v5140 = vsub.s32 %v5137, %v5139
  %v5141 = vrot.slane %v5133, %v5140
  %v5143 = vunpack.c.l.s4 1983009808
  %v5144 = vunpack.c.0.s8 %v5143
  %v5145 = vlaneseq
  %v5146 = vshrl.u32 %v5145, 7
  %v5147 = vsub.s32 %v5144, %v5146
  %v5148 = vrot.slane %v5134, %v5147
  %v5149 = vcombine.low %v5141, %v5148
  %v5150 = vcombine.low %v4618, %v4621
  %v5151 = vcombine.low %v4625, %v4628
  %v5153 = vunpack.c.l.s4 1983009808
  %v5154 = vunpack.c.0.s8 %v5153
  %v5155 = vlaneseq
  %v5156 = vshrl.u32 %v5155, 7
  %v5157 = vsub.s32 %v5154, %v5156
  %v5158 = vrot.slane %v5150, %v5157
  %v5160 = vunpack.c.l.s4 1983009808
  %v5161 = vunpack.c.0.s8 %v5160
  %v5162 = vlaneseq
  %v5163 = vshrl.u32 %v5162, 7
  %v5164 = vsub.s32 %v5161, %v5163
  %v5165 = vrot.slane %v5151, %v5164
  %v5166 = vcombine.low %v5158, %v5165
  %v5167 = vcombine.low %v4632, %v4635
  %v5168 = vcombine.low %v4639, %v4642
  %v5170 = vunpack.c.l.s4 1983009808
  %v5171 = vunpack.c.0.s8 %v5170
  %v5172 = vlaneseq
  %v5173 = vshrl.u32 %v5172, 7
  %v5174 = vsub.s32 %v5171, %v5173
  %v5175 = vrot.slane %v5167, %v5174
  %v5177 = vunpack.c.l.s4 1983009808
  %v5178 = vunpack.c.0.s8 %v5177
  %v5179 = vlaneseq
  %v5180 = vshrl.u32 %v5179, 7
  %v5181 = vsub.s32 %v5178, %v5180
  %v5182 = vrot.slane %v5168, %v5181
  %v5183 = vcombine.low %v5175, %v5182
  %v5184 = vcombine.low %v4646, %v4649
  %v5185 = vcombine.low %v4653, %v4656
  %v5187 = vunpack.c.l.s4 1983009808
  %v5188 = vunpack.c.0.s8 %v5187
  %v5189 = vlaneseq
  %v5190 = vshrl.u32 %v5189, 7
  %v5191 = vsub.s32 %v5188, %v5190
  %v5192 = vrot.slane %v5184, %v5191
  %v5194 = vunpack.c.l.s4 1983009808
  %v5195 = vunpack.c.0.s8 %v5194
  %v5196 = vlaneseq
  %v5197 = vshrl.u32 %v5196, 7
  %v5198 = vsub.s32 %v5195, %v5197
  %v5199 = vrot.slane %v5185, %v5198
  %v5200 = vcombine.low %v5192, %v5199
  %5205 = vmatprep.subr.mxu0 %v5132
  %5206 = vmatpush1.msra.mxu0 %v5131
  %5207 = vmatprep.subr.mxu0 %v5130
  %5208 = vmatpush1.msra.mxu0 %v5129
  %5209 = vmatprep.subr.mxu0 %v5128
  %5210 = vmatpush1.msra.mxu0 %v5127
  %5211 = vmatprep.subr.mxu0 %v5126
  %5212 = vmatpush1.msra.mxu0 %v5125
  %5213 = vmatprep.subr.mxu0 %v5124
  %5214 = vmatpush1.msra.mxu0 %v5123
  %5215 = vmatprep.subr.mxu0 %v5122
  %5216 = vmatpush1.msra.mxu0 %v5121
  %5217 = vmatprep.subr.mxu0 %v5120
  %5218 = vmatpush1.msra.mxu0 %v5119
  %5219 = vmatprep.subr.mxu0 %v5118
  %5220 = vmatpush1.msra.mxu0 %v5117
  %5221 = vmatprep.subr.mxu0 %v5116
  %5222 = vmatpush1.msra.mxu0 %v5115
  %5223 = vmatprep.subr.mxu0 %v5114
  %5224 = vmatpush1.msra.mxu0 %v5113
  %5225 = vmatprep.subr.mxu0 %v5112
  %5226 = vmatpush1.msra.mxu0 %v5111
  %5227 = vmatprep.subr.mxu0 %v5110
  %5228 = vmatpush1.msra.mxu0 %v5109
  %5229 = vmatprep.subr.mxu0 %v5108
  %5230 = vmatpush1.msra.mxu0 %v5107
  %5231 = vmatprep.subr.mxu0 %v5106
  %5232 = vmatpush1.msra.mxu0 %v5105
  %5233 = vmatprep.subr.mxu0 %v5104
  %5234 = vmatpush1.msra.mxu0 %v5103
  %5235 = vmatprep.subr.mxu0 %v5102
  %5236 = vmatpush1.msra.mxu0 %v5101
  %5237 = vmatprep.subr.mxu0 0.0
  %5238 = vmatpush2.msra.mxu0 0.0
  %5239 = vmatprep.subr.mxu0 0.0
  %5240 = vmatpush2.msra.mxu0 0.0
  %5241 = vmatprep.subr.mxu0 0.0
  %5242 = vmatpush2.msra.mxu0 0.0
  %5243 = vmatprep.subr.mxu0 0.0
  %5244 = vmatpush2.msra.mxu0 0.0
  %5245 = vmatprep.subr.mxu0 0.0
  %5246 = vmatpush2.msra.mxu0 0.0
  %5247 = vmatprep.subr.mxu0 0.0
  %5248 = vmatpush2.msra.mxu0 0.0
  %5249 = vmatprep.subr.mxu0 0.0
  %5250 = vmatpush2.msra.mxu0 0.0
  %5251 = vmatprep.subr.mxu0 0.0
  %5252 = vmatpush2.msra.mxu0 0.0
  %5253 = vmatprep.subr.mxu0 0.0
  %5254 = vmatpush2.msra.mxu0 0.0
  %5255 = vmatprep.subr.mxu0 0.0
  %5256 = vmatpush2.msra.mxu0 0.0
  %5257 = vmatprep.subr.mxu0 0.0
  %5258 = vmatpush2.msra.mxu0 0.0
  %5259 = vmatprep.subr.mxu0 0.0
  %5260 = vmatpush2.msra.mxu0 0.0
  %5261 = vmatprep.subr.mxu0 0.0
  %5262 = vmatpush2.msra.mxu0 0.0
  %5263 = vmatprep.subr.mxu0 0.0
  %5264 = vmatpush2.msra.mxu0 0.0
  %5265 = vmatprep.subr.mxu0 0.0
  %5266 = vmatpush2.msra.mxu0 0.0
  %5267 = vmatprep.subr.mxu0 0.0
  %5268 = vmatpush2.msra.mxu0 0.0
  %5269 = vmatprep.mubr.f32.mxu0 0.0
  %5270 = vmatmul.mubr.f32.gmra.mxu0 %v5149
  %v5271 = vpop.f32.mrf.mxu0
  %v5272 = vadd.f32 0.0, %v5271
  %v5273 = vpop.f32.mrf.mxu0
  %v5274 = vadd.f32 0.0, %v5273
  %5275 = vmatprep.mubr.f32.mxu0 0.0
  %5276 = vmatmul.mubr.f32.gmra.mxu0 %v5166
  %v5277 = vpop.f32.mrf.mxu0
  %v5278 = vadd.f32 0.0, %v5277
  %v5279 = vpop.f32.mrf.mxu0
  %v5280 = vadd.f32 0.0, %v5279
  %5281 = vmatprep.mubr.f32.mxu0 0.0
  %5282 = vmatmul.mubr.f32.gmra.mxu0 %v5183
  %v5283 = vpop.f32.mrf.mxu0
  %v5284 = vadd.f32 0.0, %v5283
  %v5285 = vpop.f32.mrf.mxu0
  %v5286 = vadd.f32 0.0, %v5285
  %5287 = vmatprep.mubr.f32.mxu0 0.0
  %5288 = vmatmul.mubr.f32.gmra.mxu0 %v5200
  %v5289 = vpop.f32.mrf.mxu0
  %v5290 = vadd.f32 0.0, %v5289
  %v5291 = vpop.f32.mrf.mxu0
  %v5292 = vadd.f32 0.0, %v5291
  %5293 = vdwg.mxu0
  %v5294 = vadd.f32 %v5078, %v5272
  %v5295 = vadd.f32 %v5080, %v5274
  %v5296 = vadd.f32 %v5084, %v5278
  %v5297 = vadd.f32 %v5086, %v5280
  %v5298 = vadd.f32 %v5090, %v5284
  %v5299 = vadd.f32 %v5092, %v5286
  %v5300 = vadd.f32 %v5096, %v5290
  %v5301 = vadd.f32 %v5098, %v5292
  %s5302 = scalar_lea.vmem %s3, 768
  %v5303 = vld [vmem:[%s5302] sm:$0xff]
  %v5304 = vld [vmem:[%s5302 + $0x8] sm:$0xff]
  %v5305 = vld [vmem:[%s5302 + $0x10] sm:$0xff]
  %v5306 = vld [vmem:[%s5302 + $0x18] sm:$0xff]
  %v5307 = vld [vmem:[%s5302 + $0x20] sm:$0xff]
  %v5308 = vld [vmem:[%s5302 + $0x28] sm:$0xff]
  %v5309 = vld [vmem:[%s5302 + $0x30] sm:$0xff]
  %v5310 = vld [vmem:[%s5302 + $0x38] sm:$0xff]
  %v5311 = vld [vmem:[%s5302 + $0x40] sm:$0xff]
  %v5312 = vld [vmem:[%s5302 + $0x48] sm:$0xff]
  %v5313 = vld [vmem:[%s5302 + $0x50] sm:$0xff]
  %v5314 = vld [vmem:[%s5302 + $0x58] sm:$0xff]
  %v5315 = vld [vmem:[%s5302 + $0x60] sm:$0xff]
  %v5316 = vld [vmem:[%s5302 + $0x68] sm:$0xff]
  %v5317 = vld [vmem:[%s5302 + $0x70] sm:$0xff]
  %v5318 = vld [vmem:[%s5302 + $0x78] sm:$0xff]
  %v5319 = vld [vmem:[%s5302 + $0x80] sm:$0xff]
  %v5320 = vld [vmem:[%s5302 + $0x88] sm:$0xff]
  %v5321 = vld [vmem:[%s5302 + $0x90] sm:$0xff]
  %v5322 = vld [vmem:[%s5302 + $0x98] sm:$0xff]
  %v5323 = vld [vmem:[%s5302 + $0xa0] sm:$0xff]
  %v5324 = vld [vmem:[%s5302 + $0xa8] sm:$0xff]
  %v5325 = vld [vmem:[%s5302 + $0xb0] sm:$0xff]
  %v5326 = vld [vmem:[%s5302 + $0xb8] sm:$0xff]
  %v5327 = vld [vmem:[%s5302 + $0xc0] sm:$0xff]
  %v5328 = vld [vmem:[%s5302 + $0xc8] sm:$0xff]
  %v5329 = vld [vmem:[%s5302 + $0xd0] sm:$0xff]
  %v5330 = vld [vmem:[%s5302 + $0xd8] sm:$0xff]
  %v5331 = vld [vmem:[%s5302 + $0xe0] sm:$0xff]
  %v5332 = vld [vmem:[%s5302 + $0xe8] sm:$0xff]
  %v5333 = vld [vmem:[%s5302 + $0xf0] sm:$0xff]
  %v5334 = vld [vmem:[%s5302 + $0xf8] sm:$0xff]
  %v5335 = vcombine.low %v4660, %v4663
  %v5336 = vcombine.low %v4667, %v4670
  %v5338 = vunpack.c.l.s4 1983009808
  %v5339 = vunpack.c.0.s8 %v5338
  %v5340 = vlaneseq
  %v5341 = vshrl.u32 %v5340, 7
  %v5342 = vsub.s32 %v5339, %v5341
  %v5343 = vrot.slane %v5335, %v5342
  %v5345 = vunpack.c.l.s4 1983009808
  %v5346 = vunpack.c.0.s8 %v5345
  %v5347 = vlaneseq
  %v5348 = vshrl.u32 %v5347, 7
  %v5349 = vsub.s32 %v5346, %v5348
  %v5350 = vrot.slane %v5336, %v5349
  %v5351 = vcombine.low %v5343, %v5350
  %v5352 = vcombine.low %v4674, %v4677
  %v5353 = vcombine.low %v4681, %v4684
  %v5355 = vunpack.c.l.s4 1983009808
  %v5356 = vunpack.c.0.s8 %v5355
  %v5357 = vlaneseq
  %v5358 = vshrl.u32 %v5357, 7
  %v5359 = vsub.s32 %v5356, %v5358
  %v5360 = vrot.slane %v5352, %v5359
  %v5362 = vunpack.c.l.s4 1983009808
  %v5363 = vunpack.c.0.s8 %v5362
  %v5364 = vlaneseq
  %v5365 = vshrl.u32 %v5364, 7
  %v5366 = vsub.s32 %v5363, %v5365
  %v5367 = vrot.slane %v5353, %v5366
  %v5368 = vcombine.low %v5360, %v5367
  %v5369 = vcombine.low %v4688, %v4691
  %v5370 = vcombine.low %v4695, %v4698
  %v5372 = vunpack.c.l.s4 1983009808
  %v5373 = vunpack.c.0.s8 %v5372
  %v5374 = vlaneseq
  %v5375 = vshrl.u32 %v5374, 7
  %v5376 = vsub.s32 %v5373, %v5375
  %v5377 = vrot.slane %v5369, %v5376
  %v5379 = vunpack.c.l.s4 1983009808
  %v5380 = vunpack.c.0.s8 %v5379
  %v5381 = vlaneseq
  %v5382 = vshrl.u32 %v5381, 7
  %v5383 = vsub.s32 %v5380, %v5382
  %v5384 = vrot.slane %v5370, %v5383
  %v5385 = vcombine.low %v5377, %v5384
  %v5386 = vcombine.low %v4702, %v4705
  %v5387 = vcombine.low %v4709, %v4712
  %v5389 = vunpack.c.l.s4 1983009808
  %v5390 = vunpack.c.0.s8 %v5389
  %v5391 = vlaneseq
  %v5392 = vshrl.u32 %v5391, 7
  %v5393 = vsub.s32 %v5390, %v5392
  %v5394 = vrot.slane %v5386, %v5393
  %v5396 = vunpack.c.l.s4 1983009808
  %v5397 = vunpack.c.0.s8 %v5396
  %v5398 = vlaneseq
  %v5399 = vshrl.u32 %v5398, 7
  %v5400 = vsub.s32 %v5397, %v5399
  %v5401 = vrot.slane %v5387, %v5400
  %v5402 = vcombine.low %v5394, %v5401
  %5407 = vmatprep.subr.mxu0 %v5334
  %5408 = vmatpush1.msra.mxu0 %v5333
  %5409 = vmatprep.subr.mxu0 %v5332
  %5410 = vmatpush1.msra.mxu0 %v5331
  %5411 = vmatprep.subr.mxu0 %v5330
  %5412 = vmatpush1.msra.mxu0 %v5329
  %5413 = vmatprep.subr.mxu0 %v5328
  %5414 = vmatpush1.msra.mxu0 %v5327
  %5415 = vmatprep.subr.mxu0 %v5326
  %5416 = vmatpush1.msra.mxu0 %v5325
  %5417 = vmatprep.subr.mxu0 %v5324
  %5418 = vmatpush1.msra.mxu0 %v5323
  %5419 = vmatprep.subr.mxu0 %v5322
  %5420 = vmatpush1.msra.mxu0 %v5321
  %5421 = vmatprep.subr.mxu0 %v5320
  %5422 = vmatpush1.msra.mxu0 %v5319
  %5423 = vmatprep.subr.mxu0 %v5318
  %5424 = vmatpush1.msra.mxu0 %v5317
  %5425 = vmatprep.subr.mxu0 %v5316
  %5426 = vmatpush1.msra.mxu0 %v5315
  %5427 = vmatprep.subr.mxu0 %v5314
  %5428 = vmatpush1.msra.mxu0 %v5313
  %5429 = vmatprep.subr.mxu0 %v5312
  %5430 = vmatpush1.msra.mxu0 %v5311
  %5431 = vmatprep.subr.mxu0 %v5310
  %5432 = vmatpush1.msra.mxu0 %v5309
  %5433 = vmatprep.subr.mxu0 %v5308
  %5434 = vmatpush1.msra.mxu0 %v5307
  %5435 = vmatprep.subr.mxu0 %v5306
  %5436 = vmatpush1.msra.mxu0 %v5305
  %5437 = vmatprep.subr.mxu0 %v5304
  %5438 = vmatpush1.msra.mxu0 %v5303
  %5439 = vmatprep.subr.mxu0 0.0
  %5440 = vmatpush2.msra.mxu0 0.0
  %5441 = vmatprep.subr.mxu0 0.0
  %5442 = vmatpush2.msra.mxu0 0.0
  %5443 = vmatprep.subr.mxu0 0.0
  %5444 = vmatpush2.msra.mxu0 0.0
  %5445 = vmatprep.subr.mxu0 0.0
  %5446 = vmatpush2.msra.mxu0 0.0
  %5447 = vmatprep.subr.mxu0 0.0
  %5448 = vmatpush2.msra.mxu0 0.0
  %5449 = vmatprep.subr.mxu0 0.0
  %5450 = vmatpush2.msra.mxu0 0.0
  %5451 = vmatprep.subr.mxu0 0.0
  %5452 = vmatpush2.msra.mxu0 0.0
  %5453 = vmatprep.subr.mxu0 0.0
  %5454 = vmatpush2.msra.mxu0 0.0
  %5455 = vmatprep.subr.mxu0 0.0
  %5456 = vmatpush2.msra.mxu0 0.0
  %5457 = vmatprep.subr.mxu0 0.0
  %5458 = vmatpush2.msra.mxu0 0.0
  %5459 = vmatprep.subr.mxu0 0.0
  %5460 = vmatpush2.msra.mxu0 0.0
  %5461 = vmatprep.subr.mxu0 0.0
  %5462 = vmatpush2.msra.mxu0 0.0
  %5463 = vmatprep.subr.mxu0 0.0
  %5464 = vmatpush2.msra.mxu0 0.0
  %5465 = vmatprep.subr.mxu0 0.0
  %5466 = vmatpush2.msra.mxu0 0.0
  %5467 = vmatprep.subr.mxu0 0.0
  %5468 = vmatpush2.msra.mxu0 0.0
  %5469 = vmatprep.subr.mxu0 0.0
  %5470 = vmatpush2.msra.mxu0 0.0
  %5471 = vmatprep.mubr.f32.mxu0 0.0
  %5472 = vmatmul.mubr.f32.gmra.mxu0 %v5351
  %v5473 = vpop.f32.mrf.mxu0
  %v5474 = vadd.f32 0.0, %v5473
  %v5475 = vpop.f32.mrf.mxu0
  %v5476 = vadd.f32 0.0, %v5475
  %5477 = vmatprep.mubr.f32.mxu0 0.0
  %5478 = vmatmul.mubr.f32.gmra.mxu0 %v5368
  %v5479 = vpop.f32.mrf.mxu0
  %v5480 = vadd.f32 0.0, %v5479
  %v5481 = vpop.f32.mrf.mxu0
  %v5482 = vadd.f32 0.0, %v5481
  %5483 = vmatprep.mubr.f32.mxu0 0.0
  %5484 = vmatmul.mubr.f32.gmra.mxu0 %v5385
  %v5485 = vpop.f32.mrf.mxu0
  %v5486 = vadd.f32 0.0, %v5485
  %v5487 = vpop.f32.mrf.mxu0
  %v5488 = vadd.f32 0.0, %v5487
  %5489 = vmatprep.mubr.f32.mxu0 0.0
  %5490 = vmatmul.mubr.f32.gmra.mxu0 %v5402
  %v5491 = vpop.f32.mrf.mxu0
  %v5492 = vadd.f32 0.0, %v5491
  %v5493 = vpop.f32.mrf.mxu0
  %v5494 = vadd.f32 0.0, %v5493
  %5495 = vdwg.mxu0
  %v5496 = vadd.f32 %v5294, %v5474
  %v5497 = vadd.f32 %v5295, %v5476
  %v5498 = vadd.f32 %v5296, %v5480
  %v5499 = vadd.f32 %v5297, %v5482
  %v5500 = vadd.f32 %v5298, %v5486
  %v5501 = vadd.f32 %v5299, %v5488
  %v5502 = vadd.f32 %v5300, %v5492
  %v5503 = vadd.f32 %v5301, %v5494
  %s5504 = scalar_lea.vmem %s3, 1024
  %v5505 = vld [vmem:[%s5504] sm:$0xff]
  %v5506 = vld [vmem:[%s5504 + $0x8] sm:$0xff]
  %v5507 = vld [vmem:[%s5504 + $0x10] sm:$0xff]
  %v5508 = vld [vmem:[%s5504 + $0x18] sm:$0xff]
  %v5509 = vld [vmem:[%s5504 + $0x20] sm:$0xff]
  %v5510 = vld [vmem:[%s5504 + $0x28] sm:$0xff]
  %v5511 = vld [vmem:[%s5504 + $0x30] sm:$0xff]
  %v5512 = vld [vmem:[%s5504 + $0x38] sm:$0xff]
  %v5513 = vld [vmem:[%s5504 + $0x40] sm:$0xff]
  %v5514 = vld [vmem:[%s5504 + $0x48] sm:$0xff]
  %v5515 = vld [vmem:[%s5504 + $0x50] sm:$0xff]
  %v5516 = vld [vmem:[%s5504 + $0x58] sm:$0xff]
  %v5517 = vld [vmem:[%s5504 + $0x60] sm:$0xff]
  %v5518 = vld [vmem:[%s5504 + $0x68] sm:$0xff]
  %v5519 = vld [vmem:[%s5504 + $0x70] sm:$0xff]
  %v5520 = vld [vmem:[%s5504 + $0x78] sm:$0xff]
  %v5521 = vld [vmem:[%s5504 + $0x80] sm:$0xff]
  %v5522 = vld [vmem:[%s5504 + $0x88] sm:$0xff]
  %v5523 = vld [vmem:[%s5504 + $0x90] sm:$0xff]
  %v5524 = vld [vmem:[%s5504 + $0x98] sm:$0xff]
  %v5525 = vld [vmem:[%s5504 + $0xa0] sm:$0xff]
  %v5526 = vld [vmem:[%s5504 + $0xa8] sm:$0xff]
  %v5527 = vld [vmem:[%s5504 + $0xb0] sm:$0xff]
  %v5528 = vld [vmem:[%s5504 + $0xb8] sm:$0xff]
  %v5529 = vld [vmem:[%s5504 + $0xc0] sm:$0xff]
  %v5530 = vld [vmem:[%s5504 + $0xc8] sm:$0xff]
  %v5531 = vld [vmem:[%s5504 + $0xd0] sm:$0xff]
  %v5532 = vld [vmem:[%s5504 + $0xd8] sm:$0xff]
  %v5533 = vld [vmem:[%s5504 + $0xe0] sm:$0xff]
  %v5534 = vld [vmem:[%s5504 + $0xe8] sm:$0xff]
  %v5535 = vld [vmem:[%s5504 + $0xf0] sm:$0xff]
  %v5536 = vld [vmem:[%s5504 + $0xf8] sm:$0xff]
  %v5537 = vcombine.low %v3059, %v3058
  %v5538 = vcombine.low %v3068, %v3076
  %v5540 = vunpack.c.l.s4 1983009808
  %v5541 = vunpack.c.0.s8 %v5540
  %v5542 = vlaneseq
  %v5543 = vshrl.u32 %v5542, 7
  %v5544 = vsub.s32 %v5541, %v5543
  %v5545 = vrot.slane %v5537, %v5544
  %v5547 = vunpack.c.l.s4 1983009808
  %v5548 = vunpack.c.0.s8 %v5547
  %v5549 = vlaneseq
  %v5550 = vshrl.u32 %v5549, 7
  %v5551 = vsub.s32 %v5548, %v5550
  %v5552 = vrot.slane %v5538, %v5551
  %v5553 = vcombine.low %v5545, %v5552
  %v5554 = vcombine.low %v3077, %v3085
  %v5555 = vcombine.low %v3092, %v3094
  %v5557 = vunpack.c.l.s4 1983009808
  %v5558 = vunpack.c.0.s8 %v5557
  %v5559 = vlaneseq
  %v5560 = vshrl.u32 %v5559, 7
  %v5561 = vsub.s32 %v5558, %v5560
  %v5562 = vrot.slane %v5554, %v5561
  %v5564 = vunpack.c.l.s4 1983009808
  %v5565 = vunpack.c.0.s8 %v5564
  %v5566 = vlaneseq
  %v5567 = vshrl.u32 %v5566, 7
  %v5568 = vsub.s32 %v5565, %v5567
  %v5569 = vrot.slane %v5555, %v5568
  %v5570 = vcombine.low %v5562, %v5569
  %v5571 = vcombine.low %v3110, %v3109
  %v5572 = vcombine.low %v3119, %v3127
  %v5574 = vunpack.c.l.s4 1983009808
  %v5575 = vunpack.c.0.s8 %v5574
  %v5576 = vlaneseq
  %v5577 = vshrl.u32 %v5576, 7
  %v5578 = vsub.s32 %v5575, %v5577
  %v5579 = vrot.slane %v5571, %v5578
  %v5581 = vunpack.c.l.s4 1983009808
  %v5582 = vunpack.c.0.s8 %v5581
  %v5583 = vlaneseq
  %v5584 = vshrl.u32 %v5583, 7
  %v5585 = vsub.s32 %v5582, %v5584
  %v5586 = vrot.slane %v5572, %v5585
  %v5587 = vcombine.low %v5579, %v5586
  %v5588 = vcombine.low %v3128, %v3136
  %v5589 = vcombine.low %v3143, %v3145
  %v5591 = vunpack.c.l.s4 1983009808
  %v5592 = vunpack.c.0.s8 %v5591
  %v5593 = vlaneseq
  %v5594 = vshrl.u32 %v5593, 7
  %v5595 = vsub.s32 %v5592, %v5594
  %v5596 = vrot.slane %v5588, %v5595
  %v5598 = vunpack.c.l.s4 1983009808
  %v5599 = vunpack.c.0.s8 %v5598
  %v5600 = vlaneseq
  %v5601 = vshrl.u32 %v5600, 7
  %v5602 = vsub.s32 %v5599, %v5601
  %v5603 = vrot.slane %v5589, %v5602
  %v5604 = vcombine.low %v5596, %v5603
  %5609 = vmatprep.subr.mxu0 %v5536
  %5610 = vmatpush1.msra.mxu0 %v5535
  %5611 = vmatprep.subr.mxu0 %v5534
  %5612 = vmatpush1.msra.mxu0 %v5533
  %5613 = vmatprep.subr.mxu0 %v5532
  %5614 = vmatpush1.msra.mxu0 %v5531
  %5615 = vmatprep.subr.mxu0 %v5530
  %5616 = vmatpush1.msra.mxu0 %v5529
  %5617 = vmatprep.subr.mxu0 %v5528
  %5618 = vmatpush1.msra.mxu0 %v5527
  %5619 = vmatprep.subr.mxu0 %v5526
  %5620 = vmatpush1.msra.mxu0 %v5525
  %5621 = vmatprep.subr.mxu0 %v5524
  %5622 = vmatpush1.msra.mxu0 %v5523
  %5623 = vmatprep.subr.mxu0 %v5522
  %5624 = vmatpush1.msra.mxu0 %v5521
  %5625 = vmatprep.subr.mxu0 %v5520
  %5626 = vmatpush1.msra.mxu0 %v5519
  %5627 = vmatprep.subr.mxu0 %v5518
  %5628 = vmatpush1.msra.mxu0 %v5517
  %5629 = vmatprep.subr.mxu0 %v5516
  %5630 = vmatpush1.msra.mxu0 %v5515
  %5631 = vmatprep.subr.mxu0 %v5514
  %5632 = vmatpush1.msra.mxu0 %v5513
  %5633 = vmatprep.subr.mxu0 %v5512
  %5634 = vmatpush1.msra.mxu0 %v5511
  %5635 = vmatprep.subr.mxu0 %v5510
  %5636 = vmatpush1.msra.mxu0 %v5509
  %5637 = vmatprep.subr.mxu0 %v5508
  %5638 = vmatpush1.msra.mxu0 %v5507
  %5639 = vmatprep.subr.mxu0 %v5506
  %5640 = vmatpush1.msra.mxu0 %v5505
  %5641 = vmatprep.subr.mxu0 0.0
  %5642 = vmatpush2.msra.mxu0 0.0
  %5643 = vmatprep.subr.mxu0 0.0
  %5644 = vmatpush2.msra.mxu0 0.0
  %5645 = vmatprep.subr.mxu0 0.0
  %5646 = vmatpush2.msra.mxu0 0.0
  %5647 = vmatprep.subr.mxu0 0.0
  %5648 = vmatpush2.msra.mxu0 0.0
  %5649 = vmatprep.subr.mxu0 0.0
  %5650 = vmatpush2.msra.mxu0 0.0
  %5651 = vmatprep.subr.mxu0 0.0
  %5652 = vmatpush2.msra.mxu0 0.0
  %5653 = vmatprep.subr.mxu0 0.0
  %5654 = vmatpush2.msra.mxu0 0.0
  %5655 = vmatprep.subr.mxu0 0.0
  %5656 = vmatpush2.msra.mxu0 0.0
  %5657 = vmatprep.subr.mxu0 0.0
  %5658 = vmatpush2.msra.mxu0 0.0
  %5659 = vmatprep.subr.mxu0 0.0
  %5660 = vmatpush2.msra.mxu0 0.0
  %5661 = vmatprep.subr.mxu0 0.0
  %5662 = vmatpush2.msra.mxu0 0.0
  %5663 = vmatprep.subr.mxu0 0.0
  %5664 = vmatpush2.msra.mxu0 0.0
  %5665 = vmatprep.subr.mxu0 0.0
  %5666 = vmatpush2.msra.mxu0 0.0
  %5667 = vmatprep.subr.mxu0 0.0
  %5668 = vmatpush2.msra.mxu0 0.0
  %5669 = vmatprep.subr.mxu0 0.0
  %5670 = vmatpush2.msra.mxu0 0.0
  %5671 = vmatprep.subr.mxu0 0.0
  %5672 = vmatpush2.msra.mxu0 0.0
  %5673 = vmatprep.mubr.f32.mxu0 0.0
  %5674 = vmatmul.mubr.f32.gmra.mxu0 %v5553
  %v5675 = vpop.f32.mrf.mxu0
  %v5676 = vadd.f32 0.0, %v5675
  %v5677 = vpop.f32.mrf.mxu0
  %v5678 = vadd.f32 0.0, %v5677
  %5679 = vmatprep.mubr.f32.mxu0 0.0
  %5680 = vmatmul.mubr.f32.gmra.mxu0 %v5570
  %v5681 = vpop.f32.mrf.mxu0
  %v5682 = vadd.f32 0.0, %v5681
  %v5683 = vpop.f32.mrf.mxu0
  %v5684 = vadd.f32 0.0, %v5683
  %5685 = vmatprep.mubr.f32.mxu0 0.0
  %5686 = vmatmul.mubr.f32.gmra.mxu0 %v5587
  %v5687 = vpop.f32.mrf.mxu0
  %v5688 = vadd.f32 0.0, %v5687
  %v5689 = vpop.f32.mrf.mxu0
  %v5690 = vadd.f32 0.0, %v5689
  %5691 = vmatprep.mubr.f32.mxu0 0.0
  %5692 = vmatmul.mubr.f32.gmra.mxu0 %v5604
  %v5693 = vpop.f32.mrf.mxu0
  %v5694 = vadd.f32 0.0, %v5693
  %v5695 = vpop.f32.mrf.mxu0
  %v5696 = vadd.f32 0.0, %v5695
  %5697 = vdwg.mxu0
  %v5698 = vadd.f32 %v5496, %v5676
  %v5699 = vadd.f32 %v5497, %v5678
  %v5700 = vadd.f32 %v5498, %v5682
  %v5701 = vadd.f32 %v5499, %v5684
  %v5702 = vadd.f32 %v5500, %v5688
  %v5703 = vadd.f32 %v5501, %v5690
  %v5704 = vadd.f32 %v5502, %v5694
  %v5705 = vadd.f32 %v5503, %v5696
  %v5706 = vmax.f32 %v5698, %v5699
  %v5707 = vmax.f32 %v5700, %v5701
  %v5708 = vmax.f32 %v5702, %v5703
  %v5709 = vmax.f32 %v5704, %v5705
  %5710 = vmatprep.subr.mxu0 %v4777
  %5711 = vmatpush1.msra.mxu0 %v4776
  %5712 = vmatprep.subr.mxu0 %v4775
  %5713 = vmatpush1.msra.mxu0 %v4774
  %5714 = vmatprep.subr.mxu0 %v4773
  %5715 = vmatpush1.msra.mxu0 %v4772
  %5716 = vmatprep.subr.mxu0 %v4771
  %5717 = vmatpush1.msra.mxu0 %v4770
  %5718 = vmatprep.subr.mxu0 %v4769
  %5719 = vmatpush1.msra.mxu0 %v4768
  %5720 = vmatprep.subr.mxu0 %v4767
  %5721 = vmatpush1.msra.mxu0 %v4766
  %5722 = vmatprep.subr.mxu0 %v4765
  %5723 = vmatpush1.msra.mxu0 %v4764
  %5724 = vmatprep.subr.mxu0 %v4763
  %5725 = vmatpush1.msra.mxu0 %v4762
  %5726 = vmatprep.subr.mxu0 %v4761
  %5727 = vmatpush1.msra.mxu0 %v4760
  %5728 = vmatprep.subr.mxu0 %v4759
  %5729 = vmatpush1.msra.mxu0 %v4758
  %5730 = vmatprep.subr.mxu0 %v4757
  %5731 = vmatpush1.msra.mxu0 %v4756
  %5732 = vmatprep.subr.mxu0 %v4755
  %5733 = vmatpush1.msra.mxu0 %v4754
  %5734 = vmatprep.subr.mxu0 %v4753
  %5735 = vmatpush1.msra.mxu0 %v4752
  %5736 = vmatprep.subr.mxu0 %v4751
  %5737 = vmatpush1.msra.mxu0 %v4750
  %5738 = vmatprep.subr.mxu0 %v4749
  %5739 = vmatpush1.msra.mxu0 %v4748
  %5740 = vmatprep.subr.mxu0 %v4747
  %5741 = vmatpush1.msra.mxu0 %v4746
  %5742 = vmatprep.subr.mxu0 0.0
  %5743 = vmatpush2.msra.mxu0 0.0
  %5744 = vmatprep.subr.mxu0 0.0
  %5745 = vmatpush2.msra.mxu0 0.0
  %5746 = vmatprep.subr.mxu0 0.0
  %5747 = vmatpush2.msra.mxu0 0.0
  %5748 = vmatprep.subr.mxu0 0.0
  %5749 = vmatpush2.msra.mxu0 0.0
  %5750 = vmatprep.subr.mxu0 0.0
  %5751 = vmatpush2.msra.mxu0 0.0
  %5752 = vmatprep.subr.mxu0 0.0
  %5753 = vmatpush2.msra.mxu0 0.0
  %5754 = vmatprep.subr.mxu0 0.0
  %5755 = vmatpush2.msra.mxu0 0.0
  %5756 = vmatprep.subr.mxu0 0.0
  %5757 = vmatpush2.msra.mxu0 0.0
  %5758 = vmatprep.subr.mxu0 0.0
  %5759 = vmatpush2.msra.mxu0 0.0
  %5760 = vmatprep.subr.mxu0 0.0
  %5761 = vmatpush2.msra.mxu0 0.0
  %5762 = vmatprep.subr.mxu0 0.0
  %5763 = vmatpush2.msra.mxu0 0.0
  %5764 = vmatprep.subr.mxu0 0.0
  %5765 = vmatpush2.msra.mxu0 0.0
  %5766 = vmatprep.subr.mxu0 0.0
  %5767 = vmatpush2.msra.mxu0 0.0
  %5768 = vmatprep.subr.mxu0 0.0
  %5769 = vmatpush2.msra.mxu0 0.0
  %5770 = vmatprep.subr.mxu0 0.0
  %5771 = vmatpush2.msra.mxu0 0.0
  %5772 = vmatprep.subr.mxu0 0.0
  %5773 = vmatpush2.msra.mxu0 0.0
  %5774 = vmatprep.mubr.f32.mxu0 0.0
  %5775 = vmatmul.mubr.f32.gmra.mxu0 %v5149
  %v5776 = vpop.f32.mrf.mxu0
  %v5777 = vadd.f32 0.0, %v5776
  %v5778 = vpop.f32.mrf.mxu0
  %v5779 = vadd.f32 0.0, %v5778
  %5780 = vmatprep.mubr.f32.mxu0 0.0
  %5781 = vmatmul.mubr.f32.gmra.mxu0 %v5166
  %v5782 = vpop.f32.mrf.mxu0
  %v5783 = vadd.f32 0.0, %v5782
  %v5784 = vpop.f32.mrf.mxu0
  %v5785 = vadd.f32 0.0, %v5784
  %5786 = vmatprep.mubr.f32.mxu0 0.0
  %5787 = vmatmul.mubr.f32.gmra.mxu0 %v5183
  %v5788 = vpop.f32.mrf.mxu0
  %v5789 = vadd.f32 0.0, %v5788
  %v5790 = vpop.f32.mrf.mxu0
  %v5791 = vadd.f32 0.0, %v5790
  %5792 = vmatprep.mubr.f32.mxu0 0.0
  %5793 = vmatmul.mubr.f32.gmra.mxu0 %v5200
  %v5794 = vpop.f32.mrf.mxu0
  %v5795 = vadd.f32 0.0, %v5794
  %v5796 = vpop.f32.mrf.mxu0
  %v5797 = vadd.f32 0.0, %v5796
  %5798 = vdwg.mxu0
  %5799 = vmatprep.subr.mxu0 %v4744
  %5800 = vmatpush1.msra.mxu0 %v4743
  %5801 = vmatprep.subr.mxu0 %v4742
  %5802 = vmatpush1.msra.mxu0 %v4741
  %5803 = vmatprep.subr.mxu0 %v4740
  %5804 = vmatpush1.msra.mxu0 %v4739
  %5805 = vmatprep.subr.mxu0 %v4738
  %5806 = vmatpush1.msra.mxu0 %v4737
  %5807 = vmatprep.subr.mxu0 %v4736
  %5808 = vmatpush1.msra.mxu0 %v4735
  %5809 = vmatprep.subr.mxu0 %v4734
  %5810 = vmatpush1.msra.mxu0 %v4733
  %5811 = vmatprep.subr.mxu0 %v4732
  %5812 = vmatpush1.msra.mxu0 %v4731
  %5813 = vmatprep.subr.mxu0 %v4730
  %5814 = vmatpush1.msra.mxu0 %v4729
  %5815 = vmatprep.subr.mxu0 %v4728
  %5816 = vmatpush1.msra.mxu0 %v4727
  %5817 = vmatprep.subr.mxu0 %v4726
  %5818 = vmatpush1.msra.mxu0 %v4725
  %5819 = vmatprep.subr.mxu0 %v4724
  %5820 = vmatpush1.msra.mxu0 %v4723
  %5821 = vmatprep.subr.mxu0 %v4722
  %5822 = vmatpush1.msra.mxu0 %v4721
  %5823 = vmatprep.subr.mxu0 %v4720
  %5824 = vmatpush1.msra.mxu0 %v4719
  %5825 = vmatprep.subr.mxu0 %v4718
  %5826 = vmatpush1.msra.mxu0 %v4717
  %5827 = vmatprep.subr.mxu0 %v4716
  %5828 = vmatpush1.msra.mxu0 %v4715
  %5829 = vmatprep.subr.mxu0 %v4714
  %5830 = vmatpush1.msra.mxu0 %v4713
  %5831 = vmatprep.subr.mxu0 0.0
  %5832 = vmatpush2.msra.mxu0 0.0
  %5833 = vmatprep.subr.mxu0 0.0
  %5834 = vmatpush2.msra.mxu0 0.0
  %5835 = vmatprep.subr.mxu0 0.0
  %5836 = vmatpush2.msra.mxu0 0.0
  %5837 = vmatprep.subr.mxu0 0.0
  %5838 = vmatpush2.msra.mxu0 0.0
  %5839 = vmatprep.subr.mxu0 0.0
  %5840 = vmatpush2.msra.mxu0 0.0
  %5841 = vmatprep.subr.mxu0 0.0
  %5842 = vmatpush2.msra.mxu0 0.0
  %5843 = vmatprep.subr.mxu0 0.0
  %5844 = vmatpush2.msra.mxu0 0.0
  %5845 = vmatprep.subr.mxu0 0.0
  %5846 = vmatpush2.msra.mxu0 0.0
  %5847 = vmatprep.subr.mxu0 0.0
  %5848 = vmatpush2.msra.mxu0 0.0
  %5849 = vmatprep.subr.mxu0 0.0
  %5850 = vmatpush2.msra.mxu0 0.0
  %5851 = vmatprep.subr.mxu0 0.0
  %5852 = vmatpush2.msra.mxu0 0.0
  %5853 = vmatprep.subr.mxu0 0.0
  %5854 = vmatpush2.msra.mxu0 0.0
  %5855 = vmatprep.subr.mxu0 0.0
  %5856 = vmatpush2.msra.mxu0 0.0
  %5857 = vmatprep.subr.mxu0 0.0
  %5858 = vmatpush2.msra.mxu0 0.0
  %5859 = vmatprep.subr.mxu0 0.0
  %5860 = vmatpush2.msra.mxu0 0.0
  %5861 = vmatprep.subr.mxu0 0.0
  %5862 = vmatpush2.msra.mxu0 0.0
  %5863 = vmatprep.mubr.f32.mxu0 0.0
  %5864 = vmatmul.mubr.f32.gmra.mxu0 %v4794
  %v5865 = vpop.f32.mrf.mxu0
  %v5866 = vadd.f32 %v5777, %v5865
  %v5867 = vpop.f32.mrf.mxu0
  %v5868 = vadd.f32 %v5779, %v5867
  %5869 = vmatprep.mubr.f32.mxu0 0.0
  %5870 = vmatmul.mubr.f32.gmra.mxu0 %v4811
  %v5871 = vpop.f32.mrf.mxu0
  %v5872 = vadd.f32 %v5783, %v5871
  %v5873 = vpop.f32.mrf.mxu0
  %v5874 = vadd.f32 %v5785, %v5873
  %5875 = vmatprep.mubr.f32.mxu0 0.0
  %5876 = vmatmul.mubr.f32.gmra.mxu0 %v4828
  %v5877 = vpop.f32.mrf.mxu0
  %v5878 = vadd.f32 %v5789, %v5877
  %v5879 = vpop.f32.mrf.mxu0
  %v5880 = vadd.f32 %v5791, %v5879
  %5881 = vmatprep.mubr.f32.mxu0 0.0
  %5882 = vmatmul.mubr.f32.gmra.mxu0 %v4845
  %v5883 = vpop.f32.mrf.mxu0
  %v5884 = vadd.f32 %v5795, %v5883
  %v5885 = vpop.f32.mrf.mxu0
  %v5886 = vadd.f32 %v5797, %v5885
  %5887 = vdwg.mxu0
  %5888 = vmatprep.subr.mxu0 %v5132
  %5889 = vmatpush1.msra.mxu0 %v5131
  %5890 = vmatprep.subr.mxu0 %v5130
  %5891 = vmatpush1.msra.mxu0 %v5129
  %5892 = vmatprep.subr.mxu0 %v5128
  %5893 = vmatpush1.msra.mxu0 %v5127
  %5894 = vmatprep.subr.mxu0 %v5126
  %5895 = vmatpush1.msra.mxu0 %v5125
  %5896 = vmatprep.subr.mxu0 %v5124
  %5897 = vmatpush1.msra.mxu0 %v5123
  %5898 = vmatprep.subr.mxu0 %v5122
  %5899 = vmatpush1.msra.mxu0 %v5121
  %5900 = vmatprep.subr.mxu0 %v5120
  %5901 = vmatpush1.msra.mxu0 %v5119
  %5902 = vmatprep.subr.mxu0 %v5118
  %5903 = vmatpush1.msra.mxu0 %v5117
  %5904 = vmatprep.subr.mxu0 %v5116
  %5905 = vmatpush1.msra.mxu0 %v5115
  %5906 = vmatprep.subr.mxu0 %v5114
  %5907 = vmatpush1.msra.mxu0 %v5113
  %5908 = vmatprep.subr.mxu0 %v5112
  %5909 = vmatpush1.msra.mxu0 %v5111
  %5910 = vmatprep.subr.mxu0 %v5110
  %5911 = vmatpush1.msra.mxu0 %v5109
  %5912 = vmatprep.subr.mxu0 %v5108
  %5913 = vmatpush1.msra.mxu0 %v5107
  %5914 = vmatprep.subr.mxu0 %v5106
  %5915 = vmatpush1.msra.mxu0 %v5105
  %5916 = vmatprep.subr.mxu0 %v5104
  %5917 = vmatpush1.msra.mxu0 %v5103
  %5918 = vmatprep.subr.mxu0 %v5102
  %5919 = vmatpush1.msra.mxu0 %v5101
  %5920 = vmatprep.subr.mxu0 0.0
  %5921 = vmatpush2.msra.mxu0 0.0
  %5922 = vmatprep.subr.mxu0 0.0
  %5923 = vmatpush2.msra.mxu0 0.0
  %5924 = vmatprep.subr.mxu0 0.0
  %5925 = vmatpush2.msra.mxu0 0.0
  %5926 = vmatprep.subr.mxu0 0.0
  %5927 = vmatpush2.msra.mxu0 0.0
  %5928 = vmatprep.subr.mxu0 0.0
  %5929 = vmatpush2.msra.mxu0 0.0
  %5930 = vmatprep.subr.mxu0 0.0
  %5931 = vmatpush2.msra.mxu0 0.0
  %5932 = vmatprep.subr.mxu0 0.0
  %5933 = vmatpush2.msra.mxu0 0.0
  %5934 = vmatprep.subr.mxu0 0.0
  %5935 = vmatpush2.msra.mxu0 0.0
  %5936 = vmatprep.subr.mxu0 0.0
  %5937 = vmatpush2.msra.mxu0 0.0
  %5938 = vmatprep.subr.mxu0 0.0
  %5939 = vmatpush2.msra.mxu0 0.0
  %5940 = vmatprep.subr.mxu0 0.0
  %5941 = vmatpush2.msra.mxu0 0.0
  %5942 = vmatprep.subr.mxu0 0.0
  %5943 = vmatpush2.msra.mxu0 0.0
  %5944 = vmatprep.subr.mxu0 0.0
  %5945 = vmatpush2.msra.mxu0 0.0
  %5946 = vmatprep.subr.mxu0 0.0
  %5947 = vmatpush2.msra.mxu0 0.0
  %5948 = vmatprep.subr.mxu0 0.0
  %5949 = vmatpush2.msra.mxu0 0.0
  %5950 = vmatprep.subr.mxu0 0.0
  %5951 = vmatpush2.msra.mxu0 0.0
  %5952 = vmatprep.mubr.f32.mxu0 0.0
  %5953 = vmatmul.mubr.f32.gmra.mxu0 %v5351
  %v5954 = vpop.f32.mrf.mxu0
  %v5955 = vadd.f32 0.0, %v5954
  %v5956 = vpop.f32.mrf.mxu0
  %v5957 = vadd.f32 0.0, %v5956
  %5958 = vmatprep.mubr.f32.mxu0 0.0
  %5959 = vmatmul.mubr.f32.gmra.mxu0 %v5368
  %v5960 = vpop.f32.mrf.mxu0
  %v5961 = vadd.f32 0.0, %v5960
  %v5962 = vpop.f32.mrf.mxu0
  %v5963 = vadd.f32 0.0, %v5962
  %5964 = vmatprep.mubr.f32.mxu0 0.0
  %5965 = vmatmul.mubr.f32.gmra.mxu0 %v5385
  %v5966 = vpop.f32.mrf.mxu0
  %v5967 = vadd.f32 0.0, %v5966
  %v5968 = vpop.f32.mrf.mxu0
  %v5969 = vadd.f32 0.0, %v5968
  %5970 = vmatprep.mubr.f32.mxu0 0.0
  %5971 = vmatmul.mubr.f32.gmra.mxu0 %v5402
  %v5972 = vpop.f32.mrf.mxu0
  %v5973 = vadd.f32 0.0, %v5972
  %v5974 = vpop.f32.mrf.mxu0
  %v5975 = vadd.f32 0.0, %v5974
  %5976 = vdwg.mxu0
  %v5977 = vadd.f32 %v5866, %v5955
  %v5978 = vadd.f32 %v5868, %v5957
  %v5979 = vadd.f32 %v5872, %v5961
  %v5980 = vadd.f32 %v5874, %v5963
  %v5981 = vadd.f32 %v5878, %v5967
  %v5982 = vadd.f32 %v5880, %v5969
  %v5983 = vadd.f32 %v5884, %v5973
  %v5984 = vadd.f32 %v5886, %v5975
  %5985 = vmatprep.subr.mxu0 %v5334
  %5986 = vmatpush1.msra.mxu0 %v5333
  %5987 = vmatprep.subr.mxu0 %v5332
  %5988 = vmatpush1.msra.mxu0 %v5331
  %5989 = vmatprep.subr.mxu0 %v5330
  %5990 = vmatpush1.msra.mxu0 %v5329
  %5991 = vmatprep.subr.mxu0 %v5328
  %5992 = vmatpush1.msra.mxu0 %v5327
  %5993 = vmatprep.subr.mxu0 %v5326
  %5994 = vmatpush1.msra.mxu0 %v5325
  %5995 = vmatprep.subr.mxu0 %v5324
  %5996 = vmatpush1.msra.mxu0 %v5323
  %5997 = vmatprep.subr.mxu0 %v5322
  %5998 = vmatpush1.msra.mxu0 %v5321
  %5999 = vmatprep.subr.mxu0 %v5320
  %6000 = vmatpush1.msra.mxu0 %v5319
  %6001 = vmatprep.subr.mxu0 %v5318
  %6002 = vmatpush1.msra.mxu0 %v5317
  %6003 = vmatprep.subr.mxu0 %v5316
  %6004 = vmatpush1.msra.mxu0 %v5315
  %6005 = vmatprep.subr.mxu0 %v5314
  %6006 = vmatpush1.msra.mxu0 %v5313
  %6007 = vmatprep.subr.mxu0 %v5312
  %6008 = vmatpush1.msra.mxu0 %v5311
  %6009 = vmatprep.subr.mxu0 %v5310
  %6010 = vmatpush1.msra.mxu0 %v5309
  %6011 = vmatprep.subr.mxu0 %v5308
  %6012 = vmatpush1.msra.mxu0 %v5307
  %6013 = vmatprep.subr.mxu0 %v5306
  %6014 = vmatpush1.msra.mxu0 %v5305
  %6015 = vmatprep.subr.mxu0 %v5304
  %6016 = vmatpush1.msra.mxu0 %v5303
  %6017 = vmatprep.subr.mxu0 0.0
  %6018 = vmatpush2.msra.mxu0 0.0
  %6019 = vmatprep.subr.mxu0 0.0
  %6020 = vmatpush2.msra.mxu0 0.0
  %6021 = vmatprep.subr.mxu0 0.0
  %6022 = vmatpush2.msra.mxu0 0.0
  %6023 = vmatprep.subr.mxu0 0.0
  %6024 = vmatpush2.msra.mxu0 0.0
  %6025 = vmatprep.subr.mxu0 0.0
  %6026 = vmatpush2.msra.mxu0 0.0
  %6027 = vmatprep.subr.mxu0 0.0
  %6028 = vmatpush2.msra.mxu0 0.0
  %6029 = vmatprep.subr.mxu0 0.0
  %6030 = vmatpush2.msra.mxu0 0.0
  %6031 = vmatprep.subr.mxu0 0.0
  %6032 = vmatpush2.msra.mxu0 0.0
  %6033 = vmatprep.subr.mxu0 0.0
  %6034 = vmatpush2.msra.mxu0 0.0
  %6035 = vmatprep.subr.mxu0 0.0
  %6036 = vmatpush2.msra.mxu0 0.0
  %6037 = vmatprep.subr.mxu0 0.0
  %6038 = vmatpush2.msra.mxu0 0.0
  %6039 = vmatprep.subr.mxu0 0.0
  %6040 = vmatpush2.msra.mxu0 0.0
  %6041 = vmatprep.subr.mxu0 0.0
  %6042 = vmatpush2.msra.mxu0 0.0
  %6043 = vmatprep.subr.mxu0 0.0
  %6044 = vmatpush2.msra.mxu0 0.0
  %6045 = vmatprep.subr.mxu0 0.0
  %6046 = vmatpush2.msra.mxu0 0.0
  %6047 = vmatprep.subr.mxu0 0.0
  %6048 = vmatpush2.msra.mxu0 0.0
  %6049 = vmatprep.mubr.f32.mxu0 0.0
  %6050 = vmatmul.mubr.f32.gmra.mxu0 %v5553
  %v6051 = vpop.f32.mrf.mxu0
  %v6052 = vadd.f32 0.0, %v6051
  %v6053 = vpop.f32.mrf.mxu0
  %v6054 = vadd.f32 0.0, %v6053
  %6055 = vmatprep.mubr.f32.mxu0 0.0
  %6056 = vmatmul.mubr.f32.gmra.mxu0 %v5570
  %v6057 = vpop.f32.mrf.mxu0
  %v6058 = vadd.f32 0.0, %v6057
  %v6059 = vpop.f32.mrf.mxu0
  %v6060 = vadd.f32 0.0, %v6059
  %6061 = vmatprep.mubr.f32.mxu0 0.0
  %6062 = vmatmul.mubr.f32.gmra.mxu0 %v5587
  %v6063 = vpop.f32.mrf.mxu0
  %v6064 = vadd.f32 0.0, %v6063
  %v6065 = vpop.f32.mrf.mxu0
  %v6066 = vadd.f32 0.0, %v6065
  %6067 = vmatprep.mubr.f32.mxu0 0.0
  %6068 = vmatmul.mubr.f32.gmra.mxu0 %v5604
  %v6069 = vpop.f32.mrf.mxu0
  %v6070 = vadd.f32 0.0, %v6069
  %v6071 = vpop.f32.mrf.mxu0
  %v6072 = vadd.f32 0.0, %v6071
  %6073 = vdwg.mxu0
  %v6074 = vadd.f32 %v5977, %v6052
  %v6075 = vadd.f32 %v5978, %v6054
  %v6076 = vadd.f32 %v5979, %v6058
  %v6077 = vadd.f32 %v5980, %v6060
  %v6078 = vadd.f32 %v5981, %v6064
  %v6079 = vadd.f32 %v5982, %v6066
  %v6080 = vadd.f32 %v5983, %v6070
  %v6081 = vadd.f32 %v5984, %v6072
  %v6082 = vcombine.low %v4507, %v4506
  %v6083 = vcombine.low %v4516, %v4524
  %v6085 = vunpack.c.l.s4 1983009808
  %v6086 = vunpack.c.0.s8 %v6085
  %v6087 = vlaneseq
  %v6088 = vshrl.u32 %v6087, 7
  %v6089 = vsub.s32 %v6086, %v6088
  %v6090 = vrot.slane %v6082, %v6089
  %v6092 = vunpack.c.l.s4 1983009808
  %v6093 = vunpack.c.0.s8 %v6092
  %v6094 = vlaneseq
  %v6095 = vshrl.u32 %v6094, 7
  %v6096 = vsub.s32 %v6093, %v6095
  %v6097 = vrot.slane %v6083, %v6096
  %v6098 = vcombine.low %v6090, %v6097
  %v6099 = vcombine.low %v4525, %v4533
  %v6100 = vcombine.low %v4540, %v4542
  %v6102 = vunpack.c.l.s4 1983009808
  %v6103 = vunpack.c.0.s8 %v6102
  %v6104 = vlaneseq
  %v6105 = vshrl.u32 %v6104, 7
  %v6106 = vsub.s32 %v6103, %v6105
  %v6107 = vrot.slane %v6099, %v6106
  %v6109 = vunpack.c.l.s4 1983009808
  %v6110 = vunpack.c.0.s8 %v6109
  %v6111 = vlaneseq
  %v6112 = vshrl.u32 %v6111, 7
  %v6113 = vsub.s32 %v6110, %v6112
  %v6114 = vrot.slane %v6100, %v6113
  %v6115 = vcombine.low %v6107, %v6114
  %v6116 = vcombine.low %v4558, %v4557
  %v6117 = vcombine.low %v4567, %v4575
  %v6119 = vunpack.c.l.s4 1983009808
  %v6120 = vunpack.c.0.s8 %v6119
  %v6121 = vlaneseq
  %v6122 = vshrl.u32 %v6121, 7
  %v6123 = vsub.s32 %v6120, %v6122
  %v6124 = vrot.slane %v6116, %v6123
  %v6126 = vunpack.c.l.s4 1983009808
  %v6127 = vunpack.c.0.s8 %v6126
  %v6128 = vlaneseq
  %v6129 = vshrl.u32 %v6128, 7
  %v6130 = vsub.s32 %v6127, %v6129
  %v6131 = vrot.slane %v6117, %v6130
  %v6132 = vcombine.low %v6124, %v6131
  %v6133 = vcombine.low %v4576, %v4584
  %v6134 = vcombine.low %v4591, %v4593
  %v6136 = vunpack.c.l.s4 1983009808
  %v6137 = vunpack.c.0.s8 %v6136
  %v6138 = vlaneseq
  %v6139 = vshrl.u32 %v6138, 7
  %v6140 = vsub.s32 %v6137, %v6139
  %v6141 = vrot.slane %v6133, %v6140
  %v6143 = vunpack.c.l.s4 1983009808
  %v6144 = vunpack.c.0.s8 %v6143
  %v6145 = vlaneseq
  %v6146 = vshrl.u32 %v6145, 7
  %v6147 = vsub.s32 %v6144, %v6146
  %v6148 = vrot.slane %v6134, %v6147
  %v6149 = vcombine.low %v6141, %v6148
  %6154 = vmatprep.subr.mxu0 %v5536
  %6155 = vmatpush1.msra.mxu0 %v5535
  %6156 = vmatprep.subr.mxu0 %v5534
  %6157 = vmatpush1.msra.mxu0 %v5533
  %6158 = vmatprep.subr.mxu0 %v5532
  %6159 = vmatpush1.msra.mxu0 %v5531
  %6160 = vmatprep.subr.mxu0 %v5530
  %6161 = vmatpush1.msra.mxu0 %v5529
  %6162 = vmatprep.subr.mxu0 %v5528
  %6163 = vmatpush1.msra.mxu0 %v5527
  %6164 = vmatprep.subr.mxu0 %v5526
  %6165 = vmatpush1.msra.mxu0 %v5525
  %6166 = vmatprep.subr.mxu0 %v5524
  %6167 = vmatpush1.msra.mxu0 %v5523
  %6168 = vmatprep.subr.mxu0 %v5522
  %6169 = vmatpush1.msra.mxu0 %v5521
  %6170 = vmatprep.subr.mxu0 %v5520
  %6171 = vmatpush1.msra.mxu0 %v5519
  %6172 = vmatprep.subr.mxu0 %v5518
  %6173 = vmatpush1.msra.mxu0 %v5517
  %6174 = vmatprep.subr.mxu0 %v5516
  %6175 = vmatpush1.msra.mxu0 %v5515
  %6176 = vmatprep.subr.mxu0 %v5514
  %6177 = vmatpush1.msra.mxu0 %v5513
  %6178 = vmatprep.subr.mxu0 %v5512
  %6179 = vmatpush1.msra.mxu0 %v5511
  %6180 = vmatprep.subr.mxu0 %v5510
  %6181 = vmatpush1.msra.mxu0 %v5509
  %6182 = vmatprep.subr.mxu0 %v5508
  %6183 = vmatpush1.msra.mxu0 %v5507
  %6184 = vmatprep.subr.mxu0 %v5506
  %6185 = vmatpush1.msra.mxu0 %v5505
  %6186 = vmatprep.subr.mxu0 0.0
  %6187 = vmatpush2.msra.mxu0 0.0
  %6188 = vmatprep.subr.mxu0 0.0
  %6189 = vmatpush2.msra.mxu0 0.0
  %6190 = vmatprep.subr.mxu0 0.0
  %6191 = vmatpush2.msra.mxu0 0.0
  %6192 = vmatprep.subr.mxu0 0.0
  %6193 = vmatpush2.msra.mxu0 0.0
  %6194 = vmatprep.subr.mxu0 0.0
  %6195 = vmatpush2.msra.mxu0 0.0
  %6196 = vmatprep.subr.mxu0 0.0
  %6197 = vmatpush2.msra.mxu0 0.0
  %6198 = vmatprep.subr.mxu0 0.0
  %6199 = vmatpush2.msra.mxu0 0.0
  %6200 = vmatprep.subr.mxu0 0.0
  %6201 = vmatpush2.msra.mxu0 0.0
  %6202 = vmatprep.subr.mxu0 0.0
  %6203 = vmatpush2.msra.mxu0 0.0
  %6204 = vmatprep.subr.mxu0 0.0
  %6205 = vmatpush2.msra.mxu0 0.0
  %6206 = vmatprep.subr.mxu0 0.0
  %6207 = vmatpush2.msra.mxu0 0.0
  %6208 = vmatprep.subr.mxu0 0.0
  %6209 = vmatpush2.msra.mxu0 0.0
  %6210 = vmatprep.subr.mxu0 0.0
  %6211 = vmatpush2.msra.mxu0 0.0
  %6212 = vmatprep.subr.mxu0 0.0
  %6213 = vmatpush2.msra.mxu0 0.0
  %6214 = vmatprep.subr.mxu0 0.0
  %6215 = vmatpush2.msra.mxu0 0.0
  %6216 = vmatprep.subr.mxu0 0.0
  %6217 = vmatpush2.msra.mxu0 0.0
  %6218 = vmatprep.mubr.f32.mxu0 0.0
  %6219 = vmatmul.mubr.f32.gmra.mxu0 %v6098
  %v6220 = vpop.f32.mrf.mxu0
  %v6221 = vadd.f32 0.0, %v6220
  %v6222 = vpop.f32.mrf.mxu0
  %v6223 = vadd.f32 0.0, %v6222
  %6224 = vmatprep.mubr.f32.mxu0 0.0
  %6225 = vmatmul.mubr.f32.gmra.mxu0 %v6115
  %v6226 = vpop.f32.mrf.mxu0
  %v6227 = vadd.f32 0.0, %v6226
  %v6228 = vpop.f32.mrf.mxu0
  %v6229 = vadd.f32 0.0, %v6228
  %6230 = vmatprep.mubr.f32.mxu0 0.0
  %6231 = vmatmul.mubr.f32.gmra.mxu0 %v6132
  %v6232 = vpop.f32.mrf.mxu0
  %v6233 = vadd.f32 0.0, %v6232
  %v6234 = vpop.f32.mrf.mxu0
  %v6235 = vadd.f32 0.0, %v6234
  %6236 = vmatprep.mubr.f32.mxu0 0.0
  %6237 = vmatmul.mubr.f32.gmra.mxu0 %v6149
  %v6238 = vpop.f32.mrf.mxu0
  %v6239 = vadd.f32 0.0, %v6238
  %v6240 = vpop.f32.mrf.mxu0
  %v6241 = vadd.f32 0.0, %v6240
  %6242 = vdwg.mxu0
  %v6243 = vadd.f32 %v6074, %v6221
  %v6244 = vadd.f32 %v6075, %v6223
  %v6245 = vadd.f32 %v6076, %v6227
  %v6246 = vadd.f32 %v6077, %v6229
  %v6247 = vadd.f32 %v6078, %v6233
  %v6248 = vadd.f32 %v6079, %v6235
  %v6249 = vadd.f32 %v6080, %v6239
  %v6250 = vadd.f32 %v6081, %v6241
  %v6251 = vmax.f32 %v6243, %v6244
  %v6252 = vmax.f32 %v6245, %v6246
  %v6253 = vmax.f32 %v6247, %v6248
  %v6254 = vmax.f32 %v6249, %v6250
  %v6255 = vmax.f32 %v5706, %v6251
  %v6256 = vmax.f32 %v5707, %v6252
  %v6257 = vmax.f32 %v5708, %v6253
  %v6258 = vmax.f32 %v5709, %v6254
  %v6260 = vlaneseq
  %v6261 = vshrl.u32 %v6260, 7
  %v6262 = vsub.s32 0, %v6261
  %v6263 = vrot.slane %v35, %v6262
  %v6265 = vadd.f32 %v6255, %v6263
  %v6266 = vadd.f32 %v6256, %v6263
  %v6267 = vadd.f32 %v6257, %v6263
  %v6268 = vadd.f32 %v6258, %v6263
  %v6269 = vmax.f32 %v6265, 0.0
  %v6270 = vmax.f32 %v6266, 0.0
  %v6271 = vmax.f32 %v6267, 0.0
  %v6272 = vmax.f32 %v6268, 0.0
  %6273 = vst [vmem:[%s9] sm:$0xff] %v6269
  %6274 = vst [vmem:[%s9 + $0x8] sm:$0xff] %v6270
  %6275 = vst [vmem:[%s9 + $0x10] sm:$0xff] %v6271
  %6276 = vst [vmem:[%s9 + $0x18] sm:$0xff] %v6272
  %v6281 = vcombine.high %v6269, %v6269
  %v6282 = vcombine.high %v6270, %v6270
  %v6283 = vcombine.high %v6271, %v6271
  %v6284 = vcombine.high %v6272, %v6272
  %v6285 = vld [vmem:[%s6] sm:$0x1]
  %v6286 = vld [vmem:[%s5] sm:$0xff]
  %v6287 = vld [vmem:[%s5 + $0x8] sm:$0xff]
  %v6288 = vld [vmem:[%s5 + $0x10] sm:$0xff]
  %v6289 = vld [vmem:[%s5 + $0x18] sm:$0xff]
  %v6290 = vld [vmem:[%s5 + $0x20] sm:$0xff]
  %v6291 = vld [vmem:[%s5 + $0x28] sm:$0xff]
  %v6292 = vld [vmem:[%s5 + $0x30] sm:$0xff]
  %v6293 = vld [vmem:[%s5 + $0x38] sm:$0xff]
  %v6294 = vld [vmem:[%s5 + $0x40] sm:$0xff]
  %v6295 = vld [vmem:[%s5 + $0x48] sm:$0xff]
  %v6296 = vld [vmem:[%s5 + $0x50] sm:$0xff]
  %v6297 = vld [vmem:[%s5 + $0x58] sm:$0xff]
  %v6298 = vld [vmem:[%s5 + $0x60] sm:$0xff]
  %v6299 = vld [vmem:[%s5 + $0x68] sm:$0xff]
  %v6300 = vld [vmem:[%s5 + $0x70] sm:$0xff]
  %v6301 = vld [vmem:[%s5 + $0x78] sm:$0xff]
  %v6302 = vlaneseq
  %v6303 = vshrl.u32 %v6302, 7
  %v6304 = vsub.s32 0, %v6303
  %v6305 = vrot.slane %v6269, %v6304
  %v6306 = vlaneseq
  %v6307 = vshrl.u32 %v6306, 7
  %v6308 = vsub.s32 0, %v6307
  %v6309 = vrot.slane %v6281, %v6308
  %v6310 = vlaneseq
  %v6311 = vshrl.u32 %v6310, 7
  %v6312 = vsub.s32 0, %v6311
  %v6313 = vrot.slane %v6270, %v6312
  %v6314 = vlaneseq
  %v6315 = vshrl.u32 %v6314, 7
  %v6316 = vsub.s32 0, %v6315
  %v6317 = vrot.slane %v6282, %v6316
  %v6318 = vlaneseq
  %v6319 = vshrl.u32 %v6318, 7
  %v6320 = vsub.s32 0, %v6319
  %v6321 = vrot.slane %v6271, %v6320
  %v6322 = vlaneseq
  %v6323 = vshrl.u32 %v6322, 7
  %v6324 = vsub.s32 0, %v6323
  %v6325 = vrot.slane %v6283, %v6324
  %v6326 = vlaneseq
  %v6327 = vshrl.u32 %v6326, 7
  %v6328 = vsub.s32 0, %v6327
  %v6329 = vrot.slane %v6272, %v6328
  %v6330 = vlaneseq
  %v6331 = vshrl.u32 %v6330, 7
  %v6332 = vsub.s32 0, %v6331
  %v6333 = vrot.slane %v6284, %v6332
  %vm6334 = vcmask 1041409
  %v6335 = vsel %vm6334, %v6309, %v6305
  %v6336 = vsel %vm4595, %v6313, %v6335
  %vm6337 = vcmask 1043459
  %v6338 = vsel %vm6337, %v6317, %v6336
  %v6339 = vsel %vm4597, %v6321, %v6338
  %vm6340 = vcmask 1045509
  %v6341 = vsel %vm6340, %v6325, %v6339
  %v6342 = vsel %vm4599, %v6329, %v6341
  %vm6343 = vcmask 1047559
  %v6344 = vsel %vm6343, %v6333, %v6342
  %6346 = vmatprep.subr.mxu0 0.0
  %6347 = vmatpush1.msra.mxu0 %v6301
  %6348 = vmatprep.subr.mxu0 0.0
  %6349 = vmatpush1.msra.mxu0 %v6300
  %6350 = vmatprep.subr.mxu0 0.0
  %6351 = vmatpush1.msra.mxu0 %v6299
  %6352 = vmatprep.subr.mxu0 0.0
  %6353 = vmatpush1.msra.mxu0 %v6298
  %6354 = vmatprep.subr.mxu0 0.0
  %6355 = vmatpush1.msra.mxu0 %v6297
  %6356 = vmatprep.subr.mxu0 0.0
  %6357 = vmatpush1.msra.mxu0 %v6296
  %6358 = vmatprep.subr.mxu0 0.0
  %6359 = vmatpush1.msra.mxu0 %v6295
  %6360 = vmatprep.subr.mxu0 0.0
  %6361 = vmatpush1.msra.mxu0 %v6294
  %6362 = vmatprep.subr.mxu0 0.0
  %6363 = vmatpush1.msra.mxu0 %v6293
  %6364 = vmatprep.subr.mxu0 0.0
  %6365 = vmatpush1.msra.mxu0 %v6292
  %6366 = vmatprep.subr.mxu0 0.0
  %6367 = vmatpush1.msra.mxu0 %v6291
  %6368 = vmatprep.subr.mxu0 0.0
  %6369 = vmatpush1.msra.mxu0 %v6290
  %6370 = vmatprep.subr.mxu0 0.0
  %6371 = vmatpush1.msra.mxu0 %v6289
  %6372 = vmatprep.subr.mxu0 0.0
  %6373 = vmatpush1.msra.mxu0 %v6288
  %6374 = vmatprep.subr.mxu0 0.0
  %6375 = vmatpush1.msra.mxu0 %v6287
  %6376 = vmatprep.subr.mxu0 0.0
  %6377 = vmatpush1.msra.mxu0 %v6286
  %6378 = vmatprep.subr.mxu0 0.0
  %6379 = vmatpush2.msra.mxu0 0.0
  %6380 = vmatprep.subr.mxu0 0.0
  %6381 = vmatpush2.msra.mxu0 0.0
  %6382 = vmatprep.subr.mxu0 0.0
  %6383 = vmatpush2.msra.mxu0 0.0
  %6384 = vmatprep.subr.mxu0 0.0
  %6385 = vmatpush2.msra.mxu0 0.0
  %6386 = vmatprep.subr.mxu0 0.0
  %6387 = vmatpush2.msra.mxu0 0.0
  %6388 = vmatprep.subr.mxu0 0.0
  %6389 = vmatpush2.msra.mxu0 0.0
  %6390 = vmatprep.subr.mxu0 0.0
  %6391 = vmatpush2.msra.mxu0 0.0
  %6392 = vmatprep.subr.mxu0 0.0
  %6393 = vmatpush2.msra.mxu0 0.0
  %6394 = vmatprep.subr.mxu0 0.0
  %6395 = vmatpush2.msra.mxu0 0.0
  %6396 = vmatprep.subr.mxu0 0.0
  %6397 = vmatpush2.msra.mxu0 0.0
  %6398 = vmatprep.subr.mxu0 0.0
  %6399 = vmatpush2.msra.mxu0 0.0
  %6400 = vmatprep.subr.mxu0 0.0
  %6401 = vmatpush2.msra.mxu0 0.0
  %6402 = vmatprep.subr.mxu0 0.0
  %6403 = vmatpush2.msra.mxu0 0.0
  %6404 = vmatprep.subr.mxu0 0.0
  %6405 = vmatpush2.msra.mxu0 0.0
  %6406 = vmatprep.subr.mxu0 0.0
  %6407 = vmatpush2.msra.mxu0 0.0
  %6408 = vmatprep.subr.mxu0 0.0
  %6409 = vmatpush2.msra.mxu0 0.0
  %6410 = vmatprep.mubr.f32.mxu0 0.0
  %6411 = vmatmul.mubr.f32.gmra.mxu0 %v6344
  %v6412 = vpop.f32.mrf.mxu0
  %v6413 = vadd.f32 0.0, %v6412
  %v6414 = vpop.f32.mrf.mxu0
  %6415 = vdwg.mxu0
  %v6417 = vlaneseq
  %v6418 = vshrl.u32 %v6417, 7
  %v6419 = vsub.s32 0, %v6418
  %v6420 = vrot.slane %v6285, %v6419
  %v6422 = vadd.f32 %v6420, %v6413
  %v6423 = vld [vmem:[%s5 + $0x80] sm:$0xff]
  %v6424 = vld [vmem:[%s5 + $0x88] sm:$0xff]
  %v6425 = vld [vmem:[%s5 + $0x90] sm:$0xff]
  %v6426 = vld [vmem:[%s5 + $0x98] sm:$0xff]
  %v6427 = vld [vmem:[%s5 + $0xa0] sm:$0xff]
  %v6428 = vld [vmem:[%s5 + $0xa8] sm:$0xff]
  %v6429 = vld [vmem:[%s5 + $0xb0] sm:$0xff]
  %v6430 = vld [vmem:[%s5 + $0xb8] sm:$0xff]
  %v6431 = vld [vmem:[%s5 + $0xc0] sm:$0xff]
  %v6432 = vld [vmem:[%s5 + $0xc8] sm:$0xff]
  %v6433 = vld [vmem:[%s5 + $0xd0] sm:$0xff]
  %v6434 = vld [vmem:[%s5 + $0xd8] sm:$0xff]
  %v6435 = vld [vmem:[%s5 + $0xe0] sm:$0xff]
  %v6436 = vld [vmem:[%s5 + $0xe8] sm:$0xff]
  %v6437 = vld [vmem:[%s5 + $0xf0] sm:$0xff]
  %v6438 = vld [vmem:[%s5 + $0xf8] sm:$0xff]
  %v6439 = vlaneseq
  %v6440 = vshrl.u32 %v6439, 7
  %v6441 = vsub.s32 1, %v6440
  %v6442 = vrot.slane %v6269, %v6441
  %v6443 = vlaneseq
  %v6444 = vshrl.u32 %v6443, 7
  %v6445 = vsub.s32 1, %v6444
  %v6446 = vrot.slane %v6281, %v6445
  %v6447 = vlaneseq
  %v6448 = vshrl.u32 %v6447, 7
  %v6449 = vsub.s32 1, %v6448
  %v6450 = vrot.slane %v6270, %v6449
  %v6451 = vlaneseq
  %v6452 = vshrl.u32 %v6451, 7
  %v6453 = vsub.s32 1, %v6452
  %v6454 = vrot.slane %v6282, %v6453
  %v6455 = vlaneseq
  %v6456 = vshrl.u32 %v6455, 7
  %v6457 = vsub.s32 1, %v6456
  %v6458 = vrot.slane %v6271, %v6457
  %v6459 = vlaneseq
  %v6460 = vshrl.u32 %v6459, 7
  %v6461 = vsub.s32 1, %v6460
  %v6462 = vrot.slane %v6283, %v6461
  %v6463 = vlaneseq
  %v6464 = vshrl.u32 %v6463, 7
  %v6465 = vsub.s32 1, %v6464
  %v6466 = vrot.slane %v6272, %v6465
  %v6467 = vlaneseq
  %v6468 = vshrl.u32 %v6467, 7
  %v6469 = vsub.s32 1, %v6468
  %v6470 = vrot.slane %v6284, %v6469
  %v6471 = vsel %vm6334, %v6446, %v6442
  %v6472 = vsel %vm4595, %v6450, %v6471
  %v6473 = vsel %vm6337, %v6454, %v6472
  %v6474 = vsel %vm4597, %v6458, %v6473
  %v6475 = vsel %vm6340, %v6462, %v6474
  %v6476 = vsel %vm4599, %v6466, %v6475
  %v6477 = vsel %vm6343, %v6470, %v6476
  %6479 = vmatprep.subr.mxu0 0.0
  %6480 = vmatpush1.msra.mxu0 %v6438
  %6481 = vmatprep.subr.mxu0 0.0
  %6482 = vmatpush1.msra.mxu0 %v6437
  %6483 = vmatprep.subr.mxu0 0.0
  %6484 = vmatpush1.msra.mxu0 %v6436
  %6485 = vmatprep.subr.mxu0 0.0
  %6486 = vmatpush1.msra.mxu0 %v6435
  %6487 = vmatprep.subr.mxu0 0.0
  %6488 = vmatpush1.msra.mxu0 %v6434
  %6489 = vmatprep.subr.mxu0 0.0
  %6490 = vmatpush1.msra.mxu0 %v6433
  %6491 = vmatprep.subr.mxu0 0.0
  %6492 = vmatpush1.msra.mxu0 %v6432
  %6493 = vmatprep.subr.mxu0 0.0
  %6494 = vmatpush1.msra.mxu0 %v6431
  %6495 = vmatprep.subr.mxu0 0.0
  %6496 = vmatpush1.msra.mxu0 %v6430
  %6497 = vmatprep.subr.mxu0 0.0
  %6498 = vmatpush1.msra.mxu0 %v6429
  %6499 = vmatprep.subr.mxu0 0.0
  %6500 = vmatpush1.msra.mxu0 %v6428
  %6501 = vmatprep.subr.mxu0 0.0
  %6502 = vmatpush1.msra.mxu0 %v6427
  %6503 = vmatprep.subr.mxu0 0.0
  %6504 = vmatpush1.msra.mxu0 %v6426
  %6505 = vmatprep.subr.mxu0 0.0
  %6506 = vmatpush1.msra.mxu0 %v6425
  %6507 = vmatprep.subr.mxu0 0.0
  %6508 = vmatpush1.msra.mxu0 %v6424
  %6509 = vmatprep.subr.mxu0 0.0
  %6510 = vmatpush1.msra.mxu0 %v6423
  %6511 = vmatprep.subr.mxu0 0.0
  %6512 = vmatpush2.msra.mxu0 0.0
  %6513 = vmatprep.subr.mxu0 0.0
  %6514 = vmatpush2.msra.mxu0 0.0
  %6515 = vmatprep.subr.mxu0 0.0
  %6516 = vmatpush2.msra.mxu0 0.0
  %6517 = vmatprep.subr.mxu0 0.0
  %6518 = vmatpush2.msra.mxu0 0.0
  %6519 = vmatprep.subr.mxu0 0.0
  %6520 = vmatpush2.msra.mxu0 0.0
  %6521 = vmatprep.subr.mxu0 0.0
  %6522 = vmatpush2.msra.mxu0 0.0
  %6523 = vmatprep.subr.mxu0 0.0
  %6524 = vmatpush2.msra.mxu0 0.0
  %6525 = vmatprep.subr.mxu0 0.0
  %6526 = vmatpush2.msra.mxu0 0.0
  %6527 = vmatprep.subr.mxu0 0.0
  %6528 = vmatpush2.msra.mxu0 0.0
  %6529 = vmatprep.subr.mxu0 0.0
  %6530 = vmatpush2.msra.mxu0 0.0
  %6531 = vmatprep.subr.mxu0 0.0
  %6532 = vmatpush2.msra.mxu0 0.0
  %6533 = vmatprep.subr.mxu0 0.0
  %6534 = vmatpush2.msra.mxu0 0.0
  %6535 = vmatprep.subr.mxu0 0.0
  %6536 = vmatpush2.msra.mxu0 0.0
  %6537 = vmatprep.subr.mxu0 0.0
  %6538 = vmatpush2.msra.mxu0 0.0
  %6539 = vmatprep.subr.mxu0 0.0
  %6540 = vmatpush2.msra.mxu0 0.0
  %6541 = vmatprep.subr.mxu0 0.0
  %6542 = vmatpush2.msra.mxu0 0.0
  %6543 = vmatprep.mubr.f32.mxu0 0.0
  %6544 = vmatmul.mubr.f32.gmra.mxu0 %v6477
  %v6545 = vpop.f32.mrf.mxu0
  %v6546 = vadd.f32 0.0, %v6545
  %v6547 = vpop.f32.mrf.mxu0
  %6548 = vdwg.mxu0
  %v6549 = vadd.f32 %v6422, %v6546
  %v6550 = vld [vmem:[%s5 + $0x100] sm:$0xff]
  %v6551 = vld [vmem:[%s5 + $0x108] sm:$0xff]
  %v6552 = vld [vmem:[%s5 + $0x110] sm:$0xff]
  %v6553 = vld [vmem:[%s5 + $0x118] sm:$0xff]
  %v6554 = vld [vmem:[%s5 + $0x120] sm:$0xff]
  %v6555 = vld [vmem:[%s5 + $0x128] sm:$0xff]
  %v6556 = vld [vmem:[%s5 + $0x130] sm:$0xff]
  %v6557 = vld [vmem:[%s5 + $0x138] sm:$0xff]
  %v6558 = vld [vmem:[%s5 + $0x140] sm:$0xff]
  %v6559 = vld [vmem:[%s5 + $0x148] sm:$0xff]
  %v6560 = vld [vmem:[%s5 + $0x150] sm:$0xff]
  %v6561 = vld [vmem:[%s5 + $0x158] sm:$0xff]
  %v6562 = vld [vmem:[%s5 + $0x160] sm:$0xff]
  %v6563 = vld [vmem:[%s5 + $0x168] sm:$0xff]
  %v6564 = vld [vmem:[%s5 + $0x170] sm:$0xff]
  %v6565 = vld [vmem:[%s5 + $0x178] sm:$0xff]
  %v6566 = vlaneseq
  %v6567 = vshrl.u32 %v6566, 7
  %v6568 = vsub.s32 2, %v6567
  %v6569 = vrot.slane %v6269, %v6568
  %v6570 = vlaneseq
  %v6571 = vshrl.u32 %v6570, 7
  %v6572 = vsub.s32 2, %v6571
  %v6573 = vrot.slane %v6281, %v6572
  %v6574 = vlaneseq
  %v6575 = vshrl.u32 %v6574, 7
  %v6576 = vsub.s32 2, %v6575
  %v6577 = vrot.slane %v6270, %v6576
  %v6578 = vlaneseq
  %v6579 = vshrl.u32 %v6578, 7
  %v6580 = vsub.s32 2, %v6579
  %v6581 = vrot.slane %v6282, %v6580
  %v6582 = vlaneseq
  %v6583 = vshrl.u32 %v6582, 7
  %v6584 = vsub.s32 2, %v6583
  %v6585 = vrot.slane %v6271, %v6584
  %v6586 = vlaneseq
  %v6587 = vshrl.u32 %v6586, 7
  %v6588 = vsub.s32 2, %v6587
  %v6589 = vrot.slane %v6283, %v6588
  %v6590 = vlaneseq
  %v6591 = vshrl.u32 %v6590, 7
  %v6592 = vsub.s32 2, %v6591
  %v6593 = vrot.slane %v6272, %v6592
  %v6594 = vlaneseq
  %v6595 = vshrl.u32 %v6594, 7
  %v6596 = vsub.s32 2, %v6595
  %v6597 = vrot.slane %v6284, %v6596
  %v6598 = vsel %vm6334, %v6573, %v6569
  %v6599 = vsel %vm4595, %v6577, %v6598
  %v6600 = vsel %vm6337, %v6581, %v6599
  %v6601 = vsel %vm4597, %v6585, %v6600
  %v6602 = vsel %vm6340, %v6589, %v6601
  %v6603 = vsel %vm4599, %v6593, %v6602
  %v6604 = vsel %vm6343, %v6597, %v6603
  %6606 = vmatprep.subr.mxu0 0.0
  %6607 = vmatpush1.msra.mxu0 %v6565
  %6608 = vmatprep.subr.mxu0 0.0
  %6609 = vmatpush1.msra.mxu0 %v6564
  %6610 = vmatprep.subr.mxu0 0.0
  %6611 = vmatpush1.msra.mxu0 %v6563
  %6612 = vmatprep.subr.mxu0 0.0
  %6613 = vmatpush1.msra.mxu0 %v6562
  %6614 = vmatprep.subr.mxu0 0.0
  %6615 = vmatpush1.msra.mxu0 %v6561
  %6616 = vmatprep.subr.mxu0 0.0
  %6617 = vmatpush1.msra.mxu0 %v6560
  %6618 = vmatprep.subr.mxu0 0.0
  %6619 = vmatpush1.msra.mxu0 %v6559
  %6620 = vmatprep.subr.mxu0 0.0
  %6621 = vmatpush1.msra.mxu0 %v6558
  %6622 = vmatprep.subr.mxu0 0.0
  %6623 = vmatpush1.msra.mxu0 %v6557
  %6624 = vmatprep.subr.mxu0 0.0
  %6625 = vmatpush1.msra.mxu0 %v6556
  %6626 = vmatprep.subr.mxu0 0.0
  %6627 = vmatpush1.msra.mxu0 %v6555
  %6628 = vmatprep.subr.mxu0 0.0
  %6629 = vmatpush1.msra.mxu0 %v6554
  %6630 = vmatprep.subr.mxu0 0.0
  %6631 = vmatpush1.msra.mxu0 %v6553
  %6632 = vmatprep.subr.mxu0 0.0
  %6633 = vmatpush1.msra.mxu0 %v6552
  %6634 = vmatprep.subr.mxu0 0.0
  %6635 = vmatpush1.msra.mxu0 %v6551
  %6636 = vmatprep.subr.mxu0 0.0
  %6637 = vmatpush1.msra.mxu0 %v6550
  %6638 = vmatprep.subr.mxu0 0.0
  %6639 = vmatpush2.msra.mxu0 0.0
  %6640 = vmatprep.subr.mxu0 0.0
  %6641 = vmatpush2.msra.mxu0 0.0
  %6642 = vmatprep.subr.mxu0 0.0
  %6643 = vmatpush2.msra.mxu0 0.0
  %6644 = vmatprep.subr.mxu0 0.0
  %6645 = vmatpush2.msra.mxu0 0.0
  %6646 = vmatprep.subr.mxu0 0.0
  %6647 = vmatpush2.msra.mxu0 0.0
  %6648 = vmatprep.subr.mxu0 0.0
  %6649 = vmatpush2.msra.mxu0 0.0
  %6650 = vmatprep.subr.mxu0 0.0
  %6651 = vmatpush2.msra.mxu0 0.0
  %6652 = vmatprep.subr.mxu0 0.0
  %6653 = vmatpush2.msra.mxu0 0.0
  %6654 = vmatprep.subr.mxu0 0.0
  %6655 = vmatpush2.msra.mxu0 0.0
  %6656 = vmatprep.subr.mxu0 0.0
  %6657 = vmatpush2.msra.mxu0 0.0
  %6658 = vmatprep.subr.mxu0 0.0
  %6659 = vmatpush2.msra.mxu0 0.0
  %6660 = vmatprep.subr.mxu0 0.0
  %6661 = vmatpush2.msra.mxu0 0.0
  %6662 = vmatprep.subr.mxu0 0.0
  %6663 = vmatpush2.msra.mxu0 0.0
  %6664 = vmatprep.subr.mxu0 0.0
  %6665 = vmatpush2.msra.mxu0 0.0
  %6666 = vmatprep.subr.mxu0 0.0
  %6667 = vmatpush2.msra.mxu0 0.0
  %6668 = vmatprep.subr.mxu0 0.0
  %6669 = vmatpush2.msra.mxu0 0.0
  %6670 = vmatprep.mubr.f32.mxu0 0.0
  %6671 = vmatmul.mubr.f32.gmra.mxu0 %v6604
  %v6672 = vpop.f32.mrf.mxu0
  %v6673 = vadd.f32 0.0, %v6672
  %v6674 = vpop.f32.mrf.mxu0
  %6675 = vdwg.mxu0
  %v6676 = vadd.f32 %v6549, %v6673
  %v6677 = vld [vmem:[%s5 + $0x180] sm:$0xff]
  %v6678 = vld [vmem:[%s5 + $0x188] sm:$0xff]
  %v6679 = vld [vmem:[%s5 + $0x190] sm:$0xff]
  %v6680 = vld [vmem:[%s5 + $0x198] sm:$0xff]
  %v6681 = vld [vmem:[%s5 + $0x1a0] sm:$0xff]
  %v6682 = vld [vmem:[%s5 + $0x1a8] sm:$0xff]
  %v6683 = vld [vmem:[%s5 + $0x1b0] sm:$0xff]
  %v6684 = vld [vmem:[%s5 + $0x1b8] sm:$0xff]
  %v6685 = vld [vmem:[%s5 + $0x1c0] sm:$0xff]
  %v6686 = vld [vmem:[%s5 + $0x1c8] sm:$0xff]
  %v6687 = vld [vmem:[%s5 + $0x1d0] sm:$0xff]
  %v6688 = vld [vmem:[%s5 + $0x1d8] sm:$0xff]
  %v6689 = vld [vmem:[%s5 + $0x1e0] sm:$0xff]
  %v6690 = vld [vmem:[%s5 + $0x1e8] sm:$0xff]
  %v6691 = vld [vmem:[%s5 + $0x1f0] sm:$0xff]
  %v6692 = vld [vmem:[%s5 + $0x1f8] sm:$0xff]
  %v6693 = vlaneseq
  %v6694 = vshrl.u32 %v6693, 7
  %v6695 = vsub.s32 3, %v6694
  %v6696 = vrot.slane %v6269, %v6695
  %v6697 = vlaneseq
  %v6698 = vshrl.u32 %v6697, 7
  %v6699 = vsub.s32 3, %v6698
  %v6700 = vrot.slane %v6281, %v6699
  %v6701 = vlaneseq
  %v6702 = vshrl.u32 %v6701, 7
  %v6703 = vsub.s32 3, %v6702
  %v6704 = vrot.slane %v6270, %v6703
  %v6705 = vlaneseq
  %v6706 = vshrl.u32 %v6705, 7
  %v6707 = vsub.s32 3, %v6706
  %v6708 = vrot.slane %v6282, %v6707
  %v6709 = vlaneseq
  %v6710 = vshrl.u32 %v6709, 7
  %v6711 = vsub.s32 3, %v6710
  %v6712 = vrot.slane %v6271, %v6711
  %v6713 = vlaneseq
  %v6714 = vshrl.u32 %v6713, 7
  %v6715 = vsub.s32 3, %v6714
  %v6716 = vrot.slane %v6283, %v6715
  %v6717 = vlaneseq
  %v6718 = vshrl.u32 %v6717, 7
  %v6719 = vsub.s32 3, %v6718
  %v6720 = vrot.slane %v6272, %v6719
  %v6721 = vlaneseq
  %v6722 = vshrl.u32 %v6721, 7
  %v6723 = vsub.s32 3, %v6722
  %v6724 = vrot.slane %v6284, %v6723
  %v6725 = vsel %vm6334, %v6700, %v6696
  %v6726 = vsel %vm4595, %v6704, %v6725
  %v6727 = vsel %vm6337, %v6708, %v6726
  %v6728 = vsel %vm4597, %v6712, %v6727
  %v6729 = vsel %vm6340, %v6716, %v6728
  %v6730 = vsel %vm4599, %v6720, %v6729
  %v6731 = vsel %vm6343, %v6724, %v6730
  %6733 = vmatprep.subr.mxu0 0.0
  %6734 = vmatpush1.msra.mxu0 %v6692
  %6735 = vmatprep.subr.mxu0 0.0
  %6736 = vmatpush1.msra.mxu0 %v6691
  %6737 = vmatprep.subr.mxu0 0.0
  %6738 = vmatpush1.msra.mxu0 %v6690
  %6739 = vmatprep.subr.mxu0 0.0
  %6740 = vmatpush1.msra.mxu0 %v6689
  %6741 = vmatprep.subr.mxu0 0.0
  %6742 = vmatpush1.msra.mxu0 %v6688
  %6743 = vmatprep.subr.mxu0 0.0
  %6744 = vmatpush1.msra.mxu0 %v6687
  %6745 = vmatprep.subr.mxu0 0.0
  %6746 = vmatpush1.msra.mxu0 %v6686
  %6747 = vmatprep.subr.mxu0 0.0
  %6748 = vmatpush1.msra.mxu0 %v6685
  %6749 = vmatprep.subr.mxu0 0.0
  %6750 = vmatpush1.msra.mxu0 %v6684
  %6751 = vmatprep.subr.mxu0 0.0
  %6752 = vmatpush1.msra.mxu0 %v6683
  %6753 = vmatprep.subr.mxu0 0.0
  %6754 = vmatpush1.msra.mxu0 %v6682
  %6755 = vmatprep.subr.mxu0 0.0
  %6756 = vmatpush1.msra.mxu0 %v6681
  %6757 = vmatprep.subr.mxu0 0.0
  %6758 = vmatpush1.msra.mxu0 %v6680
  %6759 = vmatprep.subr.mxu0 0.0
  %6760 = vmatpush1.msra.mxu0 %v6679
  %6761 = vmatprep.subr.mxu0 0.0
  %6762 = vmatpush1.msra.mxu0 %v6678
  %6763 = vmatprep.subr.mxu0 0.0
  %6764 = vmatpush1.msra.mxu0 %v6677
  %6765 = vmatprep.subr.mxu0 0.0
  %6766 = vmatpush2.msra.mxu0 0.0
  %6767 = vmatprep.subr.mxu0 0.0
  %6768 = vmatpush2.msra.mxu0 0.0
  %6769 = vmatprep.subr.mxu0 0.0
  %6770 = vmatpush2.msra.mxu0 0.0
  %6771 = vmatprep.subr.mxu0 0.0
  %6772 = vmatpush2.msra.mxu0 0.0
  %6773 = vmatprep.subr.mxu0 0.0
  %6774 = vmatpush2.msra.mxu0 0.0
  %6775 = vmatprep.subr.mxu0 0.0
  %6776 = vmatpush2.msra.mxu0 0.0
  %6777 = vmatprep.subr.mxu0 0.0
  %6778 = vmatpush2.msra.mxu0 0.0
  %6779 = vmatprep.subr.mxu0 0.0
  %6780 = vmatpush2.msra.mxu0 0.0
  %6781 = vmatprep.subr.mxu0 0.0
  %6782 = vmatpush2.msra.mxu0 0.0
  %6783 = vmatprep.subr.mxu0 0.0
  %6784 = vmatpush2.msra.mxu0 0.0
  %6785 = vmatprep.subr.mxu0 0.0
  %6786 = vmatpush2.msra.mxu0 0.0
  %6787 = vmatprep.subr.mxu0 0.0
  %6788 = vmatpush2.msra.mxu0 0.0
  %6789 = vmatprep.subr.mxu0 0.0
  %6790 = vmatpush2.msra.mxu0 0.0
  %6791 = vmatprep.subr.mxu0 0.0
  %6792 = vmatpush2.msra.mxu0 0.0
  %6793 = vmatprep.subr.mxu0 0.0
  %6794 = vmatpush2.msra.mxu0 0.0
  %6795 = vmatprep.subr.mxu0 0.0
  %6796 = vmatpush2.msra.mxu0 0.0
  %6797 = vmatprep.mubr.f32.mxu0 0.0
  %6798 = vmatmul.mubr.f32.gmra.mxu0 %v6731
  %v6799 = vpop.f32.mrf.mxu0
  %v6800 = vadd.f32 0.0, %v6799
  %v6801 = vpop.f32.mrf.mxu0
  %6802 = vdwg.mxu0
  %v6803 = vadd.f32 %v6676, %v6800
  %v6804 = vmax.f32 %v6803, 0.0
  %v6805 = vld [vmem:[%s7] sm:$0xff]
  %v6806 = vld [vmem:[%s7 + $0x8] sm:$0xff]
  %v6807 = vld [vmem:[%s7 + $0x10] sm:$0xff]
  %v6808 = vld [vmem:[%s7 + $0x18] sm:$0xff]
  %v6809 = vld [vmem:[%s7 + $0x20] sm:$0xff]
  %v6810 = vld [vmem:[%s7 + $0x28] sm:$0xff]
  %v6811 = vld [vmem:[%s7 + $0x30] sm:$0xff]
  %v6812 = vld [vmem:[%s7 + $0x38] sm:$0xff]
  %v6813 = vld [vmem:[%s8] sm:$0x1]
  %v6815 = vlaneseq
  %v6816 = vshrl.u32 %v6815, 7
  %v6817 = vsub.s32 0, %v6816
  %v6818 = vrot.slane %v6813, %v6817
  %vm6820 = vcmask 523264
  %v6822 = vsel %vm6820, %v6804, 0
  %6824 = vmatprep.subr.mxu0 0.0
  %6825 = vmatpush1.msra.mxu0 0.0
  %6826 = vmatprep.subr.mxu0 0.0
  %6827 = vmatpush1.msra.mxu0 0.0
  %6828 = vmatprep.subr.mxu0 0.0
  %6829 = vmatpush1.msra.mxu0 0.0
  %6830 = vmatprep.subr.mxu0 0.0
  %6831 = vmatpush1.msra.mxu0 0.0
  %6832 = vmatprep.subr.mxu0 0.0
  %6833 = vmatpush1.msra.mxu0 0.0
  %6834 = vmatprep.subr.mxu0 0.0
  %6835 = vmatpush1.msra.mxu0 0.0
  %6836 = vmatprep.subr.mxu0 0.0
  %6837 = vmatpush1.msra.mxu0 0.0
  %6838 = vmatprep.subr.mxu0 0.0
  %6839 = vmatpush1.msra.mxu0 0.0
  %6840 = vmatprep.subr.mxu0 0.0
  %6841 = vmatpush1.msra.mxu0 %v6812
  %6842 = vmatprep.subr.mxu0 0.0
  %6843 = vmatpush1.msra.mxu0 %v6811
  %6844 = vmatprep.subr.mxu0 0.0
  %6845 = vmatpush1.msra.mxu0 %v6810
  %6846 = vmatprep.subr.mxu0 0.0
  %6847 = vmatpush1.msra.mxu0 %v6809
  %6848 = vmatprep.subr.mxu0 0.0
  %6849 = vmatpush1.msra.mxu0 %v6808
  %6850 = vmatprep.subr.mxu0 0.0
  %6851 = vmatpush1.msra.mxu0 %v6807
  %6852 = vmatprep.subr.mxu0 0.0
  %6853 = vmatpush1.msra.mxu0 %v6806
  %6854 = vmatprep.subr.mxu0 0.0
  %6855 = vmatpush1.msra.mxu0 %v6805
  %6856 = vmatprep.subr.mxu0 0.0
  %6857 = vmatpush2.msra.mxu0 0.0
  %6858 = vmatprep.subr.mxu0 0.0
  %6859 = vmatpush2.msra.mxu0 0.0
  %6860 = vmatprep.subr.mxu0 0.0
  %6861 = vmatpush2.msra.mxu0 0.0
  %6862 = vmatprep.subr.mxu0 0.0
  %6863 = vmatpush2.msra.mxu0 0.0
  %6864 = vmatprep.subr.mxu0 0.0
  %6865 = vmatpush2.msra.mxu0 0.0
  %6866 = vmatprep.subr.mxu0 0.0
  %6867 = vmatpush2.msra.mxu0 0.0
  %6868 = vmatprep.subr.mxu0 0.0
  %6869 = vmatpush2.msra.mxu0 0.0
  %6870 = vmatprep.subr.mxu0 0.0
  %6871 = vmatpush2.msra.mxu0 0.0
  %6872 = vmatprep.subr.mxu0 0.0
  %6873 = vmatpush2.msra.mxu0 0.0
  %6874 = vmatprep.subr.mxu0 0.0
  %6875 = vmatpush2.msra.mxu0 0.0
  %6876 = vmatprep.subr.mxu0 0.0
  %6877 = vmatpush2.msra.mxu0 0.0
  %6878 = vmatprep.subr.mxu0 0.0
  %6879 = vmatpush2.msra.mxu0 0.0
  %6880 = vmatprep.subr.mxu0 0.0
  %6881 = vmatpush2.msra.mxu0 0.0
  %6882 = vmatprep.subr.mxu0 0.0
  %6883 = vmatpush2.msra.mxu0 0.0
  %6884 = vmatprep.subr.mxu0 0.0
  %6885 = vmatpush2.msra.mxu0 0.0
  %6886 = vmatprep.subr.mxu0 0.0
  %6887 = vmatpush2.msra.mxu0 0.0
  %6888 = vmatprep.mubr.f32.mxu0 0.0
  %6889 = vmatmul.mubr.f32.gmra.mxu0 %v6822
  %v6890 = vpop.f32.mrf.mxu0
  %v6891 = vadd.f32 %v6818, %v6890
  %v6892 = vpop.f32.mrf.mxu0
  %6893 = vdwg.mxu0
  %6894 = vst [vmem:[%s10] sm:$0xff] %v6891
  // Predicated region
  $region38: #{cnn_mnist_forward.1} parent=0 // pred_check
    _
  $region39: #{cnn_mnist_forward.1} parent=0 // pred_check_branch
    %6896 = sbr.rel (0) target = $region41
  $region40: #{cnn_mnist_forward.1} parent=0 // pred_region
    _
  $region41: #{cnn_mnist_forward.1} parent=0 // pred_fallthru
    _
  // Predicated region
  $region42: #{cnn_mnist_forward.1} parent=0 // pred_check
    _
  $region43: #{cnn_mnist_forward.1} parent=0 // pred_check_branch
    %6898 = sbr.rel (0) target = $region45
  $region44: #{cnn_mnist_forward.1} parent=0 // pred_region
    _
  $region45: #{cnn_mnist_forward.1} parent=0 // pred_fallthru
    _
  // Predicated region
  $region46: #{cnn_mnist_forward.1} parent=0 // pred_check
    _
  $region47: #{cnn_mnist_forward.1} parent=0 // pred_check_branch
    %6900 = sbr.rel (0) target = $region49
  $region48: #{cnn_mnist_forward.1} parent=0 // pred_region
    _
  $region49: #{cnn_mnist_forward.1} parent=0 // pred_fallthru
    _
  // Predicated region
  $region50: #{cnn_mnist_forward.1} parent=0 // pred_check
    _
  $region51: #{cnn_mnist_forward.1} parent=0 // pred_check_branch
    %6902 = sbr.rel (0) target = $region53
  $region52: #{cnn_mnist_forward.1} parent=0 // pred_region
    _
  $region53: #{cnn_mnist_forward.1} parent=0 // pred_fallthru
    _

</llo_original>
